<compile_context>
chip_gen: v5e
topology: v5e:2x2
jax: 0.10.0
libtpu: 0.0.40
codegen_flags: <defaults>
</compile_context>

<pallas_src>
import numpy as np

import jax
import jax.numpy as jnp
from jax import lax
from jax.experimental import pallas as pl
from jax.experimental.pallas import tpu as pltpu

# ----------------------------- configuration ------------------------------ #
IN_CHANNELS = (16, 16, 32)          # per-level channels of the 3 input maps
IN_SPATIAL = (16, 8, 4)             # per-level H (=W)
BATCH = 2
HAM_CHANNELS = 64                   # "ham_channels" (small synthetic size)
CHANNELS = 64                       # "channels" (== ham_channels, see note)
GN_GROUPS = 32                      # nn.GroupNorm(32, ...)
NUM_CLASSES = 2
MD_S = 1                            # NMF2D MD_S
MD_R = 16                           # NMF2D MD_R (small synthetic size)
NMF_STEPS = 6                       # train_steps (fresh module is training)
GN_EPS = 1e-5
NMF_EPS = 1e-6

C0, C1, C2 = IN_CHANNELS
C_CAT = sum(IN_CHANNELS)
CG = HAM_CHANNELS // GN_GROUPS      # channels per GroupNorm group (= 2)
N_OUT = IN_SPATIAL[0] * IN_SPATIAL[0]
# Packing the four 1x1 conv weights into one slab requires equal widths.
assert C_CAT == HAM_CHANNELS == CHANNELS


# ----------------------- bilinear interpolation matrices ------------------- #
def _bilinear_1d(s_in, s_out):
    """1-D interpolation matrix matching F.interpolate(bilinear, align_corners=False)."""
    a = np.zeros((s_out, s_in), dtype=np.float32)
    scale = s_in / s_out
    for d in range(s_out):
        src = max((d + 0.5) * scale - 0.5, 0.0)
        i0 = min(int(np.floor(src)), s_in - 1)
        i1 = min(i0 + 1, s_in - 1)
        w1 = src - i0
        a[d, i0] += 1.0 - w1
        a[d, i1] += w1
    return a


def _resize_matrix(s_in, s_out):
    """P (s_in*s_in, s_out*s_out) such that flat_out = flat_in @ P (row-major H*W)."""
    a = _bilinear_1d(s_in, s_out)                         # (s_out, s_in)
    p = np.einsum("yi,xj->ijyx", a, a).reshape(s_in * s_in, s_out * s_out)
    return jnp.asarray(p, dtype=jnp.float32)


def _group_pair_matrix():
    """(C, C) 0/1 matrix: pair[i, j] = 1 iff channels i, j share a GN group."""
    g = np.arange(HAM_CHANNELS) // CG
    return jnp.asarray((g[:, None] == g[None, :]).astype(np.float32))


# ------------------------------ kernel helpers ----------------------------- #
def _mm(a, b):                    # a @ b
    return jnp.dot(a, b, preferred_element_type=jnp.float32)


def _mm_ta(a, b):                 # a.T @ b   (contract dim0 with dim0)
    return lax.dot_general(a, b, (((0,), (0,)), ((), ())),
                           preferred_element_type=jnp.float32)


def _mm_tb(a, b):                 # a @ b.T   (contract dim1 with dim1)
    return lax.dot_general(a, b, (((1,), (1,)), ((), ())),
                           preferred_element_type=jnp.float32)


def _group_norm(y, gamma, beta, pair, bb, n):
    """GroupNorm on y:(C, bb*n) without relayouting the big activation.

    Per-channel sum / sum-of-squares are lane reductions on the dense (C, n)
    slices; channel pairs of a group are combined with a tiny (C, C) 0/1
    pairing matmul applied to the (C, 2*bb) stats slab.  Stats are per sample.
    """
    stats = []
    for b in range(bb):
        yb = y[:, b * n:(b + 1) * n]
        stats.append(jnp.sum(yb, axis=1, keepdims=True))          # (C, 1)
        stats.append(jnp.sum(yb * yb, axis=1, keepdims=True))     # (C, 1)
    st = jnp.concatenate(stats, axis=1)                           # (C, 2*bb)
    gst = _mm(pair, st)                                           # per-channel group sums
    inv_cnt = 1.0 / float(CG * n)
    outs = []
    for b in range(bb):
        mean = gst[:, 2 * b:2 * b + 1] * inv_cnt
        var = gst[:, 2 * b + 1:2 * b + 2] * inv_cnt - mean * mean
        yb = y[:, b * n:(b + 1) * n]
        outs.append((yb - mean) * lax.rsqrt(var + GN_EPS))
    yn = outs[0] if bb == 1 else jnp.concatenate(outs, axis=1)
    return yn * gamma + beta


def _nmf(x, bases_t, steps):
    """NMF2D (spatial=True, S=1) on x:(D, N), f32.

    bases held transposed as (R, D) and coef as (R, N): D and N stay in the
    lane axis, R in sublanes; contractions are MXU-native.  Exact division
    (matches the PyTorch reference)."""
    s = _mm(bases_t, x)                                    # (R, N) == (x^T @ bases)^T
    m = jnp.max(s, axis=0, keepdims=True)
    e = jnp.exp(s - m)
    coef_t = e / jnp.sum(e, axis=0, keepdims=True)         # softmax over R (inv_t = 1)

    num_t = s                                              # bases unchanged -> reuse as iter-0 numerator
    for _ in range(steps):                                 # fully unrolled
        # coef update: coef *= (x^T@bases) / (coef @ (bases^T@bases) + eps)
        gram_b = _mm_tb(bases_t, bases_t)                  # (R, R), symmetric
        den_t = _mm(gram_b, coef_t)                        # (R, N)
        coef_t = coef_t * num_t / (den_t + NMF_EPS)
        # bases update: bases *= (x@coef) / (bases @ (coef^T@coef) + eps)
        num_b = _mm_tb(coef_t, x)                          # (R, D)
        gram_c = _mm_tb(coef_t, coef_t)                    # (R, R), symmetric
        den_b = _mm(gram_c, bases_t)                       # (R, D)
        bases_t = bases_t * num_b / (den_b + NMF_EPS)
        num_t = _mm(bases_t, x)                            # numerator for next coef update

    # compute_coef: one extra coef update with the final bases.
    gram_b = _mm_tb(bases_t, bases_t)
    den_t = _mm(gram_b, coef_t)
    coef_t = coef_t * num_t / (den_t + NMF_EPS)

    # reconstruction: bases @ coef^T -> (D, N)
    return _mm_ta(bases_t, coef_t)


# ------------------------------ fused kernel ------------------------------- #
# Packed parameter slab columns (prm, f32):
#   0 squeeze_b  1 squeeze_g  2 squeeze_beta
#   3 ham_in_b
#   4 ham_out_b  5 ham_out_g  6 ham_out_beta
#   7 align_b    8 align_g    9 align_beta
def make_fused_head_kernel(bb):
    n = N_OUT

    def kernel(x0_ref, x1_ref, x2_ref, p1_ref, p2_ref, w4_ref, prm_ref,
               clswb_ref, pair_ref, bases_ref, o_ref):
        prm = prm_ref[...]                                 # (C, 10) f32
        pair = pair_ref[...]                               # (C, C)  f32
        w_sq = w4_ref[0]                                   # (C, C_cat) bf16
        w_hin = w4_ref[1]
        w_hout = w4_ref[2]
        w_al = w4_ref[3]

        # --- bilinear resize (precomputed matrices, batch folded into sublanes) ---
        r1 = _mm(x1_ref[...].reshape(bb * C1, -1), p1_ref[...]).astype(jnp.bfloat16)
        r2 = _mm(x2_ref[...].reshape(bb * C2, -1), p2_ref[...]).astype(jnp.bfloat16)

        # --- concat levels along channels, batches along lanes: (C_cat, bb*N) ---
        cats = []
        for b in range(bb):
            cats.append(jnp.concatenate(
                [x0_ref[b],                                # level 0: identity resize
                 r1[b * C1:(b + 1) * C1],
                 r2[b * C2:(b + 1) * C2]], axis=0))
        cat = cats[0] if bb == 1 else jnp.concatenate(cats, axis=1)

        # --- squeeze: single K=C_cat 1x1 conv + GroupNorm + ReLU ---
        h = _mm(w_sq, cat) + prm[:, 0:1]
        h = _group_norm(h, prm[:, 1:2], prm[:, 2:3], pair, bb, n)
        x = jnp.maximum(h, 0.0)                            # (C, bb*N) f32

        # --- Hamburger: ham_in 1x1 conv + ReLU ---
        enjoy = jnp.maximum(_mm(w_hin, x.astype(jnp.bfloat16)) + prm[:, 3:4], 0.0)

        # --- NMF2D (spatial=True, S=1), per sample, f32 ---
        recs = []
        for b in range(bb):
            recs.append(_nmf(enjoy[:, b * n:(b + 1) * n], bases_ref[b], NMF_STEPS))
        recon = recs[0] if bb == 1 else jnp.concatenate(recs, axis=1)

        # --- ham_out 1x1 conv + GroupNorm, residual add, ReLU ---
        z = _mm(w_hout, recon.astype(jnp.bfloat16)) + prm[:, 4:5]
        z = _group_norm(z, prm[:, 5:6], prm[:, 6:7], pair, bb, n)
        ham = jnp.maximum(x + z, 0.0)

        # --- align 1x1 conv + GroupNorm + ReLU ---
        a = _mm(w_al, ham.astype(jnp.bfloat16)) + prm[:, 7:8]
        a = _group_norm(a, prm[:, 8:9], prm[:, 9:10], pair, bb, n)
        a = jnp.maximum(a, 0.0)

        # --- cls_seg: dropout (identity) + 1x1 conv ---
        # TODO(synk): cls_seg is inherited from mmseg BaseDecodeHead (not in the
        # snippet); implemented as dropout(identity) + Conv2d(channels, num_classes, 1).
        cwb = clswb_ref[...]                               # (nc, C+1) f32
        logits = _mm(cwb[:, :CHANNELS].astype(jnp.bfloat16),
                     a.astype(jnp.bfloat16)) + cwb[:, CHANNELS:]
        for b in range(bb):
            o_ref[b] = logits[:, b * n:(b + 1) * n]

    return kernel


# ------------------------------ parameters --------------------------------- #
def init_params(key):
    ks = jax.random.split(key, 10)

    def w(k, co, ci):
        return (0.1 * jax.random.normal(k, (co, ci))).astype(jnp.float32)

    def b(k, co):
        return (0.01 * jax.random.normal(k, (co,))).astype(jnp.float32)

    squeeze_w = w(ks[0], HAM_CHANNELS, C_CAT)
    squeeze_b = b(ks[1], HAM_CHANNELS)
    ham_in_w = w(ks[2], HAM_CHANNELS, HAM_CHANNELS)
    ham_in_b = b(ks[3], HAM_CHANNELS)
    ham_out_w = w(ks[4], HAM_CHANNELS, HAM_CHANNELS)
    ham_out_b = b(ks[5], HAM_CHANNELS)
    align_w = w(ks[6], CHANNELS, HAM_CHANNELS)
    align_b = b(ks[7], CHANNELS)
    cls_w = w(ks[8], NUM_CLASSES, CHANNELS)
    cls_b = b(ks[9], NUM_CLASSES)

    ones = jnp.ones((HAM_CHANNELS,), jnp.float32)
    zeros = jnp.zeros((HAM_CHANNELS,), jnp.float32)

    # MXU-operand weights stored bf16 (f32 accumulation in-kernel); biases /
    # GN affine stay f32 (they are VPU operands on f32 activations).
    w4 = jnp.stack([squeeze_w, ham_in_w, ham_out_w, align_w],
                   axis=0).astype(jnp.bfloat16)                         # (4, C, C)
    prm = jnp.stack([squeeze_b, ones, zeros,          # squeeze b / gamma / beta
                     ham_in_b,                        # ham_in b
                     ham_out_b, ones, zeros,          # ham_out b / gamma / beta
                     align_b, ones, zeros],           # align  b / gamma / beta
                    axis=1).astype(jnp.float32)       # (C, 10)
    clswb = jnp.concatenate([cls_w, cls_b[:, None]], axis=1)            # (nc, C+1) f32
    return dict(w4=w4, prm=prm, clswb=clswb)


# ------------------------------- forward ----------------------------------- #
def _batches_per_step():
    """v5e/v6e (single TensorCore): fold all batches into one grid step
    (batch merged along the lane axis).  v7x (2 TCs/chip): keep grid=(B,) so
    the 'parallel' grid shards across TensorCores."""
    try:
        kind = jax.devices()[0].device_kind.lower().replace(" ", "")
    except Exception:
        kind = ""
    multi_tc = ("v7" in kind) or ("tpu7" in kind)
    return 1 if multi_tc else BATCH


def light_ham_head_forward(inputs, params, bases_key, bb=None):
    B, _, H, W = inputs[0].shape
    N = H * W
    assert N == N_OUT and B == BATCH
    if bb is None:
        bb = _batches_per_step()
    assert B % bb == 0

    # Flatten each level (NCHW -> (B, C, H*W)); bf16 MXU operands.
    x0 = inputs[0].astype(jnp.bfloat16).reshape(B, C0, N)
    x1 = inputs[1].astype(jnp.bfloat16).reshape(B, C1, IN_SPATIAL[1] * IN_SPATIAL[1])
    x2 = inputs[2].astype(jnp.bfloat16).reshape(B, C2, IN_SPATIAL[2] * IN_SPATIAL[2])
    n1, n2 = x1.shape[-1], x2.shape[-1]

    # Precomputed bilinear (align_corners=False) interpolation matrices.
    # Their weights are multiples of 1/8 -> exactly representable in bf16.
    p1 = _resize_matrix(IN_SPATIAL[1], H).astype(jnp.bfloat16)           # (n1, N)
    p2 = _resize_matrix(IN_SPATIAL[2], H).astype(jnp.bfloat16)           # (n2, N)
    pair = _group_pair_matrix()                                          # (C, C) f32

    # NMF2D rand_init bases, held transposed as (B, R, D); F.normalize over D.
    assert MD_S == 1
    D = HAM_CHANNELS // MD_S
    bases0 = jax.random.uniform(bases_key, (B * MD_S, MD_R, D), dtype=jnp.float32)
    bases0 = bases0 / jnp.sqrt(jnp.sum(bases0 * bases0, axis=2, keepdims=True) + 1e-12)

    # Advisory cost hint: the kernel is tiny / latency-bound.
    flops_per_batch = (
        2 * N * (C1 * n1 + C2 * n2)                                      # resize matmuls
        + 4 * 2 * HAM_CHANNELS * C_CAT * N                               # 4 conv stages
        + 2 * NUM_CLASSES * CHANNELS * N                                 # cls_seg
        + (NMF_STEPS + 2) * (4 * MD_R * HAM_CHANNELS * N
                             + 4 * MD_R * MD_R * (N + HAM_CHANNELS)))    # NMF (approx)
    cost = pl.CostEstimate(
        flops=int(B * flops_per_batch),
        transcendentals=int(B * (MD_R * N + 6 * HAM_CHANNELS)),
        bytes_accessed=int(
            2 * (x0.size + x1.size + x2.size + p1.size + p2.size + params["w4"].size)
            + 4 * (params["prm"].size + params["clswb"].size + pair.size + bases0.size)
            + 4 * B * NUM_CLASSES * N),
    )

    out = pl.pallas_call(
        make_fused_head_kernel(bb),
        out_shape=jax.ShapeDtypeStruct((B, NUM_CLASSES, N), jnp.float32),
        grid=(B // bb,),
        in_specs=[
            pl.BlockSpec((bb, C0, N), lambda g: (g, 0, 0)),
            pl.BlockSpec((bb, C1, n1), lambda g: (g, 0, 0)),
            pl.BlockSpec((bb, C2, n2), lambda g: (g, 0, 0)),
            pl.BlockSpec((n1, N), lambda g: (0, 0)),
            pl.BlockSpec((n2, N), lambda g: (0, 0)),
            pl.BlockSpec((4, HAM_CHANNELS, C_CAT), lambda g: (0, 0, 0)),
            pl.BlockSpec((HAM_CHANNELS, 10), lambda g: (0, 0)),
            pl.BlockSpec((NUM_CLASSES, CHANNELS + 1), lambda g: (0, 0)),
            pl.BlockSpec((HAM_CHANNELS, HAM_CHANNELS), lambda g: (0, 0)),
            pl.BlockSpec((bb, MD_R, D), lambda g: (g, 0, 0)),
        ],
        out_specs=pl.BlockSpec((bb, NUM_CLASSES, N), lambda g: (g, 0, 0)),
        compiler_params=pltpu.CompilerParams(
            dimension_semantics=("parallel",)),
        cost_estimate=cost,
    )(x0, x1, x2, p1, p2, params["w4"], params["prm"], params["clswb"],
      pair, bases0)

    return out.reshape(B, NUM_CLASSES, H, W)


# --------------------------------- main ------------------------------------ #
if __name__ == "__main__":
    key = jax.random.PRNGKey(0)
    k_in, k_param, k_bases = jax.random.split(key, 3)
    in_keys = jax.random.split(k_in, len(IN_CHANNELS))

    inputs = [
        jax.random.normal(in_keys[i], (BATCH, IN_CHANNELS[i], IN_SPATIAL[i],
                                       IN_SPATIAL[i]), dtype=jnp.float32)
        for i in range(len(IN_CHANNELS))
    ]
    params = init_params(k_param)

    out = light_ham_head_forward(inputs, params, k_bases)
    out = jax.block_until_ready(out)

    assert out.shape == (BATCH, NUM_CLASSES, IN_SPATIAL[0], IN_SPATIAL[0])
    assert bool(jnp.all(jnp.isfinite(out)))
    print("KERNEL_OK")
</pallas_src>

<mosaic_0001>
module attributes {stable_mosaic.version = 11 : i64} {
  func.func @kernel(%arg0: i32, %arg1: memref<2x16x256xbf16, #tpu.memory_space<vmem>>, %arg2: memref<2x16x64xbf16, #tpu.memory_space<vmem>>, %arg3: memref<2x32x16xbf16, #tpu.memory_space<vmem>>, %arg4: memref<64x256xbf16, #tpu.memory_space<vmem>>, %arg5: memref<16x256xbf16, #tpu.memory_space<vmem>>, %arg6: memref<4x64x64xbf16, #tpu.memory_space<vmem>>, %arg7: memref<64x10xf32, #tpu.memory_space<vmem>>, %arg8: memref<2x65xf32, #tpu.memory_space<vmem>>, %arg9: memref<64x64xf32, #tpu.memory_space<vmem>>, %arg10: memref<2x16x64xf32, #tpu.memory_space<vmem>>, %arg11: memref<2x2x256xf32, #tpu.memory_space<vmem>>) attributes {dimension_semantics = [#tpu.dimension_semantics<parallel>], iteration_bounds = array<i64: 1>, scalar_prefetch = 0 : i64, scratch_operands = 0 : i64, tpu.core_type = #tpu.core_type<tc>, window_params = [{transform_indices = @transform_0, window_bounds = array<i64: 2, 16, 256>}, {transform_indices = @transform_1, window_bounds = array<i64: 2, 16, 64>}, {transform_indices = @transform_2, window_bounds = array<i64: 2, 32, 16>}, {pipeline_mode = #tpu.pipeline_mode<synchronous>, transform_indices = @transform_3, window_bounds = array<i64: 64, 256>}, {pipeline_mode = #tpu.pipeline_mode<synchronous>, transform_indices = @transform_4, window_bounds = array<i64: 16, 256>}, {pipeline_mode = #tpu.pipeline_mode<synchronous>, transform_indices = @transform_5, window_bounds = array<i64: 4, 64, 64>}, {pipeline_mode = #tpu.pipeline_mode<synchronous>, transform_indices = @transform_6, window_bounds = array<i64: 64, 10>}, {pipeline_mode = #tpu.pipeline_mode<synchronous>, transform_indices = @transform_7, window_bounds = array<i64: 2, 65>}, {pipeline_mode = #tpu.pipeline_mode<synchronous>, transform_indices = @transform_8, window_bounds = array<i64: 64, 64>}, {transform_indices = @transform_9, window_bounds = array<i64: 2, 16, 64>}, {transform_indices = @transform_10, window_bounds = array<i64: 2, 2, 256>}]} {
    %c0 = arith.constant 0 : index
    %c0_0 = arith.constant 0 : index
    %0 = vector.load %arg7[%c0, %c0_0] : memref<64x10xf32, #tpu.memory_space<vmem>>, vector<64x10xf32>
    %c0_1 = arith.constant 0 : index
    %c0_2 = arith.constant 0 : index
    %1 = vector.load %arg9[%c0_1, %c0_2] : memref<64x64xf32, #tpu.memory_space<vmem>>, vector<64x64xf32>
    %c0_3 = arith.constant 0 : index
    %c0_4 = arith.constant 0 : index
    %c0_5 = arith.constant 0 : index
    %2 = vector.load %arg6[%c0_3, %c0_4, %c0_5] : memref<4x64x64xbf16, #tpu.memory_space<vmem>>, vector<1x64x64xbf16>
    %3 = vector.shape_cast %2 : vector<1x64x64xbf16> to vector<64x64xbf16>
    %c1 = arith.constant 1 : index
    %c0_6 = arith.constant 0 : index
    %c0_7 = arith.constant 0 : index
    %4 = vector.load %arg6[%c1, %c0_6, %c0_7] : memref<4x64x64xbf16, #tpu.memory_space<vmem>>, vector<1x64x64xbf16>
    %5 = vector.shape_cast %4 : vector<1x64x64xbf16> to vector<64x64xbf16>
    %c2 = arith.constant 2 : index
    %c0_8 = arith.constant 0 : index
    %c0_9 = arith.constant 0 : index
    %6 = vector.load %arg6[%c2, %c0_8, %c0_9] : memref<4x64x64xbf16, #tpu.memory_space<vmem>>, vector<1x64x64xbf16>
    %7 = vector.shape_cast %6 : vector<1x64x64xbf16> to vector<64x64xbf16>
    %c3 = arith.constant 3 : index
    %c0_10 = arith.constant 0 : index
    %c0_11 = arith.constant 0 : index
    %8 = vector.load %arg6[%c3, %c0_10, %c0_11] : memref<4x64x64xbf16, #tpu.memory_space<vmem>>, vector<1x64x64xbf16>
    %9 = vector.shape_cast %8 : vector<1x64x64xbf16> to vector<64x64xbf16>
    %c0_12 = arith.constant 0 : index
    %c0_13 = arith.constant 0 : index
    %c0_14 = arith.constant 0 : index
    %10 = vector.load %arg2[%c0_12, %c0_13, %c0_14] : memref<2x16x64xbf16, #tpu.memory_space<vmem>>, vector<2x16x64xbf16>
    %11 = vector.shape_cast %10 : vector<2x16x64xbf16> to vector<32x64xbf16>
    %c0_15 = arith.constant 0 : index
    %c0_16 = arith.constant 0 : index
    %12 = vector.load %arg4[%c0_15, %c0_16] : memref<64x256xbf16, #tpu.memory_space<vmem>>, vector<64x256xbf16>
    %cst = arith.constant dense<0.000000e+00> : vector<32x256xf32>
    %13 = tpu.matmul %11, %12, %cst {dimension_numbers = #tpu.dot_dimension_numbers<[1], [0], [0], [1], [0, 0, 1, 1], [], []>} : vector<32x64xbf16>, vector<64x256xbf16>, vector<32x256xf32> -> vector<32x256xf32>
    %14 = arith.truncf %13 : vector<32x256xf32> to vector<32x256xbf16>
    %c0_17 = arith.constant 0 : index
    %c0_18 = arith.constant 0 : index
    %c0_19 = arith.constant 0 : index
    %15 = vector.load %arg3[%c0_17, %c0_18, %c0_19] : memref<2x32x16xbf16, #tpu.memory_space<vmem>>, vector<2x32x16xbf16>
    %16 = vector.shape_cast %15 : vector<2x32x16xbf16> to vector<64x16xbf16>
    %c0_20 = arith.constant 0 : index
    %c0_21 = arith.constant 0 : index
    %17 = vector.load %arg5[%c0_20, %c0_21] : memref<16x256xbf16, #tpu.memory_space<vmem>>, vector<16x256xbf16>
    %cst_22 = arith.constant dense<0.000000e+00> : vector<64x256xf32>
    %18 = tpu.matmul %16, %17, %cst_22 {dimension_numbers = #tpu.dot_dimension_numbers<[1], [0], [0], [1], [0, 0, 1, 1], [], []>} : vector<64x16xbf16>, vector<16x256xbf16>, vector<64x256xf32> -> vector<64x256xf32>
    %19 = arith.truncf %18 : vector<64x256xf32> to vector<64x256xbf16>
    %c0_23 = arith.constant 0 : index
    %c0_24 = arith.constant 0 : index
    %c0_25 = arith.constant 0 : index
    %20 = vector.load %arg1[%c0_23, %c0_24, %c0_25] : memref<2x16x256xbf16, #tpu.memory_space<vmem>>, vector<1x16x256xbf16>
    %21 = vector.shape_cast %20 : vector<1x16x256xbf16> to vector<16x256xbf16>
    %22 = vector.extract_strided_slice %14 {offsets = [0, 0], sizes = [16, 256], strides = [1, 1]} : vector<32x256xbf16> to vector<16x256xbf16>
    %23 = vector.extract_strided_slice %19 {offsets = [0, 0], sizes = [32, 256], strides = [1, 1]} : vector<64x256xbf16> to vector<32x256xbf16>
    %24 = tpu.concatenate %21, %22, %23 in 0 : vector<16x256xbf16>, vector<16x256xbf16>, vector<32x256xbf16> -> vector<64x256xbf16>
    %c1_26 = arith.constant 1 : index
    %c0_27 = arith.constant 0 : index
    %c0_28 = arith.constant 0 : index
    %25 = vector.load %arg1[%c1_26, %c0_27, %c0_28] : memref<2x16x256xbf16, #tpu.memory_space<vmem>>, vector<1x16x256xbf16>
    %26 = vector.shape_cast %25 : vector<1x16x256xbf16> to vector<16x256xbf16>
    %27 = vector.extract_strided_slice %14 {offsets = [16, 0], sizes = [16, 256], strides = [1, 1]} : vector<32x256xbf16> to vector<16x256xbf16>
    %28 = vector.extract_strided_slice %19 {offsets = [32, 0], sizes = [32, 256], strides = [1, 1]} : vector<64x256xbf16> to vector<32x256xbf16>
    %29 = tpu.concatenate %26, %27, %28 in 0 : vector<16x256xbf16>, vector<16x256xbf16>, vector<32x256xbf16> -> vector<64x256xbf16>
    %30 = tpu.concatenate %24, %29 in 1 : vector<64x256xbf16>, vector<64x256xbf16> -> vector<64x512xbf16>
    %cst_29 = arith.constant dense<0.000000e+00> : vector<64x512xf32>
    %31 = tpu.matmul %3, %30, %cst_29 {dimension_numbers = #tpu.dot_dimension_numbers<[1], [0], [0], [1], [0, 0, 1, 1], [], []>} : vector<64x64xbf16>, vector<64x512xbf16>, vector<64x512xf32> -> vector<64x512xf32>
    %32 = vector.extract_strided_slice %0 {offsets = [0, 0], sizes = [64, 1], strides = [1, 1]} : vector<64x10xf32> to vector<64x1xf32>
    %33 = vector.broadcast %32 : vector<64x1xf32> to vector<64x512xf32>
    %34 = arith.addf %31, %33 : vector<64x512xf32>
    %35 = vector.extract_strided_slice %0 {offsets = [0, 1], sizes = [64, 1], strides = [1, 1]} : vector<64x10xf32> to vector<64x1xf32>
    %36 = vector.extract_strided_slice %0 {offsets = [0, 2], sizes = [64, 1], strides = [1, 1]} : vector<64x10xf32> to vector<64x1xf32>
    %37 = vector.extract_strided_slice %34 {offsets = [0, 0], sizes = [64, 256], strides = [1, 1]} : vector<64x512xf32> to vector<64x256xf32>
    %cst_30 = arith.constant dense<0.000000e+00> : vector<64xf32>
    %38 = vector.multi_reduction <add>, %37, %cst_30 [1] : vector<64x256xf32> to vector<64xf32>
    %39 = vector.shape_cast %38 : vector<64xf32> to vector<64x1xf32>
    %40 = arith.mulf %37, %37 : vector<64x256xf32>
    %cst_31 = arith.constant dense<0.000000e+00> : vector<64xf32>
    %41 = vector.multi_reduction <add>, %40, %cst_31 [1] : vector<64x256xf32> to vector<64xf32>
    %42 = vector.shape_cast %41 : vector<64xf32> to vector<64x1xf32>
    %43 = vector.extract_strided_slice %34 {offsets = [0, 256], sizes = [64, 256], strides = [1, 1]} : vector<64x512xf32> to vector<64x256xf32>
    %cst_32 = arith.constant dense<0.000000e+00> : vector<64xf32>
    %44 = vector.multi_reduction <add>, %43, %cst_32 [1] : vector<64x256xf32> to vector<64xf32>
    %45 = vector.shape_cast %44 : vector<64xf32> to vector<64x1xf32>
    %46 = arith.mulf %43, %43 : vector<64x256xf32>
    %cst_33 = arith.constant dense<0.000000e+00> : vector<64xf32>
    %47 = vector.multi_reduction <add>, %46, %cst_33 [1] : vector<64x256xf32> to vector<64xf32>
    %48 = vector.shape_cast %47 : vector<64xf32> to vector<64x1xf32>
    %49 = tpu.concatenate %39, %42, %45, %48 in 1 : vector<64x1xf32>, vector<64x1xf32>, vector<64x1xf32>, vector<64x1xf32> -> vector<64x4xf32>
    %cst_34 = arith.constant dense<0.000000e+00> : vector<64x4xf32>
    %50 = tpu.matmul %1, %49, %cst_34 {dimension_numbers = #tpu.dot_dimension_numbers<[1], [0], [0], [1], [0, 0, 1, 1], [], []>} : vector<64x64xf32>, vector<64x4xf32>, vector<64x4xf32> -> vector<64x4xf32>
    %51 = vector.extract_strided_slice %50 {offsets = [0, 0], sizes = [64, 1], strides = [1, 1]} : vector<64x4xf32> to vector<64x1xf32>
    %cst_35 = arith.constant 0.001953125 : f32
    %52 = vector.broadcast %cst_35 : f32 to vector<64x1xf32>
    %53 = arith.mulf %51, %52 : vector<64x1xf32>
    %54 = vector.extract_strided_slice %50 {offsets = [0, 1], sizes = [64, 1], strides = [1, 1]} : vector<64x4xf32> to vector<64x1xf32>
    %cst_36 = arith.constant 0.001953125 : f32
    %55 = vector.broadcast %cst_36 : f32 to vector<64x1xf32>
    %56 = arith.mulf %54, %55 : vector<64x1xf32>
    %57 = arith.mulf %53, %53 : vector<64x1xf32>
    %58 = arith.subf %56, %57 : vector<64x1xf32>
    %59 = vector.extract_strided_slice %34 {offsets = [0, 0], sizes = [64, 256], strides = [1, 1]} : vector<64x512xf32> to vector<64x256xf32>
    %60 = vector.broadcast %53 : vector<64x1xf32> to vector<64x256xf32>
    %61 = arith.subf %59, %60 : vector<64x256xf32>
    %cst_37 = arith.constant 9.99999974E-6 : f32
    %62 = vector.broadcast %cst_37 : f32 to vector<64x1xf32>
    %63 = arith.addf %58, %62 : vector<64x1xf32>
    %64 = math.rsqrt %63 : vector<64x1xf32>
    %65 = vector.broadcast %64 : vector<64x1xf32> to vector<64x256xf32>
    %66 = arith.mulf %61, %65 : vector<64x256xf32>
    %67 = vector.extract_strided_slice %50 {offsets = [0, 2], sizes = [64, 1], strides = [1, 1]} : vector<64x4xf32> to vector<64x1xf32>
    %cst_38 = arith.constant 0.001953125 : f32
    %68 = vector.broadcast %cst_38 : f32 to vector<64x1xf32>
    %69 = arith.mulf %67, %68 : vector<64x1xf32>
    %70 = vector.extract_strided_slice %50 {offsets = [0, 3], sizes = [64, 1], strides = [1, 1]} : vector<64x4xf32> to vector<64x1xf32>
    %cst_39 = arith.constant 0.001953125 : f32
    %71 = vector.broadcast %cst_39 : f32 to vector<64x1xf32>
    %72 = arith.mulf %70, %71 : vector<64x1xf32>
    %73 = arith.mulf %69, %69 : vector<64x1xf32>
    %74 = arith.subf %72, %73 : vector<64x1xf32>
    %75 = vector.extract_strided_slice %34 {offsets = [0, 256], sizes = [64, 256], strides = [1, 1]} : vector<64x512xf32> to vector<64x256xf32>
    %76 = vector.broadcast %69 : vector<64x1xf32> to vector<64x256xf32>
    %77 = arith.subf %75, %76 : vector<64x256xf32>
    %cst_40 = arith.constant 9.99999974E-6 : f32
    %78 = vector.broadcast %cst_40 : f32 to vector<64x1xf32>
    %79 = arith.addf %74, %78 : vector<64x1xf32>
    %80 = math.rsqrt %79 : vector<64x1xf32>
    %81 = vector.broadcast %80 : vector<64x1xf32> to vector<64x256xf32>
    %82 = arith.mulf %77, %81 : vector<64x256xf32>
    %83 = tpu.concatenate %66, %82 in 1 : vector<64x256xf32>, vector<64x256xf32> -> vector<64x512xf32>
    %84 = vector.broadcast %35 : vector<64x1xf32> to vector<64x512xf32>
    %85 = arith.mulf %83, %84 : vector<64x512xf32>
    %86 = vector.broadcast %36 : vector<64x1xf32> to vector<64x512xf32>
    %87 = arith.addf %85, %86 : vector<64x512xf32>
    %cst_41 = arith.constant 0.000000e+00 : f32
    %88 = vector.broadcast %cst_41 : f32 to vector<64x512xf32>
    %89 = arith.maximumf %87, %88 : vector<64x512xf32>
    %90 = arith.truncf %89 : vector<64x512xf32> to vector<64x512xbf16>
    %cst_42 = arith.constant dense<0.000000e+00> : vector<64x512xf32>
    %91 = tpu.matmul %5, %90, %cst_42 {dimension_numbers = #tpu.dot_dimension_numbers<[1], [0], [0], [1], [0, 0, 1, 1], [], []>} : vector<64x64xbf16>, vector<64x512xbf16>, vector<64x512xf32> -> vector<64x512xf32>
    %92 = vector.extract_strided_slice %0 {offsets = [0, 3], sizes = [64, 1], strides = [1, 1]} : vector<64x10xf32> to vector<64x1xf32>
    %93 = vector.broadcast %92 : vector<64x1xf32> to vector<64x512xf32>
    %94 = arith.addf %91, %93 : vector<64x512xf32>
    %cst_43 = arith.constant 0.000000e+00 : f32
    %95 = vector.broadcast %cst_43 : f32 to vector<64x512xf32>
    %96 = arith.maximumf %94, %95 : vector<64x512xf32>
    %97 = vector.extract_strided_slice %96 {offsets = [0, 0], sizes = [64, 256], strides = [1, 1]} : vector<64x512xf32> to vector<64x256xf32>
    %c0_44 = arith.constant 0 : index
    %c0_45 = arith.constant 0 : index
    %c0_46 = arith.constant 0 : index
    %98 = vector.load %arg10[%c0_44, %c0_45, %c0_46] : memref<2x16x64xf32, #tpu.memory_space<vmem>>, vector<1x16x64xf32>
    %99 = vector.shape_cast %98 : vector<1x16x64xf32> to vector<16x64xf32>
    %cst_47 = arith.constant dense<0.000000e+00> : vector<16x256xf32>
    %100 = tpu.matmul %99, %97, %cst_47 {dimension_numbers = #tpu.dot_dimension_numbers<[1], [0], [0], [1], [0, 0, 1, 1], [], []>} : vector<16x64xf32>, vector<64x256xf32>, vector<16x256xf32> -> vector<16x256xf32>
    %cst_48 = arith.constant dense<0xFF800000> : vector<256xf32>
    %101 = vector.multi_reduction <maximumf>, %100, %cst_48 [0] : vector<16x256xf32> to vector<256xf32>
    %102 = vector.shape_cast %101 : vector<256xf32> to vector<1x256xf32>
    %103 = vector.broadcast %102 : vector<1x256xf32> to vector<16x256xf32>
    %104 = arith.subf %100, %103 : vector<16x256xf32>
    %105 = math.exp %104 : vector<16x256xf32>
    %cst_49 = arith.constant dense<0.000000e+00> : vector<256xf32>
    %106 = vector.multi_reduction <add>, %105, %cst_49 [0] : vector<16x256xf32> to vector<256xf32>
    %107 = vector.shape_cast %106 : vector<256xf32> to vector<1x256xf32>
    %108 = vector.broadcast %107 : vector<1x256xf32> to vector<16x256xf32>
    %109 = arith.divf %105, %108 : vector<16x256xf32>
    %cst_50 = arith.constant dense<0.000000e+00> : vector<16x16xf32>
    %110 = tpu.matmul %99, %99, %cst_50 {dimension_numbers = #tpu.dot_dimension_numbers<[1], [1], [0], [0], [0, 0, 1, 0], [], []>} : vector<16x64xf32>, vector<16x64xf32>, vector<16x16xf32> -> vector<16x16xf32>
    %cst_51 = arith.constant dense<0.000000e+00> : vector<16x256xf32>
    %111 = tpu.matmul %110, %109, %cst_51 {dimension_numbers = #tpu.dot_dimension_numbers<[1], [0], [0], [1], [0, 0, 1, 1], [], []>} : vector<16x16xf32>, vector<16x256xf32>, vector<16x256xf32> -> vector<16x256xf32>
    %112 = arith.mulf %109, %100 : vector<16x256xf32>
    %cst_52 = arith.constant 9.99999997E-7 : f32
    %113 = vector.broadcast %cst_52 : f32 to vector<16x256xf32>
    %114 = arith.addf %111, %113 : vector<16x256xf32>
    %115 = arith.divf %112, %114 : vector<16x256xf32>
    %cst_53 = arith.constant dense<0.000000e+00> : vector<16x64xf32>
    %116 = tpu.matmul %115, %97, %cst_53 {dimension_numbers = #tpu.dot_dimension_numbers<[1], [1], [0], [0], [0, 0, 1, 0], [], []>} : vector<16x256xf32>, vector<64x256xf32>, vector<16x64xf32> -> vector<16x64xf32>
    %cst_54 = arith.constant dense<0.000000e+00> : vector<16x16xf32>
    %117 = tpu.matmul %115, %115, %cst_54 {dimension_numbers = #tpu.dot_dimension_numbers<[1], [1], [0], [0], [0, 0, 1, 0], [], []>} : vector<16x256xf32>, vector<16x256xf32>, vector<16x16xf32> -> vector<16x16xf32>
    %cst_55 = arith.constant dense<0.000000e+00> : vector<16x64xf32>
    %118 = tpu.matmul %117, %99, %cst_55 {dimension_numbers = #tpu.dot_dimension_numbers<[1], [0], [0], [1], [0, 0, 1, 1], [], []>} : vector<16x16xf32>, vector<16x64xf32>, vector<16x64xf32> -> vector<16x64xf32>
    %119 = arith.mulf %99, %116 : vector<16x64xf32>
    %cst_56 = arith.constant 9.99999997E-7 : f32
    %120 = vector.broadcast %cst_56 : f32 to vector<16x64xf32>
    %121 = arith.addf %118, %120 : vector<16x64xf32>
    %122 = arith.divf %119, %121 : vector<16x64xf32>
    %cst_57 = arith.constant dense<0.000000e+00> : vector<16x256xf32>
    %123 = tpu.matmul %122, %97, %cst_57 {dimension_numbers = #tpu.dot_dimension_numbers<[1], [0], [0], [1], [0, 0, 1, 1], [], []>} : vector<16x64xf32>, vector<64x256xf32>, vector<16x256xf32> -> vector<16x256xf32>
    %cst_58 = arith.constant dense<0.000000e+00> : vector<16x16xf32>
    %124 = tpu.matmul %122, %122, %cst_58 {dimension_numbers = #tpu.dot_dimension_numbers<[1], [1], [0], [0], [0, 0, 1, 0], [], []>} : vector<16x64xf32>, vector<16x64xf32>, vector<16x16xf32> -> vector<16x16xf32>
    %cst_59 = arith.constant dense<0.000000e+00> : vector<16x256xf32>
    %125 = tpu.matmul %124, %115, %cst_59 {dimension_numbers = #tpu.dot_dimension_numbers<[1], [0], [0], [1], [0, 0, 1, 1], [], []>} : vector<16x16xf32>, vector<16x256xf32>, vector<16x256xf32> -> vector<16x256xf32>
    %126 = arith.mulf %115, %123 : vector<16x256xf32>
    %cst_60 = arith.constant 9.99999997E-7 : f32
    %127 = vector.broadcast %cst_60 : f32 to vector<16x256xf32>
    %128 = arith.addf %125, %127 : vector<16x256xf32>
    %129 = arith.divf %126, %128 : vector<16x256xf32>
    %cst_61 = arith.constant dense<0.000000e+00> : vector<16x64xf32>
    %130 = tpu.matmul %129, %97, %cst_61 {dimension_numbers = #tpu.dot_dimension_numbers<[1], [1], [0], [0], [0, 0, 1, 0], [], []>} : vector<16x256xf32>, vector<64x256xf32>, vector<16x64xf32> -> vector<16x64xf32>
    %cst_62 = arith.constant dense<0.000000e+00> : vector<16x16xf32>
    %131 = tpu.matmul %129, %129, %cst_62 {dimension_numbers = #tpu.dot_dimension_numbers<[1], [1], [0], [0], [0, 0, 1, 0], [], []>} : vector<16x256xf32>, vector<16x256xf32>, vector<16x16xf32> -> vector<16x16xf32>
    %cst_63 = arith.constant dense<0.000000e+00> : vector<16x64xf32>
    %132 = tpu.matmul %131, %122, %cst_63 {dimension_numbers = #tpu.dot_dimension_numbers<[1], [0], [0], [1], [0, 0, 1, 1], [], []>} : vector<16x16xf32>, vector<16x64xf32>, vector<16x64xf32> -> vector<16x64xf32>
    %133 = arith.mulf %122, %130 : vector<16x64xf32>
    %cst_64 = arith.constant 9.99999997E-7 : f32
    %134 = vector.broadcast %cst_64 : f32 to vector<16x64xf32>
    %135 = arith.addf %132, %134 : vector<16x64xf32>
    %136 = arith.divf %133, %135 : vector<16x64xf32>
    %cst_65 = arith.constant dense<0.000000e+00> : vector<16x256xf32>
    %137 = tpu.matmul %136, %97, %cst_65 {dimension_numbers = #tpu.dot_dimension_numbers<[1], [0], [0], [1], [0, 0, 1, 1], [], []>} : vector<16x64xf32>, vector<64x256xf32>, vector<16x256xf32> -> vector<16x256xf32>
    %cst_66 = arith.constant dense<0.000000e+00> : vector<16x16xf32>
    %138 = tpu.matmul %136, %136, %cst_66 {dimension_numbers = #tpu.dot_dimension_numbers<[1], [1], [0], [0], [0, 0, 1, 0], [], []>} : vector<16x64xf32>, vector<16x64xf32>, vector<16x16xf32> -> vector<16x16xf32>
    %cst_67 = arith.constant dense<0.000000e+00> : vector<16x256xf32>
    %139 = tpu.matmul %138, %129, %cst_67 {dimension_numbers = #tpu.dot_dimension_numbers<[1], [0], [0], [1], [0, 0, 1, 1], [], []>} : vector<16x16xf32>, vector<16x256xf32>, vector<16x256xf32> -> vector<16x256xf32>
    %140 = arith.mulf %129, %137 : vector<16x256xf32>
    %cst_68 = arith.constant 9.99999997E-7 : f32
    %141 = vector.broadcast %cst_68 : f32 to vector<16x256xf32>
    %142 = arith.addf %139, %141 : vector<16x256xf32>
    %143 = arith.divf %140, %142 : vector<16x256xf32>
    %cst_69 = arith.constant dense<0.000000e+00> : vector<16x64xf32>
    %144 = tpu.matmul %143, %97, %cst_69 {dimension_numbers = #tpu.dot_dimension_numbers<[1], [1], [0], [0], [0, 0, 1, 0], [], []>} : vector<16x256xf32>, vector<64x256xf32>, vector<16x64xf32> -> vector<16x64xf32>
    %cst_70 = arith.constant dense<0.000000e+00> : vector<16x16xf32>
    %145 = tpu.matmul %143, %143, %cst_70 {dimension_numbers = #tpu.dot_dimension_numbers<[1], [1], [0], [0], [0, 0, 1, 0], [], []>} : vector<16x256xf32>, vector<16x256xf32>, vector<16x16xf32> -> vector<16x16xf32>
    %cst_71 = arith.constant dense<0.000000e+00> : vector<16x64xf32>
    %146 = tpu.matmul %145, %136, %cst_71 {dimension_numbers = #tpu.dot_dimension_numbers<[1], [0], [0], [1], [0, 0, 1, 1], [], []>} : vector<16x16xf32>, vector<16x64xf32>, vector<16x64xf32> -> vector<16x64xf32>
    %147 = arith.mulf %136, %144 : vector<16x64xf32>
    %cst_72 = arith.constant 9.99999997E-7 : f32
    %148 = vector.broadcast %cst_72 : f32 to vector<16x64xf32>
    %149 = arith.addf %146, %148 : vector<16x64xf32>
    %150 = arith.divf %147, %149 : vector<16x64xf32>
    %cst_73 = arith.constant dense<0.000000e+00> : vector<16x256xf32>
    %151 = tpu.matmul %150, %97, %cst_73 {dimension_numbers = #tpu.dot_dimension_numbers<[1], [0], [0], [1], [0, 0, 1, 1], [], []>} : vector<16x64xf32>, vector<64x256xf32>, vector<16x256xf32> -> vector<16x256xf32>
    %cst_74 = arith.constant dense<0.000000e+00> : vector<16x16xf32>
    %152 = tpu.matmul %150, %150, %cst_74 {dimension_numbers = #tpu.dot_dimension_numbers<[1], [1], [0], [0], [0, 0, 1, 0], [], []>} : vector<16x64xf32>, vector<16x64xf32>, vector<16x16xf32> -> vector<16x16xf32>
    %cst_75 = arith.constant dense<0.000000e+00> : vector<16x256xf32>
    %153 = tpu.matmul %152, %143, %cst_75 {dimension_numbers = #tpu.dot_dimension_numbers<[1], [0], [0], [1], [0, 0, 1, 1], [], []>} : vector<16x16xf32>, vector<16x256xf32>, vector<16x256xf32> -> vector<16x256xf32>
    %154 = arith.mulf %143, %151 : vector<16x256xf32>
    %cst_76 = arith.constant 9.99999997E-7 : f32
    %155 = vector.broadcast %cst_76 : f32 to vector<16x256xf32>
    %156 = arith.addf %153, %155 : vector<16x256xf32>
    %157 = arith.divf %154, %156 : vector<16x256xf32>
    %cst_77 = arith.constant dense<0.000000e+00> : vector<16x64xf32>
    %158 = tpu.matmul %157, %97, %cst_77 {dimension_numbers = #tpu.dot_dimension_numbers<[1], [1], [0], [0], [0, 0, 1, 0], [], []>} : vector<16x256xf32>, vector<64x256xf32>, vector<16x64xf32> -> vector<16x64xf32>
    %cst_78 = arith.constant dense<0.000000e+00> : vector<16x16xf32>
    %159 = tpu.matmul %157, %157, %cst_78 {dimension_numbers = #tpu.dot_dimension_numbers<[1], [1], [0], [0], [0, 0, 1, 0], [], []>} : vector<16x256xf32>, vector<16x256xf32>, vector<16x16xf32> -> vector<16x16xf32>
    %cst_79 = arith.constant dense<0.000000e+00> : vector<16x64xf32>
    %160 = tpu.matmul %159, %150, %cst_79 {dimension_numbers = #tpu.dot_dimension_numbers<[1], [0], [0], [1], [0, 0, 1, 1], [], []>} : vector<16x16xf32>, vector<16x64xf32>, vector<16x64xf32> -> vector<16x64xf32>
    %161 = arith.mulf %150, %158 : vector<16x64xf32>
    %cst_80 = arith.constant 9.99999997E-7 : f32
    %162 = vector.broadcast %cst_80 : f32 to vector<16x64xf32>
    %163 = arith.addf %160, %162 : vector<16x64xf32>
    %164 = arith.divf %161, %163 : vector<16x64xf32>
    %cst_81 = arith.constant dense<0.000000e+00> : vector<16x256xf32>
    %165 = tpu.matmul %164, %97, %cst_81 {dimension_numbers = #tpu.dot_dimension_numbers<[1], [0], [0], [1], [0, 0, 1, 1], [], []>} : vector<16x64xf32>, vector<64x256xf32>, vector<16x256xf32> -> vector<16x256xf32>
    %cst_82 = arith.constant dense<0.000000e+00> : vector<16x16xf32>
    %166 = tpu.matmul %164, %164, %cst_82 {dimension_numbers = #tpu.dot_dimension_numbers<[1], [1], [0], [0], [0, 0, 1, 0], [], []>} : vector<16x64xf32>, vector<16x64xf32>, vector<16x16xf32> -> vector<16x16xf32>
    %cst_83 = arith.constant dense<0.000000e+00> : vector<16x256xf32>
    %167 = tpu.matmul %166, %157, %cst_83 {dimension_numbers = #tpu.dot_dimension_numbers<[1], [0], [0], [1], [0, 0, 1, 1], [], []>} : vector<16x16xf32>, vector<16x256xf32>, vector<16x256xf32> -> vector<16x256xf32>
    %168 = arith.mulf %157, %165 : vector<16x256xf32>
    %cst_84 = arith.constant 9.99999997E-7 : f32
    %169 = vector.broadcast %cst_84 : f32 to vector<16x256xf32>
    %170 = arith.addf %167, %169 : vector<16x256xf32>
    %171 = arith.divf %168, %170 : vector<16x256xf32>
    %cst_85 = arith.constant dense<0.000000e+00> : vector<16x64xf32>
    %172 = tpu.matmul %171, %97, %cst_85 {dimension_numbers = #tpu.dot_dimension_numbers<[1], [1], [0], [0], [0, 0, 1, 0], [], []>} : vector<16x256xf32>, vector<64x256xf32>, vector<16x64xf32> -> vector<16x64xf32>
    %cst_86 = arith.constant dense<0.000000e+00> : vector<16x16xf32>
    %173 = tpu.matmul %171, %171, %cst_86 {dimension_numbers = #tpu.dot_dimension_numbers<[1], [1], [0], [0], [0, 0, 1, 0], [], []>} : vector<16x256xf32>, vector<16x256xf32>, vector<16x16xf32> -> vector<16x16xf32>
    %cst_87 = arith.constant dense<0.000000e+00> : vector<16x64xf32>
    %174 = tpu.matmul %173, %164, %cst_87 {dimension_numbers = #tpu.dot_dimension_numbers<[1], [0], [0], [1], [0, 0, 1, 1], [], []>} : vector<16x16xf32>, vector<16x64xf32>, vector<16x64xf32> -> vector<16x64xf32>
    %175 = arith.mulf %164, %172 : vector<16x64xf32>
    %cst_88 = arith.constant 9.99999997E-7 : f32
    %176 = vector.broadcast %cst_88 : f32 to vector<16x64xf32>
    %177 = arith.addf %174, %176 : vector<16x64xf32>
    %178 = arith.divf %175, %177 : vector<16x64xf32>
    %cst_89 = arith.constant dense<0.000000e+00> : vector<16x256xf32>
    %179 = tpu.matmul %178, %97, %cst_89 {dimension_numbers = #tpu.dot_dimension_numbers<[1], [0], [0], [1], [0, 0, 1, 1], [], []>} : vector<16x64xf32>, vector<64x256xf32>, vector<16x256xf32> -> vector<16x256xf32>
    %cst_90 = arith.constant dense<0.000000e+00> : vector<16x16xf32>
    %180 = tpu.matmul %178, %178, %cst_90 {dimension_numbers = #tpu.dot_dimension_numbers<[1], [1], [0], [0], [0, 0, 1, 0], [], []>} : vector<16x64xf32>, vector<16x64xf32>, vector<16x16xf32> -> vector<16x16xf32>
    %cst_91 = arith.constant dense<0.000000e+00> : vector<16x256xf32>
    %181 = tpu.matmul %180, %171, %cst_91 {dimension_numbers = #tpu.dot_dimension_numbers<[1], [0], [0], [1], [0, 0, 1, 1], [], []>} : vector<16x16xf32>, vector<16x256xf32>, vector<16x256xf32> -> vector<16x256xf32>
    %182 = arith.mulf %171, %179 : vector<16x256xf32>
    %cst_92 = arith.constant 9.99999997E-7 : f32
    %183 = vector.broadcast %cst_92 : f32 to vector<16x256xf32>
    %184 = arith.addf %181, %183 : vector<16x256xf32>
    %185 = arith.divf %182, %184 : vector<16x256xf32>
    %cst_93 = arith.constant dense<0.000000e+00> : vector<16x64xf32>
    %186 = tpu.matmul %185, %97, %cst_93 {dimension_numbers = #tpu.dot_dimension_numbers<[1], [1], [0], [0], [0, 0, 1, 0], [], []>} : vector<16x256xf32>, vector<64x256xf32>, vector<16x64xf32> -> vector<16x64xf32>
    %cst_94 = arith.constant dense<0.000000e+00> : vector<16x16xf32>
    %187 = tpu.matmul %185, %185, %cst_94 {dimension_numbers = #tpu.dot_dimension_numbers<[1], [1], [0], [0], [0, 0, 1, 0], [], []>} : vector<16x256xf32>, vector<16x256xf32>, vector<16x16xf32> -> vector<16x16xf32>
    %cst_95 = arith.constant dense<0.000000e+00> : vector<16x64xf32>
    %188 = tpu.matmul %187, %178, %cst_95 {dimension_numbers = #tpu.dot_dimension_numbers<[1], [0], [0], [1], [0, 0, 1, 1], [], []>} : vector<16x16xf32>, vector<16x64xf32>, vector<16x64xf32> -> vector<16x64xf32>
    %189 = arith.mulf %178, %186 : vector<16x64xf32>
    %cst_96 = arith.constant 9.99999997E-7 : f32
    %190 = vector.broadcast %cst_96 : f32 to vector<16x64xf32>
    %191 = arith.addf %188, %190 : vector<16x64xf32>
    %192 = arith.divf %189, %191 : vector<16x64xf32>
    %cst_97 = arith.constant dense<0.000000e+00> : vector<16x256xf32>
    %193 = tpu.matmul %192, %97, %cst_97 {dimension_numbers = #tpu.dot_dimension_numbers<[1], [0], [0], [1], [0, 0, 1, 1], [], []>} : vector<16x64xf32>, vector<64x256xf32>, vector<16x256xf32> -> vector<16x256xf32>
    %cst_98 = arith.constant dense<0.000000e+00> : vector<16x16xf32>
    %194 = tpu.matmul %192, %192, %cst_98 {dimension_numbers = #tpu.dot_dimension_numbers<[1], [1], [0], [0], [0, 0, 1, 0], [], []>} : vector<16x64xf32>, vector<16x64xf32>, vector<16x16xf32> -> vector<16x16xf32>
    %cst_99 = arith.constant dense<0.000000e+00> : vector<16x256xf32>
    %195 = tpu.matmul %194, %185, %cst_99 {dimension_numbers = #tpu.dot_dimension_numbers<[1], [0], [0], [1], [0, 0, 1, 1], [], []>} : vector<16x16xf32>, vector<16x256xf32>, vector<16x256xf32> -> vector<16x256xf32>
    %196 = arith.mulf %185, %193 : vector<16x256xf32>
    %cst_100 = arith.constant 9.99999997E-7 : f32
    %197 = vector.broadcast %cst_100 : f32 to vector<16x256xf32>
    %198 = arith.addf %195, %197 : vector<16x256xf32>
    %199 = arith.divf %196, %198 : vector<16x256xf32>
    %cst_101 = arith.constant dense<0.000000e+00> : vector<64x256xf32>
    %200 = tpu.matmul %192, %199, %cst_101 {dimension_numbers = #tpu.dot_dimension_numbers<[0], [0], [1], [1], [0, 1, 1, 1], [], []>} : vector<16x64xf32>, vector<16x256xf32>, vector<64x256xf32> -> vector<64x256xf32>
    %201 = vector.extract_strided_slice %96 {offsets = [0, 256], sizes = [64, 256], strides = [1, 1]} : vector<64x512xf32> to vector<64x256xf32>
    %c1_102 = arith.constant 1 : index
    %c0_103 = arith.constant 0 : index
    %c0_104 = arith.constant 0 : index
    %202 = vector.load %arg10[%c1_102, %c0_103, %c0_104] : memref<2x16x64xf32, #tpu.memory_space<vmem>>, vector<1x16x64xf32>
    %203 = vector.shape_cast %202 : vector<1x16x64xf32> to vector<16x64xf32>
    %cst_105 = arith.constant dense<0.000000e+00> : vector<16x256xf32>
    %204 = tpu.matmul %203, %201, %cst_105 {dimension_numbers = #tpu.dot_dimension_numbers<[1], [0], [0], [1], [0, 0, 1, 1], [], []>} : vector<16x64xf32>, vector<64x256xf32>, vector<16x256xf32> -> vector<16x256xf32>
    %cst_106 = arith.constant dense<0xFF800000> : vector<256xf32>
    %205 = vector.multi_reduction <maximumf>, %204, %cst_106 [0] : vector<16x256xf32> to vector<256xf32>
    %206 = vector.shape_cast %205 : vector<256xf32> to vector<1x256xf32>
    %207 = vector.broadcast %206 : vector<1x256xf32> to vector<16x256xf32>
    %208 = arith.subf %204, %207 : vector<16x256xf32>
    %209 = math.exp %208 : vector<16x256xf32>
    %cst_107 = arith.constant dense<0.000000e+00> : vector<256xf32>
    %210 = vector.multi_reduction <add>, %209, %cst_107 [0] : vector<16x256xf32> to vector<256xf32>
    %211 = vector.shape_cast %210 : vector<256xf32> to vector<1x256xf32>
    %212 = vector.broadcast %211 : vector<1x256xf32> to vector<16x256xf32>
    %213 = arith.divf %209, %212 : vector<16x256xf32>
    %cst_108 = arith.constant dense<0.000000e+00> : vector<16x16xf32>
    %214 = tpu.matmul %203, %203, %cst_108 {dimension_numbers = #tpu.dot_dimension_numbers<[1], [1], [0], [0], [0, 0, 1, 0], [], []>} : vector<16x64xf32>, vector<16x64xf32>, vector<16x16xf32> -> vector<16x16xf32>
    %cst_109 = arith.constant dense<0.000000e+00> : vector<16x256xf32>
    %215 = tpu.matmul %214, %213, %cst_109 {dimension_numbers = #tpu.dot_dimension_numbers<[1], [0], [0], [1], [0, 0, 1, 1], [], []>} : vector<16x16xf32>, vector<16x256xf32>, vector<16x256xf32> -> vector<16x256xf32>
    %216 = arith.mulf %213, %204 : vector<16x256xf32>
    %cst_110 = arith.constant 9.99999997E-7 : f32
    %217 = vector.broadcast %cst_110 : f32 to vector<16x256xf32>
    %218 = arith.addf %215, %217 : vector<16x256xf32>
    %219 = arith.divf %216, %218 : vector<16x256xf32>
    %cst_111 = arith.constant dense<0.000000e+00> : vector<16x64xf32>
    %220 = tpu.matmul %219, %201, %cst_111 {dimension_numbers = #tpu.dot_dimension_numbers<[1], [1], [0], [0], [0, 0, 1, 0], [], []>} : vector<16x256xf32>, vector<64x256xf32>, vector<16x64xf32> -> vector<16x64xf32>
    %cst_112 = arith.constant dense<0.000000e+00> : vector<16x16xf32>
    %221 = tpu.matmul %219, %219, %cst_112 {dimension_numbers = #tpu.dot_dimension_numbers<[1], [1], [0], [0], [0, 0, 1, 0], [], []>} : vector<16x256xf32>, vector<16x256xf32>, vector<16x16xf32> -> vector<16x16xf32>
    %cst_113 = arith.constant dense<0.000000e+00> : vector<16x64xf32>
    %222 = tpu.matmul %221, %203, %cst_113 {dimension_numbers = #tpu.dot_dimension_numbers<[1], [0], [0], [1], [0, 0, 1, 1], [], []>} : vector<16x16xf32>, vector<16x64xf32>, vector<16x64xf32> -> vector<16x64xf32>
    %223 = arith.mulf %203, %220 : vector<16x64xf32>
    %cst_114 = arith.constant 9.99999997E-7 : f32
    %224 = vector.broadcast %cst_114 : f32 to vector<16x64xf32>
    %225 = arith.addf %222, %224 : vector<16x64xf32>
    %226 = arith.divf %223, %225 : vector<16x64xf32>
    %cst_115 = arith.constant dense<0.000000e+00> : vector<16x256xf32>
    %227 = tpu.matmul %226, %201, %cst_115 {dimension_numbers = #tpu.dot_dimension_numbers<[1], [0], [0], [1], [0, 0, 1, 1], [], []>} : vector<16x64xf32>, vector<64x256xf32>, vector<16x256xf32> -> vector<16x256xf32>
    %cst_116 = arith.constant dense<0.000000e+00> : vector<16x16xf32>
    %228 = tpu.matmul %226, %226, %cst_116 {dimension_numbers = #tpu.dot_dimension_numbers<[1], [1], [0], [0], [0, 0, 1, 0], [], []>} : vector<16x64xf32>, vector<16x64xf32>, vector<16x16xf32> -> vector<16x16xf32>
    %cst_117 = arith.constant dense<0.000000e+00> : vector<16x256xf32>
    %229 = tpu.matmul %228, %219, %cst_117 {dimension_numbers = #tpu.dot_dimension_numbers<[1], [0], [0], [1], [0, 0, 1, 1], [], []>} : vector<16x16xf32>, vector<16x256xf32>, vector<16x256xf32> -> vector<16x256xf32>
    %230 = arith.mulf %219, %227 : vector<16x256xf32>
    %cst_118 = arith.constant 9.99999997E-7 : f32
    %231 = vector.broadcast %cst_118 : f32 to vector<16x256xf32>
    %232 = arith.addf %229, %231 : vector<16x256xf32>
    %233 = arith.divf %230, %232 : vector<16x256xf32>
    %cst_119 = arith.constant dense<0.000000e+00> : vector<16x64xf32>
    %234 = tpu.matmul %233, %201, %cst_119 {dimension_numbers = #tpu.dot_dimension_numbers<[1], [1], [0], [0], [0, 0, 1, 0], [], []>} : vector<16x256xf32>, vector<64x256xf32>, vector<16x64xf32> -> vector<16x64xf32>
    %cst_120 = arith.constant dense<0.000000e+00> : vector<16x16xf32>
    %235 = tpu.matmul %233, %233, %cst_120 {dimension_numbers = #tpu.dot_dimension_numbers<[1], [1], [0], [0], [0, 0, 1, 0], [], []>} : vector<16x256xf32>, vector<16x256xf32>, vector<16x16xf32> -> vector<16x16xf32>
    %cst_121 = arith.constant dense<0.000000e+00> : vector<16x64xf32>
    %236 = tpu.matmul %235, %226, %cst_121 {dimension_numbers = #tpu.dot_dimension_numbers<[1], [0], [0], [1], [0, 0, 1, 1], [], []>} : vector<16x16xf32>, vector<16x64xf32>, vector<16x64xf32> -> vector<16x64xf32>
    %237 = arith.mulf %226, %234 : vector<16x64xf32>
    %cst_122 = arith.constant 9.99999997E-7 : f32
    %238 = vector.broadcast %cst_122 : f32 to vector<16x64xf32>
    %239 = arith.addf %236, %238 : vector<16x64xf32>
    %240 = arith.divf %237, %239 : vector<16x64xf32>
    %cst_123 = arith.constant dense<0.000000e+00> : vector<16x256xf32>
    %241 = tpu.matmul %240, %201, %cst_123 {dimension_numbers = #tpu.dot_dimension_numbers<[1], [0], [0], [1], [0, 0, 1, 1], [], []>} : vector<16x64xf32>, vector<64x256xf32>, vector<16x256xf32> -> vector<16x256xf32>
    %cst_124 = arith.constant dense<0.000000e+00> : vector<16x16xf32>
    %242 = tpu.matmul %240, %240, %cst_124 {dimension_numbers = #tpu.dot_dimension_numbers<[1], [1], [0], [0], [0, 0, 1, 0], [], []>} : vector<16x64xf32>, vector<16x64xf32>, vector<16x16xf32> -> vector<16x16xf32>
    %cst_125 = arith.constant dense<0.000000e+00> : vector<16x256xf32>
    %243 = tpu.matmul %242, %233, %cst_125 {dimension_numbers = #tpu.dot_dimension_numbers<[1], [0], [0], [1], [0, 0, 1, 1], [], []>} : vector<16x16xf32>, vector<16x256xf32>, vector<16x256xf32> -> vector<16x256xf32>
    %244 = arith.mulf %233, %241 : vector<16x256xf32>
    %cst_126 = arith.constant 9.99999997E-7 : f32
    %245 = vector.broadcast %cst_126 : f32 to vector<16x256xf32>
    %246 = arith.addf %243, %245 : vector<16x256xf32>
    %247 = arith.divf %244, %246 : vector<16x256xf32>
    %cst_127 = arith.constant dense<0.000000e+00> : vector<16x64xf32>
    %248 = tpu.matmul %247, %201, %cst_127 {dimension_numbers = #tpu.dot_dimension_numbers<[1], [1], [0], [0], [0, 0, 1, 0], [], []>} : vector<16x256xf32>, vector<64x256xf32>, vector<16x64xf32> -> vector<16x64xf32>
    %cst_128 = arith.constant dense<0.000000e+00> : vector<16x16xf32>
    %249 = tpu.matmul %247, %247, %cst_128 {dimension_numbers = #tpu.dot_dimension_numbers<[1], [1], [0], [0], [0, 0, 1, 0], [], []>} : vector<16x256xf32>, vector<16x256xf32>, vector<16x16xf32> -> vector<16x16xf32>
    %cst_129 = arith.constant dense<0.000000e+00> : vector<16x64xf32>
    %250 = tpu.matmul %249, %240, %cst_129 {dimension_numbers = #tpu.dot_dimension_numbers<[1], [0], [0], [1], [0, 0, 1, 1], [], []>} : vector<16x16xf32>, vector<16x64xf32>, vector<16x64xf32> -> vector<16x64xf32>
    %251 = arith.mulf %240, %248 : vector<16x64xf32>
    %cst_130 = arith.constant 9.99999997E-7 : f32
    %252 = vector.broadcast %cst_130 : f32 to vector<16x64xf32>
    %253 = arith.addf %250, %252 : vector<16x64xf32>
    %254 = arith.divf %251, %253 : vector<16x64xf32>
    %cst_131 = arith.constant dense<0.000000e+00> : vector<16x256xf32>
    %255 = tpu.matmul %254, %201, %cst_131 {dimension_numbers = #tpu.dot_dimension_numbers<[1], [0], [0], [1], [0, 0, 1, 1], [], []>} : vector<16x64xf32>, vector<64x256xf32>, vector<16x256xf32> -> vector<16x256xf32>
    %cst_132 = arith.constant dense<0.000000e+00> : vector<16x16xf32>
    %256 = tpu.matmul %254, %254, %cst_132 {dimension_numbers = #tpu.dot_dimension_numbers<[1], [1], [0], [0], [0, 0, 1, 0], [], []>} : vector<16x64xf32>, vector<16x64xf32>, vector<16x16xf32> -> vector<16x16xf32>
    %cst_133 = arith.constant dense<0.000000e+00> : vector<16x256xf32>
    %257 = tpu.matmul %256, %247, %cst_133 {dimension_numbers = #tpu.dot_dimension_numbers<[1], [0], [0], [1], [0, 0, 1, 1], [], []>} : vector<16x16xf32>, vector<16x256xf32>, vector<16x256xf32> -> vector<16x256xf32>
    %258 = arith.mulf %247, %255 : vector<16x256xf32>
    %cst_134 = arith.constant 9.99999997E-7 : f32
    %259 = vector.broadcast %cst_134 : f32 to vector<16x256xf32>
    %260 = arith.addf %257, %259 : vector<16x256xf32>
    %261 = arith.divf %258, %260 : vector<16x256xf32>
    %cst_135 = arith.constant dense<0.000000e+00> : vector<16x64xf32>
    %262 = tpu.matmul %261, %201, %cst_135 {dimension_numbers = #tpu.dot_dimension_numbers<[1], [1], [0], [0], [0, 0, 1, 0], [], []>} : vector<16x256xf32>, vector<64x256xf32>, vector<16x64xf32> -> vector<16x64xf32>
    %cst_136 = arith.constant dense<0.000000e+00> : vector<16x16xf32>
    %263 = tpu.matmul %261, %261, %cst_136 {dimension_numbers = #tpu.dot_dimension_numbers<[1], [1], [0], [0], [0, 0, 1, 0], [], []>} : vector<16x256xf32>, vector<16x256xf32>, vector<16x16xf32> -> vector<16x16xf32>
    %cst_137 = arith.constant dense<0.000000e+00> : vector<16x64xf32>
    %264 = tpu.matmul %263, %254, %cst_137 {dimension_numbers = #tpu.dot_dimension_numbers<[1], [0], [0], [1], [0, 0, 1, 1], [], []>} : vector<16x16xf32>, vector<16x64xf32>, vector<16x64xf32> -> vector<16x64xf32>
    %265 = arith.mulf %254, %262 : vector<16x64xf32>
    %cst_138 = arith.constant 9.99999997E-7 : f32
    %266 = vector.broadcast %cst_138 : f32 to vector<16x64xf32>
    %267 = arith.addf %264, %266 : vector<16x64xf32>
    %268 = arith.divf %265, %267 : vector<16x64xf32>
    %cst_139 = arith.constant dense<0.000000e+00> : vector<16x256xf32>
    %269 = tpu.matmul %268, %201, %cst_139 {dimension_numbers = #tpu.dot_dimension_numbers<[1], [0], [0], [1], [0, 0, 1, 1], [], []>} : vector<16x64xf32>, vector<64x256xf32>, vector<16x256xf32> -> vector<16x256xf32>
    %cst_140 = arith.constant dense<0.000000e+00> : vector<16x16xf32>
    %270 = tpu.matmul %268, %268, %cst_140 {dimension_numbers = #tpu.dot_dimension_numbers<[1], [1], [0], [0], [0, 0, 1, 0], [], []>} : vector<16x64xf32>, vector<16x64xf32>, vector<16x16xf32> -> vector<16x16xf32>
    %cst_141 = arith.constant dense<0.000000e+00> : vector<16x256xf32>
    %271 = tpu.matmul %270, %261, %cst_141 {dimension_numbers = #tpu.dot_dimension_numbers<[1], [0], [0], [1], [0, 0, 1, 1], [], []>} : vector<16x16xf32>, vector<16x256xf32>, vector<16x256xf32> -> vector<16x256xf32>
    %272 = arith.mulf %261, %269 : vector<16x256xf32>
    %cst_142 = arith.constant 9.99999997E-7 : f32
    %273 = vector.broadcast %cst_142 : f32 to vector<16x256xf32>
    %274 = arith.addf %271, %273 : vector<16x256xf32>
    %275 = arith.divf %272, %274 : vector<16x256xf32>
    %cst_143 = arith.constant dense<0.000000e+00> : vector<16x64xf32>
    %276 = tpu.matmul %275, %201, %cst_143 {dimension_numbers = #tpu.dot_dimension_numbers<[1], [1], [0], [0], [0, 0, 1, 0], [], []>} : vector<16x256xf32>, vector<64x256xf32>, vector<16x64xf32> -> vector<16x64xf32>
    %cst_144 = arith.constant dense<0.000000e+00> : vector<16x16xf32>
    %277 = tpu.matmul %275, %275, %cst_144 {dimension_numbers = #tpu.dot_dimension_numbers<[1], [1], [0], [0], [0, 0, 1, 0], [], []>} : vector<16x256xf32>, vector<16x256xf32>, vector<16x16xf32> -> vector<16x16xf32>
    %cst_145 = arith.constant dense<0.000000e+00> : vector<16x64xf32>
    %278 = tpu.matmul %277, %268, %cst_145 {dimension_numbers = #tpu.dot_dimension_numbers<[1], [0], [0], [1], [0, 0, 1, 1], [], []>} : vector<16x16xf32>, vector<16x64xf32>, vector<16x64xf32> -> vector<16x64xf32>
    %279 = arith.mulf %268, %276 : vector<16x64xf32>
    %cst_146 = arith.constant 9.99999997E-7 : f32
    %280 = vector.broadcast %cst_146 : f32 to vector<16x64xf32>
    %281 = arith.addf %278, %280 : vector<16x64xf32>
    %282 = arith.divf %279, %281 : vector<16x64xf32>
    %cst_147 = arith.constant dense<0.000000e+00> : vector<16x256xf32>
    %283 = tpu.matmul %282, %201, %cst_147 {dimension_numbers = #tpu.dot_dimension_numbers<[1], [0], [0], [1], [0, 0, 1, 1], [], []>} : vector<16x64xf32>, vector<64x256xf32>, vector<16x256xf32> -> vector<16x256xf32>
    %cst_148 = arith.constant dense<0.000000e+00> : vector<16x16xf32>
    %284 = tpu.matmul %282, %282, %cst_148 {dimension_numbers = #tpu.dot_dimension_numbers<[1], [1], [0], [0], [0, 0, 1, 0], [], []>} : vector<16x64xf32>, vector<16x64xf32>, vector<16x16xf32> -> vector<16x16xf32>
    %cst_149 = arith.constant dense<0.000000e+00> : vector<16x256xf32>
    %285 = tpu.matmul %284, %275, %cst_149 {dimension_numbers = #tpu.dot_dimension_numbers<[1], [0], [0], [1], [0, 0, 1, 1], [], []>} : vector<16x16xf32>, vector<16x256xf32>, vector<16x256xf32> -> vector<16x256xf32>
    %286 = arith.mulf %275, %283 : vector<16x256xf32>
    %cst_150 = arith.constant 9.99999997E-7 : f32
    %287 = vector.broadcast %cst_150 : f32 to vector<16x256xf32>
    %288 = arith.addf %285, %287 : vector<16x256xf32>
    %289 = arith.divf %286, %288 : vector<16x256xf32>
    %cst_151 = arith.constant dense<0.000000e+00> : vector<16x64xf32>
    %290 = tpu.matmul %289, %201, %cst_151 {dimension_numbers = #tpu.dot_dimension_numbers<[1], [1], [0], [0], [0, 0, 1, 0], [], []>} : vector<16x256xf32>, vector<64x256xf32>, vector<16x64xf32> -> vector<16x64xf32>
    %cst_152 = arith.constant dense<0.000000e+00> : vector<16x16xf32>
    %291 = tpu.matmul %289, %289, %cst_152 {dimension_numbers = #tpu.dot_dimension_numbers<[1], [1], [0], [0], [0, 0, 1, 0], [], []>} : vector<16x256xf32>, vector<16x256xf32>, vector<16x16xf32> -> vector<16x16xf32>
    %cst_153 = arith.constant dense<0.000000e+00> : vector<16x64xf32>
    %292 = tpu.matmul %291, %282, %cst_153 {dimension_numbers = #tpu.dot_dimension_numbers<[1], [0], [0], [1], [0, 0, 1, 1], [], []>} : vector<16x16xf32>, vector<16x64xf32>, vector<16x64xf32> -> vector<16x64xf32>
    %293 = arith.mulf %282, %290 : vector<16x64xf32>
    %cst_154 = arith.constant 9.99999997E-7 : f32
    %294 = vector.broadcast %cst_154 : f32 to vector<16x64xf32>
    %295 = arith.addf %292, %294 : vector<16x64xf32>
    %296 = arith.divf %293, %295 : vector<16x64xf32>
    %cst_155 = arith.constant dense<0.000000e+00> : vector<16x256xf32>
    %297 = tpu.matmul %296, %201, %cst_155 {dimension_numbers = #tpu.dot_dimension_numbers<[1], [0], [0], [1], [0, 0, 1, 1], [], []>} : vector<16x64xf32>, vector<64x256xf32>, vector<16x256xf32> -> vector<16x256xf32>
    %cst_156 = arith.constant dense<0.000000e+00> : vector<16x16xf32>
    %298 = tpu.matmul %296, %296, %cst_156 {dimension_numbers = #tpu.dot_dimension_numbers<[1], [1], [0], [0], [0, 0, 1, 0], [], []>} : vector<16x64xf32>, vector<16x64xf32>, vector<16x16xf32> -> vector<16x16xf32>
    %cst_157 = arith.constant dense<0.000000e+00> : vector<16x256xf32>
    %299 = tpu.matmul %298, %289, %cst_157 {dimension_numbers = #tpu.dot_dimension_numbers<[1], [0], [0], [1], [0, 0, 1, 1], [], []>} : vector<16x16xf32>, vector<16x256xf32>, vector<16x256xf32> -> vector<16x256xf32>
    %300 = arith.mulf %289, %297 : vector<16x256xf32>
    %cst_158 = arith.constant 9.99999997E-7 : f32
    %301 = vector.broadcast %cst_158 : f32 to vector<16x256xf32>
    %302 = arith.addf %299, %301 : vector<16x256xf32>
    %303 = arith.divf %300, %302 : vector<16x256xf32>
    %cst_159 = arith.constant dense<0.000000e+00> : vector<64x256xf32>
    %304 = tpu.matmul %296, %303, %cst_159 {dimension_numbers = #tpu.dot_dimension_numbers<[0], [0], [1], [1], [0, 1, 1, 1], [], []>} : vector<16x64xf32>, vector<16x256xf32>, vector<64x256xf32> -> vector<64x256xf32>
    %305 = tpu.concatenate %200, %304 in 1 : vector<64x256xf32>, vector<64x256xf32> -> vector<64x512xf32>
    %306 = arith.truncf %305 : vector<64x512xf32> to vector<64x512xbf16>
    %cst_160 = arith.constant dense<0.000000e+00> : vector<64x512xf32>
    %307 = tpu.matmul %7, %306, %cst_160 {dimension_numbers = #tpu.dot_dimension_numbers<[1], [0], [0], [1], [0, 0, 1, 1], [], []>} : vector<64x64xbf16>, vector<64x512xbf16>, vector<64x512xf32> -> vector<64x512xf32>
    %308 = vector.extract_strided_slice %0 {offsets = [0, 4], sizes = [64, 1], strides = [1, 1]} : vector<64x10xf32> to vector<64x1xf32>
    %309 = vector.broadcast %308 : vector<64x1xf32> to vector<64x512xf32>
    %310 = arith.addf %307, %309 : vector<64x512xf32>
    %311 = vector.extract_strided_slice %0 {offsets = [0, 5], sizes = [64, 1], strides = [1, 1]} : vector<64x10xf32> to vector<64x1xf32>
    %312 = vector.extract_strided_slice %0 {offsets = [0, 6], sizes = [64, 1], strides = [1, 1]} : vector<64x10xf32> to vector<64x1xf32>
    %313 = vector.extract_strided_slice %310 {offsets = [0, 0], sizes = [64, 256], strides = [1, 1]} : vector<64x512xf32> to vector<64x256xf32>
    %cst_161 = arith.constant dense<0.000000e+00> : vector<64xf32>
    %314 = vector.multi_reduction <add>, %313, %cst_161 [1] : vector<64x256xf32> to vector<64xf32>
    %315 = vector.shape_cast %314 : vector<64xf32> to vector<64x1xf32>
    %316 = arith.mulf %313, %313 : vector<64x256xf32>
    %cst_162 = arith.constant dense<0.000000e+00> : vector<64xf32>
    %317 = vector.multi_reduction <add>, %316, %cst_162 [1] : vector<64x256xf32> to vector<64xf32>
    %318 = vector.shape_cast %317 : vector<64xf32> to vector<64x1xf32>
    %319 = vector.extract_strided_slice %310 {offsets = [0, 256], sizes = [64, 256], strides = [1, 1]} : vector<64x512xf32> to vector<64x256xf32>
    %cst_163 = arith.constant dense<0.000000e+00> : vector<64xf32>
    %320 = vector.multi_reduction <add>, %319, %cst_163 [1] : vector<64x256xf32> to vector<64xf32>
    %321 = vector.shape_cast %320 : vector<64xf32> to vector<64x1xf32>
    %322 = arith.mulf %319, %319 : vector<64x256xf32>
    %cst_164 = arith.constant dense<0.000000e+00> : vector<64xf32>
    %323 = vector.multi_reduction <add>, %322, %cst_164 [1] : vector<64x256xf32> to vector<64xf32>
    %324 = vector.shape_cast %323 : vector<64xf32> to vector<64x1xf32>
    %325 = tpu.concatenate %315, %318, %321, %324 in 1 : vector<64x1xf32>, vector<64x1xf32>, vector<64x1xf32>, vector<64x1xf32> -> vector<64x4xf32>
    %cst_165 = arith.constant dense<0.000000e+00> : vector<64x4xf32>
    %326 = tpu.matmul %1, %325, %cst_165 {dimension_numbers = #tpu.dot_dimension_numbers<[1], [0], [0], [1], [0, 0, 1, 1], [], []>} : vector<64x64xf32>, vector<64x4xf32>, vector<64x4xf32> -> vector<64x4xf32>
    %327 = vector.extract_strided_slice %326 {offsets = [0, 0], sizes = [64, 1], strides = [1, 1]} : vector<64x4xf32> to vector<64x1xf32>
    %cst_166 = arith.constant 0.001953125 : f32
    %328 = vector.broadcast %cst_166 : f32 to vector<64x1xf32>
    %329 = arith.mulf %327, %328 : vector<64x1xf32>
    %330 = vector.extract_strided_slice %326 {offsets = [0, 1], sizes = [64, 1], strides = [1, 1]} : vector<64x4xf32> to vector<64x1xf32>
    %cst_167 = arith.constant 0.001953125 : f32
    %331 = vector.broadcast %cst_167 : f32 to vector<64x1xf32>
    %332 = arith.mulf %330, %331 : vector<64x1xf32>
    %333 = arith.mulf %329, %329 : vector<64x1xf32>
    %334 = arith.subf %332, %333 : vector<64x1xf32>
    %335 = vector.extract_strided_slice %310 {offsets = [0, 0], sizes = [64, 256], strides = [1, 1]} : vector<64x512xf32> to vector<64x256xf32>
    %336 = vector.broadcast %329 : vector<64x1xf32> to vector<64x256xf32>
    %337 = arith.subf %335, %336 : vector<64x256xf32>
    %cst_168 = arith.constant 9.99999974E-6 : f32
    %338 = vector.broadcast %cst_168 : f32 to vector<64x1xf32>
    %339 = arith.addf %334, %338 : vector<64x1xf32>
    %340 = math.rsqrt %339 : vector<64x1xf32>
    %341 = vector.broadcast %340 : vector<64x1xf32> to vector<64x256xf32>
    %342 = arith.mulf %337, %341 : vector<64x256xf32>
    %343 = vector.extract_strided_slice %326 {offsets = [0, 2], sizes = [64, 1], strides = [1, 1]} : vector<64x4xf32> to vector<64x1xf32>
    %cst_169 = arith.constant 0.001953125 : f32
    %344 = vector.broadcast %cst_169 : f32 to vector<64x1xf32>
    %345 = arith.mulf %343, %344 : vector<64x1xf32>
    %346 = vector.extract_strided_slice %326 {offsets = [0, 3], sizes = [64, 1], strides = [1, 1]} : vector<64x4xf32> to vector<64x1xf32>
    %cst_170 = arith.constant 0.001953125 : f32
    %347 = vector.broadcast %cst_170 : f32 to vector<64x1xf32>
    %348 = arith.mulf %346, %347 : vector<64x1xf32>
    %349 = arith.mulf %345, %345 : vector<64x1xf32>
    %350 = arith.subf %348, %349 : vector<64x1xf32>
    %351 = vector.extract_strided_slice %310 {offsets = [0, 256], sizes = [64, 256], strides = [1, 1]} : vector<64x512xf32> to vector<64x256xf32>
    %352 = vector.broadcast %345 : vector<64x1xf32> to vector<64x256xf32>
    %353 = arith.subf %351, %352 : vector<64x256xf32>
    %cst_171 = arith.constant 9.99999974E-6 : f32
    %354 = vector.broadcast %cst_171 : f32 to vector<64x1xf32>
    %355 = arith.addf %350, %354 : vector<64x1xf32>
    %356 = math.rsqrt %355 : vector<64x1xf32>
    %357 = vector.broadcast %356 : vector<64x1xf32> to vector<64x256xf32>
    %358 = arith.mulf %353, %357 : vector<64x256xf32>
    %359 = tpu.concatenate %342, %358 in 1 : vector<64x256xf32>, vector<64x256xf32> -> vector<64x512xf32>
    %360 = vector.broadcast %311 : vector<64x1xf32> to vector<64x512xf32>
    %361 = arith.mulf %359, %360 : vector<64x512xf32>
    %362 = vector.broadcast %312 : vector<64x1xf32> to vector<64x512xf32>
    %363 = arith.addf %361, %362 : vector<64x512xf32>
    %364 = arith.addf %89, %363 : vector<64x512xf32>
    %cst_172 = arith.constant 0.000000e+00 : f32
    %365 = vector.broadcast %cst_172 : f32 to vector<64x512xf32>
    %366 = arith.maximumf %364, %365 : vector<64x512xf32>
    %367 = arith.truncf %366 : vector<64x512xf32> to vector<64x512xbf16>
    %cst_173 = arith.constant dense<0.000000e+00> : vector<64x512xf32>
    %368 = tpu.matmul %9, %367, %cst_173 {dimension_numbers = #tpu.dot_dimension_numbers<[1], [0], [0], [1], [0, 0, 1, 1], [], []>} : vector<64x64xbf16>, vector<64x512xbf16>, vector<64x512xf32> -> vector<64x512xf32>
    %369 = vector.extract_strided_slice %0 {offsets = [0, 7], sizes = [64, 1], strides = [1, 1]} : vector<64x10xf32> to vector<64x1xf32>
    %370 = vector.broadcast %369 : vector<64x1xf32> to vector<64x512xf32>
    %371 = arith.addf %368, %370 : vector<64x512xf32>
    %372 = vector.extract_strided_slice %0 {offsets = [0, 8], sizes = [64, 1], strides = [1, 1]} : vector<64x10xf32> to vector<64x1xf32>
    %373 = vector.extract_strided_slice %0 {offsets = [0, 9], sizes = [64, 1], strides = [1, 1]} : vector<64x10xf32> to vector<64x1xf32>
    %374 = vector.extract_strided_slice %371 {offsets = [0, 0], sizes = [64, 256], strides = [1, 1]} : vector<64x512xf32> to vector<64x256xf32>
    %cst_174 = arith.constant dense<0.000000e+00> : vector<64xf32>
    %375 = vector.multi_reduction <add>, %374, %cst_174 [1] : vector<64x256xf32> to vector<64xf32>
    %376 = vector.shape_cast %375 : vector<64xf32> to vector<64x1xf32>
    %377 = arith.mulf %374, %374 : vector<64x256xf32>
    %cst_175 = arith.constant dense<0.000000e+00> : vector<64xf32>
    %378 = vector.multi_reduction <add>, %377, %cst_175 [1] : vector<64x256xf32> to vector<64xf32>
    %379 = vector.shape_cast %378 : vector<64xf32> to vector<64x1xf32>
    %380 = vector.extract_strided_slice %371 {offsets = [0, 256], sizes = [64, 256], strides = [1, 1]} : vector<64x512xf32> to vector<64x256xf32>
    %cst_176 = arith.constant dense<0.000000e+00> : vector<64xf32>
    %381 = vector.multi_reduction <add>, %380, %cst_176 [1] : vector<64x256xf32> to vector<64xf32>
    %382 = vector.shape_cast %381 : vector<64xf32> to vector<64x1xf32>
    %383 = arith.mulf %380, %380 : vector<64x256xf32>
    %cst_177 = arith.constant dense<0.000000e+00> : vector<64xf32>
    %384 = vector.multi_reduction <add>, %383, %cst_177 [1] : vector<64x256xf32> to vector<64xf32>
    %385 = vector.shape_cast %384 : vector<64xf32> to vector<64x1xf32>
    %386 = tpu.concatenate %376, %379, %382, %385 in 1 : vector<64x1xf32>, vector<64x1xf32>, vector<64x1xf32>, vector<64x1xf32> -> vector<64x4xf32>
    %cst_178 = arith.constant dense<0.000000e+00> : vector<64x4xf32>
    %387 = tpu.matmul %1, %386, %cst_178 {dimension_numbers = #tpu.dot_dimension_numbers<[1], [0], [0], [1], [0, 0, 1, 1], [], []>} : vector<64x64xf32>, vector<64x4xf32>, vector<64x4xf32> -> vector<64x4xf32>
    %388 = vector.extract_strided_slice %387 {offsets = [0, 0], sizes = [64, 1], strides = [1, 1]} : vector<64x4xf32> to vector<64x1xf32>
    %cst_179 = arith.constant 0.001953125 : f32
    %389 = vector.broadcast %cst_179 : f32 to vector<64x1xf32>
    %390 = arith.mulf %388, %389 : vector<64x1xf32>
    %391 = vector.extract_strided_slice %387 {offsets = [0, 1], sizes = [64, 1], strides = [1, 1]} : vector<64x4xf32> to vector<64x1xf32>
    %cst_180 = arith.constant 0.001953125 : f32
    %392 = vector.broadcast %cst_180 : f32 to vector<64x1xf32>
    %393 = arith.mulf %391, %392 : vector<64x1xf32>
    %394 = arith.mulf %390, %390 : vector<64x1xf32>
    %395 = arith.subf %393, %394 : vector<64x1xf32>
    %396 = vector.extract_strided_slice %371 {offsets = [0, 0], sizes = [64, 256], strides = [1, 1]} : vector<64x512xf32> to vector<64x256xf32>
    %397 = vector.broadcast %390 : vector<64x1xf32> to vector<64x256xf32>
    %398 = arith.subf %396, %397 : vector<64x256xf32>
    %cst_181 = arith.constant 9.99999974E-6 : f32
    %399 = vector.broadcast %cst_181 : f32 to vector<64x1xf32>
    %400 = arith.addf %395, %399 : vector<64x1xf32>
    %401 = math.rsqrt %400 : vector<64x1xf32>
    %402 = vector.broadcast %401 : vector<64x1xf32> to vector<64x256xf32>
    %403 = arith.mulf %398, %402 : vector<64x256xf32>
    %404 = vector.extract_strided_slice %387 {offsets = [0, 2], sizes = [64, 1], strides = [1, 1]} : vector<64x4xf32> to vector<64x1xf32>
    %cst_182 = arith.constant 0.001953125 : f32
    %405 = vector.broadcast %cst_182 : f32 to vector<64x1xf32>
    %406 = arith.mulf %404, %405 : vector<64x1xf32>
    %407 = vector.extract_strided_slice %387 {offsets = [0, 3], sizes = [64, 1], strides = [1, 1]} : vector<64x4xf32> to vector<64x1xf32>
    %cst_183 = arith.constant 0.001953125 : f32
    %408 = vector.broadcast %cst_183 : f32 to vector<64x1xf32>
    %409 = arith.mulf %407, %408 : vector<64x1xf32>
    %410 = arith.mulf %406, %406 : vector<64x1xf32>
    %411 = arith.subf %409, %410 : vector<64x1xf32>
    %412 = vector.extract_strided_slice %371 {offsets = [0, 256], sizes = [64, 256], strides = [1, 1]} : vector<64x512xf32> to vector<64x256xf32>
    %413 = vector.broadcast %406 : vector<64x1xf32> to vector<64x256xf32>
    %414 = arith.subf %412, %413 : vector<64x256xf32>
    %cst_184 = arith.constant 9.99999974E-6 : f32
    %415 = vector.broadcast %cst_184 : f32 to vector<64x1xf32>
    %416 = arith.addf %411, %415 : vector<64x1xf32>
    %417 = math.rsqrt %416 : vector<64x1xf32>
    %418 = vector.broadcast %417 : vector<64x1xf32> to vector<64x256xf32>
    %419 = arith.mulf %414, %418 : vector<64x256xf32>
    %420 = tpu.concatenate %403, %419 in 1 : vector<64x256xf32>, vector<64x256xf32> -> vector<64x512xf32>
    %421 = vector.broadcast %372 : vector<64x1xf32> to vector<64x512xf32>
    %422 = arith.mulf %420, %421 : vector<64x512xf32>
    %423 = vector.broadcast %373 : vector<64x1xf32> to vector<64x512xf32>
    %424 = arith.addf %422, %423 : vector<64x512xf32>
    %cst_185 = arith.constant 0.000000e+00 : f32
    %425 = vector.broadcast %cst_185 : f32 to vector<64x512xf32>
    %426 = arith.maximumf %424, %425 : vector<64x512xf32>
    %c0_186 = arith.constant 0 : index
    %c0_187 = arith.constant 0 : index
    %427 = vector.load %arg8[%c0_186, %c0_187] : memref<2x65xf32, #tpu.memory_space<vmem>>, vector<2x65xf32>
    %428 = vector.extract_strided_slice %427 {offsets = [0, 0], sizes = [2, 64], strides = [1, 1]} : vector<2x65xf32> to vector<2x64xf32>
    %429 = arith.truncf %428 : vector<2x64xf32> to vector<2x64xbf16>
    %430 = arith.truncf %426 : vector<64x512xf32> to vector<64x512xbf16>
    %cst_188 = arith.constant dense<0.000000e+00> : vector<2x512xf32>
    %431 = tpu.matmul %429, %430, %cst_188 {dimension_numbers = #tpu.dot_dimension_numbers<[1], [0], [0], [1], [0, 0, 1, 1], [], []>} : vector<2x64xbf16>, vector<64x512xbf16>, vector<2x512xf32> -> vector<2x512xf32>
    %432 = vector.extract_strided_slice %427 {offsets = [0, 64], sizes = [2, 1], strides = [1, 1]} : vector<2x65xf32> to vector<2x1xf32>
    %433 = vector.broadcast %432 : vector<2x1xf32> to vector<2x512xf32>
    %434 = arith.addf %431, %433 : vector<2x512xf32>
    %435 = vector.extract_strided_slice %434 {offsets = [0, 0], sizes = [2, 256], strides = [1, 1]} : vector<2x512xf32> to vector<2x256xf32>
    %c0_189 = arith.constant 0 : index
    %c0_190 = arith.constant 0 : index
    %c0_191 = arith.constant 0 : index
    %436 = vector.load %arg11[%c0_189, %c0_190, %c0_191] : memref<2x2x256xf32, #tpu.memory_space<vmem>>, vector<1x2x256xf32>
    %437 = vector.shape_cast %436 : vector<1x2x256xf32> to vector<2x256xf32>
    %438 = vector.shape_cast %435 : vector<2x256xf32> to vector<1x2x256xf32>
    tpu.vector_store %arg11[%c0_189, %c0_190, %c0_191], %438 {strides = array<i32>} : memref<2x2x256xf32, #tpu.memory_space<vmem>>, vector<1x2x256xf32>,
    %439 = vector.extract_strided_slice %434 {offsets = [0, 256], sizes = [2, 256], strides = [1, 1]} : vector<2x512xf32> to vector<2x256xf32>
    %c1_192 = arith.constant 1 : index
    %c0_193 = arith.constant 0 : index
    %c0_194 = arith.constant 0 : index
    %440 = vector.load %arg11[%c1_192, %c0_193, %c0_194] : memref<2x2x256xf32, #tpu.memory_space<vmem>>, vector<1x2x256xf32>
    %441 = vector.shape_cast %440 : vector<1x2x256xf32> to vector<2x256xf32>
    %442 = vector.shape_cast %439 : vector<2x256xf32> to vector<1x2x256xf32>
    tpu.vector_store %arg11[%c1_192, %c0_193, %c0_194], %442 {strides = array<i32>} : memref<2x2x256xf32, #tpu.memory_space<vmem>>, vector<1x2x256xf32>,
    return
  }
  func.func @transform_0(%arg0: i32) -> (i32, i32, i32) {
    %c0_i32 = arith.constant 0 : i32
    %c0_i32_0 = arith.constant 0 : i32
    %c0_i32_1 = arith.constant 0 : i32
    return %arg0, %c0_i32, %c0_i32_0 : i32, i32, i32
  }
  func.func @transform_1(%arg0: i32) -> (i32, i32, i32) {
    %c0_i32 = arith.constant 0 : i32
    %c0_i32_0 = arith.constant 0 : i32
    %c0_i32_1 = arith.constant 0 : i32
    return %arg0, %c0_i32, %c0_i32_0 : i32, i32, i32
  }
  func.func @transform_2(%arg0: i32) -> (i32, i32, i32) {
    %c0_i32 = arith.constant 0 : i32
    %c0_i32_0 = arith.constant 0 : i32
    %c0_i32_1 = arith.constant 0 : i32
    return %arg0, %c0_i32, %c0_i32_0 : i32, i32, i32
  }
  func.func @transform_3(%arg0: i32) -> (i32, i32) {
    %c0_i32 = arith.constant 0 : i32
    %c0_i32_0 = arith.constant 0 : i32
    %c0_i32_1 = arith.constant 0 : i32
    return %c0_i32, %c0_i32_0 : i32, i32
  }
  func.func @transform_4(%arg0: i32) -> (i32, i32) {
    %c0_i32 = arith.constant 0 : i32
    %c0_i32_0 = arith.constant 0 : i32
    %c0_i32_1 = arith.constant 0 : i32
    return %c0_i32, %c0_i32_0 : i32, i32
  }
  func.func @transform_5(%arg0: i32) -> (i32, i32, i32) {
    %c0_i32 = arith.constant 0 : i32
    %c0_i32_0 = arith.constant 0 : i32
    %c0_i32_1 = arith.constant 0 : i32
    %c0_i32_2 = arith.constant 0 : i32
    return %c0_i32, %c0_i32_0, %c0_i32_1 : i32, i32, i32
  }
  func.func @transform_6(%arg0: i32) -> (i32, i32) {
    %c0_i32 = arith.constant 0 : i32
    %c0_i32_0 = arith.constant 0 : i32
    %c0_i32_1 = arith.constant 0 : i32
    return %c0_i32, %c0_i32_0 : i32, i32
  }
  func.func @transform_7(%arg0: i32) -> (i32, i32) {
    %c0_i32 = arith.constant 0 : i32
    %c0_i32_0 = arith.constant 0 : i32
    %c0_i32_1 = arith.constant 0 : i32
    return %c0_i32, %c0_i32_0 : i32, i32
  }
  func.func @transform_8(%arg0: i32) -> (i32, i32) {
    %c0_i32 = arith.constant 0 : i32
    %c0_i32_0 = arith.constant 0 : i32
    %c0_i32_1 = arith.constant 0 : i32
    return %c0_i32, %c0_i32_0 : i32, i32
  }
  func.func @transform_9(%arg0: i32) -> (i32, i32, i32) {
    %c0_i32 = arith.constant 0 : i32
    %c0_i32_0 = arith.constant 0 : i32
    %c0_i32_1 = arith.constant 0 : i32
    return %arg0, %c0_i32, %c0_i32_0 : i32, i32, i32
  }
  func.func @transform_10(%arg0: i32) -> (i32, i32, i32) {
    %c0_i32 = arith.constant 0 : i32
    %c0_i32_0 = arith.constant 0 : i32
    %c0_i32_1 = arith.constant 0 : i32
    return %arg0, %c0_i32, %c0_i32_0 : i32, i32, i32
  }
}

</mosaic_0001>

<llo_original>
// kernel: tpu_custom_call.1
$region0: #{tpu_custom_call.1}
  #allocation0 [shape = 'u32[]', space=smem, size = 0x4, offset = 0x4, fixed_abs, tag = 'smem constant byte address 0x4 - core index']
  #allocation1 [shape = 'u32[72,128]{1,0:T(1,128)}', space=vmem, size = 0x9000, scoped, tag = 'internal scratch']
  %s0 = inlined_call_operand.vmem [shape: bf16[2,16,256], index: 0, kind: input, shape index: {}]
  %s1 = inlined_call_operand.vmem [shape: bf16[2,16,64], index: 1, kind: input, shape index: {}]
  %s2 = inlined_call_operand.vmem [shape: bf16[2,32,16], index: 2, kind: input, shape index: {}]
  %s3 = inlined_call_operand.vmem [shape: bf16[64,256], index: 3, kind: input, shape index: {}]
  %s4 = inlined_call_operand.hbm [shape: bf16[16,256], index: 4, kind: input, shape index: {}]
  %s5 = inlined_call_operand.hbm [shape: bf16[4,64,64], index: 5, kind: input, shape index: {}]
  %s6 = inlined_call_operand.vmem [shape: f32[64,10], index: 6, kind: input, shape index: {}]
  %s7 = inlined_call_operand.vmem [shape: f32[2,65], index: 7, kind: input, shape index: {}]
  %s8 = inlined_call_operand.hbm [shape: f32[64,64], index: 8, kind: input, shape index: {}]
  %s9 = inlined_call_operand.hbm [shape: f32[2,16,64], index: 9, kind: input, shape index: {}]
  %s10 = inlined_call_operand.hbm [shape: f32[2,2,256], index: 10, kind: output, shape index: {}]
  %s11 = sld [smem:[#allocation0]]
  $region66: #{tpu_custom_call.1} parent=0
    _
  %s13 = ssub.s32 1, %s11
  %s14 = scalar_select 0, %s13, %s11
  $region1: #{tpu_custom_call.1} parent=0
    #allocation2 [shape = 'u8[8192]{0}', space=vmem, size = 0x2000, scoped, tag = 'input window, operand 4, single buffered']
    #allocation3 [shape = 's32[1]{0}', space=sflag, size = 0x4, scoped, tag = 'scoped memory for tpu_custom_call.1']
    #allocation4 [shape = 's32[1]{0}', space=sflag, size = 0x4, scoped, tag = 'scoped memory for tpu_custom_call.1']
    #allocation5 [shape = 'u8[65536]{0}', space=vmem, size = 0x10000, scoped, tag = 'input window, operand 5, single buffered']
    #allocation6 [shape = 's32[1]{0}', space=sflag, size = 0x4, scoped, tag = 'scoped memory for tpu_custom_call.1']
    #allocation7 [shape = 'u8[32768]{0}', space=vmem, size = 0x8000, scoped, tag = 'input window, operand 8, single buffered']
    #allocation8 [shape = 'u8[16384]{0}', space=vmem, size = 0x4000, scoped, tag = 'input window, operand 9, single buffered']
    #allocation9 [shape = 's32[1]{0}', space=sflag, size = 0x4, scoped, tag = 'scoped memory for tpu_custom_call.1']
    #allocation10 [shape = 'u8[4096]{0}', space=vmem, size = 0x1000, scoped, tag = 'output window, operand 0, single buffered']
    %15 = vsyncpa [#allocation3], 0
    %16 = vsyncpa [#allocation6], 0
    %17 = vsyncpa [#allocation9], 0
    %18 = vsyncpa [#allocation4], 0
    // Predicated region
    $region2: #{tpu_custom_call.1} parent=1 // pred_check
      _
    $region3: #{tpu_custom_call.1} parent=1 // pred_check_branch
      %20 = sbr.rel (0) target = $region5
    $region4: #{tpu_custom_call.1} parent=1 // pred_region
      _
    $region5: #{tpu_custom_call.1} parent=1 // pred_fallthru
      _
    // Predicated region
    $region6: #{tpu_custom_call.1} parent=1 // pred_check
      _
    $region7: #{tpu_custom_call.1} parent=1 // pred_check_branch
      %22 = sbr.rel (0) target = $region9
    $region8: #{tpu_custom_call.1} parent=1 // pred_region
      _
    $region9: #{tpu_custom_call.1} parent=1 // pred_fallthru
      _
    // Predicated region
    $region10: #{tpu_custom_call.1} parent=1 // pred_check
      _
    $region11: #{tpu_custom_call.1} parent=1 // pred_check_branch
      %24 = sbr.rel (0) target = $region13
    $region12: #{tpu_custom_call.1} parent=1 // pred_region
      _
    $region13: #{tpu_custom_call.1} parent=1 // pred_fallthru
      _
    // Predicated region
    $region14: #{tpu_custom_call.1} parent=1 // pred_check
      _
    $region15: #{tpu_custom_call.1} parent=1 // pred_check_branch
      %26 = sbr.rel (0) target = $region17
    $region16: #{tpu_custom_call.1} parent=1 // pred_region
      _
    $region17: #{tpu_custom_call.1} parent=1 // pred_fallthru
      _
    // Predicated region
    $region18: #{tpu_custom_call.1} parent=1 // pred_check
      _
    $region19: #{tpu_custom_call.1} parent=1 // pred_check_branch
      %28 = sbr.rel (0) target = $region21
    $region20: #{tpu_custom_call.1} parent=1 // pred_region
      %30 = vsyncadd [#allocation3], 0
      %s31 = sshll.u32 %s4, 4
      %s32 = int_to_ptr.hbm [resolvable:$true] %s31
      %s33 = sshll.u32 [#allocation2], 4
      %s34 = int_to_ptr.vmem [resolvable:$true] %s33
      %39 = dma.hbm_to_vmem [thread:$0]  %s32, 256, %s34, [#allocation3], 128, 128, 8
    $region21: #{tpu_custom_call.1} parent=1 // pred_fallthru
      _
    // Predicated region
    $region22: #{tpu_custom_call.1} parent=1 // pred_check
      _
    $region23: #{tpu_custom_call.1} parent=1 // pred_check_branch
      %41 = sbr.rel (0) target = $region25
    $region24: #{tpu_custom_call.1} parent=1 // pred_region
      %43 = vsyncadd [#allocation6], 0
      %s44 = sshll.u32 %s5, 4
      %s45 = int_to_ptr.hbm [resolvable:$true] %s44
      %s46 = sshll.u32 [#allocation5], 4
      %s47 = int_to_ptr.vmem [resolvable:$true] %s46
      %52 = dma.hbm_to_vmem [thread:$0]  %s45, 2048, %s47, [#allocation6], 64, 64, 4
    $region25: #{tpu_custom_call.1} parent=1 // pred_fallthru
      _
    // Predicated region
    $region26: #{tpu_custom_call.1} parent=1 // pred_check
      _
    $region27: #{tpu_custom_call.1} parent=1 // pred_check_branch
      %54 = sbr.rel (0) target = $region29
    $region28: #{tpu_custom_call.1} parent=1 // pred_region
      _
    $region29: #{tpu_custom_call.1} parent=1 // pred_fallthru
      _
    // Predicated region
    $region30: #{tpu_custom_call.1} parent=1 // pred_check
      _
    $region31: #{tpu_custom_call.1} parent=1 // pred_check_branch
      %56 = sbr.rel (0) target = $region33
    $region32: #{tpu_custom_call.1} parent=1 // pred_region
      _
    $region33: #{tpu_custom_call.1} parent=1 // pred_fallthru
      _
    // Predicated region
    $region34: #{tpu_custom_call.1} parent=1 // pred_check
      _
    $region35: #{tpu_custom_call.1} parent=1 // pred_check_branch
      %58 = sbr.rel (0) target = $region37
    $region36: #{tpu_custom_call.1} parent=1 // pred_region
      %60 = vsyncadd [#allocation6], 0
      %s61 = sshll.u32 %s8, 4
      %s62 = int_to_ptr.hbm [resolvable:$true] %s61
      %s63 = sshll.u32 [#allocation7], 4
      %s64 = int_to_ptr.vmem [resolvable:$true] %s63
      %69 = dma.hbm_to_vmem [thread:$0]  %s62, 1024, %s64, [#allocation6], 128, 128, 8
    $region37: #{tpu_custom_call.1} parent=1 // pred_fallthru
      _
    // Predicated region
    $region38: #{tpu_custom_call.1} parent=1 // pred_check
      _
    $region39: #{tpu_custom_call.1} parent=1 // pred_check_branch
      %71 = sbr.rel (0) target = $region41
    $region40: #{tpu_custom_call.1} parent=1 // pred_region
      %73 = vsyncadd [#allocation9], 0
      %s74 = sshll.u32 %s9, 4
      %s75 = int_to_ptr.hbm [resolvable:$true] %s74
      %s76 = sshll.u32 [#allocation8], 4
      %s77 = int_to_ptr.vmem [resolvable:$true] %s76
      %82 = dma.hbm_to_vmem [thread:$0]  %s75, 512, %s77, [#allocation9], 128, 128, 8
    $region41: #{tpu_custom_call.1} parent=1 // pred_fallthru
      _
    // Predicated region
    $region42: #{tpu_custom_call.1} parent=1 // pred_check
      _
    $region43: #{tpu_custom_call.1} parent=1 // pred_check_branch
      %84 = sbr.rel (0) target = $region45
    $region44: #{tpu_custom_call.1} parent=1 // pred_region
      %86 = dma.done [#allocation3], 256
    $region45: #{tpu_custom_call.1} parent=1 // pred_fallthru
      _
    // Predicated region
    $region46: #{tpu_custom_call.1} parent=1 // pred_check
      _
    $region47: #{tpu_custom_call.1} parent=1 // pred_check_branch
      %88 = sbr.rel (0) target = $region49
    $region48: #{tpu_custom_call.1} parent=1 // pred_region
      %90 = dma.done [#allocation6], 2048
    $region49: #{tpu_custom_call.1} parent=1 // pred_fallthru
      _
    // Predicated region
    $region50: #{tpu_custom_call.1} parent=1 // pred_check
      _
    $region51: #{tpu_custom_call.1} parent=1 // pred_check_branch
      %92 = sbr.rel (0) target = $region53
    $region52: #{tpu_custom_call.1} parent=1 // pred_region
      %94 = dma.done [#allocation6], 1024
    $region53: #{tpu_custom_call.1} parent=1 // pred_fallthru
      _
    // Predicated region
    $region54: #{tpu_custom_call.1} parent=1 // pred_check
      _
    $region55: #{tpu_custom_call.1} parent=1 // pred_check_branch
      %96 = sbr.rel (0) target = $region57
    $region56: #{tpu_custom_call.1} parent=1 // pred_region
      %98 = dma.done [#allocation9], 512
    $region57: #{tpu_custom_call.1} parent=1 // pred_fallthru
      _
    %v100 = vld [vmem:[%s6] sm:$0xff]
    %v101 = vld [vmem:[%s6 + $0x8] sm:$0xff]
    %v102 = vld [vmem:[%s6 + $0x10] sm:$0xff]
    %v103 = vld [vmem:[%s6 + $0x18] sm:$0xff]
    %v104 = vld [vmem:[%s6 + $0x20] sm:$0xff]
    %v105 = vld [vmem:[%s6 + $0x28] sm:$0xff]
    %v106 = vld [vmem:[%s6 + $0x30] sm:$0xff]
    %v107 = vld [vmem:[%s6 + $0x38] sm:$0xff]
    %v108 = vld [vmem:[#allocation7] sm:$0xff]
    %v109 = vld [vmem:[#allocation7 + $0x8] sm:$0xff]
    %v110 = vld [vmem:[#allocation7 + $0x10] sm:$0xff]
    %v111 = vld [vmem:[#allocation7 + $0x18] sm:$0xff]
    %v112 = vld [vmem:[#allocation7 + $0x20] sm:$0xff]
    %v113 = vld [vmem:[#allocation7 + $0x28] sm:$0xff]
    %v114 = vld [vmem:[#allocation7 + $0x30] sm:$0xff]
    %v115 = vld [vmem:[#allocation7 + $0x38] sm:$0xff]
    %v116 = vld [vmem:[#allocation5] sm:$0xf]
    %v117 = vld [vmem:[#allocation5 + $0x4] sm:$0xf]
    %v118 = vld [vmem:[#allocation5 + $0x8] sm:$0xf]
    %v119 = vld [vmem:[#allocation5 + $0xc] sm:$0xf]
    %v120 = vld [vmem:[#allocation5 + $0x10] sm:$0xf]
    %v121 = vld [vmem:[#allocation5 + $0x14] sm:$0xf]
    %v122 = vld [vmem:[#allocation5 + $0x18] sm:$0xf]
    %v123 = vld [vmem:[#allocation5 + $0x1c] sm:$0xf]
    %s124 = scalar_lea.vmem [#allocation5], 32
    %v125 = vld [vmem:[%s124] sm:$0xf]
    %v126 = vld [vmem:[%s124 + $0x4] sm:$0xf]
    %v127 = vld [vmem:[%s124 + $0x8] sm:$0xf]
    %v128 = vld [vmem:[%s124 + $0xc] sm:$0xf]
    %v129 = vld [vmem:[%s124 + $0x10] sm:$0xf]
    %v130 = vld [vmem:[%s124 + $0x14] sm:$0xf]
    %v131 = vld [vmem:[%s124 + $0x18] sm:$0xf]
    %v132 = vld [vmem:[%s124 + $0x1c] sm:$0xf]
    %s133 = scalar_lea.vmem [#allocation5], 64
    %v134 = vld [vmem:[%s133] sm:$0xf]
    %v135 = vld [vmem:[%s133 + $0x4] sm:$0xf]
    %v136 = vld [vmem:[%s133 + $0x8] sm:$0xf]
    %v137 = vld [vmem:[%s133 + $0xc] sm:$0xf]
    %v138 = vld [vmem:[%s133 + $0x10] sm:$0xf]
    %v139 = vld [vmem:[%s133 + $0x14] sm:$0xf]
    %v140 = vld [vmem:[%s133 + $0x18] sm:$0xf]
    %v141 = vld [vmem:[%s133 + $0x1c] sm:$0xf]
    %s142 = scalar_lea.vmem [#allocation5], 96
    %v143 = vld [vmem:[%s142] sm:$0xf]
    %v144 = vld [vmem:[%s142 + $0x4] sm:$0xf]
    %v145 = vld [vmem:[%s142 + $0x8] sm:$0xf]
    %v146 = vld [vmem:[%s142 + $0xc] sm:$0xf]
    %v147 = vld [vmem:[%s142 + $0x10] sm:$0xf]
    %v148 = vld [vmem:[%s142 + $0x14] sm:$0xf]
    %v149 = vld [vmem:[%s142 + $0x18] sm:$0xf]
    %v150 = vld [vmem:[%s142 + $0x1c] sm:$0xf]
    %v151 = vld [vmem:[%s1] sm:$0xf]
    %v152 = vld [vmem:[%s1 + $0x4] sm:$0xf]
    %v153 = vld [vmem:[%s1 + $0x8] sm:$0xf]
    %v154 = vld [vmem:[%s1 + $0xc] sm:$0xf]
    %v155 = vld [vmem:[%s3] sm:$0xff]
    %v156 = vld [vmem:[%s3 + $0x8] sm:$0xff]
    %v157 = vld [vmem:[%s3 + $0x10] sm:$0xff]
    %v158 = vld [vmem:[%s3 + $0x18] sm:$0xff]
    %v159 = vld [vmem:[%s3 + $0x20] sm:$0xff]
    %v160 = vld [vmem:[%s3 + $0x28] sm:$0xff]
    %v161 = vld [vmem:[%s3 + $0x30] sm:$0xff]
    %v162 = vld [vmem:[%s3 + $0x38] sm:$0xff]
    %v167 = vunpack.c.l.b16 %v151
    %v168 = vunpack.c.l.b16 %v152
    %v169 = vunpack.c.l.b16 %v153
    %v170 = vunpack.c.l.b16 %v154
    %v171 = vpack.c.b16 %v168, %v167
    %v172 = vpack.c.b16 %v170, %v169
    %v181 = vunpack.c.l.b16 %v155
    %v182 = vunpack.c.h.b16 %v155
    %v183 = vunpack.c.l.b16 %v156
    %v184 = vunpack.c.h.b16 %v156
    %v185 = vunpack.c.l.b16 %v157
    %v186 = vunpack.c.h.b16 %v157
    %v187 = vunpack.c.l.b16 %v158
    %v188 = vunpack.c.h.b16 %v158
    %v189 = vunpack.c.l.b16 %v159
    %v190 = vunpack.c.h.b16 %v159
    %v191 = vunpack.c.l.b16 %v160
    %v192 = vunpack.c.h.b16 %v160
    %v193 = vunpack.c.l.b16 %v161
    %v194 = vunpack.c.h.b16 %v161
    %v195 = vunpack.c.l.b16 %v162
    %v196 = vunpack.c.h.b16 %v162
    %v197 = vpack.c.b16 %v183, %v181
    %v198 = vpack.c.b16 %v184, %v182
    %v199 = vpack.c.b16 %v187, %v185
    %v200 = vpack.c.b16 %v188, %v186
    %v201 = vpack.c.b16 %v191, %v189
    %v202 = vpack.c.b16 %v192, %v190
    %v203 = vpack.c.b16 %v195, %v193
    %v204 = vpack.c.b16 %v196, %v194
    %vm213 = vcmask 523264
    %v215 = vsel %vm213, %v171, 0
    %v218 = vsel %vm213, %v172, 0
    %220 = vmatpush.bf16.msra.mxu0 0
    %221 = vmatpush.bf16.msra.mxu0 0
    %222 = vmatpush.bf16.msra.mxu0 0
    %223 = vmatpush.bf16.msra.mxu0 0
    %224 = vmatpush.bf16.msra.mxu0 %v203
    %225 = vmatpush.bf16.msra.mxu0 %v201
    %226 = vmatpush.bf16.msra.mxu0 %v199
    %227 = vmatpush.bf16.msra.mxu0 %v197
    %228 = vmatmul.bf16.gmra.mxu0 %v215
    %v229 = vpop.f32.mrf.mxu0
    %v230 = vadd.f32 0.0, %v229
    %v231 = vpop.f32.mrf.mxu0
    %v232 = vadd.f32 0.0, %v231
    %233 = vmatmul.bf16.gmra.mxu0 %v218
    %v234 = vpop.f32.mrf.mxu0
    %v235 = vadd.f32 0.0, %v234
    %v236 = vpop.f32.mrf.mxu0
    %v237 = vadd.f32 0.0, %v236
    %238 = vdwg.mxu0
    %239 = vmatpush.bf16.msra.mxu0 0
    %240 = vmatpush.bf16.msra.mxu0 0
    %241 = vmatpush.bf16.msra.mxu0 0
    %242 = vmatpush.bf16.msra.mxu0 0
    %243 = vmatpush.bf16.msra.mxu0 %v204
    %244 = vmatpush.bf16.msra.mxu0 %v202
    %245 = vmatpush.bf16.msra.mxu0 %v200
    %246 = vmatpush.bf16.msra.mxu0 %v198
    %247 = vmatmul.bf16.gmra.mxu0 %v215
    %v248 = vpop.f32.mrf.mxu0
    %v249 = vadd.f32 0.0, %v248
    %v250 = vpop.f32.mrf.mxu0
    %v251 = vadd.f32 0.0, %v250
    %252 = vmatmul.bf16.gmra.mxu0 %v218
    %v253 = vpop.f32.mrf.mxu0
    %v254 = vadd.f32 0.0, %v253
    %v255 = vpop.f32.mrf.mxu0
    %v256 = vadd.f32 0.0, %v255
    %257 = vdwg.mxu0
    %v258 = vpack.c.bf16 %v249, %v230
    %v259 = vpack.c.bf16 %v251, %v232
    %v260 = vpack.c.bf16 %v254, %v235
    %v261 = vpack.c.bf16 %v256, %v237
    %v262 = vld [vmem:[%s2] sm:$0xf]
    %v263 = vld [vmem:[%s2 + $0x4] sm:$0xf]
    %v264 = vld [vmem:[%s2 + $0x8] sm:$0xf]
    %v265 = vld [vmem:[%s2 + $0xc] sm:$0xf]
    %v266 = vld [vmem:[%s2 + $0x10] sm:$0xf]
    %v267 = vld [vmem:[%s2 + $0x14] sm:$0xf]
    %v268 = vld [vmem:[%s2 + $0x18] sm:$0xf]
    %v269 = vld [vmem:[%s2 + $0x1c] sm:$0xf]
    %v270 = vld [vmem:[#allocation2] sm:$0xff]
    %v271 = vld [vmem:[#allocation2 + $0x8] sm:$0xff]
    %v280 = vunpack.c.l.b16 %v262
    %v281 = vunpack.c.l.b16 %v263
    %v282 = vunpack.c.l.b16 %v264
    %v283 = vunpack.c.l.b16 %v265
    %v284 = vunpack.c.l.b16 %v266
    %v285 = vunpack.c.l.b16 %v267
    %v286 = vunpack.c.l.b16 %v268
    %v287 = vunpack.c.l.b16 %v269
    %v288 = vpack.c.b16 %v281, %v280
    %v289 = vpack.c.b16 %v283, %v282
    %v290 = vpack.c.b16 %v285, %v284
    %v291 = vpack.c.b16 %v287, %v286
    %v294 = vunpack.c.l.b16 %v270
    %v295 = vunpack.c.h.b16 %v270
    %v296 = vunpack.c.l.b16 %v271
    %v297 = vunpack.c.h.b16 %v271
    %v298 = vpack.c.b16 %v296, %v294
    %v299 = vpack.c.b16 %v297, %v295
    %vm302 = vcmask 130048
    %v304 = vsel %vm302, %v288, 0
    %v307 = vsel %vm302, %v289, 0
    %v310 = vsel %vm302, %v290, 0
    %v313 = vsel %vm302, %v291, 0
    %315 = vmatpush.bf16.msra.mxu0 0
    %316 = vmatpush.bf16.msra.mxu0 0
    %317 = vmatpush.bf16.msra.mxu0 0
    %318 = vmatpush.bf16.msra.mxu0 0
    %319 = vmatpush.bf16.msra.mxu0 0
    %320 = vmatpush.bf16.msra.mxu0 0
    %321 = vmatpush.bf16.msra.mxu0 0
    %322 = vmatpush.bf16.msra.mxu0 %v298
    %323 = vmatmul.bf16.gmra.mxu0 %v304
    %v324 = vpop.f32.mrf.mxu0
    %v325 = vadd.f32 0.0, %v324
    %v326 = vpop.f32.mrf.mxu0
    %v327 = vadd.f32 0.0, %v326
    %328 = vmatmul.bf16.gmra.mxu0 %v307
    %v329 = vpop.f32.mrf.mxu0
    %v330 = vadd.f32 0.0, %v329
    %v331 = vpop.f32.mrf.mxu0
    %v332 = vadd.f32 0.0, %v331
    %333 = vmatmul.bf16.gmra.mxu0 %v310
    %v334 = vpop.f32.mrf.mxu0
    %v335 = vadd.f32 0.0, %v334
    %v336 = vpop.f32.mrf.mxu0
    %v337 = vadd.f32 0.0, %v336
    %338 = vmatmul.bf16.gmra.mxu0 %v313
    %v339 = vpop.f32.mrf.mxu0
    %v340 = vadd.f32 0.0, %v339
    %v341 = vpop.f32.mrf.mxu0
    %v342 = vadd.f32 0.0, %v341
    %343 = vdwg.mxu0
    %344 = vmatpush.bf16.msra.mxu0 0
    %345 = vmatpush.bf16.msra.mxu0 0
    %346 = vmatpush.bf16.msra.mxu0 0
    %347 = vmatpush.bf16.msra.mxu0 0
    %348 = vmatpush.bf16.msra.mxu0 0
    %349 = vmatpush.bf16.msra.mxu0 0
    %350 = vmatpush.bf16.msra.mxu0 0
    %351 = vmatpush.bf16.msra.mxu0 %v299
    %352 = vmatmul.bf16.gmra.mxu0 %v304
    %v353 = vpop.f32.mrf.mxu0
    %v354 = vadd.f32 0.0, %v353
    %v355 = vpop.f32.mrf.mxu0
    %v356 = vadd.f32 0.0, %v355
    %357 = vmatmul.bf16.gmra.mxu0 %v307
    %v358 = vpop.f32.mrf.mxu0
    %v359 = vadd.f32 0.0, %v358
    %v360 = vpop.f32.mrf.mxu0
    %v361 = vadd.f32 0.0, %v360
    %362 = vmatmul.bf16.gmra.mxu0 %v310
    %v363 = vpop.f32.mrf.mxu0
    %v364 = vadd.f32 0.0, %v363
    %v365 = vpop.f32.mrf.mxu0
    %v366 = vadd.f32 0.0, %v365
    %367 = vmatmul.bf16.gmra.mxu0 %v313
    %v368 = vpop.f32.mrf.mxu0
    %v369 = vadd.f32 0.0, %v368
    %v370 = vpop.f32.mrf.mxu0
    %v371 = vadd.f32 0.0, %v370
    %372 = vdwg.mxu0
    %v373 = vpack.c.bf16 %v354, %v325
    %v374 = vpack.c.bf16 %v356, %v327
    %v375 = vpack.c.bf16 %v359, %v330
    %v376 = vpack.c.bf16 %v361, %v332
    %v377 = vpack.c.bf16 %v364, %v335
    %v378 = vpack.c.bf16 %v366, %v337
    %v379 = vpack.c.bf16 %v369, %v340
    %v380 = vpack.c.bf16 %v371, %v342
    %v381 = vld [vmem:[%s0] sm:$0xff]
    %v382 = vld [vmem:[%s0 + $0x8] sm:$0xff]
    %v385 = vunpack.c.l.b16 %v381
    %v386 = vunpack.c.h.b16 %v381
    %v387 = vunpack.c.l.b16 %v382
    %v388 = vunpack.c.h.b16 %v382
    %v389 = vpack.c.b16 %v387, %v385
    %v390 = vpack.c.b16 %v388, %v386
    %v395 = vunpack.c.l.b16 %v258
    %v396 = vunpack.c.h.b16 %v258
    %v397 = vunpack.c.l.b16 %v259
    %v398 = vunpack.c.h.b16 %v259
    %v399 = vpack.c.b16 %v397, %v395
    %v400 = vpack.c.b16 %v398, %v396
    %v407 = vunpack.c.l.b16 %v373
    %v408 = vunpack.c.h.b16 %v373
    %v409 = vunpack.c.l.b16 %v374
    %v410 = vunpack.c.h.b16 %v374
    %v411 = vunpack.c.l.b16 %v375
    %v412 = vunpack.c.h.b16 %v375
    %v413 = vunpack.c.l.b16 %v376
    %v414 = vunpack.c.h.b16 %v376
    %v415 = vpack.c.b16 %v409, %v407
    %v416 = vpack.c.b16 %v410, %v408
    %v417 = vpack.c.b16 %v413, %v411
    %v418 = vpack.c.b16 %v414, %v412
    %s423 = scalar_lea.vmem %s0, 16
    %v424 = vld [vmem:[%s423] sm:$0xff]
    %v425 = vld [vmem:[%s423 + $0x8] sm:$0xff]
    %v428 = vunpack.c.l.b16 %v424
    %v429 = vunpack.c.h.b16 %v424
    %v430 = vunpack.c.l.b16 %v425
    %v431 = vunpack.c.h.b16 %v425
    %v432 = vpack.c.b16 %v430, %v428
    %v433 = vpack.c.b16 %v431, %v429
    %v438 = vunpack.c.l.b16 %v260
    %v439 = vunpack.c.h.b16 %v260
    %v440 = vunpack.c.l.b16 %v261
    %v441 = vunpack.c.h.b16 %v261
    %v442 = vpack.c.b16 %v440, %v438
    %v443 = vpack.c.b16 %v441, %v439
    %v450 = vunpack.c.l.b16 %v377
    %v451 = vunpack.c.h.b16 %v377
    %v452 = vunpack.c.l.b16 %v378
    %v453 = vunpack.c.h.b16 %v378
    %v454 = vunpack.c.l.b16 %v379
    %v455 = vunpack.c.h.b16 %v379
    %v456 = vunpack.c.l.b16 %v380
    %v457 = vunpack.c.h.b16 %v380
    %v458 = vpack.c.b16 %v452, %v450
    %v459 = vpack.c.b16 %v453, %v451
    %v460 = vpack.c.b16 %v456, %v454
    %v461 = vpack.c.b16 %v457, %v455
    %467 = vset.pattern.permute.xlu0 0
    %468 = vperm.xlu0 %467, %v100
    %v469 = vpop.permute.xlu0 %468
    %472 = vset.pattern.permute.xlu0 0
    %473 = vperm.xlu0 %472, %v101
    %v474 = vpop.permute.xlu0 %473
    %477 = vset.pattern.permute.xlu0 0
    %478 = vperm.xlu0 %477, %v102
    %v479 = vpop.permute.xlu0 %478
    %482 = vset.pattern.permute.xlu0 0
    %483 = vperm.xlu0 %482, %v103
    %v484 = vpop.permute.xlu0 %483
    %487 = vset.pattern.permute.xlu0 0
    %488 = vperm.xlu0 %487, %v104
    %v489 = vpop.permute.xlu0 %488
    %492 = vset.pattern.permute.xlu0 0
    %493 = vperm.xlu0 %492, %v105
    %v494 = vpop.permute.xlu0 %493
    %497 = vset.pattern.permute.xlu0 0
    %498 = vperm.xlu0 %497, %v106
    %v499 = vpop.permute.xlu0 %498
    %502 = vset.pattern.permute.xlu0 0
    %503 = vperm.xlu0 %502, %v107
    %v504 = vpop.permute.xlu0 %503
    %v514 = vunpack.c.l.b16 %v116
    %v515 = vunpack.c.l.b16 %v117
    %v516 = vunpack.c.l.b16 %v118
    %v517 = vunpack.c.l.b16 %v119
    %v518 = vunpack.c.l.b16 %v120
    %v519 = vunpack.c.l.b16 %v121
    %v520 = vunpack.c.l.b16 %v122
    %v521 = vunpack.c.l.b16 %v123
    %v522 = vpack.c.b16 %v515, %v514
    %v523 = vpack.c.b16 %v517, %v516
    %v524 = vpack.c.b16 %v519, %v518
    %v525 = vpack.c.b16 %v521, %v520
    %v527 = vsel %vm213, %v522, 0
    %v530 = vsel %vm213, %v523, 0
    %v533 = vsel %vm213, %v524, 0
    %v536 = vsel %vm213, %v525, 0
    %538 = vmatpush.bf16.msra.mxu0 0
    %539 = vmatpush.bf16.msra.mxu0 0
    %540 = vmatpush.bf16.msra.mxu0 0
    %541 = vmatpush.bf16.msra.mxu0 0
    %542 = vmatpush.bf16.msra.mxu0 %v417
    %543 = vmatpush.bf16.msra.mxu0 %v415
    %544 = vmatpush.bf16.msra.mxu0 %v399
    %545 = vmatpush.bf16.msra.mxu0 %v389
    %546 = vmatmul.bf16.gmra.mxu0 %v527
    %v547 = vpop.f32.mrf.mxu0
    %v548 = vadd.f32 %v469, %v547
    %v549 = vpop.f32.mrf.mxu0
    %v550 = vadd.f32 %v474, %v549
    %551 = vmatmul.bf16.gmra.mxu0 %v530
    %v552 = vpop.f32.mrf.mxu0
    %v553 = vadd.f32 %v479, %v552
    %v554 = vpop.f32.mrf.mxu0
    %v555 = vadd.f32 %v484, %v554
    %556 = vmatmul.bf16.gmra.mxu0 %v533
    %v557 = vpop.f32.mrf.mxu0
    %v558 = vadd.f32 %v489, %v557
    %v559 = vpop.f32.mrf.mxu0
    %v560 = vadd.f32 %v494, %v559
    %561 = vmatmul.bf16.gmra.mxu0 %v536
    %v562 = vpop.f32.mrf.mxu0
    %v563 = vadd.f32 %v499, %v562
    %v564 = vpop.f32.mrf.mxu0
    %v565 = vadd.f32 %v504, %v564
    %566 = vdwg.mxu0
    %567 = vmatpush.bf16.msra.mxu0 0
    %568 = vmatpush.bf16.msra.mxu0 0
    %569 = vmatpush.bf16.msra.mxu0 0
    %570 = vmatpush.bf16.msra.mxu0 0
    %571 = vmatpush.bf16.msra.mxu0 %v418
    %572 = vmatpush.bf16.msra.mxu0 %v416
    %573 = vmatpush.bf16.msra.mxu0 %v400
    %574 = vmatpush.bf16.msra.mxu0 %v390
    %575 = vmatmul.bf16.gmra.mxu0 %v527
    %v576 = vpop.f32.mrf.mxu0
    %v577 = vadd.f32 %v469, %v576
    %v578 = vpop.f32.mrf.mxu0
    %v579 = vadd.f32 %v474, %v578
    %580 = vmatmul.bf16.gmra.mxu0 %v530
    %v581 = vpop.f32.mrf.mxu0
    %v582 = vadd.f32 %v479, %v581
    %v583 = vpop.f32.mrf.mxu0
    %v584 = vadd.f32 %v484, %v583
    %585 = vmatmul.bf16.gmra.mxu0 %v533
    %v586 = vpop.f32.mrf.mxu0
    %v587 = vadd.f32 %v489, %v586
    %v588 = vpop.f32.mrf.mxu0
    %v589 = vadd.f32 %v494, %v588
    %590 = vmatmul.bf16.gmra.mxu0 %v536
    %v591 = vpop.f32.mrf.mxu0
    %v592 = vadd.f32 %v499, %v591
    %v593 = vpop.f32.mrf.mxu0
    %v594 = vadd.f32 %v504, %v593
    %595 = vdwg.mxu0
    %596 = vmatpush.bf16.msra.mxu0 0
    %597 = vmatpush.bf16.msra.mxu0 0
    %598 = vmatpush.bf16.msra.mxu0 0
    %599 = vmatpush.bf16.msra.mxu0 0
    %600 = vmatpush.bf16.msra.mxu0 %v460
    %601 = vmatpush.bf16.msra.mxu0 %v458
    %602 = vmatpush.bf16.msra.mxu0 %v442
    %603 = vmatpush.bf16.msra.mxu0 %v432
    %604 = vmatmul.bf16.gmra.mxu0 %v527
    %v605 = vpop.f32.mrf.mxu0
    %v606 = vadd.f32 %v469, %v605
    %v607 = vpop.f32.mrf.mxu0
    %v608 = vadd.f32 %v474, %v607
    %609 = vmatmul.bf16.gmra.mxu0 %v530
    %v610 = vpop.f32.mrf.mxu0
    %v611 = vadd.f32 %v479, %v610
    %v612 = vpop.f32.mrf.mxu0
    %v613 = vadd.f32 %v484, %v612
    %614 = vmatmul.bf16.gmra.mxu0 %v533
    %v615 = vpop.f32.mrf.mxu0
    %v616 = vadd.f32 %v489, %v615
    %v617 = vpop.f32.mrf.mxu0
    %v618 = vadd.f32 %v494, %v617
    %619 = vmatmul.bf16.gmra.mxu0 %v536
    %v620 = vpop.f32.mrf.mxu0
    %v621 = vadd.f32 %v499, %v620
    %v622 = vpop.f32.mrf.mxu0
    %v623 = vadd.f32 %v504, %v622
    %624 = vdwg.mxu0
    %625 = vmatpush.bf16.msra.mxu0 0
    %626 = vmatpush.bf16.msra.mxu0 0
    %627 = vmatpush.bf16.msra.mxu0 0
    %628 = vmatpush.bf16.msra.mxu0 0
    %629 = vmatpush.bf16.msra.mxu0 %v461
    %630 = vmatpush.bf16.msra.mxu0 %v459
    %631 = vmatpush.bf16.msra.mxu0 %v443
    %632 = vmatpush.bf16.msra.mxu0 %v433
    %633 = vmatmul.bf16.gmra.mxu0 %v527
    %v634 = vpop.f32.mrf.mxu0
    %v635 = vadd.f32 %v469, %v634
    %v636 = vpop.f32.mrf.mxu0
    %v637 = vadd.f32 %v474, %v636
    %638 = vmatmul.bf16.gmra.mxu0 %v530
    %v639 = vpop.f32.mrf.mxu0
    %v640 = vadd.f32 %v479, %v639
    %v641 = vpop.f32.mrf.mxu0
    %v642 = vadd.f32 %v484, %v641
    %643 = vmatmul.bf16.gmra.mxu0 %v533
    %v644 = vpop.f32.mrf.mxu0
    %v645 = vadd.f32 %v489, %v644
    %v646 = vpop.f32.mrf.mxu0
    %v647 = vadd.f32 %v494, %v646
    %648 = vmatmul.bf16.gmra.mxu0 %v536
    %v649 = vpop.f32.mrf.mxu0
    %v650 = vadd.f32 %v499, %v649
    %v651 = vpop.f32.mrf.mxu0
    %v652 = vadd.f32 %v504, %v651
    %653 = vdwg.mxu0
    %v654 = vadd.f32 %v548, %v577
    %655 = vadd.xlane.f32.xlu0 %v654
    %v656 = vpop.xlane.xlu0 %655
    %v657 = vadd.f32 %v550, %v579
    %658 = vadd.xlane.f32.xlu0 %v657
    %v659 = vpop.xlane.xlu0 %658
    %v660 = vadd.f32 %v553, %v582
    %661 = vadd.xlane.f32.xlu0 %v660
    %v662 = vpop.xlane.xlu0 %661
    %v663 = vadd.f32 %v555, %v584
    %664 = vadd.xlane.f32.xlu0 %v663
    %v665 = vpop.xlane.xlu0 %664
    %v666 = vadd.f32 %v558, %v587
    %667 = vadd.xlane.f32.xlu0 %v666
    %v668 = vpop.xlane.xlu0 %667
    %v669 = vadd.f32 %v560, %v589
    %670 = vadd.xlane.f32.xlu0 %v669
    %v671 = vpop.xlane.xlu0 %670
    %v672 = vadd.f32 %v563, %v592
    %673 = vadd.xlane.f32.xlu0 %v672
    %v674 = vpop.xlane.xlu0 %673
    %v675 = vadd.f32 %v565, %v594
    %676 = vadd.xlane.f32.xlu0 %v675
    %v677 = vpop.xlane.xlu0 %676
    %v678 = vmul.f32 %v548, %v548
    %v679 = vmul.f32 %v577, %v577
    %v680 = vmul.f32 %v550, %v550
    %v681 = vmul.f32 %v579, %v579
    %v682 = vmul.f32 %v553, %v553
    %v683 = vmul.f32 %v582, %v582
    %v684 = vmul.f32 %v555, %v555
    %v685 = vmul.f32 %v584, %v584
    %v686 = vmul.f32 %v558, %v558
    %v687 = vmul.f32 %v587, %v587
    %v688 = vmul.f32 %v560, %v560
    %v689 = vmul.f32 %v589, %v589
    %v690 = vmul.f32 %v563, %v563
    %v691 = vmul.f32 %v592, %v592
    %v692 = vmul.f32 %v565, %v565
    %v693 = vmul.f32 %v594, %v594
    %v694 = vadd.f32 %v678, %v679
    %695 = vadd.xlane.f32.xlu0 %v694
    %v696 = vpop.xlane.xlu0 %695
    %v697 = vadd.f32 %v680, %v681
    %698 = vadd.xlane.f32.xlu0 %v697
    %v699 = vpop.xlane.xlu0 %698
    %v700 = vadd.f32 %v682, %v683
    %701 = vadd.xlane.f32.xlu0 %v700
    %v702 = vpop.xlane.xlu0 %701
    %v703 = vadd.f32 %v684, %v685
    %704 = vadd.xlane.f32.xlu0 %v703
    %v705 = vpop.xlane.xlu0 %704
    %v706 = vadd.f32 %v686, %v687
    %707 = vadd.xlane.f32.xlu0 %v706
    %v708 = vpop.xlane.xlu0 %707
    %v709 = vadd.f32 %v688, %v689
    %710 = vadd.xlane.f32.xlu0 %v709
    %v711 = vpop.xlane.xlu0 %710
    %v712 = vadd.f32 %v690, %v691
    %713 = vadd.xlane.f32.xlu0 %v712
    %v714 = vpop.xlane.xlu0 %713
    %v715 = vadd.f32 %v692, %v693
    %716 = vadd.xlane.f32.xlu0 %v715
    %v717 = vpop.xlane.xlu0 %716
    %v718 = vadd.f32 %v606, %v635
    %719 = vadd.xlane.f32.xlu0 %v718
    %v720 = vpop.xlane.xlu0 %719
    %v721 = vadd.f32 %v608, %v637
    %722 = vadd.xlane.f32.xlu0 %v721
    %v723 = vpop.xlane.xlu0 %722
    %v724 = vadd.f32 %v611, %v640
    %725 = vadd.xlane.f32.xlu0 %v724
    %v726 = vpop.xlane.xlu0 %725
    %v727 = vadd.f32 %v613, %v642
    %728 = vadd.xlane.f32.xlu0 %v727
    %v729 = vpop.xlane.xlu0 %728
    %v730 = vadd.f32 %v616, %v645
    %731 = vadd.xlane.f32.xlu0 %v730
    %v732 = vpop.xlane.xlu0 %731
    %v733 = vadd.f32 %v618, %v647
    %734 = vadd.xlane.f32.xlu0 %v733
    %v735 = vpop.xlane.xlu0 %734
    %v736 = vadd.f32 %v621, %v650
    %737 = vadd.xlane.f32.xlu0 %v736
    %v738 = vpop.xlane.xlu0 %737
    %v739 = vadd.f32 %v623, %v652
    %740 = vadd.xlane.f32.xlu0 %v739
    %v741 = vpop.xlane.xlu0 %740
    %v742 = vmul.f32 %v606, %v606
    %v743 = vmul.f32 %v635, %v635
    %v744 = vmul.f32 %v608, %v608
    %v745 = vmul.f32 %v637, %v637
    %v746 = vmul.f32 %v611, %v611
    %v747 = vmul.f32 %v640, %v640
    %v748 = vmul.f32 %v613, %v613
    %v749 = vmul.f32 %v642, %v642
    %v750 = vmul.f32 %v616, %v616
    %v751 = vmul.f32 %v645, %v645
    %v752 = vmul.f32 %v618, %v618
    %v753 = vmul.f32 %v647, %v647
    %v754 = vmul.f32 %v621, %v621
    %v755 = vmul.f32 %v650, %v650
    %v756 = vmul.f32 %v623, %v623
    %v757 = vmul.f32 %v652, %v652
    %v758 = vadd.f32 %v742, %v743
    %759 = vadd.xlane.f32.xlu0 %v758
    %v760 = vpop.xlane.xlu0 %759
    %v761 = vadd.f32 %v744, %v745
    %762 = vadd.xlane.f32.xlu0 %v761
    %v763 = vpop.xlane.xlu0 %762
    %v764 = vadd.f32 %v746, %v747
    %765 = vadd.xlane.f32.xlu0 %v764
    %v766 = vpop.xlane.xlu0 %765
    %v767 = vadd.f32 %v748, %v749
    %768 = vadd.xlane.f32.xlu0 %v767
    %v769 = vpop.xlane.xlu0 %768
    %v770 = vadd.f32 %v750, %v751
    %771 = vadd.xlane.f32.xlu0 %v770
    %v772 = vpop.xlane.xlu0 %771
    %v773 = vadd.f32 %v752, %v753
    %774 = vadd.xlane.f32.xlu0 %v773
    %v775 = vpop.xlane.xlu0 %774
    %v776 = vadd.f32 %v754, %v755
    %777 = vadd.xlane.f32.xlu0 %v776
    %v778 = vpop.xlane.xlu0 %777
    %v779 = vadd.f32 %v756, %v757
    %780 = vadd.xlane.f32.xlu0 %v779
    %v781 = vpop.xlane.xlu0 %780
    %vm782 = vcmask 7168
    %v783 = vsel %vm782, %v656, %v696
    %v784 = vsel %vm782, %v659, %v699
    %v785 = vsel %vm782, %v662, %v702
    %v786 = vsel %vm782, %v665, %v705
    %v787 = vsel %vm782, %v668, %v708
    %v788 = vsel %vm782, %v671, %v711
    %v789 = vsel %vm782, %v674, %v714
    %v790 = vsel %vm782, %v677, %v717
    %vm791 = vcmask 15360
    %v792 = vsel %vm791, %v783, %v720
    %v793 = vsel %vm791, %v784, %v723
    %v794 = vsel %vm791, %v785, %v726
    %v795 = vsel %vm791, %v786, %v729
    %v796 = vsel %vm791, %v787, %v732
    %v797 = vsel %vm791, %v788, %v735
    %v798 = vsel %vm791, %v789, %v738
    %v799 = vsel %vm791, %v790, %v741
    %vm800 = vcmask 23552
    %v801 = vsel %vm800, %v792, %v760
    %v802 = vsel %vm800, %v793, %v763
    %v803 = vsel %vm800, %v794, %v766
    %v804 = vsel %vm800, %v795, %v769
    %v805 = vsel %vm800, %v796, %v772
    %v806 = vsel %vm800, %v797, %v775
    %v807 = vsel %vm800, %v798, %v778
    %v808 = vsel %vm800, %v799, %v781
    %v810 = vsel %vm213, %v108, 0
    %v813 = vsel %vm213, %v109, 0
    %v816 = vsel %vm213, %v110, 0
    %v819 = vsel %vm213, %v111, 0
    %v822 = vsel %vm213, %v112, 0
    %v825 = vsel %vm213, %v113, 0
    %v828 = vsel %vm213, %v114, 0
    %v831 = vsel %vm213, %v115, 0
    %833 = vmatpush.msra.mxu0 0.0
    %834 = vmatpush.msra.mxu0 0.0
    %835 = vmatpush.msra.mxu0 0.0
    %836 = vmatpush.msra.mxu0 0.0
    %837 = vmatpush.msra.mxu0 0.0
    %838 = vmatpush.msra.mxu0 0.0
    %839 = vmatpush.msra.mxu0 0.0
    %840 = vmatpush.msra.mxu0 0.0
    %841 = vmatpush.msra.mxu0 %v808
    %842 = vmatpush.msra.mxu0 %v807
    %843 = vmatpush.msra.mxu0 %v806
    %844 = vmatpush.msra.mxu0 %v805
    %845 = vmatpush.msra.mxu0 %v804
    %846 = vmatpush.msra.mxu0 %v803
    %847 = vmatpush.msra.mxu0 %v802
    %848 = vmatpush.msra.mxu0 %v801
    %849 = vmatmul.f32.gmra.mxu0 %v810
    %v850 = vpop.f32.mrf.mxu0
    %v851 = vadd.f32 0.0, %v850
    %852 = vmatmul.f32.gmra.mxu0 %v813
    %v853 = vpop.f32.mrf.mxu0
    %v854 = vadd.f32 0.0, %v853
    %855 = vmatmul.f32.gmra.mxu0 %v816
    %v856 = vpop.f32.mrf.mxu0
    %v857 = vadd.f32 0.0, %v856
    %858 = vmatmul.f32.gmra.mxu0 %v819
    %v859 = vpop.f32.mrf.mxu0
    %v860 = vadd.f32 0.0, %v859
    %861 = vmatmul.f32.gmra.mxu0 %v822
    %v862 = vpop.f32.mrf.mxu0
    %v863 = vadd.f32 0.0, %v862
    %864 = vmatmul.f32.gmra.mxu0 %v825
    %v865 = vpop.f32.mrf.mxu0
    %v866 = vadd.f32 0.0, %v865
    %867 = vmatmul.f32.gmra.mxu0 %v828
    %v868 = vpop.f32.mrf.mxu0
    %v869 = vadd.f32 0.0, %v868
    %870 = vmatmul.f32.gmra.mxu0 %v831
    %v871 = vpop.f32.mrf.mxu0
    %v872 = vadd.f32 0.0, %v871
    %873 = vdwg.mxu0
    %v874 = vmul.f32 %v851, 0.001953125
    %v875 = vmul.f32 %v854, 0.001953125
    %v876 = vmul.f32 %v857, 0.001953125
    %v877 = vmul.f32 %v860, 0.001953125
    %v878 = vmul.f32 %v863, 0.001953125
    %v879 = vmul.f32 %v866, 0.001953125
    %v880 = vmul.f32 %v869, 0.001953125
    %v881 = vmul.f32 %v872, 0.001953125
    %v882 = vmul.f32 %v874, %v874
    %v883 = vmul.f32 %v875, %v875
    %v884 = vmul.f32 %v876, %v876
    %v885 = vmul.f32 %v877, %v877
    %v886 = vmul.f32 %v878, %v878
    %v887 = vmul.f32 %v879, %v879
    %v888 = vmul.f32 %v880, %v880
    %v889 = vmul.f32 %v881, %v881
    %898 = vrot.lane.b32.xlu0 %v882, 1
    %v899 = vpop.permute.xlu0 %898
    %900 = vrot.lane.b32.xlu0 %v883, 1
    %v901 = vpop.permute.xlu0 %900
    %902 = vrot.lane.b32.xlu0 %v884, 1
    %v903 = vpop.permute.xlu0 %902
    %904 = vrot.lane.b32.xlu0 %v885, 1
    %v905 = vpop.permute.xlu0 %904
    %906 = vrot.lane.b32.xlu0 %v886, 1
    %v907 = vpop.permute.xlu0 %906
    %908 = vrot.lane.b32.xlu0 %v887, 1
    %v909 = vpop.permute.xlu0 %908
    %910 = vrot.lane.b32.xlu0 %v888, 1
    %v911 = vpop.permute.xlu0 %910
    %912 = vrot.lane.b32.xlu0 %v889, 1
    %v913 = vpop.permute.xlu0 %912
    %v922 = vsub.f32 %v874, %v899
    %v923 = vsub.f32 %v875, %v901
    %v924 = vsub.f32 %v876, %v903
    %v925 = vsub.f32 %v877, %v905
    %v926 = vsub.f32 %v878, %v907
    %v927 = vsub.f32 %v879, %v909
    %v928 = vsub.f32 %v880, %v911
    %v929 = vsub.f32 %v881, %v913
    %931 = vset.pattern.permute.xlu0 0
    %932 = vperm.xlu0 %931, %v874
    %v933 = vpop.permute.xlu0 %932
    %936 = vset.pattern.permute.xlu0 0
    %937 = vperm.xlu0 %936, %v875
    %v938 = vpop.permute.xlu0 %937
    %941 = vset.pattern.permute.xlu0 0
    %942 = vperm.xlu0 %941, %v876
    %v943 = vpop.permute.xlu0 %942
    %946 = vset.pattern.permute.xlu0 0
    %947 = vperm.xlu0 %946, %v877
    %v948 = vpop.permute.xlu0 %947
    %951 = vset.pattern.permute.xlu0 0
    %952 = vperm.xlu0 %951, %v878
    %v953 = vpop.permute.xlu0 %952
    %956 = vset.pattern.permute.xlu0 0
    %957 = vperm.xlu0 %956, %v879
    %v958 = vpop.permute.xlu0 %957
    %961 = vset.pattern.permute.xlu0 0
    %962 = vperm.xlu0 %961, %v880
    %v963 = vpop.permute.xlu0 %962
    %966 = vset.pattern.permute.xlu0 0
    %967 = vperm.xlu0 %966, %v881
    %v968 = vpop.permute.xlu0 %967
    %v970 = vsub.f32 %v548, %v933
    %v971 = vsub.f32 %v577, %v933
    %v972 = vsub.f32 %v550, %v938
    %v973 = vsub.f32 %v579, %v938
    %v974 = vsub.f32 %v553, %v943
    %v975 = vsub.f32 %v582, %v943
    %v976 = vsub.f32 %v555, %v948
    %v977 = vsub.f32 %v584, %v948
    %v978 = vsub.f32 %v558, %v953
    %v979 = vsub.f32 %v587, %v953
    %v980 = vsub.f32 %v560, %v958
    %v981 = vsub.f32 %v589, %v958
    %v982 = vsub.f32 %v563, %v963
    %v983 = vsub.f32 %v592, %v963
    %v984 = vsub.f32 %v565, %v968
    %v985 = vsub.f32 %v594, %v968
    %v986 = vadd.f32 %v922, 1e-05
    %v987 = vadd.f32 %v923, 1e-05
    %v988 = vadd.f32 %v924, 1e-05
    %v989 = vadd.f32 %v925, 1e-05
    %v990 = vadd.f32 %v926, 1e-05
    %v991 = vadd.f32 %v927, 1e-05
    %v992 = vadd.f32 %v928, 1e-05
    %v993 = vadd.f32 %v929, 1e-05
    %v994 = vrsqrt.pop %v986
    %v995 = vmul.f32 %v994, %v986
    %v996 = vmul.f32 %v995, %v994
    %v997 = vmul.f32 0.5, %v996
    %v998 = vsub.f32 1.5, %v997
    %v999 = vmul.f32 %v994, %v998
    %vm1000 = vweird.f32 %v986
    %vm1001 = vweird.f32 %v994
    %vm1002 = vmor %vm1000, %vm1001
    %v1003 = vsel %vm1002, %v994, %v999
    %v1004 = vrsqrt.pop %v987
    %v1005 = vmul.f32 %v1004, %v987
    %v1006 = vmul.f32 %v1005, %v1004
    %v1007 = vmul.f32 0.5, %v1006
    %v1008 = vsub.f32 1.5, %v1007
    %v1009 = vmul.f32 %v1004, %v1008
    %vm1010 = vweird.f32 %v987
    %vm1011 = vweird.f32 %v1004
    %vm1012 = vmor %vm1010, %vm1011
    %v1013 = vsel %vm1012, %v1004, %v1009
    %v1014 = vrsqrt.pop %v988
    %v1015 = vmul.f32 %v1014, %v988
    %v1016 = vmul.f32 %v1015, %v1014
    %v1017 = vmul.f32 0.5, %v1016
    %v1018 = vsub.f32 1.5, %v1017
    %v1019 = vmul.f32 %v1014, %v1018
    %vm1020 = vweird.f32 %v988
    %vm1021 = vweird.f32 %v1014
    %vm1022 = vmor %vm1020, %vm1021
    %v1023 = vsel %vm1022, %v1014, %v1019
    %v1024 = vrsqrt.pop %v989
    %v1025 = vmul.f32 %v1024, %v989
    %v1026 = vmul.f32 %v1025, %v1024
    %v1027 = vmul.f32 0.5, %v1026
    %v1028 = vsub.f32 1.5, %v1027
    %v1029 = vmul.f32 %v1024, %v1028
    %vm1030 = vweird.f32 %v989
    %vm1031 = vweird.f32 %v1024
    %vm1032 = vmor %vm1030, %vm1031
    %v1033 = vsel %vm1032, %v1024, %v1029
    %v1034 = vrsqrt.pop %v990
    %v1035 = vmul.f32 %v1034, %v990
    %v1036 = vmul.f32 %v1035, %v1034
    %v1037 = vmul.f32 0.5, %v1036
    %v1038 = vsub.f32 1.5, %v1037
    %v1039 = vmul.f32 %v1034, %v1038
    %vm1040 = vweird.f32 %v990
    %vm1041 = vweird.f32 %v1034
    %vm1042 = vmor %vm1040, %vm1041
    %v1043 = vsel %vm1042, %v1034, %v1039
    %v1044 = vrsqrt.pop %v991
    %v1045 = vmul.f32 %v1044, %v991
    %v1046 = vmul.f32 %v1045, %v1044
    %v1047 = vmul.f32 0.5, %v1046
    %v1048 = vsub.f32 1.5, %v1047
    %v1049 = vmul.f32 %v1044, %v1048
    %vm1050 = vweird.f32 %v991
    %vm1051 = vweird.f32 %v1044
    %vm1052 = vmor %vm1050, %vm1051
    %v1053 = vsel %vm1052, %v1044, %v1049
    %v1054 = vrsqrt.pop %v992
    %v1055 = vmul.f32 %v1054, %v992
    %v1056 = vmul.f32 %v1055, %v1054
    %v1057 = vmul.f32 0.5, %v1056
    %v1058 = vsub.f32 1.5, %v1057
    %v1059 = vmul.f32 %v1054, %v1058
    %vm1060 = vweird.f32 %v992
    %vm1061 = vweird.f32 %v1054
    %vm1062 = vmor %vm1060, %vm1061
    %v1063 = vsel %vm1062, %v1054, %v1059
    %v1064 = vrsqrt.pop %v993
    %v1065 = vmul.f32 %v1064, %v993
    %v1066 = vmul.f32 %v1065, %v1064
    %v1067 = vmul.f32 0.5, %v1066
    %v1068 = vsub.f32 1.5, %v1067
    %v1069 = vmul.f32 %v1064, %v1068
    %vm1070 = vweird.f32 %v993
    %vm1071 = vweird.f32 %v1064
    %vm1072 = vmor %vm1070, %vm1071
    %v1073 = vsel %vm1072, %v1064, %v1069
    %1075 = vset.pattern.permute.xlu0 1
    %1076 = vperm.xlu0 %1075, %v1003
    %v1077 = vpop.permute.xlu0 %1076
    %1080 = vset.pattern.permute.xlu0 1
    %1081 = vperm.xlu0 %1080, %v1013
    %v1082 = vpop.permute.xlu0 %1081
    %1085 = vset.pattern.permute.xlu0 1
    %1086 = vperm.xlu0 %1085, %v1023
    %v1087 = vpop.permute.xlu0 %1086
    %1090 = vset.pattern.permute.xlu0 1
    %1091 = vperm.xlu0 %1090, %v1033
    %v1092 = vpop.permute.xlu0 %1091
    %1095 = vset.pattern.permute.xlu0 1
    %1096 = vperm.xlu0 %1095, %v1043
    %v1097 = vpop.permute.xlu0 %1096
    %1100 = vset.pattern.permute.xlu0 1
    %1101 = vperm.xlu0 %1100, %v1053
    %v1102 = vpop.permute.xlu0 %1101
    %1105 = vset.pattern.permute.xlu0 1
    %1106 = vperm.xlu0 %1105, %v1063
    %v1107 = vpop.permute.xlu0 %1106
    %1110 = vset.pattern.permute.xlu0 1
    %1111 = vperm.xlu0 %1110, %v1073
    %v1112 = vpop.permute.xlu0 %1111
    %v1114 = vmul.f32 %v970, %v1077
    %v1115 = vmul.f32 %v971, %v1077
    %v1116 = vmul.f32 %v972, %v1082
    %v1117 = vmul.f32 %v973, %v1082
    %v1118 = vmul.f32 %v974, %v1087
    %v1119 = vmul.f32 %v975, %v1087
    %v1120 = vmul.f32 %v976, %v1092
    %v1121 = vmul.f32 %v977, %v1092
    %v1122 = vmul.f32 %v978, %v1097
    %v1123 = vmul.f32 %v979, %v1097
    %v1124 = vmul.f32 %v980, %v1102
    %v1125 = vmul.f32 %v981, %v1102
    %v1126 = vmul.f32 %v982, %v1107
    %v1127 = vmul.f32 %v983, %v1107
    %v1128 = vmul.f32 %v984, %v1112
    %v1129 = vmul.f32 %v985, %v1112
    %1130 = vset.pattern.permute.xlu0 2
    %1131 = vperm.xlu0 %1130, %v874
    %v1132 = vpop.permute.xlu0 %1131
    %1134 = vset.pattern.permute.xlu0 2
    %1135 = vperm.xlu0 %1134, %v875
    %v1136 = vpop.permute.xlu0 %1135
    %1138 = vset.pattern.permute.xlu0 2
    %1139 = vperm.xlu0 %1138, %v876
    %v1140 = vpop.permute.xlu0 %1139
    %1142 = vset.pattern.permute.xlu0 2
    %1143 = vperm.xlu0 %1142, %v877
    %v1144 = vpop.permute.xlu0 %1143
    %1146 = vset.pattern.permute.xlu0 2
    %1147 = vperm.xlu0 %1146, %v878
    %v1148 = vpop.permute.xlu0 %1147
    %1150 = vset.pattern.permute.xlu0 2
    %1151 = vperm.xlu0 %1150, %v879
    %v1152 = vpop.permute.xlu0 %1151
    %1154 = vset.pattern.permute.xlu0 2
    %1155 = vperm.xlu0 %1154, %v880
    %v1156 = vpop.permute.xlu0 %1155
    %1158 = vset.pattern.permute.xlu0 2
    %1159 = vperm.xlu0 %1158, %v881
    %v1160 = vpop.permute.xlu0 %1159
    %v1162 = vsub.f32 %v606, %v1132
    %v1163 = vsub.f32 %v635, %v1132
    %v1164 = vsub.f32 %v608, %v1136
    %v1165 = vsub.f32 %v637, %v1136
    %v1166 = vsub.f32 %v611, %v1140
    %v1167 = vsub.f32 %v640, %v1140
    %v1168 = vsub.f32 %v613, %v1144
    %v1169 = vsub.f32 %v642, %v1144
    %v1170 = vsub.f32 %v616, %v1148
    %v1171 = vsub.f32 %v645, %v1148
    %v1172 = vsub.f32 %v618, %v1152
    %v1173 = vsub.f32 %v647, %v1152
    %v1174 = vsub.f32 %v621, %v1156
    %v1175 = vsub.f32 %v650, %v1156
    %v1176 = vsub.f32 %v623, %v1160
    %v1177 = vsub.f32 %v652, %v1160
    %1178 = vset.pattern.permute.xlu0 3
    %1179 = vperm.xlu0 %1178, %v1003
    %v1180 = vpop.permute.xlu0 %1179
    %1182 = vset.pattern.permute.xlu0 3
    %1183 = vperm.xlu0 %1182, %v1013
    %v1184 = vpop.permute.xlu0 %1183
    %1186 = vset.pattern.permute.xlu0 3
    %1187 = vperm.xlu0 %1186, %v1023
    %v1188 = vpop.permute.xlu0 %1187
    %1190 = vset.pattern.permute.xlu0 3
    %1191 = vperm.xlu0 %1190, %v1033
    %v1192 = vpop.permute.xlu0 %1191
    %1194 = vset.pattern.permute.xlu0 3
    %1195 = vperm.xlu0 %1194, %v1043
    %v1196 = vpop.permute.xlu0 %1195
    %1198 = vset.pattern.permute.xlu0 3
    %1199 = vperm.xlu0 %1198, %v1053
    %v1200 = vpop.permute.xlu0 %1199
    %1202 = vset.pattern.permute.xlu0 3
    %1203 = vperm.xlu0 %1202, %v1063
    %v1204 = vpop.permute.xlu0 %1203
    %1206 = vset.pattern.permute.xlu0 3
    %1207 = vperm.xlu0 %1206, %v1073
    %v1208 = vpop.permute.xlu0 %1207
    %v1210 = vmul.f32 %v1162, %v1180
    %v1211 = vmul.f32 %v1163, %v1180
    %v1212 = vmul.f32 %v1164, %v1184
    %v1213 = vmul.f32 %v1165, %v1184
    %v1214 = vmul.f32 %v1166, %v1188
    %v1215 = vmul.f32 %v1167, %v1188
    %v1216 = vmul.f32 %v1168, %v1192
    %v1217 = vmul.f32 %v1169, %v1192
    %v1218 = vmul.f32 %v1170, %v1196
    %v1219 = vmul.f32 %v1171, %v1196
    %v1220 = vmul.f32 %v1172, %v1200
    %v1221 = vmul.f32 %v1173, %v1200
    %v1222 = vmul.f32 %v1174, %v1204
    %v1223 = vmul.f32 %v1175, %v1204
    %v1224 = vmul.f32 %v1176, %v1208
    %v1225 = vmul.f32 %v1177, %v1208
    %1226 = vset.pattern.permute.xlu0 1
    %1227 = vperm.xlu0 %1226, %v100
    %v1228 = vpop.permute.xlu0 %1227
    %1230 = vset.pattern.permute.xlu0 1
    %1231 = vperm.xlu0 %1230, %v101
    %v1232 = vpop.permute.xlu0 %1231
    %1234 = vset.pattern.permute.xlu0 1
    %1235 = vperm.xlu0 %1234, %v102
    %v1236 = vpop.permute.xlu0 %1235
    %1238 = vset.pattern.permute.xlu0 1
    %1239 = vperm.xlu0 %1238, %v103
    %v1240 = vpop.permute.xlu0 %1239
    %1242 = vset.pattern.permute.xlu0 1
    %1243 = vperm.xlu0 %1242, %v104
    %v1244 = vpop.permute.xlu0 %1243
    %1246 = vset.pattern.permute.xlu0 1
    %1247 = vperm.xlu0 %1246, %v105
    %v1248 = vpop.permute.xlu0 %1247
    %1250 = vset.pattern.permute.xlu0 1
    %1251 = vperm.xlu0 %1250, %v106
    %v1252 = vpop.permute.xlu0 %1251
    %1254 = vset.pattern.permute.xlu0 1
    %1255 = vperm.xlu0 %1254, %v107
    %v1256 = vpop.permute.xlu0 %1255
    %v1258 = vmul.f32 %v1114, %v1228
    %v1259 = vmul.f32 %v1115, %v1228
    %v1260 = vmul.f32 %v1210, %v1228
    %v1261 = vmul.f32 %v1211, %v1228
    %v1262 = vmul.f32 %v1116, %v1232
    %v1263 = vmul.f32 %v1117, %v1232
    %v1264 = vmul.f32 %v1212, %v1232
    %v1265 = vmul.f32 %v1213, %v1232
    %v1266 = vmul.f32 %v1118, %v1236
    %v1267 = vmul.f32 %v1119, %v1236
    %v1268 = vmul.f32 %v1214, %v1236
    %v1269 = vmul.f32 %v1215, %v1236
    %v1270 = vmul.f32 %v1120, %v1240
    %v1271 = vmul.f32 %v1121, %v1240
    %v1272 = vmul.f32 %v1216, %v1240
    %v1273 = vmul.f32 %v1217, %v1240
    %v1274 = vmul.f32 %v1122, %v1244
    %v1275 = vmul.f32 %v1123, %v1244
    %v1276 = vmul.f32 %v1218, %v1244
    %v1277 = vmul.f32 %v1219, %v1244
    %v1278 = vmul.f32 %v1124, %v1248
    %v1279 = vmul.f32 %v1125, %v1248
    %v1280 = vmul.f32 %v1220, %v1248
    %v1281 = vmul.f32 %v1221, %v1248
    %v1282 = vmul.f32 %v1126, %v1252
    %v1283 = vmul.f32 %v1127, %v1252
    %v1284 = vmul.f32 %v1222, %v1252
    %v1285 = vmul.f32 %v1223, %v1252
    %v1286 = vmul.f32 %v1128, %v1256
    %v1287 = vmul.f32 %v1129, %v1256
    %v1288 = vmul.f32 %v1224, %v1256
    %v1289 = vmul.f32 %v1225, %v1256
    %1290 = vset.pattern.permute.xlu0 2
    %1291 = vperm.xlu0 %1290, %v100
    %v1292 = vpop.permute.xlu0 %1291
    %1294 = vset.pattern.permute.xlu0 2
    %1295 = vperm.xlu0 %1294, %v101
    %v1296 = vpop.permute.xlu0 %1295
    %1298 = vset.pattern.permute.xlu0 2
    %1299 = vperm.xlu0 %1298, %v102
    %v1300 = vpop.permute.xlu0 %1299
    %1302 = vset.pattern.permute.xlu0 2
    %1303 = vperm.xlu0 %1302, %v103
    %v1304 = vpop.permute.xlu0 %1303
    %1306 = vset.pattern.permute.xlu0 2
    %1307 = vperm.xlu0 %1306, %v104
    %v1308 = vpop.permute.xlu0 %1307
    %1310 = vset.pattern.permute.xlu0 2
    %1311 = vperm.xlu0 %1310, %v105
    %v1312 = vpop.permute.xlu0 %1311
    %1314 = vset.pattern.permute.xlu0 2
    %1315 = vperm.xlu0 %1314, %v106
    %v1316 = vpop.permute.xlu0 %1315
    %1318 = vset.pattern.permute.xlu0 2
    %1319 = vperm.xlu0 %1318, %v107
    %v1320 = vpop.permute.xlu0 %1319
    %v1322 = vadd.f32 %v1258, %v1292
    %v1323 = vadd.f32 %v1259, %v1292
    %v1324 = vadd.f32 %v1260, %v1292
    %v1325 = vadd.f32 %v1261, %v1292
    %v1326 = vadd.f32 %v1262, %v1296
    %v1327 = vadd.f32 %v1263, %v1296
    %v1328 = vadd.f32 %v1264, %v1296
    %v1329 = vadd.f32 %v1265, %v1296
    %v1330 = vadd.f32 %v1266, %v1300
    %v1331 = vadd.f32 %v1267, %v1300
    %v1332 = vadd.f32 %v1268, %v1300
    %v1333 = vadd.f32 %v1269, %v1300
    %v1334 = vadd.f32 %v1270, %v1304
    %v1335 = vadd.f32 %v1271, %v1304
    %v1336 = vadd.f32 %v1272, %v1304
    %v1337 = vadd.f32 %v1273, %v1304
    %v1338 = vadd.f32 %v1274, %v1308
    %v1339 = vadd.f32 %v1275, %v1308
    %v1340 = vadd.f32 %v1276, %v1308
    %v1341 = vadd.f32 %v1277, %v1308
    %v1342 = vadd.f32 %v1278, %v1312
    %v1343 = vadd.f32 %v1279, %v1312
    %v1344 = vadd.f32 %v1280, %v1312
    %v1345 = vadd.f32 %v1281, %v1312
    %v1346 = vadd.f32 %v1282, %v1316
    %v1347 = vadd.f32 %v1283, %v1316
    %v1348 = vadd.f32 %v1284, %v1316
    %v1349 = vadd.f32 %v1285, %v1316
    %v1350 = vadd.f32 %v1286, %v1320
    %v1351 = vadd.f32 %v1287, %v1320
    %v1352 = vadd.f32 %v1288, %v1320
    %v1353 = vadd.f32 %v1289, %v1320
    %v1354 = vmax.f32 %v1322, 0.0
    %v1355 = vmax.f32 %v1323, 0.0
    %v1356 = vmax.f32 %v1324, 0.0
    %v1357 = vmax.f32 %v1325, 0.0
    %v1358 = vmax.f32 %v1326, 0.0
    %v1359 = vmax.f32 %v1327, 0.0
    %v1360 = vmax.f32 %v1328, 0.0
    %v1361 = vmax.f32 %v1329, 0.0
    %v1362 = vmax.f32 %v1330, 0.0
    %v1363 = vmax.f32 %v1331, 0.0
    %v1364 = vmax.f32 %v1332, 0.0
    %v1365 = vmax.f32 %v1333, 0.0
    %v1366 = vmax.f32 %v1334, 0.0
    %v1367 = vmax.f32 %v1335, 0.0
    %v1368 = vmax.f32 %v1336, 0.0
    %v1369 = vmax.f32 %v1337, 0.0
    %v1370 = vmax.f32 %v1338, 0.0
    %v1371 = vmax.f32 %v1339, 0.0
    %v1372 = vmax.f32 %v1340, 0.0
    %v1373 = vmax.f32 %v1341, 0.0
    %v1374 = vmax.f32 %v1342, 0.0
    %v1375 = vmax.f32 %v1343, 0.0
    %v1376 = vmax.f32 %v1344, 0.0
    %v1377 = vmax.f32 %v1345, 0.0
    %v1378 = vmax.f32 %v1346, 0.0
    %v1379 = vmax.f32 %v1347, 0.0
    %v1380 = vmax.f32 %v1348, 0.0
    %v1381 = vmax.f32 %v1349, 0.0
    %v1382 = vmax.f32 %v1350, 0.0
    %v1383 = vmax.f32 %v1351, 0.0
    %v1384 = vmax.f32 %v1352, 0.0
    %v1385 = vmax.f32 %v1353, 0.0
    %v1386 = vpack.c.bf16 %v1358, %v1354
    %v1387 = vpack.c.bf16 %v1359, %v1355
    %v1388 = vpack.c.bf16 %v1360, %v1356
    %v1389 = vpack.c.bf16 %v1361, %v1357
    %v1390 = vpack.c.bf16 %v1366, %v1362
    %v1391 = vpack.c.bf16 %v1367, %v1363
    %v1392 = vpack.c.bf16 %v1368, %v1364
    %v1393 = vpack.c.bf16 %v1369, %v1365
    %v1394 = vpack.c.bf16 %v1374, %v1370
    %v1395 = vpack.c.bf16 %v1375, %v1371
    %v1396 = vpack.c.bf16 %v1376, %v1372
    %v1397 = vpack.c.bf16 %v1377, %v1373
    %v1398 = vpack.c.bf16 %v1382, %v1378
    %v1399 = vpack.c.bf16 %v1383, %v1379
    %v1400 = vpack.c.bf16 %v1384, %v1380
    %v1401 = vpack.c.bf16 %v1385, %v1381
    %1402 = vset.pattern.permute.xlu0 3
    %1403 = vperm.xlu0 %1402, %v100
    %v1404 = vpop.permute.xlu0 %1403
    %1406 = vset.pattern.permute.xlu0 3
    %1407 = vperm.xlu0 %1406, %v101
    %v1408 = vpop.permute.xlu0 %1407
    %1410 = vset.pattern.permute.xlu0 3
    %1411 = vperm.xlu0 %1410, %v102
    %v1412 = vpop.permute.xlu0 %1411
    %1414 = vset.pattern.permute.xlu0 3
    %1415 = vperm.xlu0 %1414, %v103
    %v1416 = vpop.permute.xlu0 %1415
    %1418 = vset.pattern.permute.xlu0 3
    %1419 = vperm.xlu0 %1418, %v104
    %v1420 = vpop.permute.xlu0 %1419
    %1422 = vset.pattern.permute.xlu0 3
    %1423 = vperm.xlu0 %1422, %v105
    %v1424 = vpop.permute.xlu0 %1423
    %1426 = vset.pattern.permute.xlu0 3
    %1427 = vperm.xlu0 %1426, %v106
    %v1428 = vpop.permute.xlu0 %1427
    %1430 = vset.pattern.permute.xlu0 3
    %1431 = vperm.xlu0 %1430, %v107
    %v1432 = vpop.permute.xlu0 %1431
    %v1442 = vunpack.c.l.b16 %v125
    %v1443 = vunpack.c.l.b16 %v126
    %v1444 = vunpack.c.l.b16 %v127
    %v1445 = vunpack.c.l.b16 %v128
    %v1446 = vunpack.c.l.b16 %v129
    %v1447 = vunpack.c.l.b16 %v130
    %v1448 = vunpack.c.l.b16 %v131
    %v1449 = vunpack.c.l.b16 %v132
    %v1450 = vpack.c.b16 %v1443, %v1442
    %v1451 = vpack.c.b16 %v1445, %v1444
    %v1452 = vpack.c.b16 %v1447, %v1446
    %v1453 = vpack.c.b16 %v1449, %v1448
    %v1455 = vsel %vm213, %v1450, 0
    %v1458 = vsel %vm213, %v1451, 0
    %v1461 = vsel %vm213, %v1452, 0
    %v1464 = vsel %vm213, %v1453, 0
    %1466 = vmatpush.bf16.msra.mxu0 0
    %1467 = vmatpush.bf16.msra.mxu0 0
    %1468 = vmatpush.bf16.msra.mxu0 0
    %1469 = vmatpush.bf16.msra.mxu0 0
    %1470 = vmatpush.bf16.msra.mxu0 %v1398
    %1471 = vmatpush.bf16.msra.mxu0 %v1394
    %1472 = vmatpush.bf16.msra.mxu0 %v1390
    %1473 = vmatpush.bf16.msra.mxu0 %v1386
    %1474 = vmatmul.bf16.gmra.mxu0 %v1455
    %v1475 = vpop.f32.mrf.mxu0
    %v1476 = vadd.f32 %v1404, %v1475
    %v1477 = vpop.f32.mrf.mxu0
    %v1478 = vadd.f32 %v1408, %v1477
    %1479 = vmatmul.bf16.gmra.mxu0 %v1458
    %v1480 = vpop.f32.mrf.mxu0
    %v1481 = vadd.f32 %v1412, %v1480
    %v1482 = vpop.f32.mrf.mxu0
    %v1483 = vadd.f32 %v1416, %v1482
    %1484 = vmatmul.bf16.gmra.mxu0 %v1461
    %v1485 = vpop.f32.mrf.mxu0
    %v1486 = vadd.f32 %v1420, %v1485
    %v1487 = vpop.f32.mrf.mxu0
    %v1488 = vadd.f32 %v1424, %v1487
    %1489 = vmatmul.bf16.gmra.mxu0 %v1464
    %v1490 = vpop.f32.mrf.mxu0
    %v1491 = vadd.f32 %v1428, %v1490
    %v1492 = vpop.f32.mrf.mxu0
    %v1493 = vadd.f32 %v1432, %v1492
    %1494 = vdwg.mxu0
    %1495 = vmatpush.bf16.msra.mxu0 0
    %1496 = vmatpush.bf16.msra.mxu0 0
    %1497 = vmatpush.bf16.msra.mxu0 0
    %1498 = vmatpush.bf16.msra.mxu0 0
    %1499 = vmatpush.bf16.msra.mxu0 %v1399
    %1500 = vmatpush.bf16.msra.mxu0 %v1395
    %1501 = vmatpush.bf16.msra.mxu0 %v1391
    %1502 = vmatpush.bf16.msra.mxu0 %v1387
    %1503 = vmatmul.bf16.gmra.mxu0 %v1455
    %v1504 = vpop.f32.mrf.mxu0
    %v1505 = vadd.f32 %v1404, %v1504
    %v1506 = vpop.f32.mrf.mxu0
    %v1507 = vadd.f32 %v1408, %v1506
    %1508 = vmatmul.bf16.gmra.mxu0 %v1458
    %v1509 = vpop.f32.mrf.mxu0
    %v1510 = vadd.f32 %v1412, %v1509
    %v1511 = vpop.f32.mrf.mxu0
    %v1512 = vadd.f32 %v1416, %v1511
    %1513 = vmatmul.bf16.gmra.mxu0 %v1461
    %v1514 = vpop.f32.mrf.mxu0
    %v1515 = vadd.f32 %v1420, %v1514
    %v1516 = vpop.f32.mrf.mxu0
    %v1517 = vadd.f32 %v1424, %v1516
    %1518 = vmatmul.bf16.gmra.mxu0 %v1464
    %v1519 = vpop.f32.mrf.mxu0
    %v1520 = vadd.f32 %v1428, %v1519
    %v1521 = vpop.f32.mrf.mxu0
    %v1522 = vadd.f32 %v1432, %v1521
    %1523 = vdwg.mxu0
    %1524 = vmatpush.bf16.msra.mxu0 0
    %1525 = vmatpush.bf16.msra.mxu0 0
    %1526 = vmatpush.bf16.msra.mxu0 0
    %1527 = vmatpush.bf16.msra.mxu0 0
    %1528 = vmatpush.bf16.msra.mxu0 %v1400
    %1529 = vmatpush.bf16.msra.mxu0 %v1396
    %1530 = vmatpush.bf16.msra.mxu0 %v1392
    %1531 = vmatpush.bf16.msra.mxu0 %v1388
    %1532 = vmatmul.bf16.gmra.mxu0 %v1455
    %v1533 = vpop.f32.mrf.mxu0
    %v1534 = vadd.f32 %v1404, %v1533
    %v1535 = vpop.f32.mrf.mxu0
    %v1536 = vadd.f32 %v1408, %v1535
    %1537 = vmatmul.bf16.gmra.mxu0 %v1458
    %v1538 = vpop.f32.mrf.mxu0
    %v1539 = vadd.f32 %v1412, %v1538
    %v1540 = vpop.f32.mrf.mxu0
    %v1541 = vadd.f32 %v1416, %v1540
    %1542 = vmatmul.bf16.gmra.mxu0 %v1461
    %v1543 = vpop.f32.mrf.mxu0
    %v1544 = vadd.f32 %v1420, %v1543
    %v1545 = vpop.f32.mrf.mxu0
    %v1546 = vadd.f32 %v1424, %v1545
    %1547 = vmatmul.bf16.gmra.mxu0 %v1464
    %v1548 = vpop.f32.mrf.mxu0
    %v1549 = vadd.f32 %v1428, %v1548
    %v1550 = vpop.f32.mrf.mxu0
    %v1551 = vadd.f32 %v1432, %v1550
    %1552 = vdwg.mxu0
    %1553 = vmatpush.bf16.msra.mxu0 0
    %1554 = vmatpush.bf16.msra.mxu0 0
    %1555 = vmatpush.bf16.msra.mxu0 0
    %1556 = vmatpush.bf16.msra.mxu0 0
    %1557 = vmatpush.bf16.msra.mxu0 %v1401
    %1558 = vmatpush.bf16.msra.mxu0 %v1397
    %1559 = vmatpush.bf16.msra.mxu0 %v1393
    %1560 = vmatpush.bf16.msra.mxu0 %v1389
    %1561 = vmatmul.bf16.gmra.mxu0 %v1455
    %v1562 = vpop.f32.mrf.mxu0
    %v1563 = vadd.f32 %v1404, %v1562
    %v1564 = vpop.f32.mrf.mxu0
    %v1565 = vadd.f32 %v1408, %v1564
    %1566 = vmatmul.bf16.gmra.mxu0 %v1458
    %v1567 = vpop.f32.mrf.mxu0
    %v1568 = vadd.f32 %v1412, %v1567
    %v1569 = vpop.f32.mrf.mxu0
    %v1570 = vadd.f32 %v1416, %v1569
    %1571 = vmatmul.bf16.gmra.mxu0 %v1461
    %v1572 = vpop.f32.mrf.mxu0
    %v1573 = vadd.f32 %v1420, %v1572
    %v1574 = vpop.f32.mrf.mxu0
    %v1575 = vadd.f32 %v1424, %v1574
    %1576 = vmatmul.bf16.gmra.mxu0 %v1464
    %v1577 = vpop.f32.mrf.mxu0
    %v1578 = vadd.f32 %v1428, %v1577
    %v1579 = vpop.f32.mrf.mxu0
    %v1580 = vadd.f32 %v1432, %v1579
    %1581 = vdwg.mxu0
    %v1582 = vmax.f32 %v1476, 0.0
    %v1583 = vmax.f32 %v1505, 0.0
    %v1584 = vmax.f32 %v1534, 0.0
    %v1585 = vmax.f32 %v1563, 0.0
    %v1586 = vmax.f32 %v1478, 0.0
    %v1587 = vmax.f32 %v1507, 0.0
    %v1588 = vmax.f32 %v1536, 0.0
    %v1589 = vmax.f32 %v1565, 0.0
    %v1590 = vmax.f32 %v1481, 0.0
    %v1591 = vmax.f32 %v1510, 0.0
    %v1592 = vmax.f32 %v1539, 0.0
    %v1593 = vmax.f32 %v1568, 0.0
    %v1594 = vmax.f32 %v1483, 0.0
    %v1595 = vmax.f32 %v1512, 0.0
    %v1596 = vmax.f32 %v1541, 0.0
    %v1597 = vmax.f32 %v1570, 0.0
    %v1598 = vmax.f32 %v1486, 0.0
    %v1599 = vmax.f32 %v1515, 0.0
    %v1600 = vmax.f32 %v1544, 0.0
    %v1601 = vmax.f32 %v1573, 0.0
    %v1602 = vmax.f32 %v1488, 0.0
    %v1603 = vmax.f32 %v1517, 0.0
    %v1604 = vmax.f32 %v1546, 0.0
    %v1605 = vmax.f32 %v1575, 0.0
    %v1606 = vmax.f32 %v1491, 0.0
    %v1607 = vmax.f32 %v1520, 0.0
    %v1608 = vmax.f32 %v1549, 0.0
    %v1609 = vmax.f32 %v1578, 0.0
    %v1610 = vmax.f32 %v1493, 0.0
    %v1611 = vmax.f32 %v1522, 0.0
    %v1612 = vmax.f32 %v1551, 0.0
    %v1613 = vmax.f32 %v1580, 0.0
    %v1614 = vld [vmem:[#allocation8] sm:$0xff]
    %v1615 = vld [vmem:[#allocation8 + $0x8] sm:$0xff]
    %v1617 = vsel %vm213, %v1614, 0
    %v1620 = vsel %vm213, %v1615, 0
    %1622 = vmatpush.msra.mxu0 0.0
    %1623 = vmatpush.msra.mxu0 0.0
    %1624 = vmatpush.msra.mxu0 0.0
    %1625 = vmatpush.msra.mxu0 0.0
    %1626 = vmatpush.msra.mxu0 0.0
    %1627 = vmatpush.msra.mxu0 0.0
    %1628 = vmatpush.msra.mxu0 0.0
    %1629 = vmatpush.msra.mxu0 0.0
    %1630 = vmatpush.msra.mxu0 %v1610
    %1631 = vmatpush.msra.mxu0 %v1606
    %1632 = vmatpush.msra.mxu0 %v1602
    %1633 = vmatpush.msra.mxu0 %v1598
    %1634 = vmatpush.msra.mxu0 %v1594
    %1635 = vmatpush.msra.mxu0 %v1590
    %1636 = vmatpush.msra.mxu0 %v1586
    %1637 = vmatpush.msra.mxu0 %v1582
    %1638 = vmatmul.f32.gmra.mxu0 %v1617
    %v1639 = vpop.f32.mrf.mxu0
    %v1640 = vadd.f32 0.0, %v1639
    %1641 = vmatmul.f32.gmra.mxu0 %v1620
    %v1642 = vpop.f32.mrf.mxu0
    %v1643 = vadd.f32 0.0, %v1642
    %1644 = vdwg.mxu0
    %1645 = vmatpush.msra.mxu0 0.0
    %1646 = vmatpush.msra.mxu0 0.0
    %1647 = vmatpush.msra.mxu0 0.0
    %1648 = vmatpush.msra.mxu0 0.0
    %1649 = vmatpush.msra.mxu0 0.0
    %1650 = vmatpush.msra.mxu0 0.0
    %1651 = vmatpush.msra.mxu0 0.0
    %1652 = vmatpush.msra.mxu0 0.0
    %1653 = vmatpush.msra.mxu0 %v1611
    %1654 = vmatpush.msra.mxu0 %v1607
    %1655 = vmatpush.msra.mxu0 %v1603
    %1656 = vmatpush.msra.mxu0 %v1599
    %1657 = vmatpush.msra.mxu0 %v1595
    %1658 = vmatpush.msra.mxu0 %v1591
    %1659 = vmatpush.msra.mxu0 %v1587
    %1660 = vmatpush.msra.mxu0 %v1583
    %1661 = vmatmul.f32.gmra.mxu0 %v1617
    %v1662 = vpop.f32.mrf.mxu0
    %v1663 = vadd.f32 0.0, %v1662
    %1664 = vmatmul.f32.gmra.mxu0 %v1620
    %v1665 = vpop.f32.mrf.mxu0
    %v1666 = vadd.f32 0.0, %v1665
    %1667 = vdwg.mxu0
    %v1668 = vmax.f32 %v1640, %v1643
    %v1669 = vrot.slane %v1668, 4
    %v1670 = vmax.f32 %v1668, %v1669
    %v1671 = vrot.slane %v1670, 2
    %v1672 = vmax.f32 %v1670, %v1671
    %v1673 = vrot.slane %v1672, 1
    %v1674 = vmax.f32 %v1672, %v1673
    %v1675 = vmax.f32 %v1663, %v1666
    %v1676 = vrot.slane %v1675, 4
    %v1677 = vmax.f32 %v1675, %v1676
    %v1678 = vrot.slane %v1677, 2
    %v1679 = vmax.f32 %v1677, %v1678
    %v1680 = vrot.slane %v1679, 1
    %v1681 = vmax.f32 %v1679, %v1680
    %v1682 = vsub.f32 %v1640, %v1674
    %v1683 = vsub.f32 %v1663, %v1681
    %v1684 = vsub.f32 %v1643, %v1674
    %v1685 = vsub.f32 %v1666, %v1681
    %v1686 = vmul.f32 %v1682, 1.442695
    %v1687 = vpow.pop %v1686
    %v1688 = vmul.f32 %v1683, 1.442695
    %v1689 = vpow.pop %v1688
    %v1690 = vmul.f32 %v1684, 1.442695
    %v1691 = vpow.pop %v1690
    %v1692 = vmul.f32 %v1685, 1.442695
    %v1693 = vpow.pop %v1692
    %v1694 = vadd.f32 %v1687, %v1691
    %v1695 = vrot.slane %v1694, 4
    %v1696 = vadd.f32 %v1694, %v1695
    %v1697 = vrot.slane %v1696, 2
    %v1698 = vadd.f32 %v1696, %v1697
    %v1699 = vrot.slane %v1698, 1
    %v1700 = vadd.f32 %v1698, %v1699
    %v1701 = vadd.f32 %v1689, %v1693
    %v1702 = vrot.slane %v1701, 4
    %v1703 = vadd.f32 %v1701, %v1702
    %v1704 = vrot.slane %v1703, 2
    %v1705 = vadd.f32 %v1703, %v1704
    %v1706 = vrot.slane %v1705, 1
    %v1707 = vadd.f32 %v1705, %v1706
    %v1708 = vrcp.pop %v1700
    %v1709 = vmul.f32 %v1700, %v1708
    %v1710 = vsub.f32 1.0, %v1709
    %v1711 = vmul.f32 %v1708, %v1710
    %v1712 = vadd.f32 %v1708, %v1711
    %vm1713 = vweird.f32 %v1700
    %vm1714 = vweird.f32 %v1708
    %vm1715 = vmor %vm1713, %vm1714
    %v1716 = vsel %vm1715, %v1708, %v1712
    %v1717 = vand.u32 2147483647, %v1700
    %vm1718 = vcmp.eq.f32.partialorder %v1717, 8.507059e+37
    %v1719 = vand.u32 %v1700, 2147483648
    %v1720 = vor.u32 1.1754944e-38, %v1719
    %v1721 = vsel %vm1718, %v1720, %v1716
    %v1722 = vmul.f32 %v1687, %v1721
    %v1723 = vrcp.pop %v1707
    %v1724 = vmul.f32 %v1707, %v1723
    %v1725 = vsub.f32 1.0, %v1724
    %v1726 = vmul.f32 %v1723, %v1725
    %v1727 = vadd.f32 %v1723, %v1726
    %vm1728 = vweird.f32 %v1707
    %vm1729 = vweird.f32 %v1723
    %vm1730 = vmor %vm1728, %vm1729
    %v1731 = vsel %vm1730, %v1723, %v1727
    %v1732 = vand.u32 2147483647, %v1707
    %vm1733 = vcmp.eq.f32.partialorder %v1732, 8.507059e+37
    %v1734 = vand.u32 %v1707, 2147483648
    %v1735 = vor.u32 1.1754944e-38, %v1734
    %v1736 = vsel %vm1733, %v1735, %v1731
    %v1737 = vmul.f32 %v1689, %v1736
    %v1738 = vmul.f32 %v1691, %v1721
    %v1739 = vmul.f32 %v1693, %v1736
    %1740 = vmatpush.xpose.msra.mxu0 0.0
    %1741 = vmatpush.xpose.msra.mxu0 0.0
    %1742 = vmatpush.xpose.msra.mxu0 0.0
    %1743 = vmatpush.xpose.msra.mxu0 0.0
    %1744 = vmatpush.xpose.msra.mxu0 0.0
    %1745 = vmatpush.xpose.msra.mxu0 0.0
    %1746 = vmatpush.xpose.msra.mxu0 0.0
    %1747 = vmatpush.xpose.msra.mxu0 0.0
    %1748 = vmatpush.xpose.msra.mxu0 0.0
    %1749 = vmatpush.xpose.msra.mxu0 0.0
    %1750 = vmatpush.xpose.msra.mxu0 0.0
    %1751 = vmatpush.xpose.msra.mxu0 0.0
    %1752 = vmatpush.xpose.msra.mxu0 0.0
    %1753 = vmatpush.xpose.msra.mxu0 0.0
    %1754 = vmatpush.xpose.msra.mxu0 %v1620
    %1755 = vmatpush.xpose.msra.mxu0 %v1617
    %1756 = vmatmul.f32.gmra.mxu0 %v1617
    %v1757 = vpop.f32.mrf.mxu0
    %v1758 = vadd.f32 0.0, %v1757
    %1759 = vmatmul.f32.gmra.mxu0 %v1620
    %v1760 = vpop.f32.mrf.mxu0
    %v1761 = vadd.f32 0.0, %v1760
    %1762 = vdwg.mxu0
    %v1763 = vmul.f32 %v1722, %v1640
    %v1764 = vmul.f32 %v1737, %v1663
    %v1765 = vmul.f32 %v1738, %v1643
    %v1766 = vmul.f32 %v1739, %v1666
    %v1768 = vsel %vm302, %v1758, 0
    %v1771 = vsel %vm302, %v1761, 0
    %1773 = vmatpush.msra.mxu0 0.0
    %1774 = vmatpush.msra.mxu0 0.0
    %1775 = vmatpush.msra.mxu0 0.0
    %1776 = vmatpush.msra.mxu0 0.0
    %1777 = vmatpush.msra.mxu0 0.0
    %1778 = vmatpush.msra.mxu0 0.0
    %1779 = vmatpush.msra.mxu0 0.0
    %1780 = vmatpush.msra.mxu0 0.0
    %1781 = vmatpush.msra.mxu0 0.0
    %1782 = vmatpush.msra.mxu0 0.0
    %1783 = vmatpush.msra.mxu0 0.0
    %1784 = vmatpush.msra.mxu0 0.0
    %1785 = vmatpush.msra.mxu0 0.0
    %1786 = vmatpush.msra.mxu0 0.0
    %1787 = vmatpush.msra.mxu0 %v1738
    %1788 = vmatpush.msra.mxu0 %v1722
    %1789 = vmatmul.f32.gmra.mxu0 %v1768
    %v1790 = vpop.f32.mrf.mxu0
    %v1791 = vadd.f32 1e-06, %v1790
    %1792 = vmatmul.f32.gmra.mxu0 %v1771
    %v1793 = vpop.f32.mrf.mxu0
    %v1794 = vadd.f32 1e-06, %v1793
    %1795 = vdwg.mxu0
    %1796 = vmatpush.msra.mxu0 0.0
    %1797 = vmatpush.msra.mxu0 0.0
    %1798 = vmatpush.msra.mxu0 0.0
    %1799 = vmatpush.msra.mxu0 0.0
    %1800 = vmatpush.msra.mxu0 0.0
    %1801 = vmatpush.msra.mxu0 0.0
    %1802 = vmatpush.msra.mxu0 0.0
    %1803 = vmatpush.msra.mxu0 0.0
    %1804 = vmatpush.msra.mxu0 0.0
    %1805 = vmatpush.msra.mxu0 0.0
    %1806 = vmatpush.msra.mxu0 0.0
    %1807 = vmatpush.msra.mxu0 0.0
    %1808 = vmatpush.msra.mxu0 0.0
    %1809 = vmatpush.msra.mxu0 0.0
    %1810 = vmatpush.msra.mxu0 %v1739
    %1811 = vmatpush.msra.mxu0 %v1737
    %1812 = vmatmul.f32.gmra.mxu0 %v1768
    %v1813 = vpop.f32.mrf.mxu0
    %v1814 = vadd.f32 1e-06, %v1813
    %1815 = vmatmul.f32.gmra.mxu0 %v1771
    %v1816 = vpop.f32.mrf.mxu0
    %v1817 = vadd.f32 1e-06, %v1816
    %1818 = vdwg.mxu0
    %v1819 = vrcp.pop %v1791
    %v1820 = vmul.f32 %v1791, %v1819
    %v1821 = vsub.f32 1.0, %v1820
    %v1822 = vmul.f32 %v1819, %v1821
    %v1823 = vadd.f32 %v1819, %v1822
    %vm1824 = vweird.f32 %v1791
    %vm1825 = vweird.f32 %v1819
    %vm1826 = vmor %vm1824, %vm1825
    %v1827 = vsel %vm1826, %v1819, %v1823
    %v1828 = vand.u32 2147483647, %v1791
    %vm1829 = vcmp.eq.f32.partialorder %v1828, 8.507059e+37
    %v1830 = vand.u32 %v1791, 2147483648
    %v1831 = vor.u32 1.1754944e-38, %v1830
    %v1832 = vsel %vm1829, %v1831, %v1827
    %v1833 = vmul.f32 %v1763, %v1832
    %v1834 = vrcp.pop %v1814
    %v1835 = vmul.f32 %v1814, %v1834
    %v1836 = vsub.f32 1.0, %v1835
    %v1837 = vmul.f32 %v1834, %v1836
    %v1838 = vadd.f32 %v1834, %v1837
    %vm1839 = vweird.f32 %v1814
    %vm1840 = vweird.f32 %v1834
    %vm1841 = vmor %vm1839, %vm1840
    %v1842 = vsel %vm1841, %v1834, %v1838
    %v1843 = vand.u32 2147483647, %v1814
    %vm1844 = vcmp.eq.f32.partialorder %v1843, 8.507059e+37
    %v1845 = vand.u32 %v1814, 2147483648
    %v1846 = vor.u32 1.1754944e-38, %v1845
    %v1847 = vsel %vm1844, %v1846, %v1842
    %v1848 = vmul.f32 %v1764, %v1847
    %v1849 = vrcp.pop %v1794
    %v1850 = vmul.f32 %v1794, %v1849
    %v1851 = vsub.f32 1.0, %v1850
    %v1852 = vmul.f32 %v1849, %v1851
    %v1853 = vadd.f32 %v1849, %v1852
    %vm1854 = vweird.f32 %v1794
    %vm1855 = vweird.f32 %v1849
    %vm1856 = vmor %vm1854, %vm1855
    %v1857 = vsel %vm1856, %v1849, %v1853
    %v1858 = vand.u32 2147483647, %v1794
    %vm1859 = vcmp.eq.f32.partialorder %v1858, 8.507059e+37
    %v1860 = vand.u32 %v1794, 2147483648
    %v1861 = vor.u32 1.1754944e-38, %v1860
    %v1862 = vsel %vm1859, %v1861, %v1857
    %v1863 = vmul.f32 %v1765, %v1862
    %v1864 = vrcp.pop %v1817
    %v1865 = vmul.f32 %v1817, %v1864
    %v1866 = vsub.f32 1.0, %v1865
    %v1867 = vmul.f32 %v1864, %v1866
    %v1868 = vadd.f32 %v1864, %v1867
    %vm1869 = vweird.f32 %v1817
    %vm1870 = vweird.f32 %v1864
    %vm1871 = vmor %vm1869, %vm1870
    %v1872 = vsel %vm1871, %v1864, %v1868
    %v1873 = vand.u32 2147483647, %v1817
    %vm1874 = vcmp.eq.f32.partialorder %v1873, 8.507059e+37
    %v1875 = vand.u32 %v1817, 2147483648
    %v1876 = vor.u32 1.1754944e-38, %v1875
    %v1877 = vsel %vm1874, %v1876, %v1872
    %v1878 = vmul.f32 %v1766, %v1877
    %1879 = vmatpush.xpose.msra.mxu0 0.0
    %1880 = vmatpush.xpose.msra.mxu0 0.0
    %1881 = vmatpush.xpose.msra.mxu0 0.0
    %1882 = vmatpush.xpose.msra.mxu0 0.0
    %1883 = vmatpush.xpose.msra.mxu0 0.0
    %1884 = vmatpush.xpose.msra.mxu0 0.0
    %1885 = vmatpush.xpose.msra.mxu0 0.0
    %1886 = vmatpush.xpose.msra.mxu0 0.0
    %1887 = vmatpush.xpose.msra.mxu0 %v1610
    %1888 = vmatpush.xpose.msra.mxu0 %v1606
    %1889 = vmatpush.xpose.msra.mxu0 %v1602
    %1890 = vmatpush.xpose.msra.mxu0 %v1598
    %1891 = vmatpush.xpose.msra.mxu0 %v1594
    %1892 = vmatpush.xpose.msra.mxu0 %v1590
    %1893 = vmatpush.xpose.msra.mxu0 %v1586
    %1894 = vmatpush.xpose.msra.mxu0 %v1582
    %1895 = vmatmul.f32.gmra.mxu0 %v1833
    %v1896 = vpop.f32.mrf.mxu0
    %v1897 = vadd.f32 0.0, %v1896
    %1898 = vmatmul.f32.gmra.mxu0 %v1863
    %v1899 = vpop.f32.mrf.mxu0
    %v1900 = vadd.f32 0.0, %v1899
    %1901 = vdwg.mxu0
    %1902 = vmatpush.xpose.msra.mxu0 0.0
    %1903 = vmatpush.xpose.msra.mxu0 0.0
    %1904 = vmatpush.xpose.msra.mxu0 0.0
    %1905 = vmatpush.xpose.msra.mxu0 0.0
    %1906 = vmatpush.xpose.msra.mxu0 0.0
    %1907 = vmatpush.xpose.msra.mxu0 0.0
    %1908 = vmatpush.xpose.msra.mxu0 0.0
    %1909 = vmatpush.xpose.msra.mxu0 0.0
    %1910 = vmatpush.xpose.msra.mxu0 %v1611
    %1911 = vmatpush.xpose.msra.mxu0 %v1607
    %1912 = vmatpush.xpose.msra.mxu0 %v1603
    %1913 = vmatpush.xpose.msra.mxu0 %v1599
    %1914 = vmatpush.xpose.msra.mxu0 %v1595
    %1915 = vmatpush.xpose.msra.mxu0 %v1591
    %1916 = vmatpush.xpose.msra.mxu0 %v1587
    %1917 = vmatpush.xpose.msra.mxu0 %v1583
    %1918 = vmatmul.f32.gmra.mxu0 %v1848
    %v1919 = vpop.f32.mrf.mxu0
    %v1920 = vadd.f32 %v1897, %v1919
    %1921 = vmatmul.f32.gmra.mxu0 %v1878
    %v1922 = vpop.f32.mrf.mxu0
    %v1923 = vadd.f32 %v1900, %v1922
    %1924 = vdwg.mxu0
    %1925 = vmatpush.xpose.msra.mxu0 0.0
    %1926 = vmatpush.xpose.msra.mxu0 0.0
    %1927 = vmatpush.xpose.msra.mxu0 0.0
    %1928 = vmatpush.xpose.msra.mxu0 0.0
    %1929 = vmatpush.xpose.msra.mxu0 0.0
    %1930 = vmatpush.xpose.msra.mxu0 0.0
    %1931 = vmatpush.xpose.msra.mxu0 0.0
    %1932 = vmatpush.xpose.msra.mxu0 0.0
    %1933 = vmatpush.xpose.msra.mxu0 0.0
    %1934 = vmatpush.xpose.msra.mxu0 0.0
    %1935 = vmatpush.xpose.msra.mxu0 0.0
    %1936 = vmatpush.xpose.msra.mxu0 0.0
    %1937 = vmatpush.xpose.msra.mxu0 0.0
    %1938 = vmatpush.xpose.msra.mxu0 0.0
    %1939 = vmatpush.xpose.msra.mxu0 %v1863
    %1940 = vmatpush.xpose.msra.mxu0 %v1833
    %1941 = vmatmul.f32.gmra.mxu0 %v1833
    %v1942 = vpop.f32.mrf.mxu0
    %v1943 = vadd.f32 0.0, %v1942
    %1944 = vmatmul.f32.gmra.mxu0 %v1863
    %v1945 = vpop.f32.mrf.mxu0
    %v1946 = vadd.f32 0.0, %v1945
    %1947 = vdwg.mxu0
    %1948 = vmatpush.xpose.msra.mxu0 0.0
    %1949 = vmatpush.xpose.msra.mxu0 0.0
    %1950 = vmatpush.xpose.msra.mxu0 0.0
    %1951 = vmatpush.xpose.msra.mxu0 0.0
    %1952 = vmatpush.xpose.msra.mxu0 0.0
    %1953 = vmatpush.xpose.msra.mxu0 0.0
    %1954 = vmatpush.xpose.msra.mxu0 0.0
    %1955 = vmatpush.xpose.msra.mxu0 0.0
    %1956 = vmatpush.xpose.msra.mxu0 0.0
    %1957 = vmatpush.xpose.msra.mxu0 0.0
    %1958 = vmatpush.xpose.msra.mxu0 0.0
    %1959 = vmatpush.xpose.msra.mxu0 0.0
    %1960 = vmatpush.xpose.msra.mxu0 0.0
    %1961 = vmatpush.xpose.msra.mxu0 0.0
    %1962 = vmatpush.xpose.msra.mxu0 %v1878
    %1963 = vmatpush.xpose.msra.mxu0 %v1848
    %1964 = vmatmul.f32.gmra.mxu0 %v1848
    %v1965 = vpop.f32.mrf.mxu0
    %v1966 = vadd.f32 %v1943, %v1965
    %1967 = vmatmul.f32.gmra.mxu0 %v1878
    %v1968 = vpop.f32.mrf.mxu0
    %v1969 = vadd.f32 %v1946, %v1968
    %1970 = vdwg.mxu0
    %v1971 = vmul.f32 %v1614, %v1920
    %v1972 = vmul.f32 %v1615, %v1923
    %v1974 = vsel %vm302, %v1966, 0
    %v1977 = vsel %vm302, %v1969, 0
    %1979 = vmatpush.msra.mxu0 0.0
    %1980 = vmatpush.msra.mxu0 0.0
    %1981 = vmatpush.msra.mxu0 0.0
    %1982 = vmatpush.msra.mxu0 0.0
    %1983 = vmatpush.msra.mxu0 0.0
    %1984 = vmatpush.msra.mxu0 0.0
    %1985 = vmatpush.msra.mxu0 0.0
    %1986 = vmatpush.msra.mxu0 0.0
    %1987 = vmatpush.msra.mxu0 0.0
    %1988 = vmatpush.msra.mxu0 0.0
    %1989 = vmatpush.msra.mxu0 0.0
    %1990 = vmatpush.msra.mxu0 0.0
    %1991 = vmatpush.msra.mxu0 0.0
    %1992 = vmatpush.msra.mxu0 0.0
    %1993 = vmatpush.msra.mxu0 %v1615
    %1994 = vmatpush.msra.mxu0 %v1614
    %1995 = vmatmul.f32.gmra.mxu0 %v1974
    %v1996 = vpop.f32.mrf.mxu0
    %v1997 = vadd.f32 1e-06, %v1996
    %1998 = vmatmul.f32.gmra.mxu0 %v1977
    %v1999 = vpop.f32.mrf.mxu0
    %v2000 = vadd.f32 1e-06, %v1999
    %2001 = vdwg.mxu0
    %v2002 = vrcp.pop %v1997
    %v2003 = vmul.f32 %v1997, %v2002
    %v2004 = vsub.f32 1.0, %v2003
    %v2005 = vmul.f32 %v2002, %v2004
    %v2006 = vadd.f32 %v2002, %v2005
    %vm2007 = vweird.f32 %v1997
    %vm2008 = vweird.f32 %v2002
    %vm2009 = vmor %vm2007, %vm2008
    %v2010 = vsel %vm2009, %v2002, %v2006
    %v2011 = vand.u32 2147483647, %v1997
    %vm2012 = vcmp.eq.f32.partialorder %v2011, 8.507059e+37
    %v2013 = vand.u32 %v1997, 2147483648
    %v2014 = vor.u32 1.1754944e-38, %v2013
    %v2015 = vsel %vm2012, %v2014, %v2010
    %v2016 = vmul.f32 %v1971, %v2015
    %v2017 = vrcp.pop %v2000
    %v2018 = vmul.f32 %v2000, %v2017
    %v2019 = vsub.f32 1.0, %v2018
    %v2020 = vmul.f32 %v2017, %v2019
    %v2021 = vadd.f32 %v2017, %v2020
    %vm2022 = vweird.f32 %v2000
    %vm2023 = vweird.f32 %v2017
    %vm2024 = vmor %vm2022, %vm2023
    %v2025 = vsel %vm2024, %v2017, %v2021
    %v2026 = vand.u32 2147483647, %v2000
    %vm2027 = vcmp.eq.f32.partialorder %v2026, 8.507059e+37
    %v2028 = vand.u32 %v2000, 2147483648
    %v2029 = vor.u32 1.1754944e-38, %v2028
    %v2030 = vsel %vm2027, %v2029, %v2025
    %v2031 = vmul.f32 %v1972, %v2030
    %v2033 = vsel %vm213, %v2016, 0
    %v2036 = vsel %vm213, %v2031, 0
    %2038 = vmatpush.msra.mxu0 0.0
    %2039 = vmatpush.msra.mxu0 0.0
    %2040 = vmatpush.msra.mxu0 0.0
    %2041 = vmatpush.msra.mxu0 0.0
    %2042 = vmatpush.msra.mxu0 0.0
    %2043 = vmatpush.msra.mxu0 0.0
    %2044 = vmatpush.msra.mxu0 0.0
    %2045 = vmatpush.msra.mxu0 0.0
    %2046 = vmatpush.msra.mxu0 %v1610
    %2047 = vmatpush.msra.mxu0 %v1606
    %2048 = vmatpush.msra.mxu0 %v1602
    %2049 = vmatpush.msra.mxu0 %v1598
    %2050 = vmatpush.msra.mxu0 %v1594
    %2051 = vmatpush.msra.mxu0 %v1590
    %2052 = vmatpush.msra.mxu0 %v1586
    %2053 = vmatpush.msra.mxu0 %v1582
    %2054 = vmatmul.f32.gmra.mxu0 %v2033
    %v2055 = vpop.f32.mrf.mxu0
    %v2056 = vadd.f32 0.0, %v2055
    %2057 = vmatmul.f32.gmra.mxu0 %v2036
    %v2058 = vpop.f32.mrf.mxu0
    %v2059 = vadd.f32 0.0, %v2058
    %2060 = vdwg.mxu0
    %2061 = vmatpush.msra.mxu0 0.0
    %2062 = vmatpush.msra.mxu0 0.0
    %2063 = vmatpush.msra.mxu0 0.0
    %2064 = vmatpush.msra.mxu0 0.0
    %2065 = vmatpush.msra.mxu0 0.0
    %2066 = vmatpush.msra.mxu0 0.0
    %2067 = vmatpush.msra.mxu0 0.0
    %2068 = vmatpush.msra.mxu0 0.0
    %2069 = vmatpush.msra.mxu0 %v1611
    %2070 = vmatpush.msra.mxu0 %v1607
    %2071 = vmatpush.msra.mxu0 %v1603
    %2072 = vmatpush.msra.mxu0 %v1599
    %2073 = vmatpush.msra.mxu0 %v1595
    %2074 = vmatpush.msra.mxu0 %v1591
    %2075 = vmatpush.msra.mxu0 %v1587
    %2076 = vmatpush.msra.mxu0 %v1583
    %2077 = vmatmul.f32.gmra.mxu0 %v2033
    %v2078 = vpop.f32.mrf.mxu0
    %v2079 = vadd.f32 0.0, %v2078
    %2080 = vmatmul.f32.gmra.mxu0 %v2036
    %v2081 = vpop.f32.mrf.mxu0
    %v2082 = vadd.f32 0.0, %v2081
    %2083 = vdwg.mxu0
    %2084 = vmatpush.xpose.msra.mxu0 0.0
    %2085 = vmatpush.xpose.msra.mxu0 0.0
    %2086 = vmatpush.xpose.msra.mxu0 0.0
    %2087 = vmatpush.xpose.msra.mxu0 0.0
    %2088 = vmatpush.xpose.msra.mxu0 0.0
    %2089 = vmatpush.xpose.msra.mxu0 0.0
    %2090 = vmatpush.xpose.msra.mxu0 0.0
    %2091 = vmatpush.xpose.msra.mxu0 0.0
    %2092 = vmatpush.xpose.msra.mxu0 0.0
    %2093 = vmatpush.xpose.msra.mxu0 0.0
    %2094 = vmatpush.xpose.msra.mxu0 0.0
    %2095 = vmatpush.xpose.msra.mxu0 0.0
    %2096 = vmatpush.xpose.msra.mxu0 0.0
    %2097 = vmatpush.xpose.msra.mxu0 0.0
    %2098 = vmatpush.xpose.msra.mxu0 %v2036
    %2099 = vmatpush.xpose.msra.mxu0 %v2033
    %2100 = vmatmul.f32.gmra.mxu0 %v2033
    %v2101 = vpop.f32.mrf.mxu0
    %v2102 = vadd.f32 0.0, %v2101
    %2103 = vmatmul.f32.gmra.mxu0 %v2036
    %v2104 = vpop.f32.mrf.mxu0
    %v2105 = vadd.f32 0.0, %v2104
    %2106 = vdwg.mxu0
    %v2107 = vmul.f32 %v1833, %v2056
    %v2108 = vmul.f32 %v1848, %v2079
    %v2109 = vmul.f32 %v1863, %v2059
    %v2110 = vmul.f32 %v1878, %v2082
    %v2112 = vsel %vm302, %v2102, 0
    %v2115 = vsel %vm302, %v2105, 0
    %2117 = vmatpush.msra.mxu0 0.0
    %2118 = vmatpush.msra.mxu0 0.0
    %2119 = vmatpush.msra.mxu0 0.0
    %2120 = vmatpush.msra.mxu0 0.0
    %2121 = vmatpush.msra.mxu0 0.0
    %2122 = vmatpush.msra.mxu0 0.0
    %2123 = vmatpush.msra.mxu0 0.0
    %2124 = vmatpush.msra.mxu0 0.0
    %2125 = vmatpush.msra.mxu0 0.0
    %2126 = vmatpush.msra.mxu0 0.0
    %2127 = vmatpush.msra.mxu0 0.0
    %2128 = vmatpush.msra.mxu0 0.0
    %2129 = vmatpush.msra.mxu0 0.0
    %2130 = vmatpush.msra.mxu0 0.0
    %2131 = vmatpush.msra.mxu0 %v1863
    %2132 = vmatpush.msra.mxu0 %v1833
    %2133 = vmatmul.f32.gmra.mxu0 %v2112
    %v2134 = vpop.f32.mrf.mxu0
    %v2135 = vadd.f32 1e-06, %v2134
    %2136 = vmatmul.f32.gmra.mxu0 %v2115
    %v2137 = vpop.f32.mrf.mxu0
    %v2138 = vadd.f32 1e-06, %v2137
    %2139 = vdwg.mxu0
    %2140 = vmatpush.msra.mxu0 0.0
    %2141 = vmatpush.msra.mxu0 0.0
    %2142 = vmatpush.msra.mxu0 0.0
    %2143 = vmatpush.msra.mxu0 0.0
    %2144 = vmatpush.msra.mxu0 0.0
    %2145 = vmatpush.msra.mxu0 0.0
    %2146 = vmatpush.msra.mxu0 0.0
    %2147 = vmatpush.msra.mxu0 0.0
    %2148 = vmatpush.msra.mxu0 0.0
    %2149 = vmatpush.msra.mxu0 0.0
    %2150 = vmatpush.msra.mxu0 0.0
    %2151 = vmatpush.msra.mxu0 0.0
    %2152 = vmatpush.msra.mxu0 0.0
    %2153 = vmatpush.msra.mxu0 0.0
    %2154 = vmatpush.msra.mxu0 %v1878
    %2155 = vmatpush.msra.mxu0 %v1848
    %2156 = vmatmul.f32.gmra.mxu0 %v2112
    %v2157 = vpop.f32.mrf.mxu0
    %v2158 = vadd.f32 1e-06, %v2157
    %2159 = vmatmul.f32.gmra.mxu0 %v2115
    %v2160 = vpop.f32.mrf.mxu0
    %v2161 = vadd.f32 1e-06, %v2160
    %2162 = vdwg.mxu0
    %v2163 = vrcp.pop %v2135
    %v2164 = vmul.f32 %v2135, %v2163
    %v2165 = vsub.f32 1.0, %v2164
    %v2166 = vmul.f32 %v2163, %v2165
    %v2167 = vadd.f32 %v2163, %v2166
    %vm2168 = vweird.f32 %v2135
    %vm2169 = vweird.f32 %v2163
    %vm2170 = vmor %vm2168, %vm2169
    %v2171 = vsel %vm2170, %v2163, %v2167
    %v2172 = vand.u32 2147483647, %v2135
    %vm2173 = vcmp.eq.f32.partialorder %v2172, 8.507059e+37
    %v2174 = vand.u32 %v2135, 2147483648
    %v2175 = vor.u32 1.1754944e-38, %v2174
    %v2176 = vsel %vm2173, %v2175, %v2171
    %v2177 = vmul.f32 %v2107, %v2176
    %v2178 = vrcp.pop %v2158
    %v2179 = vmul.f32 %v2158, %v2178
    %v2180 = vsub.f32 1.0, %v2179
    %v2181 = vmul.f32 %v2178, %v2180
    %v2182 = vadd.f32 %v2178, %v2181
    %vm2183 = vweird.f32 %v2158
    %vm2184 = vweird.f32 %v2178
    %vm2185 = vmor %vm2183, %vm2184
    %v2186 = vsel %vm2185, %v2178, %v2182
    %v2187 = vand.u32 2147483647, %v2158
    %vm2188 = vcmp.eq.f32.partialorder %v2187, 8.507059e+37
    %v2189 = vand.u32 %v2158, 2147483648
    %v2190 = vor.u32 1.1754944e-38, %v2189
    %v2191 = vsel %vm2188, %v2190, %v2186
    %v2192 = vmul.f32 %v2108, %v2191
    %v2193 = vrcp.pop %v2138
    %v2194 = vmul.f32 %v2138, %v2193
    %v2195 = vsub.f32 1.0, %v2194
    %v2196 = vmul.f32 %v2193, %v2195
    %v2197 = vadd.f32 %v2193, %v2196
    %vm2198 = vweird.f32 %v2138
    %vm2199 = vweird.f32 %v2193
    %vm2200 = vmor %vm2198, %vm2199
    %v2201 = vsel %vm2200, %v2193, %v2197
    %v2202 = vand.u32 2147483647, %v2138
    %vm2203 = vcmp.eq.f32.partialorder %v2202, 8.507059e+37
    %v2204 = vand.u32 %v2138, 2147483648
    %v2205 = vor.u32 1.1754944e-38, %v2204
    %v2206 = vsel %vm2203, %v2205, %v2201
    %v2207 = vmul.f32 %v2109, %v2206
    %v2208 = vrcp.pop %v2161
    %v2209 = vmul.f32 %v2161, %v2208
    %v2210 = vsub.f32 1.0, %v2209
    %v2211 = vmul.f32 %v2208, %v2210
    %v2212 = vadd.f32 %v2208, %v2211
    %vm2213 = vweird.f32 %v2161
    %vm2214 = vweird.f32 %v2208
    %vm2215 = vmor %vm2213, %vm2214
    %v2216 = vsel %vm2215, %v2208, %v2212
    %v2217 = vand.u32 2147483647, %v2161
    %vm2218 = vcmp.eq.f32.partialorder %v2217, 8.507059e+37
    %v2219 = vand.u32 %v2161, 2147483648
    %v2220 = vor.u32 1.1754944e-38, %v2219
    %v2221 = vsel %vm2218, %v2220, %v2216
    %v2222 = vmul.f32 %v2110, %v2221
    %2223 = vmatpush.xpose.msra.mxu0 0.0
    %2224 = vmatpush.xpose.msra.mxu0 0.0
    %2225 = vmatpush.xpose.msra.mxu0 0.0
    %2226 = vmatpush.xpose.msra.mxu0 0.0
    %2227 = vmatpush.xpose.msra.mxu0 0.0
    %2228 = vmatpush.xpose.msra.mxu0 0.0
    %2229 = vmatpush.xpose.msra.mxu0 0.0
    %2230 = vmatpush.xpose.msra.mxu0 0.0
    %2231 = vmatpush.xpose.msra.mxu0 %v1610
    %2232 = vmatpush.xpose.msra.mxu0 %v1606
    %2233 = vmatpush.xpose.msra.mxu0 %v1602
    %2234 = vmatpush.xpose.msra.mxu0 %v1598
    %2235 = vmatpush.xpose.msra.mxu0 %v1594
    %2236 = vmatpush.xpose.msra.mxu0 %v1590
    %2237 = vmatpush.xpose.msra.mxu0 %v1586
    %2238 = vmatpush.xpose.msra.mxu0 %v1582
    %2239 = vmatmul.f32.gmra.mxu0 %v2177
    %v2240 = vpop.f32.mrf.mxu0
    %v2241 = vadd.f32 0.0, %v2240
    %2242 = vmatmul.f32.gmra.mxu0 %v2207
    %v2243 = vpop.f32.mrf.mxu0
    %v2244 = vadd.f32 0.0, %v2243
    %2245 = vdwg.mxu0
    %2246 = vmatpush.xpose.msra.mxu0 0.0
    %2247 = vmatpush.xpose.msra.mxu0 0.0
    %2248 = vmatpush.xpose.msra.mxu0 0.0
    %2249 = vmatpush.xpose.msra.mxu0 0.0
    %2250 = vmatpush.xpose.msra.mxu0 0.0
    %2251 = vmatpush.xpose.msra.mxu0 0.0
    %2252 = vmatpush.xpose.msra.mxu0 0.0
    %2253 = vmatpush.xpose.msra.mxu0 0.0
    %2254 = vmatpush.xpose.msra.mxu0 %v1611
    %2255 = vmatpush.xpose.msra.mxu0 %v1607
    %2256 = vmatpush.xpose.msra.mxu0 %v1603
    %2257 = vmatpush.xpose.msra.mxu0 %v1599
    %2258 = vmatpush.xpose.msra.mxu0 %v1595
    %2259 = vmatpush.xpose.msra.mxu0 %v1591
    %2260 = vmatpush.xpose.msra.mxu0 %v1587
    %2261 = vmatpush.xpose.msra.mxu0 %v1583
    %2262 = vmatmul.f32.gmra.mxu0 %v2192
    %v2263 = vpop.f32.mrf.mxu0
    %v2264 = vadd.f32 %v2241, %v2263
    %2265 = vmatmul.f32.gmra.mxu0 %v2222
    %v2266 = vpop.f32.mrf.mxu0
    %v2267 = vadd.f32 %v2244, %v2266
    %2268 = vdwg.mxu0
    %2269 = vmatpush.xpose.msra.mxu0 0.0
    %2270 = vmatpush.xpose.msra.mxu0 0.0
    %2271 = vmatpush.xpose.msra.mxu0 0.0
    %2272 = vmatpush.xpose.msra.mxu0 0.0
    %2273 = vmatpush.xpose.msra.mxu0 0.0
    %2274 = vmatpush.xpose.msra.mxu0 0.0
    %2275 = vmatpush.xpose.msra.mxu0 0.0
    %2276 = vmatpush.xpose.msra.mxu0 0.0
    %2277 = vmatpush.xpose.msra.mxu0 0.0
    %2278 = vmatpush.xpose.msra.mxu0 0.0
    %2279 = vmatpush.xpose.msra.mxu0 0.0
    %2280 = vmatpush.xpose.msra.mxu0 0.0
    %2281 = vmatpush.xpose.msra.mxu0 0.0
    %2282 = vmatpush.xpose.msra.mxu0 0.0
    %2283 = vmatpush.xpose.msra.mxu0 %v2207
    %2284 = vmatpush.xpose.msra.mxu0 %v2177
    %2285 = vmatmul.f32.gmra.mxu0 %v2177
    %v2286 = vpop.f32.mrf.mxu0
    %v2287 = vadd.f32 0.0, %v2286
    %2288 = vmatmul.f32.gmra.mxu0 %v2207
    %v2289 = vpop.f32.mrf.mxu0
    %v2290 = vadd.f32 0.0, %v2289
    %2291 = vdwg.mxu0
    %2292 = vmatpush.xpose.msra.mxu0 0.0
    %2293 = vmatpush.xpose.msra.mxu0 0.0
    %2294 = vmatpush.xpose.msra.mxu0 0.0
    %2295 = vmatpush.xpose.msra.mxu0 0.0
    %2296 = vmatpush.xpose.msra.mxu0 0.0
    %2297 = vmatpush.xpose.msra.mxu0 0.0
    %2298 = vmatpush.xpose.msra.mxu0 0.0
    %2299 = vmatpush.xpose.msra.mxu0 0.0
    %2300 = vmatpush.xpose.msra.mxu0 0.0
    %2301 = vmatpush.xpose.msra.mxu0 0.0
    %2302 = vmatpush.xpose.msra.mxu0 0.0
    %2303 = vmatpush.xpose.msra.mxu0 0.0
    %2304 = vmatpush.xpose.msra.mxu0 0.0
    %2305 = vmatpush.xpose.msra.mxu0 0.0
    %2306 = vmatpush.xpose.msra.mxu0 %v2222
    %2307 = vmatpush.xpose.msra.mxu0 %v2192
    %2308 = vmatmul.f32.gmra.mxu0 %v2192
    %v2309 = vpop.f32.mrf.mxu0
    %v2310 = vadd.f32 %v2287, %v2309
    %2311 = vmatmul.f32.gmra.mxu0 %v2222
    %v2312 = vpop.f32.mrf.mxu0
    %v2313 = vadd.f32 %v2290, %v2312
    %2314 = vdwg.mxu0
    %v2315 = vmul.f32 %v2016, %v2264
    %v2316 = vmul.f32 %v2031, %v2267
    %v2318 = vsel %vm302, %v2310, 0
    %v2321 = vsel %vm302, %v2313, 0
    %2323 = vmatpush.msra.mxu0 0.0
    %2324 = vmatpush.msra.mxu0 0.0
    %2325 = vmatpush.msra.mxu0 0.0
    %2326 = vmatpush.msra.mxu0 0.0
    %2327 = vmatpush.msra.mxu0 0.0
    %2328 = vmatpush.msra.mxu0 0.0
    %2329 = vmatpush.msra.mxu0 0.0
    %2330 = vmatpush.msra.mxu0 0.0
    %2331 = vmatpush.msra.mxu0 0.0
    %2332 = vmatpush.msra.mxu0 0.0
    %2333 = vmatpush.msra.mxu0 0.0
    %2334 = vmatpush.msra.mxu0 0.0
    %2335 = vmatpush.msra.mxu0 0.0
    %2336 = vmatpush.msra.mxu0 0.0
    %2337 = vmatpush.msra.mxu0 %v2031
    %2338 = vmatpush.msra.mxu0 %v2016
    %2339 = vmatmul.f32.gmra.mxu0 %v2318
    %v2340 = vpop.f32.mrf.mxu0
    %v2341 = vadd.f32 1e-06, %v2340
    %2342 = vmatmul.f32.gmra.mxu0 %v2321
    %v2343 = vpop.f32.mrf.mxu0
    %v2344 = vadd.f32 1e-06, %v2343
    %2345 = vdwg.mxu0
    %v2346 = vrcp.pop %v2341
    %v2347 = vmul.f32 %v2341, %v2346
    %v2348 = vsub.f32 1.0, %v2347
    %v2349 = vmul.f32 %v2346, %v2348
    %v2350 = vadd.f32 %v2346, %v2349
    %vm2351 = vweird.f32 %v2341
    %vm2352 = vweird.f32 %v2346
    %vm2353 = vmor %vm2351, %vm2352
    %v2354 = vsel %vm2353, %v2346, %v2350
    %v2355 = vand.u32 2147483647, %v2341
    %vm2356 = vcmp.eq.f32.partialorder %v2355, 8.507059e+37
    %v2357 = vand.u32 %v2341, 2147483648
    %v2358 = vor.u32 1.1754944e-38, %v2357
    %v2359 = vsel %vm2356, %v2358, %v2354
    %v2360 = vmul.f32 %v2315, %v2359
    %v2361 = vrcp.pop %v2344
    %v2362 = vmul.f32 %v2344, %v2361
    %v2363 = vsub.f32 1.0, %v2362
    %v2364 = vmul.f32 %v2361, %v2363
    %v2365 = vadd.f32 %v2361, %v2364
    %vm2366 = vweird.f32 %v2344
    %vm2367 = vweird.f32 %v2361
    %vm2368 = vmor %vm2366, %vm2367
    %v2369 = vsel %vm2368, %v2361, %v2365
    %v2370 = vand.u32 2147483647, %v2344
    %vm2371 = vcmp.eq.f32.partialorder %v2370, 8.507059e+37
    %v2372 = vand.u32 %v2344, 2147483648
    %v2373 = vor.u32 1.1754944e-38, %v2372
    %v2374 = vsel %vm2371, %v2373, %v2369
    %v2375 = vmul.f32 %v2316, %v2374
    %v2377 = vsel %vm213, %v2360, 0
    %v2380 = vsel %vm213, %v2375, 0
    %2382 = vmatpush.msra.mxu0 0.0
    %2383 = vmatpush.msra.mxu0 0.0
    %2384 = vmatpush.msra.mxu0 0.0
    %2385 = vmatpush.msra.mxu0 0.0
    %2386 = vmatpush.msra.mxu0 0.0
    %2387 = vmatpush.msra.mxu0 0.0
    %2388 = vmatpush.msra.mxu0 0.0
    %2389 = vmatpush.msra.mxu0 0.0
    %2390 = vmatpush.msra.mxu0 %v1610
    %2391 = vmatpush.msra.mxu0 %v1606
    %2392 = vmatpush.msra.mxu0 %v1602
    %2393 = vmatpush.msra.mxu0 %v1598
    %2394 = vmatpush.msra.mxu0 %v1594
    %2395 = vmatpush.msra.mxu0 %v1590
    %2396 = vmatpush.msra.mxu0 %v1586
    %2397 = vmatpush.msra.mxu0 %v1582
    %2398 = vmatmul.f32.gmra.mxu0 %v2377
    %v2399 = vpop.f32.mrf.mxu0
    %v2400 = vadd.f32 0.0, %v2399
    %2401 = vmatmul.f32.gmra.mxu0 %v2380
    %v2402 = vpop.f32.mrf.mxu0
    %v2403 = vadd.f32 0.0, %v2402
    %2404 = vdwg.mxu0
    %2405 = vmatpush.msra.mxu0 0.0
    %2406 = vmatpush.msra.mxu0 0.0
    %2407 = vmatpush.msra.mxu0 0.0
    %2408 = vmatpush.msra.mxu0 0.0
    %2409 = vmatpush.msra.mxu0 0.0
    %2410 = vmatpush.msra.mxu0 0.0
    %2411 = vmatpush.msra.mxu0 0.0
    %2412 = vmatpush.msra.mxu0 0.0
    %2413 = vmatpush.msra.mxu0 %v1611
    %2414 = vmatpush.msra.mxu0 %v1607
    %2415 = vmatpush.msra.mxu0 %v1603
    %2416 = vmatpush.msra.mxu0 %v1599
    %2417 = vmatpush.msra.mxu0 %v1595
    %2418 = vmatpush.msra.mxu0 %v1591
    %2419 = vmatpush.msra.mxu0 %v1587
    %2420 = vmatpush.msra.mxu0 %v1583
    %2421 = vmatmul.f32.gmra.mxu0 %v2377
    %v2422 = vpop.f32.mrf.mxu0
    %v2423 = vadd.f32 0.0, %v2422
    %2424 = vmatmul.f32.gmra.mxu0 %v2380
    %v2425 = vpop.f32.mrf.mxu0
    %v2426 = vadd.f32 0.0, %v2425
    %2427 = vdwg.mxu0
    %2428 = vmatpush.xpose.msra.mxu0 0.0
    %2429 = vmatpush.xpose.msra.mxu0 0.0
    %2430 = vmatpush.xpose.msra.mxu0 0.0
    %2431 = vmatpush.xpose.msra.mxu0 0.0
    %2432 = vmatpush.xpose.msra.mxu0 0.0
    %2433 = vmatpush.xpose.msra.mxu0 0.0
    %2434 = vmatpush.xpose.msra.mxu0 0.0
    %2435 = vmatpush.xpose.msra.mxu0 0.0
    %2436 = vmatpush.xpose.msra.mxu0 0.0
    %2437 = vmatpush.xpose.msra.mxu0 0.0
    %2438 = vmatpush.xpose.msra.mxu0 0.0
    %2439 = vmatpush.xpose.msra.mxu0 0.0
    %2440 = vmatpush.xpose.msra.mxu0 0.0
    %2441 = vmatpush.xpose.msra.mxu0 0.0
    %2442 = vmatpush.xpose.msra.mxu0 %v2380
    %2443 = vmatpush.xpose.msra.mxu0 %v2377
    %2444 = vmatmul.f32.gmra.mxu0 %v2377
    %v2445 = vpop.f32.mrf.mxu0
    %v2446 = vadd.f32 0.0, %v2445
    %2447 = vmatmul.f32.gmra.mxu0 %v2380
    %v2448 = vpop.f32.mrf.mxu0
    %v2449 = vadd.f32 0.0, %v2448
    %2450 = vdwg.mxu0
    %v2451 = vmul.f32 %v2177, %v2400
    %v2452 = vmul.f32 %v2192, %v2423
    %v2453 = vmul.f32 %v2207, %v2403
    %v2454 = vmul.f32 %v2222, %v2426
    %v2456 = vsel %vm302, %v2446, 0
    %v2459 = vsel %vm302, %v2449, 0
    %2461 = vmatpush.msra.mxu0 0.0
    %2462 = vmatpush.msra.mxu0 0.0
    %2463 = vmatpush.msra.mxu0 0.0
    %2464 = vmatpush.msra.mxu0 0.0
    %2465 = vmatpush.msra.mxu0 0.0
    %2466 = vmatpush.msra.mxu0 0.0
    %2467 = vmatpush.msra.mxu0 0.0
    %2468 = vmatpush.msra.mxu0 0.0
    %2469 = vmatpush.msra.mxu0 0.0
    %2470 = vmatpush.msra.mxu0 0.0
    %2471 = vmatpush.msra.mxu0 0.0
    %2472 = vmatpush.msra.mxu0 0.0
    %2473 = vmatpush.msra.mxu0 0.0
    %2474 = vmatpush.msra.mxu0 0.0
    %2475 = vmatpush.msra.mxu0 %v2207
    %2476 = vmatpush.msra.mxu0 %v2177
    %2477 = vmatmul.f32.gmra.mxu0 %v2456
    %v2478 = vpop.f32.mrf.mxu0
    %v2479 = vadd.f32 1e-06, %v2478
    %2480 = vmatmul.f32.gmra.mxu0 %v2459
    %v2481 = vpop.f32.mrf.mxu0
    %v2482 = vadd.f32 1e-06, %v2481
    %2483 = vdwg.mxu0
    %2484 = vmatpush.msra.mxu0 0.0
    %2485 = vmatpush.msra.mxu0 0.0
    %2486 = vmatpush.msra.mxu0 0.0
    %2487 = vmatpush.msra.mxu0 0.0
    %2488 = vmatpush.msra.mxu0 0.0
    %2489 = vmatpush.msra.mxu0 0.0
    %2490 = vmatpush.msra.mxu0 0.0
    %2491 = vmatpush.msra.mxu0 0.0
    %2492 = vmatpush.msra.mxu0 0.0
    %2493 = vmatpush.msra.mxu0 0.0
    %2494 = vmatpush.msra.mxu0 0.0
    %2495 = vmatpush.msra.mxu0 0.0
    %2496 = vmatpush.msra.mxu0 0.0
    %2497 = vmatpush.msra.mxu0 0.0
    %2498 = vmatpush.msra.mxu0 %v2222
    %2499 = vmatpush.msra.mxu0 %v2192
    %2500 = vmatmul.f32.gmra.mxu0 %v2456
    %v2501 = vpop.f32.mrf.mxu0
    %v2502 = vadd.f32 1e-06, %v2501
    %2503 = vmatmul.f32.gmra.mxu0 %v2459
    %v2504 = vpop.f32.mrf.mxu0
    %v2505 = vadd.f32 1e-06, %v2504
    %2506 = vdwg.mxu0
    %v2507 = vrcp.pop %v2479
    %v2508 = vmul.f32 %v2479, %v2507
    %v2509 = vsub.f32 1.0, %v2508
    %v2510 = vmul.f32 %v2507, %v2509
    %v2511 = vadd.f32 %v2507, %v2510
    %vm2512 = vweird.f32 %v2479
    %vm2513 = vweird.f32 %v2507
    %vm2514 = vmor %vm2512, %vm2513
    %v2515 = vsel %vm2514, %v2507, %v2511
    %v2516 = vand.u32 2147483647, %v2479
    %vm2517 = vcmp.eq.f32.partialorder %v2516, 8.507059e+37
    %v2518 = vand.u32 %v2479, 2147483648
    %v2519 = vor.u32 1.1754944e-38, %v2518
    %v2520 = vsel %vm2517, %v2519, %v2515
    %v2521 = vmul.f32 %v2451, %v2520
    %v2522 = vrcp.pop %v2502
    %v2523 = vmul.f32 %v2502, %v2522
    %v2524 = vsub.f32 1.0, %v2523
    %v2525 = vmul.f32 %v2522, %v2524
    %v2526 = vadd.f32 %v2522, %v2525
    %vm2527 = vweird.f32 %v2502
    %vm2528 = vweird.f32 %v2522
    %vm2529 = vmor %vm2527, %vm2528
    %v2530 = vsel %vm2529, %v2522, %v2526
    %v2531 = vand.u32 2147483647, %v2502
    %vm2532 = vcmp.eq.f32.partialorder %v2531, 8.507059e+37
    %v2533 = vand.u32 %v2502, 2147483648
    %v2534 = vor.u32 1.1754944e-38, %v2533
    %v2535 = vsel %vm2532, %v2534, %v2530
    %v2536 = vmul.f32 %v2452, %v2535
    %v2537 = vrcp.pop %v2482
    %v2538 = vmul.f32 %v2482, %v2537
    %v2539 = vsub.f32 1.0, %v2538
    %v2540 = vmul.f32 %v2537, %v2539
    %v2541 = vadd.f32 %v2537, %v2540
    %vm2542 = vweird.f32 %v2482
    %vm2543 = vweird.f32 %v2537
    %vm2544 = vmor %vm2542, %vm2543
    %v2545 = vsel %vm2544, %v2537, %v2541
    %v2546 = vand.u32 2147483647, %v2482
    %vm2547 = vcmp.eq.f32.partialorder %v2546, 8.507059e+37
    %v2548 = vand.u32 %v2482, 2147483648
    %v2549 = vor.u32 1.1754944e-38, %v2548
    %v2550 = vsel %vm2547, %v2549, %v2545
    %v2551 = vmul.f32 %v2453, %v2550
    %v2552 = vrcp.pop %v2505
    %v2553 = vmul.f32 %v2505, %v2552
    %v2554 = vsub.f32 1.0, %v2553
    %v2555 = vmul.f32 %v2552, %v2554
    %v2556 = vadd.f32 %v2552, %v2555
    %vm2557 = vweird.f32 %v2505
    %vm2558 = vweird.f32 %v2552
    %vm2559 = vmor %vm2557, %vm2558
    %v2560 = vsel %vm2559, %v2552, %v2556
    %v2561 = vand.u32 2147483647, %v2505
    %vm2562 = vcmp.eq.f32.partialorder %v2561, 8.507059e+37
    %v2563 = vand.u32 %v2505, 2147483648
    %v2564 = vor.u32 1.1754944e-38, %v2563
    %v2565 = vsel %vm2562, %v2564, %v2560
    %v2566 = vmul.f32 %v2454, %v2565
    %2567 = vmatpush.xpose.msra.mxu0 0.0
    %2568 = vmatpush.xpose.msra.mxu0 0.0
    %2569 = vmatpush.xpose.msra.mxu0 0.0
    %2570 = vmatpush.xpose.msra.mxu0 0.0
    %2571 = vmatpush.xpose.msra.mxu0 0.0
    %2572 = vmatpush.xpose.msra.mxu0 0.0
    %2573 = vmatpush.xpose.msra.mxu0 0.0
    %2574 = vmatpush.xpose.msra.mxu0 0.0
    %2575 = vmatpush.xpose.msra.mxu0 %v1610
    %2576 = vmatpush.xpose.msra.mxu0 %v1606
    %2577 = vmatpush.xpose.msra.mxu0 %v1602
    %2578 = vmatpush.xpose.msra.mxu0 %v1598
    %2579 = vmatpush.xpose.msra.mxu0 %v1594
    %2580 = vmatpush.xpose.msra.mxu0 %v1590
    %2581 = vmatpush.xpose.msra.mxu0 %v1586
    %2582 = vmatpush.xpose.msra.mxu0 %v1582
    %2583 = vmatmul.f32.gmra.mxu0 %v2521
    %v2584 = vpop.f32.mrf.mxu0
    %v2585 = vadd.f32 0.0, %v2584
    %2586 = vmatmul.f32.gmra.mxu0 %v2551
    %v2587 = vpop.f32.mrf.mxu0
    %v2588 = vadd.f32 0.0, %v2587
    %2589 = vdwg.mxu0
    %2590 = vmatpush.xpose.msra.mxu0 0.0
    %2591 = vmatpush.xpose.msra.mxu0 0.0
    %2592 = vmatpush.xpose.msra.mxu0 0.0
    %2593 = vmatpush.xpose.msra.mxu0 0.0
    %2594 = vmatpush.xpose.msra.mxu0 0.0
    %2595 = vmatpush.xpose.msra.mxu0 0.0
    %2596 = vmatpush.xpose.msra.mxu0 0.0
    %2597 = vmatpush.xpose.msra.mxu0 0.0
    %2598 = vmatpush.xpose.msra.mxu0 %v1611
    %2599 = vmatpush.xpose.msra.mxu0 %v1607
    %2600 = vmatpush.xpose.msra.mxu0 %v1603
    %2601 = vmatpush.xpose.msra.mxu0 %v1599
    %2602 = vmatpush.xpose.msra.mxu0 %v1595
    %2603 = vmatpush.xpose.msra.mxu0 %v1591
    %2604 = vmatpush.xpose.msra.mxu0 %v1587
    %2605 = vmatpush.xpose.msra.mxu0 %v1583
    %2606 = vmatmul.f32.gmra.mxu0 %v2536
    %v2607 = vpop.f32.mrf.mxu0
    %v2608 = vadd.f32 %v2585, %v2607
    %2609 = vmatmul.f32.gmra.mxu0 %v2566
    %v2610 = vpop.f32.mrf.mxu0
    %v2611 = vadd.f32 %v2588, %v2610
    %2612 = vdwg.mxu0
    %2613 = vmatpush.xpose.msra.mxu0 0.0
    %2614 = vmatpush.xpose.msra.mxu0 0.0
    %2615 = vmatpush.xpose.msra.mxu0 0.0
    %2616 = vmatpush.xpose.msra.mxu0 0.0
    %2617 = vmatpush.xpose.msra.mxu0 0.0
    %2618 = vmatpush.xpose.msra.mxu0 0.0
    %2619 = vmatpush.xpose.msra.mxu0 0.0
    %2620 = vmatpush.xpose.msra.mxu0 0.0
    %2621 = vmatpush.xpose.msra.mxu0 0.0
    %2622 = vmatpush.xpose.msra.mxu0 0.0
    %2623 = vmatpush.xpose.msra.mxu0 0.0
    %2624 = vmatpush.xpose.msra.mxu0 0.0
    %2625 = vmatpush.xpose.msra.mxu0 0.0
    %2626 = vmatpush.xpose.msra.mxu0 0.0
    %2627 = vmatpush.xpose.msra.mxu0 %v2551
    %2628 = vmatpush.xpose.msra.mxu0 %v2521
    %2629 = vmatmul.f32.gmra.mxu0 %v2521
    %v2630 = vpop.f32.mrf.mxu0
    %v2631 = vadd.f32 0.0, %v2630
    %2632 = vmatmul.f32.gmra.mxu0 %v2551
    %v2633 = vpop.f32.mrf.mxu0
    %v2634 = vadd.f32 0.0, %v2633
    %2635 = vdwg.mxu0
    %2636 = vmatpush.xpose.msra.mxu0 0.0
    %2637 = vmatpush.xpose.msra.mxu0 0.0
    %2638 = vmatpush.xpose.msra.mxu0 0.0
    %2639 = vmatpush.xpose.msra.mxu0 0.0
    %2640 = vmatpush.xpose.msra.mxu0 0.0
    %2641 = vmatpush.xpose.msra.mxu0 0.0
    %2642 = vmatpush.xpose.msra.mxu0 0.0
    %2643 = vmatpush.xpose.msra.mxu0 0.0
    %2644 = vmatpush.xpose.msra.mxu0 0.0
    %2645 = vmatpush.xpose.msra.mxu0 0.0
    %2646 = vmatpush.xpose.msra.mxu0 0.0
    %2647 = vmatpush.xpose.msra.mxu0 0.0
    %2648 = vmatpush.xpose.msra.mxu0 0.0
    %2649 = vmatpush.xpose.msra.mxu0 0.0
    %2650 = vmatpush.xpose.msra.mxu0 %v2566
    %2651 = vmatpush.xpose.msra.mxu0 %v2536
    %2652 = vmatmul.f32.gmra.mxu0 %v2536
    %v2653 = vpop.f32.mrf.mxu0
    %v2654 = vadd.f32 %v2631, %v2653
    %2655 = vmatmul.f32.gmra.mxu0 %v2566
    %v2656 = vpop.f32.mrf.mxu0
    %v2657 = vadd.f32 %v2634, %v2656
    %2658 = vdwg.mxu0
    %v2659 = vmul.f32 %v2360, %v2608
    %v2660 = vmul.f32 %v2375, %v2611
    %v2662 = vsel %vm302, %v2654, 0
    %v2665 = vsel %vm302, %v2657, 0
    %2667 = vmatpush.msra.mxu0 0.0
    %2668 = vmatpush.msra.mxu0 0.0
    %2669 = vmatpush.msra.mxu0 0.0
    %2670 = vmatpush.msra.mxu0 0.0
    %2671 = vmatpush.msra.mxu0 0.0
    %2672 = vmatpush.msra.mxu0 0.0
    %2673 = vmatpush.msra.mxu0 0.0
    %2674 = vmatpush.msra.mxu0 0.0
    %2675 = vmatpush.msra.mxu0 0.0
    %2676 = vmatpush.msra.mxu0 0.0
    %2677 = vmatpush.msra.mxu0 0.0
    %2678 = vmatpush.msra.mxu0 0.0
    %2679 = vmatpush.msra.mxu0 0.0
    %2680 = vmatpush.msra.mxu0 0.0
    %2681 = vmatpush.msra.mxu0 %v2375
    %2682 = vmatpush.msra.mxu0 %v2360
    %2683 = vmatmul.f32.gmra.mxu0 %v2662
    %v2684 = vpop.f32.mrf.mxu0
    %v2685 = vadd.f32 1e-06, %v2684
    %2686 = vmatmul.f32.gmra.mxu0 %v2665
    %v2687 = vpop.f32.mrf.mxu0
    %v2688 = vadd.f32 1e-06, %v2687
    %2689 = vdwg.mxu0
    %v2690 = vrcp.pop %v2685
    %v2691 = vmul.f32 %v2685, %v2690
    %v2692 = vsub.f32 1.0, %v2691
    %v2693 = vmul.f32 %v2690, %v2692
    %v2694 = vadd.f32 %v2690, %v2693
    %vm2695 = vweird.f32 %v2685
    %vm2696 = vweird.f32 %v2690
    %vm2697 = vmor %vm2695, %vm2696
    %v2698 = vsel %vm2697, %v2690, %v2694
    %v2699 = vand.u32 2147483647, %v2685
    %vm2700 = vcmp.eq.f32.partialorder %v2699, 8.507059e+37
    %v2701 = vand.u32 %v2685, 2147483648
    %v2702 = vor.u32 1.1754944e-38, %v2701
    %v2703 = vsel %vm2700, %v2702, %v2698
    %v2704 = vmul.f32 %v2659, %v2703
    %v2705 = vrcp.pop %v2688
    %v2706 = vmul.f32 %v2688, %v2705
    %v2707 = vsub.f32 1.0, %v2706
    %v2708 = vmul.f32 %v2705, %v2707
    %v2709 = vadd.f32 %v2705, %v2708
    %vm2710 = vweird.f32 %v2688
    %vm2711 = vweird.f32 %v2705
    %vm2712 = vmor %vm2710, %vm2711
    %v2713 = vsel %vm2712, %v2705, %v2709
    %v2714 = vand.u32 2147483647, %v2688
    %vm2715 = vcmp.eq.f32.partialorder %v2714, 8.507059e+37
    %v2716 = vand.u32 %v2688, 2147483648
    %v2717 = vor.u32 1.1754944e-38, %v2716
    %v2718 = vsel %vm2715, %v2717, %v2713
    %v2719 = vmul.f32 %v2660, %v2718
    %v2721 = vsel %vm213, %v2704, 0
    %v2724 = vsel %vm213, %v2719, 0
    %2726 = vmatpush.msra.mxu0 0.0
    %2727 = vmatpush.msra.mxu0 0.0
    %2728 = vmatpush.msra.mxu0 0.0
    %2729 = vmatpush.msra.mxu0 0.0
    %2730 = vmatpush.msra.mxu0 0.0
    %2731 = vmatpush.msra.mxu0 0.0
    %2732 = vmatpush.msra.mxu0 0.0
    %2733 = vmatpush.msra.mxu0 0.0
    %2734 = vmatpush.msra.mxu0 %v1610
    %2735 = vmatpush.msra.mxu0 %v1606
    %2736 = vmatpush.msra.mxu0 %v1602
    %2737 = vmatpush.msra.mxu0 %v1598
    %2738 = vmatpush.msra.mxu0 %v1594
    %2739 = vmatpush.msra.mxu0 %v1590
    %2740 = vmatpush.msra.mxu0 %v1586
    %2741 = vmatpush.msra.mxu0 %v1582
    %2742 = vmatmul.f32.gmra.mxu0 %v2721
    %v2743 = vpop.f32.mrf.mxu0
    %v2744 = vadd.f32 0.0, %v2743
    %2745 = vmatmul.f32.gmra.mxu0 %v2724
    %v2746 = vpop.f32.mrf.mxu0
    %v2747 = vadd.f32 0.0, %v2746
    %2748 = vdwg.mxu0
    %2749 = vmatpush.msra.mxu0 0.0
    %2750 = vmatpush.msra.mxu0 0.0
    %2751 = vmatpush.msra.mxu0 0.0
    %2752 = vmatpush.msra.mxu0 0.0
    %2753 = vmatpush.msra.mxu0 0.0
    %2754 = vmatpush.msra.mxu0 0.0
    %2755 = vmatpush.msra.mxu0 0.0
    %2756 = vmatpush.msra.mxu0 0.0
    %2757 = vmatpush.msra.mxu0 %v1611
    %2758 = vmatpush.msra.mxu0 %v1607
    %2759 = vmatpush.msra.mxu0 %v1603
    %2760 = vmatpush.msra.mxu0 %v1599
    %2761 = vmatpush.msra.mxu0 %v1595
    %2762 = vmatpush.msra.mxu0 %v1591
    %2763 = vmatpush.msra.mxu0 %v1587
    %2764 = vmatpush.msra.mxu0 %v1583
    %2765 = vmatmul.f32.gmra.mxu0 %v2721
    %v2766 = vpop.f32.mrf.mxu0
    %v2767 = vadd.f32 0.0, %v2766
    %2768 = vmatmul.f32.gmra.mxu0 %v2724
    %v2769 = vpop.f32.mrf.mxu0
    %v2770 = vadd.f32 0.0, %v2769
    %2771 = vdwg.mxu0
    %2772 = vmatpush.xpose.msra.mxu0 0.0
    %2773 = vmatpush.xpose.msra.mxu0 0.0
    %2774 = vmatpush.xpose.msra.mxu0 0.0
    %2775 = vmatpush.xpose.msra.mxu0 0.0
    %2776 = vmatpush.xpose.msra.mxu0 0.0
    %2777 = vmatpush.xpose.msra.mxu0 0.0
    %2778 = vmatpush.xpose.msra.mxu0 0.0
    %2779 = vmatpush.xpose.msra.mxu0 0.0
    %2780 = vmatpush.xpose.msra.mxu0 0.0
    %2781 = vmatpush.xpose.msra.mxu0 0.0
    %2782 = vmatpush.xpose.msra.mxu0 0.0
    %2783 = vmatpush.xpose.msra.mxu0 0.0
    %2784 = vmatpush.xpose.msra.mxu0 0.0
    %2785 = vmatpush.xpose.msra.mxu0 0.0
    %2786 = vmatpush.xpose.msra.mxu0 %v2724
    %2787 = vmatpush.xpose.msra.mxu0 %v2721
    %2788 = vmatmul.f32.gmra.mxu0 %v2721
    %v2789 = vpop.f32.mrf.mxu0
    %v2790 = vadd.f32 0.0, %v2789
    %2791 = vmatmul.f32.gmra.mxu0 %v2724
    %v2792 = vpop.f32.mrf.mxu0
    %v2793 = vadd.f32 0.0, %v2792
    %2794 = vdwg.mxu0
    %v2795 = vmul.f32 %v2521, %v2744
    %v2796 = vmul.f32 %v2536, %v2767
    %v2797 = vmul.f32 %v2551, %v2747
    %v2798 = vmul.f32 %v2566, %v2770
    %v2800 = vsel %vm302, %v2790, 0
    %v2803 = vsel %vm302, %v2793, 0
    %2805 = vmatpush.msra.mxu0 0.0
    %2806 = vmatpush.msra.mxu0 0.0
    %2807 = vmatpush.msra.mxu0 0.0
    %2808 = vmatpush.msra.mxu0 0.0
    %2809 = vmatpush.msra.mxu0 0.0
    %2810 = vmatpush.msra.mxu0 0.0
    %2811 = vmatpush.msra.mxu0 0.0
    %2812 = vmatpush.msra.mxu0 0.0
    %2813 = vmatpush.msra.mxu0 0.0
    %2814 = vmatpush.msra.mxu0 0.0
    %2815 = vmatpush.msra.mxu0 0.0
    %2816 = vmatpush.msra.mxu0 0.0
    %2817 = vmatpush.msra.mxu0 0.0
    %2818 = vmatpush.msra.mxu0 0.0
    %2819 = vmatpush.msra.mxu0 %v2551
    %2820 = vmatpush.msra.mxu0 %v2521
    %2821 = vmatmul.f32.gmra.mxu0 %v2800
    %v2822 = vpop.f32.mrf.mxu0
    %v2823 = vadd.f32 1e-06, %v2822
    %2824 = vmatmul.f32.gmra.mxu0 %v2803
    %v2825 = vpop.f32.mrf.mxu0
    %v2826 = vadd.f32 1e-06, %v2825
    %2827 = vdwg.mxu0
    %2828 = vmatpush.msra.mxu0 0.0
    %2829 = vmatpush.msra.mxu0 0.0
    %2830 = vmatpush.msra.mxu0 0.0
    %2831 = vmatpush.msra.mxu0 0.0
    %2832 = vmatpush.msra.mxu0 0.0
    %2833 = vmatpush.msra.mxu0 0.0
    %2834 = vmatpush.msra.mxu0 0.0
    %2835 = vmatpush.msra.mxu0 0.0
    %2836 = vmatpush.msra.mxu0 0.0
    %2837 = vmatpush.msra.mxu0 0.0
    %2838 = vmatpush.msra.mxu0 0.0
    %2839 = vmatpush.msra.mxu0 0.0
    %2840 = vmatpush.msra.mxu0 0.0
    %2841 = vmatpush.msra.mxu0 0.0
    %2842 = vmatpush.msra.mxu0 %v2566
    %2843 = vmatpush.msra.mxu0 %v2536
    %2844 = vmatmul.f32.gmra.mxu0 %v2800
    %v2845 = vpop.f32.mrf.mxu0
    %v2846 = vadd.f32 1e-06, %v2845
    %2847 = vmatmul.f32.gmra.mxu0 %v2803
    %v2848 = vpop.f32.mrf.mxu0
    %v2849 = vadd.f32 1e-06, %v2848
    %2850 = vdwg.mxu0
    %v2851 = vrcp.pop %v2823
    %v2852 = vmul.f32 %v2823, %v2851
    %v2853 = vsub.f32 1.0, %v2852
    %v2854 = vmul.f32 %v2851, %v2853
    %v2855 = vadd.f32 %v2851, %v2854
    %vm2856 = vweird.f32 %v2823
    %vm2857 = vweird.f32 %v2851
    %vm2858 = vmor %vm2856, %vm2857
    %v2859 = vsel %vm2858, %v2851, %v2855
    %v2860 = vand.u32 2147483647, %v2823
    %vm2861 = vcmp.eq.f32.partialorder %v2860, 8.507059e+37
    %v2862 = vand.u32 %v2823, 2147483648
    %v2863 = vor.u32 1.1754944e-38, %v2862
    %v2864 = vsel %vm2861, %v2863, %v2859
    %v2865 = vmul.f32 %v2795, %v2864
    %v2866 = vrcp.pop %v2846
    %v2867 = vmul.f32 %v2846, %v2866
    %v2868 = vsub.f32 1.0, %v2867
    %v2869 = vmul.f32 %v2866, %v2868
    %v2870 = vadd.f32 %v2866, %v2869
    %vm2871 = vweird.f32 %v2846
    %vm2872 = vweird.f32 %v2866
    %vm2873 = vmor %vm2871, %vm2872
    %v2874 = vsel %vm2873, %v2866, %v2870
    %v2875 = vand.u32 2147483647, %v2846
    %vm2876 = vcmp.eq.f32.partialorder %v2875, 8.507059e+37
    %v2877 = vand.u32 %v2846, 2147483648
    %v2878 = vor.u32 1.1754944e-38, %v2877
    %v2879 = vsel %vm2876, %v2878, %v2874
    %v2880 = vmul.f32 %v2796, %v2879
    %v2881 = vrcp.pop %v2826
    %v2882 = vmul.f32 %v2826, %v2881
    %v2883 = vsub.f32 1.0, %v2882
    %v2884 = vmul.f32 %v2881, %v2883
    %v2885 = vadd.f32 %v2881, %v2884
    %vm2886 = vweird.f32 %v2826
    %vm2887 = vweird.f32 %v2881
    %vm2888 = vmor %vm2886, %vm2887
    %v2889 = vsel %vm2888, %v2881, %v2885
    %v2890 = vand.u32 2147483647, %v2826
    %vm2891 = vcmp.eq.f32.partialorder %v2890, 8.507059e+37
    %v2892 = vand.u32 %v2826, 2147483648
    %v2893 = vor.u32 1.1754944e-38, %v2892
    %v2894 = vsel %vm2891, %v2893, %v2889
    %v2895 = vmul.f32 %v2797, %v2894
    %v2896 = vrcp.pop %v2849
    %v2897 = vmul.f32 %v2849, %v2896
    %v2898 = vsub.f32 1.0, %v2897
    %v2899 = vmul.f32 %v2896, %v2898
    %v2900 = vadd.f32 %v2896, %v2899
    %vm2901 = vweird.f32 %v2849
    %vm2902 = vweird.f32 %v2896
    %vm2903 = vmor %vm2901, %vm2902
    %v2904 = vsel %vm2903, %v2896, %v2900
    %v2905 = vand.u32 2147483647, %v2849
    %vm2906 = vcmp.eq.f32.partialorder %v2905, 8.507059e+37
    %v2907 = vand.u32 %v2849, 2147483648
    %v2908 = vor.u32 1.1754944e-38, %v2907
    %v2909 = vsel %vm2906, %v2908, %v2904
    %v2910 = vmul.f32 %v2798, %v2909
    %2911 = vmatpush.xpose.msra.mxu0 0.0
    %2912 = vmatpush.xpose.msra.mxu0 0.0
    %2913 = vmatpush.xpose.msra.mxu0 0.0
    %2914 = vmatpush.xpose.msra.mxu0 0.0
    %2915 = vmatpush.xpose.msra.mxu0 0.0
    %2916 = vmatpush.xpose.msra.mxu0 0.0
    %2917 = vmatpush.xpose.msra.mxu0 0.0
    %2918 = vmatpush.xpose.msra.mxu0 0.0
    %2919 = vmatpush.xpose.msra.mxu0 %v1610
    %2920 = vmatpush.xpose.msra.mxu0 %v1606
    %2921 = vmatpush.xpose.msra.mxu0 %v1602
    %2922 = vmatpush.xpose.msra.mxu0 %v1598
    %2923 = vmatpush.xpose.msra.mxu0 %v1594
    %2924 = vmatpush.xpose.msra.mxu0 %v1590
    %2925 = vmatpush.xpose.msra.mxu0 %v1586
    %2926 = vmatpush.xpose.msra.mxu0 %v1582
    %2927 = vmatmul.f32.gmra.mxu0 %v2865
    %v2928 = vpop.f32.mrf.mxu0
    %v2929 = vadd.f32 0.0, %v2928
    %2930 = vmatmul.f32.gmra.mxu0 %v2895
    %v2931 = vpop.f32.mrf.mxu0
    %v2932 = vadd.f32 0.0, %v2931
    %2933 = vdwg.mxu0
    %2934 = vmatpush.xpose.msra.mxu0 0.0
    %2935 = vmatpush.xpose.msra.mxu0 0.0
    %2936 = vmatpush.xpose.msra.mxu0 0.0
    %2937 = vmatpush.xpose.msra.mxu0 0.0
    %2938 = vmatpush.xpose.msra.mxu0 0.0
    %2939 = vmatpush.xpose.msra.mxu0 0.0
    %2940 = vmatpush.xpose.msra.mxu0 0.0
    %2941 = vmatpush.xpose.msra.mxu0 0.0
    %2942 = vmatpush.xpose.msra.mxu0 %v1611
    %2943 = vmatpush.xpose.msra.mxu0 %v1607
    %2944 = vmatpush.xpose.msra.mxu0 %v1603
    %2945 = vmatpush.xpose.msra.mxu0 %v1599
    %2946 = vmatpush.xpose.msra.mxu0 %v1595
    %2947 = vmatpush.xpose.msra.mxu0 %v1591
    %2948 = vmatpush.xpose.msra.mxu0 %v1587
    %2949 = vmatpush.xpose.msra.mxu0 %v1583
    %2950 = vmatmul.f32.gmra.mxu0 %v2880
    %v2951 = vpop.f32.mrf.mxu0
    %v2952 = vadd.f32 %v2929, %v2951
    %2953 = vmatmul.f32.gmra.mxu0 %v2910
    %v2954 = vpop.f32.mrf.mxu0
    %v2955 = vadd.f32 %v2932, %v2954
    %2956 = vdwg.mxu0
    %2957 = vmatpush.xpose.msra.mxu0 0.0
    %2958 = vmatpush.xpose.msra.mxu0 0.0
    %2959 = vmatpush.xpose.msra.mxu0 0.0
    %2960 = vmatpush.xpose.msra.mxu0 0.0
    %2961 = vmatpush.xpose.msra.mxu0 0.0
    %2962 = vmatpush.xpose.msra.mxu0 0.0
    %2963 = vmatpush.xpose.msra.mxu0 0.0
    %2964 = vmatpush.xpose.msra.mxu0 0.0
    %2965 = vmatpush.xpose.msra.mxu0 0.0
    %2966 = vmatpush.xpose.msra.mxu0 0.0
    %2967 = vmatpush.xpose.msra.mxu0 0.0
    %2968 = vmatpush.xpose.msra.mxu0 0.0
    %2969 = vmatpush.xpose.msra.mxu0 0.0
    %2970 = vmatpush.xpose.msra.mxu0 0.0
    %2971 = vmatpush.xpose.msra.mxu0 %v2895
    %2972 = vmatpush.xpose.msra.mxu0 %v2865
    %2973 = vmatmul.f32.gmra.mxu0 %v2865
    %v2974 = vpop.f32.mrf.mxu0
    %v2975 = vadd.f32 0.0, %v2974
    %2976 = vmatmul.f32.gmra.mxu0 %v2895
    %v2977 = vpop.f32.mrf.mxu0
    %v2978 = vadd.f32 0.0, %v2977
    %2979 = vdwg.mxu0
    %2980 = vmatpush.xpose.msra.mxu0 0.0
    %2981 = vmatpush.xpose.msra.mxu0 0.0
    %2982 = vmatpush.xpose.msra.mxu0 0.0
    %2983 = vmatpush.xpose.msra.mxu0 0.0
    %2984 = vmatpush.xpose.msra.mxu0 0.0
    %2985 = vmatpush.xpose.msra.mxu0 0.0
    %2986 = vmatpush.xpose.msra.mxu0 0.0
    %2987 = vmatpush.xpose.msra.mxu0 0.0
    %2988 = vmatpush.xpose.msra.mxu0 0.0
    %2989 = vmatpush.xpose.msra.mxu0 0.0
    %2990 = vmatpush.xpose.msra.mxu0 0.0
    %2991 = vmatpush.xpose.msra.mxu0 0.0
    %2992 = vmatpush.xpose.msra.mxu0 0.0
    %2993 = vmatpush.xpose.msra.mxu0 0.0
    %2994 = vmatpush.xpose.msra.mxu0 %v2910
    %2995 = vmatpush.xpose.msra.mxu0 %v2880
    %2996 = vmatmul.f32.gmra.mxu0 %v2880
    %v2997 = vpop.f32.mrf.mxu0
    %v2998 = vadd.f32 %v2975, %v2997
    %2999 = vmatmul.f32.gmra.mxu0 %v2910
    %v3000 = vpop.f32.mrf.mxu0
    %v3001 = vadd.f32 %v2978, %v3000
    %3002 = vdwg.mxu0
    %v3003 = vmul.f32 %v2704, %v2952
    %v3004 = vmul.f32 %v2719, %v2955
    %v3006 = vsel %vm302, %v2998, 0
    %v3009 = vsel %vm302, %v3001, 0
    %3011 = vmatpush.msra.mxu0 0.0
    %3012 = vmatpush.msra.mxu0 0.0
    %3013 = vmatpush.msra.mxu0 0.0
    %3014 = vmatpush.msra.mxu0 0.0
    %3015 = vmatpush.msra.mxu0 0.0
    %3016 = vmatpush.msra.mxu0 0.0
    %3017 = vmatpush.msra.mxu0 0.0
    %3018 = vmatpush.msra.mxu0 0.0
    %3019 = vmatpush.msra.mxu0 0.0
    %3020 = vmatpush.msra.mxu0 0.0
    %3021 = vmatpush.msra.mxu0 0.0
    %3022 = vmatpush.msra.mxu0 0.0
    %3023 = vmatpush.msra.mxu0 0.0
    %3024 = vmatpush.msra.mxu0 0.0
    %3025 = vmatpush.msra.mxu0 %v2719
    %3026 = vmatpush.msra.mxu0 %v2704
    %3027 = vmatmul.f32.gmra.mxu0 %v3006
    %v3028 = vpop.f32.mrf.mxu0
    %v3029 = vadd.f32 1e-06, %v3028
    %3030 = vmatmul.f32.gmra.mxu0 %v3009
    %v3031 = vpop.f32.mrf.mxu0
    %v3032 = vadd.f32 1e-06, %v3031
    %3033 = vdwg.mxu0
    %v3034 = vrcp.pop %v3029
    %v3035 = vmul.f32 %v3029, %v3034
    %v3036 = vsub.f32 1.0, %v3035
    %v3037 = vmul.f32 %v3034, %v3036
    %v3038 = vadd.f32 %v3034, %v3037
    %vm3039 = vweird.f32 %v3029
    %vm3040 = vweird.f32 %v3034
    %vm3041 = vmor %vm3039, %vm3040
    %v3042 = vsel %vm3041, %v3034, %v3038
    %v3043 = vand.u32 2147483647, %v3029
    %vm3044 = vcmp.eq.f32.partialorder %v3043, 8.507059e+37
    %v3045 = vand.u32 %v3029, 2147483648
    %v3046 = vor.u32 1.1754944e-38, %v3045
    %v3047 = vsel %vm3044, %v3046, %v3042
    %v3048 = vmul.f32 %v3003, %v3047
    %v3049 = vrcp.pop %v3032
    %v3050 = vmul.f32 %v3032, %v3049
    %v3051 = vsub.f32 1.0, %v3050
    %v3052 = vmul.f32 %v3049, %v3051
    %v3053 = vadd.f32 %v3049, %v3052
    %vm3054 = vweird.f32 %v3032
    %vm3055 = vweird.f32 %v3049
    %vm3056 = vmor %vm3054, %vm3055
    %v3057 = vsel %vm3056, %v3049, %v3053
    %v3058 = vand.u32 2147483647, %v3032
    %vm3059 = vcmp.eq.f32.partialorder %v3058, 8.507059e+37
    %v3060 = vand.u32 %v3032, 2147483648
    %v3061 = vor.u32 1.1754944e-38, %v3060
    %v3062 = vsel %vm3059, %v3061, %v3057
    %v3063 = vmul.f32 %v3004, %v3062
    %v3065 = vsel %vm213, %v3048, 0
    %v3068 = vsel %vm213, %v3063, 0
    %3070 = vmatpush.msra.mxu0 0.0
    %3071 = vmatpush.msra.mxu0 0.0
    %3072 = vmatpush.msra.mxu0 0.0
    %3073 = vmatpush.msra.mxu0 0.0
    %3074 = vmatpush.msra.mxu0 0.0
    %3075 = vmatpush.msra.mxu0 0.0
    %3076 = vmatpush.msra.mxu0 0.0
    %3077 = vmatpush.msra.mxu0 0.0
    %3078 = vmatpush.msra.mxu0 %v1610
    %3079 = vmatpush.msra.mxu0 %v1606
    %3080 = vmatpush.msra.mxu0 %v1602
    %3081 = vmatpush.msra.mxu0 %v1598
    %3082 = vmatpush.msra.mxu0 %v1594
    %3083 = vmatpush.msra.mxu0 %v1590
    %3084 = vmatpush.msra.mxu0 %v1586
    %3085 = vmatpush.msra.mxu0 %v1582
    %3086 = vmatmul.f32.gmra.mxu0 %v3065
    %v3087 = vpop.f32.mrf.mxu0
    %v3088 = vadd.f32 0.0, %v3087
    %3089 = vmatmul.f32.gmra.mxu0 %v3068
    %v3090 = vpop.f32.mrf.mxu0
    %v3091 = vadd.f32 0.0, %v3090
    %3092 = vdwg.mxu0
    %3093 = vmatpush.msra.mxu0 0.0
    %3094 = vmatpush.msra.mxu0 0.0
    %3095 = vmatpush.msra.mxu0 0.0
    %3096 = vmatpush.msra.mxu0 0.0
    %3097 = vmatpush.msra.mxu0 0.0
    %3098 = vmatpush.msra.mxu0 0.0
    %3099 = vmatpush.msra.mxu0 0.0
    %3100 = vmatpush.msra.mxu0 0.0
    %3101 = vmatpush.msra.mxu0 %v1611
    %3102 = vmatpush.msra.mxu0 %v1607
    %3103 = vmatpush.msra.mxu0 %v1603
    %3104 = vmatpush.msra.mxu0 %v1599
    %3105 = vmatpush.msra.mxu0 %v1595
    %3106 = vmatpush.msra.mxu0 %v1591
    %3107 = vmatpush.msra.mxu0 %v1587
    %3108 = vmatpush.msra.mxu0 %v1583
    %3109 = vmatmul.f32.gmra.mxu0 %v3065
    %v3110 = vpop.f32.mrf.mxu0
    %v3111 = vadd.f32 0.0, %v3110
    %3112 = vmatmul.f32.gmra.mxu0 %v3068
    %v3113 = vpop.f32.mrf.mxu0
    %v3114 = vadd.f32 0.0, %v3113
    %3115 = vdwg.mxu0
    %3116 = vmatpush.xpose.msra.mxu0 0.0
    %3117 = vmatpush.xpose.msra.mxu0 0.0
    %3118 = vmatpush.xpose.msra.mxu0 0.0
    %3119 = vmatpush.xpose.msra.mxu0 0.0
    %3120 = vmatpush.xpose.msra.mxu0 0.0
    %3121 = vmatpush.xpose.msra.mxu0 0.0
    %3122 = vmatpush.xpose.msra.mxu0 0.0
    %3123 = vmatpush.xpose.msra.mxu0 0.0
    %3124 = vmatpush.xpose.msra.mxu0 0.0
    %3125 = vmatpush.xpose.msra.mxu0 0.0
    %3126 = vmatpush.xpose.msra.mxu0 0.0
    %3127 = vmatpush.xpose.msra.mxu0 0.0
    %3128 = vmatpush.xpose.msra.mxu0 0.0
    %3129 = vmatpush.xpose.msra.mxu0 0.0
    %3130 = vmatpush.xpose.msra.mxu0 %v3068
    %3131 = vmatpush.xpose.msra.mxu0 %v3065
    %3132 = vmatmul.f32.gmra.mxu0 %v3065
    %v3133 = vpop.f32.mrf.mxu0
    %v3134 = vadd.f32 0.0, %v3133
    %3135 = vmatmul.f32.gmra.mxu0 %v3068
    %v3136 = vpop.f32.mrf.mxu0
    %v3137 = vadd.f32 0.0, %v3136
    %3138 = vdwg.mxu0
    %v3139 = vmul.f32 %v2865, %v3088
    %v3140 = vmul.f32 %v2880, %v3111
    %v3141 = vmul.f32 %v2895, %v3091
    %v3142 = vmul.f32 %v2910, %v3114
    %v3144 = vsel %vm302, %v3134, 0
    %v3147 = vsel %vm302, %v3137, 0
    %3149 = vmatpush.msra.mxu0 0.0
    %3150 = vmatpush.msra.mxu0 0.0
    %3151 = vmatpush.msra.mxu0 0.0
    %3152 = vmatpush.msra.mxu0 0.0
    %3153 = vmatpush.msra.mxu0 0.0
    %3154 = vmatpush.msra.mxu0 0.0
    %3155 = vmatpush.msra.mxu0 0.0
    %3156 = vmatpush.msra.mxu0 0.0
    %3157 = vmatpush.msra.mxu0 0.0
    %3158 = vmatpush.msra.mxu0 0.0
    %3159 = vmatpush.msra.mxu0 0.0
    %3160 = vmatpush.msra.mxu0 0.0
    %3161 = vmatpush.msra.mxu0 0.0
    %3162 = vmatpush.msra.mxu0 0.0
    %3163 = vmatpush.msra.mxu0 %v2895
    %3164 = vmatpush.msra.mxu0 %v2865
    %3165 = vmatmul.f32.gmra.mxu0 %v3144
    %v3166 = vpop.f32.mrf.mxu0
    %v3167 = vadd.f32 1e-06, %v3166
    %3168 = vmatmul.f32.gmra.mxu0 %v3147
    %v3169 = vpop.f32.mrf.mxu0
    %v3170 = vadd.f32 1e-06, %v3169
    %3171 = vdwg.mxu0
    %3172 = vmatpush.msra.mxu0 0.0
    %3173 = vmatpush.msra.mxu0 0.0
    %3174 = vmatpush.msra.mxu0 0.0
    %3175 = vmatpush.msra.mxu0 0.0
    %3176 = vmatpush.msra.mxu0 0.0
    %3177 = vmatpush.msra.mxu0 0.0
    %3178 = vmatpush.msra.mxu0 0.0
    %3179 = vmatpush.msra.mxu0 0.0
    %3180 = vmatpush.msra.mxu0 0.0
    %3181 = vmatpush.msra.mxu0 0.0
    %3182 = vmatpush.msra.mxu0 0.0
    %3183 = vmatpush.msra.mxu0 0.0
    %3184 = vmatpush.msra.mxu0 0.0
    %3185 = vmatpush.msra.mxu0 0.0
    %3186 = vmatpush.msra.mxu0 %v2910
    %3187 = vmatpush.msra.mxu0 %v2880
    %3188 = vmatmul.f32.gmra.mxu0 %v3144
    %v3189 = vpop.f32.mrf.mxu0
    %v3190 = vadd.f32 1e-06, %v3189
    %3191 = vmatmul.f32.gmra.mxu0 %v3147
    %v3192 = vpop.f32.mrf.mxu0
    %v3193 = vadd.f32 1e-06, %v3192
    %3194 = vdwg.mxu0
    %v3195 = vrcp.pop %v3167
    %v3196 = vmul.f32 %v3167, %v3195
    %v3197 = vsub.f32 1.0, %v3196
    %v3198 = vmul.f32 %v3195, %v3197
    %v3199 = vadd.f32 %v3195, %v3198
    %vm3200 = vweird.f32 %v3167
    %vm3201 = vweird.f32 %v3195
    %vm3202 = vmor %vm3200, %vm3201
    %v3203 = vsel %vm3202, %v3195, %v3199
    %v3204 = vand.u32 2147483647, %v3167
    %vm3205 = vcmp.eq.f32.partialorder %v3204, 8.507059e+37
    %v3206 = vand.u32 %v3167, 2147483648
    %v3207 = vor.u32 1.1754944e-38, %v3206
    %v3208 = vsel %vm3205, %v3207, %v3203
    %v3209 = vmul.f32 %v3139, %v3208
    %v3210 = vrcp.pop %v3190
    %v3211 = vmul.f32 %v3190, %v3210
    %v3212 = vsub.f32 1.0, %v3211
    %v3213 = vmul.f32 %v3210, %v3212
    %v3214 = vadd.f32 %v3210, %v3213
    %vm3215 = vweird.f32 %v3190
    %vm3216 = vweird.f32 %v3210
    %vm3217 = vmor %vm3215, %vm3216
    %v3218 = vsel %vm3217, %v3210, %v3214
    %v3219 = vand.u32 2147483647, %v3190
    %vm3220 = vcmp.eq.f32.partialorder %v3219, 8.507059e+37
    %v3221 = vand.u32 %v3190, 2147483648
    %v3222 = vor.u32 1.1754944e-38, %v3221
    %v3223 = vsel %vm3220, %v3222, %v3218
    %v3224 = vmul.f32 %v3140, %v3223
    %v3225 = vrcp.pop %v3170
    %v3226 = vmul.f32 %v3170, %v3225
    %v3227 = vsub.f32 1.0, %v3226
    %v3228 = vmul.f32 %v3225, %v3227
    %v3229 = vadd.f32 %v3225, %v3228
    %vm3230 = vweird.f32 %v3170
    %vm3231 = vweird.f32 %v3225
    %vm3232 = vmor %vm3230, %vm3231
    %v3233 = vsel %vm3232, %v3225, %v3229
    %v3234 = vand.u32 2147483647, %v3170
    %vm3235 = vcmp.eq.f32.partialorder %v3234, 8.507059e+37
    %v3236 = vand.u32 %v3170, 2147483648
    %v3237 = vor.u32 1.1754944e-38, %v3236
    %v3238 = vsel %vm3235, %v3237, %v3233
    %v3239 = vmul.f32 %v3141, %v3238
    %v3240 = vrcp.pop %v3193
    %v3241 = vmul.f32 %v3193, %v3240
    %v3242 = vsub.f32 1.0, %v3241
    %v3243 = vmul.f32 %v3240, %v3242
    %v3244 = vadd.f32 %v3240, %v3243
    %vm3245 = vweird.f32 %v3193
    %vm3246 = vweird.f32 %v3240
    %vm3247 = vmor %vm3245, %vm3246
    %v3248 = vsel %vm3247, %v3240, %v3244
    %v3249 = vand.u32 2147483647, %v3193
    %vm3250 = vcmp.eq.f32.partialorder %v3249, 8.507059e+37
    %v3251 = vand.u32 %v3193, 2147483648
    %v3252 = vor.u32 1.1754944e-38, %v3251
    %v3253 = vsel %vm3250, %v3252, %v3248
    %v3254 = vmul.f32 %v3142, %v3253
    %3255 = vmatpush.xpose.msra.mxu0 0.0
    %3256 = vmatpush.xpose.msra.mxu0 0.0
    %3257 = vmatpush.xpose.msra.mxu0 0.0
    %3258 = vmatpush.xpose.msra.mxu0 0.0
    %3259 = vmatpush.xpose.msra.mxu0 0.0
    %3260 = vmatpush.xpose.msra.mxu0 0.0
    %3261 = vmatpush.xpose.msra.mxu0 0.0
    %3262 = vmatpush.xpose.msra.mxu0 0.0
    %3263 = vmatpush.xpose.msra.mxu0 %v1610
    %3264 = vmatpush.xpose.msra.mxu0 %v1606
    %3265 = vmatpush.xpose.msra.mxu0 %v1602
    %3266 = vmatpush.xpose.msra.mxu0 %v1598
    %3267 = vmatpush.xpose.msra.mxu0 %v1594
    %3268 = vmatpush.xpose.msra.mxu0 %v1590
    %3269 = vmatpush.xpose.msra.mxu0 %v1586
    %3270 = vmatpush.xpose.msra.mxu0 %v1582
    %3271 = vmatmul.f32.gmra.mxu0 %v3209
    %v3272 = vpop.f32.mrf.mxu0
    %v3273 = vadd.f32 0.0, %v3272
    %3274 = vmatmul.f32.gmra.mxu0 %v3239
    %v3275 = vpop.f32.mrf.mxu0
    %v3276 = vadd.f32 0.0, %v3275
    %3277 = vdwg.mxu0
    %3278 = vmatpush.xpose.msra.mxu0 0.0
    %3279 = vmatpush.xpose.msra.mxu0 0.0
    %3280 = vmatpush.xpose.msra.mxu0 0.0
    %3281 = vmatpush.xpose.msra.mxu0 0.0
    %3282 = vmatpush.xpose.msra.mxu0 0.0
    %3283 = vmatpush.xpose.msra.mxu0 0.0
    %3284 = vmatpush.xpose.msra.mxu0 0.0
    %3285 = vmatpush.xpose.msra.mxu0 0.0
    %3286 = vmatpush.xpose.msra.mxu0 %v1611
    %3287 = vmatpush.xpose.msra.mxu0 %v1607
    %3288 = vmatpush.xpose.msra.mxu0 %v1603
    %3289 = vmatpush.xpose.msra.mxu0 %v1599
    %3290 = vmatpush.xpose.msra.mxu0 %v1595
    %3291 = vmatpush.xpose.msra.mxu0 %v1591
    %3292 = vmatpush.xpose.msra.mxu0 %v1587
    %3293 = vmatpush.xpose.msra.mxu0 %v1583
    %3294 = vmatmul.f32.gmra.mxu0 %v3224
    %v3295 = vpop.f32.mrf.mxu0
    %v3296 = vadd.f32 %v3273, %v3295
    %3297 = vmatmul.f32.gmra.mxu0 %v3254
    %v3298 = vpop.f32.mrf.mxu0
    %v3299 = vadd.f32 %v3276, %v3298
    %3300 = vdwg.mxu0
    %3301 = vmatpush.xpose.msra.mxu0 0.0
    %3302 = vmatpush.xpose.msra.mxu0 0.0
    %3303 = vmatpush.xpose.msra.mxu0 0.0
    %3304 = vmatpush.xpose.msra.mxu0 0.0
    %3305 = vmatpush.xpose.msra.mxu0 0.0
    %3306 = vmatpush.xpose.msra.mxu0 0.0
    %3307 = vmatpush.xpose.msra.mxu0 0.0
    %3308 = vmatpush.xpose.msra.mxu0 0.0
    %3309 = vmatpush.xpose.msra.mxu0 0.0
    %3310 = vmatpush.xpose.msra.mxu0 0.0
    %3311 = vmatpush.xpose.msra.mxu0 0.0
    %3312 = vmatpush.xpose.msra.mxu0 0.0
    %3313 = vmatpush.xpose.msra.mxu0 0.0
    %3314 = vmatpush.xpose.msra.mxu0 0.0
    %3315 = vmatpush.xpose.msra.mxu0 %v3239
    %3316 = vmatpush.xpose.msra.mxu0 %v3209
    %3317 = vmatmul.f32.gmra.mxu0 %v3209
    %v3318 = vpop.f32.mrf.mxu0
    %v3319 = vadd.f32 0.0, %v3318
    %3320 = vmatmul.f32.gmra.mxu0 %v3239
    %v3321 = vpop.f32.mrf.mxu0
    %v3322 = vadd.f32 0.0, %v3321
    %3323 = vdwg.mxu0
    %3324 = vmatpush.xpose.msra.mxu0 0.0
    %3325 = vmatpush.xpose.msra.mxu0 0.0
    %3326 = vmatpush.xpose.msra.mxu0 0.0
    %3327 = vmatpush.xpose.msra.mxu0 0.0
    %3328 = vmatpush.xpose.msra.mxu0 0.0
    %3329 = vmatpush.xpose.msra.mxu0 0.0
    %3330 = vmatpush.xpose.msra.mxu0 0.0
    %3331 = vmatpush.xpose.msra.mxu0 0.0
    %3332 = vmatpush.xpose.msra.mxu0 0.0
    %3333 = vmatpush.xpose.msra.mxu0 0.0
    %3334 = vmatpush.xpose.msra.mxu0 0.0
    %3335 = vmatpush.xpose.msra.mxu0 0.0
    %3336 = vmatpush.xpose.msra.mxu0 0.0
    %3337 = vmatpush.xpose.msra.mxu0 0.0
    %3338 = vmatpush.xpose.msra.mxu0 %v3254
    %3339 = vmatpush.xpose.msra.mxu0 %v3224
    %3340 = vmatmul.f32.gmra.mxu0 %v3224
    %v3341 = vpop.f32.mrf.mxu0
    %v3342 = vadd.f32 %v3319, %v3341
    %3343 = vmatmul.f32.gmra.mxu0 %v3254
    %v3344 = vpop.f32.mrf.mxu0
    %v3345 = vadd.f32 %v3322, %v3344
    %3346 = vdwg.mxu0
    %v3347 = vmul.f32 %v3048, %v3296
    %v3348 = vmul.f32 %v3063, %v3299
    %v3350 = vsel %vm302, %v3342, 0
    %v3353 = vsel %vm302, %v3345, 0
    %3355 = vmatpush.msra.mxu0 0.0
    %3356 = vmatpush.msra.mxu0 0.0
    %3357 = vmatpush.msra.mxu0 0.0
    %3358 = vmatpush.msra.mxu0 0.0
    %3359 = vmatpush.msra.mxu0 0.0
    %3360 = vmatpush.msra.mxu0 0.0
    %3361 = vmatpush.msra.mxu0 0.0
    %3362 = vmatpush.msra.mxu0 0.0
    %3363 = vmatpush.msra.mxu0 0.0
    %3364 = vmatpush.msra.mxu0 0.0
    %3365 = vmatpush.msra.mxu0 0.0
    %3366 = vmatpush.msra.mxu0 0.0
    %3367 = vmatpush.msra.mxu0 0.0
    %3368 = vmatpush.msra.mxu0 0.0
    %3369 = vmatpush.msra.mxu0 %v3063
    %3370 = vmatpush.msra.mxu0 %v3048
    %3371 = vmatmul.f32.gmra.mxu0 %v3350
    %v3372 = vpop.f32.mrf.mxu0
    %v3373 = vadd.f32 1e-06, %v3372
    %3374 = vmatmul.f32.gmra.mxu0 %v3353
    %v3375 = vpop.f32.mrf.mxu0
    %v3376 = vadd.f32 1e-06, %v3375
    %3377 = vdwg.mxu0
    %v3378 = vrcp.pop %v3373
    %v3379 = vmul.f32 %v3373, %v3378
    %v3380 = vsub.f32 1.0, %v3379
    %v3381 = vmul.f32 %v3378, %v3380
    %v3382 = vadd.f32 %v3378, %v3381
    %vm3383 = vweird.f32 %v3373
    %vm3384 = vweird.f32 %v3378
    %vm3385 = vmor %vm3383, %vm3384
    %v3386 = vsel %vm3385, %v3378, %v3382
    %v3387 = vand.u32 2147483647, %v3373
    %vm3388 = vcmp.eq.f32.partialorder %v3387, 8.507059e+37
    %v3389 = vand.u32 %v3373, 2147483648
    %v3390 = vor.u32 1.1754944e-38, %v3389
    %v3391 = vsel %vm3388, %v3390, %v3386
    %v3392 = vmul.f32 %v3347, %v3391
    %v3393 = vrcp.pop %v3376
    %v3394 = vmul.f32 %v3376, %v3393
    %v3395 = vsub.f32 1.0, %v3394
    %v3396 = vmul.f32 %v3393, %v3395
    %v3397 = vadd.f32 %v3393, %v3396
    %vm3398 = vweird.f32 %v3376
    %vm3399 = vweird.f32 %v3393
    %vm3400 = vmor %vm3398, %vm3399
    %v3401 = vsel %vm3400, %v3393, %v3397
    %v3402 = vand.u32 2147483647, %v3376
    %vm3403 = vcmp.eq.f32.partialorder %v3402, 8.507059e+37
    %v3404 = vand.u32 %v3376, 2147483648
    %v3405 = vor.u32 1.1754944e-38, %v3404
    %v3406 = vsel %vm3403, %v3405, %v3401
    %v3407 = vmul.f32 %v3348, %v3406
    %v3409 = vsel %vm213, %v3392, 0
    %v3412 = vsel %vm213, %v3407, 0
    %3414 = vmatpush.msra.mxu0 0.0
    %3415 = vmatpush.msra.mxu0 0.0
    %3416 = vmatpush.msra.mxu0 0.0
    %3417 = vmatpush.msra.mxu0 0.0
    %3418 = vmatpush.msra.mxu0 0.0
    %3419 = vmatpush.msra.mxu0 0.0
    %3420 = vmatpush.msra.mxu0 0.0
    %3421 = vmatpush.msra.mxu0 0.0
    %3422 = vmatpush.msra.mxu0 %v1610
    %3423 = vmatpush.msra.mxu0 %v1606
    %3424 = vmatpush.msra.mxu0 %v1602
    %3425 = vmatpush.msra.mxu0 %v1598
    %3426 = vmatpush.msra.mxu0 %v1594
    %3427 = vmatpush.msra.mxu0 %v1590
    %3428 = vmatpush.msra.mxu0 %v1586
    %3429 = vmatpush.msra.mxu0 %v1582
    %3430 = vmatmul.f32.gmra.mxu0 %v3409
    %v3431 = vpop.f32.mrf.mxu0
    %v3432 = vadd.f32 0.0, %v3431
    %3433 = vmatmul.f32.gmra.mxu0 %v3412
    %v3434 = vpop.f32.mrf.mxu0
    %v3435 = vadd.f32 0.0, %v3434
    %3436 = vdwg.mxu0
    %3437 = vmatpush.msra.mxu0 0.0
    %3438 = vmatpush.msra.mxu0 0.0
    %3439 = vmatpush.msra.mxu0 0.0
    %3440 = vmatpush.msra.mxu0 0.0
    %3441 = vmatpush.msra.mxu0 0.0
    %3442 = vmatpush.msra.mxu0 0.0
    %3443 = vmatpush.msra.mxu0 0.0
    %3444 = vmatpush.msra.mxu0 0.0
    %3445 = vmatpush.msra.mxu0 %v1611
    %3446 = vmatpush.msra.mxu0 %v1607
    %3447 = vmatpush.msra.mxu0 %v1603
    %3448 = vmatpush.msra.mxu0 %v1599
    %3449 = vmatpush.msra.mxu0 %v1595
    %3450 = vmatpush.msra.mxu0 %v1591
    %3451 = vmatpush.msra.mxu0 %v1587
    %3452 = vmatpush.msra.mxu0 %v1583
    %3453 = vmatmul.f32.gmra.mxu0 %v3409
    %v3454 = vpop.f32.mrf.mxu0
    %v3455 = vadd.f32 0.0, %v3454
    %3456 = vmatmul.f32.gmra.mxu0 %v3412
    %v3457 = vpop.f32.mrf.mxu0
    %v3458 = vadd.f32 0.0, %v3457
    %3459 = vdwg.mxu0
    %3460 = vmatpush.xpose.msra.mxu0 0.0
    %3461 = vmatpush.xpose.msra.mxu0 0.0
    %3462 = vmatpush.xpose.msra.mxu0 0.0
    %3463 = vmatpush.xpose.msra.mxu0 0.0
    %3464 = vmatpush.xpose.msra.mxu0 0.0
    %3465 = vmatpush.xpose.msra.mxu0 0.0
    %3466 = vmatpush.xpose.msra.mxu0 0.0
    %3467 = vmatpush.xpose.msra.mxu0 0.0
    %3468 = vmatpush.xpose.msra.mxu0 0.0
    %3469 = vmatpush.xpose.msra.mxu0 0.0
    %3470 = vmatpush.xpose.msra.mxu0 0.0
    %3471 = vmatpush.xpose.msra.mxu0 0.0
    %3472 = vmatpush.xpose.msra.mxu0 0.0
    %3473 = vmatpush.xpose.msra.mxu0 0.0
    %3474 = vmatpush.xpose.msra.mxu0 %v3412
    %3475 = vmatpush.xpose.msra.mxu0 %v3409
    %3476 = vmatmul.f32.gmra.mxu0 %v3409
    %v3477 = vpop.f32.mrf.mxu0
    %v3478 = vadd.f32 0.0, %v3477
    %3479 = vmatmul.f32.gmra.mxu0 %v3412
    %v3480 = vpop.f32.mrf.mxu0
    %v3481 = vadd.f32 0.0, %v3480
    %3482 = vdwg.mxu0
    %v3483 = vmul.f32 %v3209, %v3432
    %v3484 = vmul.f32 %v3224, %v3455
    %v3485 = vmul.f32 %v3239, %v3435
    %v3486 = vmul.f32 %v3254, %v3458
    %v3488 = vsel %vm302, %v3478, 0
    %v3491 = vsel %vm302, %v3481, 0
    %3493 = vmatpush.msra.mxu0 0.0
    %3494 = vmatpush.msra.mxu0 0.0
    %3495 = vmatpush.msra.mxu0 0.0
    %3496 = vmatpush.msra.mxu0 0.0
    %3497 = vmatpush.msra.mxu0 0.0
    %3498 = vmatpush.msra.mxu0 0.0
    %3499 = vmatpush.msra.mxu0 0.0
    %3500 = vmatpush.msra.mxu0 0.0
    %3501 = vmatpush.msra.mxu0 0.0
    %3502 = vmatpush.msra.mxu0 0.0
    %3503 = vmatpush.msra.mxu0 0.0
    %3504 = vmatpush.msra.mxu0 0.0
    %3505 = vmatpush.msra.mxu0 0.0
    %3506 = vmatpush.msra.mxu0 0.0
    %3507 = vmatpush.msra.mxu0 %v3239
    %3508 = vmatpush.msra.mxu0 %v3209
    %3509 = vmatmul.f32.gmra.mxu0 %v3488
    %v3510 = vpop.f32.mrf.mxu0
    %v3511 = vadd.f32 1e-06, %v3510
    %3512 = vmatmul.f32.gmra.mxu0 %v3491
    %v3513 = vpop.f32.mrf.mxu0
    %v3514 = vadd.f32 1e-06, %v3513
    %3515 = vdwg.mxu0
    %3516 = vmatpush.msra.mxu0 0.0
    %3517 = vmatpush.msra.mxu0 0.0
    %3518 = vmatpush.msra.mxu0 0.0
    %3519 = vmatpush.msra.mxu0 0.0
    %3520 = vmatpush.msra.mxu0 0.0
    %3521 = vmatpush.msra.mxu0 0.0
    %3522 = vmatpush.msra.mxu0 0.0
    %3523 = vmatpush.msra.mxu0 0.0
    %3524 = vmatpush.msra.mxu0 0.0
    %3525 = vmatpush.msra.mxu0 0.0
    %3526 = vmatpush.msra.mxu0 0.0
    %3527 = vmatpush.msra.mxu0 0.0
    %3528 = vmatpush.msra.mxu0 0.0
    %3529 = vmatpush.msra.mxu0 0.0
    %3530 = vmatpush.msra.mxu0 %v3254
    %3531 = vmatpush.msra.mxu0 %v3224
    %3532 = vmatmul.f32.gmra.mxu0 %v3488
    %v3533 = vpop.f32.mrf.mxu0
    %v3534 = vadd.f32 1e-06, %v3533
    %3535 = vmatmul.f32.gmra.mxu0 %v3491
    %v3536 = vpop.f32.mrf.mxu0
    %v3537 = vadd.f32 1e-06, %v3536
    %3538 = vdwg.mxu0
    %v3539 = vrcp.pop %v3511
    %v3540 = vmul.f32 %v3511, %v3539
    %v3541 = vsub.f32 1.0, %v3540
    %v3542 = vmul.f32 %v3539, %v3541
    %v3543 = vadd.f32 %v3539, %v3542
    %vm3544 = vweird.f32 %v3511
    %vm3545 = vweird.f32 %v3539
    %vm3546 = vmor %vm3544, %vm3545
    %v3547 = vsel %vm3546, %v3539, %v3543
    %v3548 = vand.u32 2147483647, %v3511
    %vm3549 = vcmp.eq.f32.partialorder %v3548, 8.507059e+37
    %v3550 = vand.u32 %v3511, 2147483648
    %v3551 = vor.u32 1.1754944e-38, %v3550
    %v3552 = vsel %vm3549, %v3551, %v3547
    %v3553 = vmul.f32 %v3483, %v3552
    %v3554 = vrcp.pop %v3534
    %v3555 = vmul.f32 %v3534, %v3554
    %v3556 = vsub.f32 1.0, %v3555
    %v3557 = vmul.f32 %v3554, %v3556
    %v3558 = vadd.f32 %v3554, %v3557
    %vm3559 = vweird.f32 %v3534
    %vm3560 = vweird.f32 %v3554
    %vm3561 = vmor %vm3559, %vm3560
    %v3562 = vsel %vm3561, %v3554, %v3558
    %v3563 = vand.u32 2147483647, %v3534
    %vm3564 = vcmp.eq.f32.partialorder %v3563, 8.507059e+37
    %v3565 = vand.u32 %v3534, 2147483648
    %v3566 = vor.u32 1.1754944e-38, %v3565
    %v3567 = vsel %vm3564, %v3566, %v3562
    %v3568 = vmul.f32 %v3484, %v3567
    %v3569 = vrcp.pop %v3514
    %v3570 = vmul.f32 %v3514, %v3569
    %v3571 = vsub.f32 1.0, %v3570
    %v3572 = vmul.f32 %v3569, %v3571
    %v3573 = vadd.f32 %v3569, %v3572
    %vm3574 = vweird.f32 %v3514
    %vm3575 = vweird.f32 %v3569
    %vm3576 = vmor %vm3574, %vm3575
    %v3577 = vsel %vm3576, %v3569, %v3573
    %v3578 = vand.u32 2147483647, %v3514
    %vm3579 = vcmp.eq.f32.partialorder %v3578, 8.507059e+37
    %v3580 = vand.u32 %v3514, 2147483648
    %v3581 = vor.u32 1.1754944e-38, %v3580
    %v3582 = vsel %vm3579, %v3581, %v3577
    %v3583 = vmul.f32 %v3485, %v3582
    %v3584 = vrcp.pop %v3537
    %v3585 = vmul.f32 %v3537, %v3584
    %v3586 = vsub.f32 1.0, %v3585
    %v3587 = vmul.f32 %v3584, %v3586
    %v3588 = vadd.f32 %v3584, %v3587
    %vm3589 = vweird.f32 %v3537
    %vm3590 = vweird.f32 %v3584
    %vm3591 = vmor %vm3589, %vm3590
    %v3592 = vsel %vm3591, %v3584, %v3588
    %v3593 = vand.u32 2147483647, %v3537
    %vm3594 = vcmp.eq.f32.partialorder %v3593, 8.507059e+37
    %v3595 = vand.u32 %v3537, 2147483648
    %v3596 = vor.u32 1.1754944e-38, %v3595
    %v3597 = vsel %vm3594, %v3596, %v3592
    %v3598 = vmul.f32 %v3486, %v3597
    %3599 = vmatpush.xpose.msra.mxu0 0.0
    %3600 = vmatpush.xpose.msra.mxu0 0.0
    %3601 = vmatpush.xpose.msra.mxu0 0.0
    %3602 = vmatpush.xpose.msra.mxu0 0.0
    %3603 = vmatpush.xpose.msra.mxu0 0.0
    %3604 = vmatpush.xpose.msra.mxu0 0.0
    %3605 = vmatpush.xpose.msra.mxu0 0.0
    %3606 = vmatpush.xpose.msra.mxu0 0.0
    %3607 = vmatpush.xpose.msra.mxu0 %v1610
    %3608 = vmatpush.xpose.msra.mxu0 %v1606
    %3609 = vmatpush.xpose.msra.mxu0 %v1602
    %3610 = vmatpush.xpose.msra.mxu0 %v1598
    %3611 = vmatpush.xpose.msra.mxu0 %v1594
    %3612 = vmatpush.xpose.msra.mxu0 %v1590
    %3613 = vmatpush.xpose.msra.mxu0 %v1586
    %3614 = vmatpush.xpose.msra.mxu0 %v1582
    %3615 = vmatmul.f32.gmra.mxu0 %v3553
    %v3616 = vpop.f32.mrf.mxu0
    %v3617 = vadd.f32 0.0, %v3616
    %3618 = vmatmul.f32.gmra.mxu0 %v3583
    %v3619 = vpop.f32.mrf.mxu0
    %v3620 = vadd.f32 0.0, %v3619
    %3621 = vdwg.mxu0
    %3622 = vmatpush.xpose.msra.mxu0 0.0
    %3623 = vmatpush.xpose.msra.mxu0 0.0
    %3624 = vmatpush.xpose.msra.mxu0 0.0
    %3625 = vmatpush.xpose.msra.mxu0 0.0
    %3626 = vmatpush.xpose.msra.mxu0 0.0
    %3627 = vmatpush.xpose.msra.mxu0 0.0
    %3628 = vmatpush.xpose.msra.mxu0 0.0
    %3629 = vmatpush.xpose.msra.mxu0 0.0
    %3630 = vmatpush.xpose.msra.mxu0 %v1611
    %3631 = vmatpush.xpose.msra.mxu0 %v1607
    %3632 = vmatpush.xpose.msra.mxu0 %v1603
    %3633 = vmatpush.xpose.msra.mxu0 %v1599
    %3634 = vmatpush.xpose.msra.mxu0 %v1595
    %3635 = vmatpush.xpose.msra.mxu0 %v1591
    %3636 = vmatpush.xpose.msra.mxu0 %v1587
    %3637 = vmatpush.xpose.msra.mxu0 %v1583
    %3638 = vmatmul.f32.gmra.mxu0 %v3568
    %v3639 = vpop.f32.mrf.mxu0
    %v3640 = vadd.f32 %v3617, %v3639
    %3641 = vmatmul.f32.gmra.mxu0 %v3598
    %v3642 = vpop.f32.mrf.mxu0
    %v3643 = vadd.f32 %v3620, %v3642
    %3644 = vdwg.mxu0
    %3645 = vmatpush.xpose.msra.mxu0 0.0
    %3646 = vmatpush.xpose.msra.mxu0 0.0
    %3647 = vmatpush.xpose.msra.mxu0 0.0
    %3648 = vmatpush.xpose.msra.mxu0 0.0
    %3649 = vmatpush.xpose.msra.mxu0 0.0
    %3650 = vmatpush.xpose.msra.mxu0 0.0
    %3651 = vmatpush.xpose.msra.mxu0 0.0
    %3652 = vmatpush.xpose.msra.mxu0 0.0
    %3653 = vmatpush.xpose.msra.mxu0 0.0
    %3654 = vmatpush.xpose.msra.mxu0 0.0
    %3655 = vmatpush.xpose.msra.mxu0 0.0
    %3656 = vmatpush.xpose.msra.mxu0 0.0
    %3657 = vmatpush.xpose.msra.mxu0 0.0
    %3658 = vmatpush.xpose.msra.mxu0 0.0
    %3659 = vmatpush.xpose.msra.mxu0 %v3583
    %3660 = vmatpush.xpose.msra.mxu0 %v3553
    %3661 = vmatmul.f32.gmra.mxu0 %v3553
    %v3662 = vpop.f32.mrf.mxu0
    %v3663 = vadd.f32 0.0, %v3662
    %3664 = vmatmul.f32.gmra.mxu0 %v3583
    %v3665 = vpop.f32.mrf.mxu0
    %v3666 = vadd.f32 0.0, %v3665
    %3667 = vdwg.mxu0
    %3668 = vmatpush.xpose.msra.mxu0 0.0
    %3669 = vmatpush.xpose.msra.mxu0 0.0
    %3670 = vmatpush.xpose.msra.mxu0 0.0
    %3671 = vmatpush.xpose.msra.mxu0 0.0
    %3672 = vmatpush.xpose.msra.mxu0 0.0
    %3673 = vmatpush.xpose.msra.mxu0 0.0
    %3674 = vmatpush.xpose.msra.mxu0 0.0
    %3675 = vmatpush.xpose.msra.mxu0 0.0
    %3676 = vmatpush.xpose.msra.mxu0 0.0
    %3677 = vmatpush.xpose.msra.mxu0 0.0
    %3678 = vmatpush.xpose.msra.mxu0 0.0
    %3679 = vmatpush.xpose.msra.mxu0 0.0
    %3680 = vmatpush.xpose.msra.mxu0 0.0
    %3681 = vmatpush.xpose.msra.mxu0 0.0
    %3682 = vmatpush.xpose.msra.mxu0 %v3598
    %3683 = vmatpush.xpose.msra.mxu0 %v3568
    %3684 = vmatmul.f32.gmra.mxu0 %v3568
    %v3685 = vpop.f32.mrf.mxu0
    %v3686 = vadd.f32 %v3663, %v3685
    %3687 = vmatmul.f32.gmra.mxu0 %v3598
    %v3688 = vpop.f32.mrf.mxu0
    %v3689 = vadd.f32 %v3666, %v3688
    %3690 = vdwg.mxu0
    %v3691 = vmul.f32 %v3392, %v3640
    %v3692 = vmul.f32 %v3407, %v3643
    %v3694 = vsel %vm302, %v3686, 0
    %v3697 = vsel %vm302, %v3689, 0
    %3699 = vmatpush.msra.mxu0 0.0
    %3700 = vmatpush.msra.mxu0 0.0
    %3701 = vmatpush.msra.mxu0 0.0
    %3702 = vmatpush.msra.mxu0 0.0
    %3703 = vmatpush.msra.mxu0 0.0
    %3704 = vmatpush.msra.mxu0 0.0
    %3705 = vmatpush.msra.mxu0 0.0
    %3706 = vmatpush.msra.mxu0 0.0
    %3707 = vmatpush.msra.mxu0 0.0
    %3708 = vmatpush.msra.mxu0 0.0
    %3709 = vmatpush.msra.mxu0 0.0
    %3710 = vmatpush.msra.mxu0 0.0
    %3711 = vmatpush.msra.mxu0 0.0
    %3712 = vmatpush.msra.mxu0 0.0
    %3713 = vmatpush.msra.mxu0 %v3407
    %3714 = vmatpush.msra.mxu0 %v3392
    %3715 = vmatmul.f32.gmra.mxu0 %v3694
    %v3716 = vpop.f32.mrf.mxu0
    %v3717 = vadd.f32 1e-06, %v3716
    %3718 = vmatmul.f32.gmra.mxu0 %v3697
    %v3719 = vpop.f32.mrf.mxu0
    %v3720 = vadd.f32 1e-06, %v3719
    %3721 = vdwg.mxu0
    %v3722 = vrcp.pop %v3717
    %v3723 = vmul.f32 %v3717, %v3722
    %v3724 = vsub.f32 1.0, %v3723
    %v3725 = vmul.f32 %v3722, %v3724
    %v3726 = vadd.f32 %v3722, %v3725
    %vm3727 = vweird.f32 %v3717
    %vm3728 = vweird.f32 %v3722
    %vm3729 = vmor %vm3727, %vm3728
    %v3730 = vsel %vm3729, %v3722, %v3726
    %v3731 = vand.u32 2147483647, %v3717
    %vm3732 = vcmp.eq.f32.partialorder %v3731, 8.507059e+37
    %v3733 = vand.u32 %v3717, 2147483648
    %v3734 = vor.u32 1.1754944e-38, %v3733
    %v3735 = vsel %vm3732, %v3734, %v3730
    %v3736 = vmul.f32 %v3691, %v3735
    %v3737 = vrcp.pop %v3720
    %v3738 = vmul.f32 %v3720, %v3737
    %v3739 = vsub.f32 1.0, %v3738
    %v3740 = vmul.f32 %v3737, %v3739
    %v3741 = vadd.f32 %v3737, %v3740
    %vm3742 = vweird.f32 %v3720
    %vm3743 = vweird.f32 %v3737
    %vm3744 = vmor %vm3742, %vm3743
    %v3745 = vsel %vm3744, %v3737, %v3741
    %v3746 = vand.u32 2147483647, %v3720
    %vm3747 = vcmp.eq.f32.partialorder %v3746, 8.507059e+37
    %v3748 = vand.u32 %v3720, 2147483648
    %v3749 = vor.u32 1.1754944e-38, %v3748
    %v3750 = vsel %vm3747, %v3749, %v3745
    %v3751 = vmul.f32 %v3692, %v3750
    %v3753 = vsel %vm213, %v3736, 0
    %v3756 = vsel %vm213, %v3751, 0
    %3758 = vmatpush.msra.mxu0 0.0
    %3759 = vmatpush.msra.mxu0 0.0
    %3760 = vmatpush.msra.mxu0 0.0
    %3761 = vmatpush.msra.mxu0 0.0
    %3762 = vmatpush.msra.mxu0 0.0
    %3763 = vmatpush.msra.mxu0 0.0
    %3764 = vmatpush.msra.mxu0 0.0
    %3765 = vmatpush.msra.mxu0 0.0
    %3766 = vmatpush.msra.mxu0 %v1610
    %3767 = vmatpush.msra.mxu0 %v1606
    %3768 = vmatpush.msra.mxu0 %v1602
    %3769 = vmatpush.msra.mxu0 %v1598
    %3770 = vmatpush.msra.mxu0 %v1594
    %3771 = vmatpush.msra.mxu0 %v1590
    %3772 = vmatpush.msra.mxu0 %v1586
    %3773 = vmatpush.msra.mxu0 %v1582
    %3774 = vmatmul.f32.gmra.mxu0 %v3753
    %v3775 = vpop.f32.mrf.mxu0
    %v3776 = vadd.f32 0.0, %v3775
    %3777 = vmatmul.f32.gmra.mxu0 %v3756
    %v3778 = vpop.f32.mrf.mxu0
    %v3779 = vadd.f32 0.0, %v3778
    %3780 = vdwg.mxu0
    %3781 = vmatpush.msra.mxu0 0.0
    %3782 = vmatpush.msra.mxu0 0.0
    %3783 = vmatpush.msra.mxu0 0.0
    %3784 = vmatpush.msra.mxu0 0.0
    %3785 = vmatpush.msra.mxu0 0.0
    %3786 = vmatpush.msra.mxu0 0.0
    %3787 = vmatpush.msra.mxu0 0.0
    %3788 = vmatpush.msra.mxu0 0.0
    %3789 = vmatpush.msra.mxu0 %v1611
    %3790 = vmatpush.msra.mxu0 %v1607
    %3791 = vmatpush.msra.mxu0 %v1603
    %3792 = vmatpush.msra.mxu0 %v1599
    %3793 = vmatpush.msra.mxu0 %v1595
    %3794 = vmatpush.msra.mxu0 %v1591
    %3795 = vmatpush.msra.mxu0 %v1587
    %3796 = vmatpush.msra.mxu0 %v1583
    %3797 = vmatmul.f32.gmra.mxu0 %v3753
    %v3798 = vpop.f32.mrf.mxu0
    %v3799 = vadd.f32 0.0, %v3798
    %3800 = vmatmul.f32.gmra.mxu0 %v3756
    %v3801 = vpop.f32.mrf.mxu0
    %v3802 = vadd.f32 0.0, %v3801
    %3803 = vdwg.mxu0
    %3804 = vmatpush.xpose.msra.mxu0 0.0
    %3805 = vmatpush.xpose.msra.mxu0 0.0
    %3806 = vmatpush.xpose.msra.mxu0 0.0
    %3807 = vmatpush.xpose.msra.mxu0 0.0
    %3808 = vmatpush.xpose.msra.mxu0 0.0
    %3809 = vmatpush.xpose.msra.mxu0 0.0
    %3810 = vmatpush.xpose.msra.mxu0 0.0
    %3811 = vmatpush.xpose.msra.mxu0 0.0
    %3812 = vmatpush.xpose.msra.mxu0 0.0
    %3813 = vmatpush.xpose.msra.mxu0 0.0
    %3814 = vmatpush.xpose.msra.mxu0 0.0
    %3815 = vmatpush.xpose.msra.mxu0 0.0
    %3816 = vmatpush.xpose.msra.mxu0 0.0
    %3817 = vmatpush.xpose.msra.mxu0 0.0
    %3818 = vmatpush.xpose.msra.mxu0 %v3756
    %3819 = vmatpush.xpose.msra.mxu0 %v3753
    %3820 = vmatmul.f32.gmra.mxu0 %v3753
    %v3821 = vpop.f32.mrf.mxu0
    %v3822 = vadd.f32 0.0, %v3821
    %3823 = vmatmul.f32.gmra.mxu0 %v3756
    %v3824 = vpop.f32.mrf.mxu0
    %v3825 = vadd.f32 0.0, %v3824
    %3826 = vdwg.mxu0
    %v3827 = vmul.f32 %v3553, %v3776
    %v3828 = vmul.f32 %v3568, %v3799
    %v3829 = vmul.f32 %v3583, %v3779
    %v3830 = vmul.f32 %v3598, %v3802
    %v3832 = vsel %vm302, %v3822, 0
    %v3835 = vsel %vm302, %v3825, 0
    %3837 = vmatpush.msra.mxu0 0.0
    %3838 = vmatpush.msra.mxu0 0.0
    %3839 = vmatpush.msra.mxu0 0.0
    %3840 = vmatpush.msra.mxu0 0.0
    %3841 = vmatpush.msra.mxu0 0.0
    %3842 = vmatpush.msra.mxu0 0.0
    %3843 = vmatpush.msra.mxu0 0.0
    %3844 = vmatpush.msra.mxu0 0.0
    %3845 = vmatpush.msra.mxu0 0.0
    %3846 = vmatpush.msra.mxu0 0.0
    %3847 = vmatpush.msra.mxu0 0.0
    %3848 = vmatpush.msra.mxu0 0.0
    %3849 = vmatpush.msra.mxu0 0.0
    %3850 = vmatpush.msra.mxu0 0.0
    %3851 = vmatpush.msra.mxu0 %v3583
    %3852 = vmatpush.msra.mxu0 %v3553
    %3853 = vmatmul.f32.gmra.mxu0 %v3832
    %v3854 = vpop.f32.mrf.mxu0
    %v3855 = vadd.f32 1e-06, %v3854
    %3856 = vmatmul.f32.gmra.mxu0 %v3835
    %v3857 = vpop.f32.mrf.mxu0
    %v3858 = vadd.f32 1e-06, %v3857
    %3859 = vdwg.mxu0
    %3860 = vmatpush.msra.mxu0 0.0
    %3861 = vmatpush.msra.mxu0 0.0
    %3862 = vmatpush.msra.mxu0 0.0
    %3863 = vmatpush.msra.mxu0 0.0
    %3864 = vmatpush.msra.mxu0 0.0
    %3865 = vmatpush.msra.mxu0 0.0
    %3866 = vmatpush.msra.mxu0 0.0
    %3867 = vmatpush.msra.mxu0 0.0
    %3868 = vmatpush.msra.mxu0 0.0
    %3869 = vmatpush.msra.mxu0 0.0
    %3870 = vmatpush.msra.mxu0 0.0
    %3871 = vmatpush.msra.mxu0 0.0
    %3872 = vmatpush.msra.mxu0 0.0
    %3873 = vmatpush.msra.mxu0 0.0
    %3874 = vmatpush.msra.mxu0 %v3598
    %3875 = vmatpush.msra.mxu0 %v3568
    %3876 = vmatmul.f32.gmra.mxu0 %v3832
    %v3877 = vpop.f32.mrf.mxu0
    %v3878 = vadd.f32 1e-06, %v3877
    %3879 = vmatmul.f32.gmra.mxu0 %v3835
    %v3880 = vpop.f32.mrf.mxu0
    %v3881 = vadd.f32 1e-06, %v3880
    %3882 = vdwg.mxu0
    %v3883 = vrcp.pop %v3855
    %v3884 = vmul.f32 %v3855, %v3883
    %v3885 = vsub.f32 1.0, %v3884
    %v3886 = vmul.f32 %v3883, %v3885
    %v3887 = vadd.f32 %v3883, %v3886
    %vm3888 = vweird.f32 %v3855
    %vm3889 = vweird.f32 %v3883
    %vm3890 = vmor %vm3888, %vm3889
    %v3891 = vsel %vm3890, %v3883, %v3887
    %v3892 = vand.u32 2147483647, %v3855
    %vm3893 = vcmp.eq.f32.partialorder %v3892, 8.507059e+37
    %v3894 = vand.u32 %v3855, 2147483648
    %v3895 = vor.u32 1.1754944e-38, %v3894
    %v3896 = vsel %vm3893, %v3895, %v3891
    %v3897 = vmul.f32 %v3827, %v3896
    %v3898 = vrcp.pop %v3878
    %v3899 = vmul.f32 %v3878, %v3898
    %v3900 = vsub.f32 1.0, %v3899
    %v3901 = vmul.f32 %v3898, %v3900
    %v3902 = vadd.f32 %v3898, %v3901
    %vm3903 = vweird.f32 %v3878
    %vm3904 = vweird.f32 %v3898
    %vm3905 = vmor %vm3903, %vm3904
    %v3906 = vsel %vm3905, %v3898, %v3902
    %v3907 = vand.u32 2147483647, %v3878
    %vm3908 = vcmp.eq.f32.partialorder %v3907, 8.507059e+37
    %v3909 = vand.u32 %v3878, 2147483648
    %v3910 = vor.u32 1.1754944e-38, %v3909
    %v3911 = vsel %vm3908, %v3910, %v3906
    %v3912 = vmul.f32 %v3828, %v3911
    %v3913 = vrcp.pop %v3858
    %v3914 = vmul.f32 %v3858, %v3913
    %v3915 = vsub.f32 1.0, %v3914
    %v3916 = vmul.f32 %v3913, %v3915
    %v3917 = vadd.f32 %v3913, %v3916
    %vm3918 = vweird.f32 %v3858
    %vm3919 = vweird.f32 %v3913
    %vm3920 = vmor %vm3918, %vm3919
    %v3921 = vsel %vm3920, %v3913, %v3917
    %v3922 = vand.u32 2147483647, %v3858
    %vm3923 = vcmp.eq.f32.partialorder %v3922, 8.507059e+37
    %v3924 = vand.u32 %v3858, 2147483648
    %v3925 = vor.u32 1.1754944e-38, %v3924
    %v3926 = vsel %vm3923, %v3925, %v3921
    %v3927 = vmul.f32 %v3829, %v3926
    %v3928 = vrcp.pop %v3881
    %v3929 = vmul.f32 %v3881, %v3928
    %v3930 = vsub.f32 1.0, %v3929
    %v3931 = vmul.f32 %v3928, %v3930
    %v3932 = vadd.f32 %v3928, %v3931
    %vm3933 = vweird.f32 %v3881
    %vm3934 = vweird.f32 %v3928
    %vm3935 = vmor %vm3933, %vm3934
    %v3936 = vsel %vm3935, %v3928, %v3932
    %v3937 = vand.u32 2147483647, %v3881
    %vm3938 = vcmp.eq.f32.partialorder %v3937, 8.507059e+37
    %v3939 = vand.u32 %v3881, 2147483648
    %v3940 = vor.u32 1.1754944e-38, %v3939
    %v3941 = vsel %vm3938, %v3940, %v3936
    %v3942 = vmul.f32 %v3830, %v3941
    %3943 = vxpose.xlu0.b32.start [1/16] %v3736, 128
    %3944 = vxpose.xlu0.b32.cont [2/16] %v3751, 128
    %3945 = vxpose.xlu0.b32.cont [3/16] 0.0, 128
    %3946 = vxpose.xlu0.b32.cont [4/16] 0.0, 128
    %3947 = vxpose.xlu0.b32.cont [5/16] 0.0, 128
    %3948 = vxpose.xlu0.b32.cont [6/16] 0.0, 128
    %3949 = vxpose.xlu0.b32.cont [7/16] 0.0, 128
    %3950 = vxpose.xlu0.b32.cont [8/16] 0.0, 128
    %3951 = vxpose.xlu0.b32.cont [9/16] 0.0, 128
    %3952 = vxpose.xlu0.b32.cont [10/16] 0.0, 128
    %3953 = vxpose.xlu0.b32.cont [11/16] 0.0, 128
    %3954 = vxpose.xlu0.b32.cont [12/16] 0.0, 128
    %3955 = vxpose.xlu0.b32.cont [13/16] 0.0, 128
    %3956 = vxpose.xlu0.b32.cont [14/16] 0.0, 128
    %3957 = vxpose.xlu0.b32.cont [15/16] 0.0, 128
    %3958 = vxpose.xlu0.b32.end [16/16] 0.0, 128
    %v3959 = vpop.trf.xlu0
    %v3960 = vpop.trf.xlu0
    %v3961 = vpop.trf.xlu0
    %v3962 = vpop.trf.xlu0
    %v3963 = vpop.trf.xlu0
    %v3964 = vpop.trf.xlu0
    %v3965 = vpop.trf.xlu0
    %v3966 = vpop.trf.xlu0
    %v3967 = vpop.trf.xlu0
    %v3968 = vpop.trf.xlu0
    %v3969 = vpop.trf.xlu0
    %v3970 = vpop.trf.xlu0
    %v3971 = vpop.trf.xlu0
    %v3972 = vpop.trf.xlu0
    %v3973 = vpop.trf.xlu0
    %v3974 = vpop.trf.xlu0
    %v3976 = vsel %vm302, %v3959, 0
    %v3979 = vsel %vm302, %v3960, 0
    %v3982 = vsel %vm302, %v3961, 0
    %v3985 = vsel %vm302, %v3962, 0
    %v3988 = vsel %vm302, %v3963, 0
    %v3991 = vsel %vm302, %v3964, 0
    %v3994 = vsel %vm302, %v3965, 0
    %v3997 = vsel %vm302, %v3966, 0
    %3999 = vmatpush.msra.mxu0 0.0
    %4000 = vmatpush.msra.mxu0 0.0
    %4001 = vmatpush.msra.mxu0 0.0
    %4002 = vmatpush.msra.mxu0 0.0
    %4003 = vmatpush.msra.mxu0 0.0
    %4004 = vmatpush.msra.mxu0 0.0
    %4005 = vmatpush.msra.mxu0 0.0
    %4006 = vmatpush.msra.mxu0 0.0
    %4007 = vmatpush.msra.mxu0 0.0
    %4008 = vmatpush.msra.mxu0 0.0
    %4009 = vmatpush.msra.mxu0 0.0
    %4010 = vmatpush.msra.mxu0 0.0
    %4011 = vmatpush.msra.mxu0 0.0
    %4012 = vmatpush.msra.mxu0 0.0
    %4013 = vmatpush.msra.mxu0 %v3927
    %4014 = vmatpush.msra.mxu0 %v3897
    %4015 = vmatmul.f32.gmra.mxu0 %v3976
    %v4016 = vpop.f32.mrf.mxu0
    %v4017 = vadd.f32 0.0, %v4016
    %4018 = vmatmul.f32.gmra.mxu0 %v3979
    %v4019 = vpop.f32.mrf.mxu0
    %v4020 = vadd.f32 0.0, %v4019
    %4021 = vmatmul.f32.gmra.mxu0 %v3982
    %v4022 = vpop.f32.mrf.mxu0
    %v4023 = vadd.f32 0.0, %v4022
    %4024 = vmatmul.f32.gmra.mxu0 %v3985
    %v4025 = vpop.f32.mrf.mxu0
    %v4026 = vadd.f32 0.0, %v4025
    %4027 = vmatmul.f32.gmra.mxu0 %v3988
    %v4028 = vpop.f32.mrf.mxu0
    %v4029 = vadd.f32 0.0, %v4028
    %4030 = vmatmul.f32.gmra.mxu0 %v3991
    %v4031 = vpop.f32.mrf.mxu0
    %v4032 = vadd.f32 0.0, %v4031
    %4033 = vmatmul.f32.gmra.mxu0 %v3994
    %v4034 = vpop.f32.mrf.mxu0
    %v4035 = vadd.f32 0.0, %v4034
    %4036 = vmatmul.f32.gmra.mxu0 %v3997
    %v4037 = vpop.f32.mrf.mxu0
    %v4038 = vadd.f32 0.0, %v4037
    %4039 = vdwg.mxu0
    %4040 = vmatpush.msra.mxu0 0.0
    %4041 = vmatpush.msra.mxu0 0.0
    %4042 = vmatpush.msra.mxu0 0.0
    %4043 = vmatpush.msra.mxu0 0.0
    %4044 = vmatpush.msra.mxu0 0.0
    %4045 = vmatpush.msra.mxu0 0.0
    %4046 = vmatpush.msra.mxu0 0.0
    %4047 = vmatpush.msra.mxu0 0.0
    %4048 = vmatpush.msra.mxu0 0.0
    %4049 = vmatpush.msra.mxu0 0.0
    %4050 = vmatpush.msra.mxu0 0.0
    %4051 = vmatpush.msra.mxu0 0.0
    %4052 = vmatpush.msra.mxu0 0.0
    %4053 = vmatpush.msra.mxu0 0.0
    %4054 = vmatpush.msra.mxu0 %v3942
    %4055 = vmatpush.msra.mxu0 %v3912
    %4056 = vmatmul.f32.gmra.mxu0 %v3976
    %v4057 = vpop.f32.mrf.mxu0
    %v4058 = vadd.f32 0.0, %v4057
    %4059 = vmatmul.f32.gmra.mxu0 %v3979
    %v4060 = vpop.f32.mrf.mxu0
    %v4061 = vadd.f32 0.0, %v4060
    %4062 = vmatmul.f32.gmra.mxu0 %v3982
    %v4063 = vpop.f32.mrf.mxu0
    %v4064 = vadd.f32 0.0, %v4063
    %4065 = vmatmul.f32.gmra.mxu0 %v3985
    %v4066 = vpop.f32.mrf.mxu0
    %v4067 = vadd.f32 0.0, %v4066
    %4068 = vmatmul.f32.gmra.mxu0 %v3988
    %v4069 = vpop.f32.mrf.mxu0
    %v4070 = vadd.f32 0.0, %v4069
    %4071 = vmatmul.f32.gmra.mxu0 %v3991
    %v4072 = vpop.f32.mrf.mxu0
    %v4073 = vadd.f32 0.0, %v4072
    %4074 = vmatmul.f32.gmra.mxu0 %v3994
    %v4075 = vpop.f32.mrf.mxu0
    %v4076 = vadd.f32 0.0, %v4075
    %4077 = vmatmul.f32.gmra.mxu0 %v3997
    %v4078 = vpop.f32.mrf.mxu0
    %v4079 = vadd.f32 0.0, %v4078
    %4080 = vdwg.mxu0
    %s4081 = scalar_lea.vmem [#allocation8], 16
    %v4082 = vld [vmem:[%s4081] sm:$0xff]
    %v4083 = vld [vmem:[%s4081 + $0x8] sm:$0xff]
    %v4085 = vsel %vm213, %v4082, 0
    %v4088 = vsel %vm213, %v4083, 0
    %4090 = vmatpush.msra.mxu0 0.0
    %4091 = vmatpush.msra.mxu0 0.0
    %4092 = vmatpush.msra.mxu0 0.0
    %4093 = vmatpush.msra.mxu0 0.0
    %4094 = vmatpush.msra.mxu0 0.0
    %4095 = vmatpush.msra.mxu0 0.0
    %4096 = vmatpush.msra.mxu0 0.0
    %4097 = vmatpush.msra.mxu0 0.0
    %4098 = vmatpush.msra.mxu0 %v1612
    %4099 = vmatpush.msra.mxu0 %v1608
    %4100 = vmatpush.msra.mxu0 %v1604
    %4101 = vmatpush.msra.mxu0 %v1600
    %4102 = vmatpush.msra.mxu0 %v1596
    %4103 = vmatpush.msra.mxu0 %v1592
    %4104 = vmatpush.msra.mxu0 %v1588
    %4105 = vmatpush.msra.mxu0 %v1584
    %4106 = vmatmul.f32.gmra.mxu0 %v4085
    %v4107 = vpop.f32.mrf.mxu0
    %v4108 = vadd.f32 0.0, %v4107
    %4109 = vmatmul.f32.gmra.mxu0 %v4088
    %v4110 = vpop.f32.mrf.mxu0
    %v4111 = vadd.f32 0.0, %v4110
    %4112 = vdwg.mxu0
    %4113 = vmatpush.msra.mxu0 0.0
    %4114 = vmatpush.msra.mxu0 0.0
    %4115 = vmatpush.msra.mxu0 0.0
    %4116 = vmatpush.msra.mxu0 0.0
    %4117 = vmatpush.msra.mxu0 0.0
    %4118 = vmatpush.msra.mxu0 0.0
    %4119 = vmatpush.msra.mxu0 0.0
    %4120 = vmatpush.msra.mxu0 0.0
    %4121 = vmatpush.msra.mxu0 %v1613
    %4122 = vmatpush.msra.mxu0 %v1609
    %4123 = vmatpush.msra.mxu0 %v1605
    %4124 = vmatpush.msra.mxu0 %v1601
    %4125 = vmatpush.msra.mxu0 %v1597
    %4126 = vmatpush.msra.mxu0 %v1593
    %4127 = vmatpush.msra.mxu0 %v1589
    %4128 = vmatpush.msra.mxu0 %v1585
    %4129 = vmatmul.f32.gmra.mxu0 %v4085
    %v4130 = vpop.f32.mrf.mxu0
    %v4131 = vadd.f32 0.0, %v4130
    %4132 = vmatmul.f32.gmra.mxu0 %v4088
    %v4133 = vpop.f32.mrf.mxu0
    %v4134 = vadd.f32 0.0, %v4133
    %4135 = vdwg.mxu0
    %v4136 = vmax.f32 %v4108, %v4111
    %v4137 = vrot.slane %v4136, 4
    %v4138 = vmax.f32 %v4136, %v4137
    %v4139 = vrot.slane %v4138, 2
    %v4140 = vmax.f32 %v4138, %v4139
    %v4141 = vrot.slane %v4140, 1
    %v4142 = vmax.f32 %v4140, %v4141
    %v4143 = vmax.f32 %v4131, %v4134
    %v4144 = vrot.slane %v4143, 4
    %v4145 = vmax.f32 %v4143, %v4144
    %v4146 = vrot.slane %v4145, 2
    %v4147 = vmax.f32 %v4145, %v4146
    %v4148 = vrot.slane %v4147, 1
    %v4149 = vmax.f32 %v4147, %v4148
    %v4150 = vsub.f32 %v4108, %v4142
    %v4151 = vsub.f32 %v4131, %v4149
    %v4152 = vsub.f32 %v4111, %v4142
    %v4153 = vsub.f32 %v4134, %v4149
    %v4154 = vmul.f32 %v4150, 1.442695
    %v4155 = vpow.pop %v4154
    %v4156 = vmul.f32 %v4151, 1.442695
    %v4157 = vpow.pop %v4156
    %v4158 = vmul.f32 %v4152, 1.442695
    %v4159 = vpow.pop %v4158
    %v4160 = vmul.f32 %v4153, 1.442695
    %v4161 = vpow.pop %v4160
    %v4162 = vadd.f32 %v4155, %v4159
    %v4163 = vrot.slane %v4162, 4
    %v4164 = vadd.f32 %v4162, %v4163
    %v4165 = vrot.slane %v4164, 2
    %v4166 = vadd.f32 %v4164, %v4165
    %v4167 = vrot.slane %v4166, 1
    %v4168 = vadd.f32 %v4166, %v4167
    %v4169 = vadd.f32 %v4157, %v4161
    %v4170 = vrot.slane %v4169, 4
    %v4171 = vadd.f32 %v4169, %v4170
    %v4172 = vrot.slane %v4171, 2
    %v4173 = vadd.f32 %v4171, %v4172
    %v4174 = vrot.slane %v4173, 1
    %v4175 = vadd.f32 %v4173, %v4174
    %v4176 = vrcp.pop %v4168
    %v4177 = vmul.f32 %v4168, %v4176
    %v4178 = vsub.f32 1.0, %v4177
    %v4179 = vmul.f32 %v4176, %v4178
    %v4180 = vadd.f32 %v4176, %v4179
    %vm4181 = vweird.f32 %v4168
    %vm4182 = vweird.f32 %v4176
    %vm4183 = vmor %vm4181, %vm4182
    %v4184 = vsel %vm4183, %v4176, %v4180
    %v4185 = vand.u32 2147483647, %v4168
    %vm4186 = vcmp.eq.f32.partialorder %v4185, 8.507059e+37
    %v4187 = vand.u32 %v4168, 2147483648
    %v4188 = vor.u32 1.1754944e-38, %v4187
    %v4189 = vsel %vm4186, %v4188, %v4184
    %v4190 = vmul.f32 %v4155, %v4189
    %v4191 = vrcp.pop %v4175
    %v4192 = vmul.f32 %v4175, %v4191
    %v4193 = vsub.f32 1.0, %v4192
    %v4194 = vmul.f32 %v4191, %v4193
    %v4195 = vadd.f32 %v4191, %v4194
    %vm4196 = vweird.f32 %v4175
    %vm4197 = vweird.f32 %v4191
    %vm4198 = vmor %vm4196, %vm4197
    %v4199 = vsel %vm4198, %v4191, %v4195
    %v4200 = vand.u32 2147483647, %v4175
    %vm4201 = vcmp.eq.f32.partialorder %v4200, 8.507059e+37
    %v4202 = vand.u32 %v4175, 2147483648
    %v4203 = vor.u32 1.1754944e-38, %v4202
    %v4204 = vsel %vm4201, %v4203, %v4199
    %v4205 = vmul.f32 %v4157, %v4204
    %v4206 = vmul.f32 %v4159, %v4189
    %v4207 = vmul.f32 %v4161, %v4204
    %4208 = vmatpush.xpose.msra.mxu0 0.0
    %4209 = vmatpush.xpose.msra.mxu0 0.0
    %4210 = vmatpush.xpose.msra.mxu0 0.0
    %4211 = vmatpush.xpose.msra.mxu0 0.0
    %4212 = vmatpush.xpose.msra.mxu0 0.0
    %4213 = vmatpush.xpose.msra.mxu0 0.0
    %4214 = vmatpush.xpose.msra.mxu0 0.0
    %4215 = vmatpush.xpose.msra.mxu0 0.0
    %4216 = vmatpush.xpose.msra.mxu0 0.0
    %4217 = vmatpush.xpose.msra.mxu0 0.0
    %4218 = vmatpush.xpose.msra.mxu0 0.0
    %4219 = vmatpush.xpose.msra.mxu0 0.0
    %4220 = vmatpush.xpose.msra.mxu0 0.0
    %4221 = vmatpush.xpose.msra.mxu0 0.0
    %4222 = vmatpush.xpose.msra.mxu0 %v4088
    %4223 = vmatpush.xpose.msra.mxu0 %v4085
    %4224 = vmatmul.f32.gmra.mxu0 %v4085
    %v4225 = vpop.f32.mrf.mxu0
    %v4226 = vadd.f32 0.0, %v4225
    %4227 = vmatmul.f32.gmra.mxu0 %v4088
    %v4228 = vpop.f32.mrf.mxu0
    %v4229 = vadd.f32 0.0, %v4228
    %4230 = vdwg.mxu0
    %v4231 = vmul.f32 %v4190, %v4108
    %v4232 = vmul.f32 %v4205, %v4131
    %v4233 = vmul.f32 %v4206, %v4111
    %v4234 = vmul.f32 %v4207, %v4134
    %v4236 = vsel %vm302, %v4226, 0
    %v4239 = vsel %vm302, %v4229, 0
    %4241 = vmatpush.msra.mxu0 0.0
    %4242 = vmatpush.msra.mxu0 0.0
    %4243 = vmatpush.msra.mxu0 0.0
    %4244 = vmatpush.msra.mxu0 0.0
    %4245 = vmatpush.msra.mxu0 0.0
    %4246 = vmatpush.msra.mxu0 0.0
    %4247 = vmatpush.msra.mxu0 0.0
    %4248 = vmatpush.msra.mxu0 0.0
    %4249 = vmatpush.msra.mxu0 0.0
    %4250 = vmatpush.msra.mxu0 0.0
    %4251 = vmatpush.msra.mxu0 0.0
    %4252 = vmatpush.msra.mxu0 0.0
    %4253 = vmatpush.msra.mxu0 0.0
    %4254 = vmatpush.msra.mxu0 0.0
    %4255 = vmatpush.msra.mxu0 %v4206
    %4256 = vmatpush.msra.mxu0 %v4190
    %4257 = vmatmul.f32.gmra.mxu0 %v4236
    %v4258 = vpop.f32.mrf.mxu0
    %v4259 = vadd.f32 1e-06, %v4258
    %4260 = vmatmul.f32.gmra.mxu0 %v4239
    %v4261 = vpop.f32.mrf.mxu0
    %v4262 = vadd.f32 1e-06, %v4261
    %4263 = vdwg.mxu0
    %4264 = vmatpush.msra.mxu0 0.0
    %4265 = vmatpush.msra.mxu0 0.0
    %4266 = vmatpush.msra.mxu0 0.0
    %4267 = vmatpush.msra.mxu0 0.0
    %4268 = vmatpush.msra.mxu0 0.0
    %4269 = vmatpush.msra.mxu0 0.0
    %4270 = vmatpush.msra.mxu0 0.0
    %4271 = vmatpush.msra.mxu0 0.0
    %4272 = vmatpush.msra.mxu0 0.0
    %4273 = vmatpush.msra.mxu0 0.0
    %4274 = vmatpush.msra.mxu0 0.0
    %4275 = vmatpush.msra.mxu0 0.0
    %4276 = vmatpush.msra.mxu0 0.0
    %4277 = vmatpush.msra.mxu0 0.0
    %4278 = vmatpush.msra.mxu0 %v4207
    %4279 = vmatpush.msra.mxu0 %v4205
    %4280 = vmatmul.f32.gmra.mxu0 %v4236
    %v4281 = vpop.f32.mrf.mxu0
    %v4282 = vadd.f32 1e-06, %v4281
    %4283 = vmatmul.f32.gmra.mxu0 %v4239
    %v4284 = vpop.f32.mrf.mxu0
    %v4285 = vadd.f32 1e-06, %v4284
    %4286 = vdwg.mxu0
    %v4287 = vrcp.pop %v4259
    %v4288 = vmul.f32 %v4259, %v4287
    %v4289 = vsub.f32 1.0, %v4288
    %v4290 = vmul.f32 %v4287, %v4289
    %v4291 = vadd.f32 %v4287, %v4290
    %vm4292 = vweird.f32 %v4259
    %vm4293 = vweird.f32 %v4287
    %vm4294 = vmor %vm4292, %vm4293
    %v4295 = vsel %vm4294, %v4287, %v4291
    %v4296 = vand.u32 2147483647, %v4259
    %vm4297 = vcmp.eq.f32.partialorder %v4296, 8.507059e+37
    %v4298 = vand.u32 %v4259, 2147483648
    %v4299 = vor.u32 1.1754944e-38, %v4298
    %v4300 = vsel %vm4297, %v4299, %v4295
    %v4301 = vmul.f32 %v4231, %v4300
    %v4302 = vrcp.pop %v4282
    %v4303 = vmul.f32 %v4282, %v4302
    %v4304 = vsub.f32 1.0, %v4303
    %v4305 = vmul.f32 %v4302, %v4304
    %v4306 = vadd.f32 %v4302, %v4305
    %vm4307 = vweird.f32 %v4282
    %vm4308 = vweird.f32 %v4302
    %vm4309 = vmor %vm4307, %vm4308
    %v4310 = vsel %vm4309, %v4302, %v4306
    %v4311 = vand.u32 2147483647, %v4282
    %vm4312 = vcmp.eq.f32.partialorder %v4311, 8.507059e+37
    %v4313 = vand.u32 %v4282, 2147483648
    %v4314 = vor.u32 1.1754944e-38, %v4313
    %v4315 = vsel %vm4312, %v4314, %v4310
    %v4316 = vmul.f32 %v4232, %v4315
    %v4317 = vrcp.pop %v4262
    %v4318 = vmul.f32 %v4262, %v4317
    %v4319 = vsub.f32 1.0, %v4318
    %v4320 = vmul.f32 %v4317, %v4319
    %v4321 = vadd.f32 %v4317, %v4320
    %vm4322 = vweird.f32 %v4262
    %vm4323 = vweird.f32 %v4317
    %vm4324 = vmor %vm4322, %vm4323
    %v4325 = vsel %vm4324, %v4317, %v4321
    %v4326 = vand.u32 2147483647, %v4262
    %vm4327 = vcmp.eq.f32.partialorder %v4326, 8.507059e+37
    %v4328 = vand.u32 %v4262, 2147483648
    %v4329 = vor.u32 1.1754944e-38, %v4328
    %v4330 = vsel %vm4327, %v4329, %v4325
    %v4331 = vmul.f32 %v4233, %v4330
    %v4332 = vrcp.pop %v4285
    %v4333 = vmul.f32 %v4285, %v4332
    %v4334 = vsub.f32 1.0, %v4333
    %v4335 = vmul.f32 %v4332, %v4334
    %v4336 = vadd.f32 %v4332, %v4335
    %vm4337 = vweird.f32 %v4285
    %vm4338 = vweird.f32 %v4332
    %vm4339 = vmor %vm4337, %vm4338
    %v4340 = vsel %vm4339, %v4332, %v4336
    %v4341 = vand.u32 2147483647, %v4285
    %vm4342 = vcmp.eq.f32.partialorder %v4341, 8.507059e+37
    %v4343 = vand.u32 %v4285, 2147483648
    %v4344 = vor.u32 1.1754944e-38, %v4343
    %v4345 = vsel %vm4342, %v4344, %v4340
    %v4346 = vmul.f32 %v4234, %v4345
    %4347 = vmatpush.xpose.msra.mxu0 0.0
    %4348 = vmatpush.xpose.msra.mxu0 0.0
    %4349 = vmatpush.xpose.msra.mxu0 0.0
    %4350 = vmatpush.xpose.msra.mxu0 0.0
    %4351 = vmatpush.xpose.msra.mxu0 0.0
    %4352 = vmatpush.xpose.msra.mxu0 0.0
    %4353 = vmatpush.xpose.msra.mxu0 0.0
    %4354 = vmatpush.xpose.msra.mxu0 0.0
    %4355 = vmatpush.xpose.msra.mxu0 %v1612
    %4356 = vmatpush.xpose.msra.mxu0 %v1608
    %4357 = vmatpush.xpose.msra.mxu0 %v1604
    %4358 = vmatpush.xpose.msra.mxu0 %v1600
    %4359 = vmatpush.xpose.msra.mxu0 %v1596
    %4360 = vmatpush.xpose.msra.mxu0 %v1592
    %4361 = vmatpush.xpose.msra.mxu0 %v1588
    %4362 = vmatpush.xpose.msra.mxu0 %v1584
    %4363 = vmatmul.f32.gmra.mxu0 %v4301
    %v4364 = vpop.f32.mrf.mxu0
    %v4365 = vadd.f32 0.0, %v4364
    %4366 = vmatmul.f32.gmra.mxu0 %v4331
    %v4367 = vpop.f32.mrf.mxu0
    %v4368 = vadd.f32 0.0, %v4367
    %4369 = vdwg.mxu0
    %4370 = vmatpush.xpose.msra.mxu0 0.0
    %4371 = vmatpush.xpose.msra.mxu0 0.0
    %4372 = vmatpush.xpose.msra.mxu0 0.0
    %4373 = vmatpush.xpose.msra.mxu0 0.0
    %4374 = vmatpush.xpose.msra.mxu0 0.0
    %4375 = vmatpush.xpose.msra.mxu0 0.0
    %4376 = vmatpush.xpose.msra.mxu0 0.0
    %4377 = vmatpush.xpose.msra.mxu0 0.0
    %4378 = vmatpush.xpose.msra.mxu0 %v1613
    %4379 = vmatpush.xpose.msra.mxu0 %v1609
    %4380 = vmatpush.xpose.msra.mxu0 %v1605
    %4381 = vmatpush.xpose.msra.mxu0 %v1601
    %4382 = vmatpush.xpose.msra.mxu0 %v1597
    %4383 = vmatpush.xpose.msra.mxu0 %v1593
    %4384 = vmatpush.xpose.msra.mxu0 %v1589
    %4385 = vmatpush.xpose.msra.mxu0 %v1585
    %4386 = vmatmul.f32.gmra.mxu0 %v4316
    %v4387 = vpop.f32.mrf.mxu0
    %v4388 = vadd.f32 %v4365, %v4387
    %4389 = vmatmul.f32.gmra.mxu0 %v4346
    %v4390 = vpop.f32.mrf.mxu0
    %v4391 = vadd.f32 %v4368, %v4390
    %4392 = vdwg.mxu0
    %4393 = vmatpush.xpose.msra.mxu0 0.0
    %4394 = vmatpush.xpose.msra.mxu0 0.0
    %4395 = vmatpush.xpose.msra.mxu0 0.0
    %4396 = vmatpush.xpose.msra.mxu0 0.0
    %4397 = vmatpush.xpose.msra.mxu0 0.0
    %4398 = vmatpush.xpose.msra.mxu0 0.0
    %4399 = vmatpush.xpose.msra.mxu0 0.0
    %4400 = vmatpush.xpose.msra.mxu0 0.0
    %4401 = vmatpush.xpose.msra.mxu0 0.0
    %4402 = vmatpush.xpose.msra.mxu0 0.0
    %4403 = vmatpush.xpose.msra.mxu0 0.0
    %4404 = vmatpush.xpose.msra.mxu0 0.0
    %4405 = vmatpush.xpose.msra.mxu0 0.0
    %4406 = vmatpush.xpose.msra.mxu0 0.0
    %4407 = vmatpush.xpose.msra.mxu0 %v4331
    %4408 = vmatpush.xpose.msra.mxu0 %v4301
    %4409 = vmatmul.f32.gmra.mxu0 %v4301
    %v4410 = vpop.f32.mrf.mxu0
    %v4411 = vadd.f32 0.0, %v4410
    %4412 = vmatmul.f32.gmra.mxu0 %v4331
    %v4413 = vpop.f32.mrf.mxu0
    %v4414 = vadd.f32 0.0, %v4413
    %4415 = vdwg.mxu0
    %4416 = vmatpush.xpose.msra.mxu0 0.0
    %4417 = vmatpush.xpose.msra.mxu0 0.0
    %4418 = vmatpush.xpose.msra.mxu0 0.0
    %4419 = vmatpush.xpose.msra.mxu0 0.0
    %4420 = vmatpush.xpose.msra.mxu0 0.0
    %4421 = vmatpush.xpose.msra.mxu0 0.0
    %4422 = vmatpush.xpose.msra.mxu0 0.0
    %4423 = vmatpush.xpose.msra.mxu0 0.0
    %4424 = vmatpush.xpose.msra.mxu0 0.0
    %4425 = vmatpush.xpose.msra.mxu0 0.0
    %4426 = vmatpush.xpose.msra.mxu0 0.0
    %4427 = vmatpush.xpose.msra.mxu0 0.0
    %4428 = vmatpush.xpose.msra.mxu0 0.0
    %4429 = vmatpush.xpose.msra.mxu0 0.0
    %4430 = vmatpush.xpose.msra.mxu0 %v4346
    %4431 = vmatpush.xpose.msra.mxu0 %v4316
    %4432 = vmatmul.f32.gmra.mxu0 %v4316
    %v4433 = vpop.f32.mrf.mxu0
    %v4434 = vadd.f32 %v4411, %v4433
    %4435 = vmatmul.f32.gmra.mxu0 %v4346
    %v4436 = vpop.f32.mrf.mxu0
    %v4437 = vadd.f32 %v4414, %v4436
    %4438 = vdwg.mxu0
    %v4439 = vmul.f32 %v4082, %v4388
    %v4440 = vmul.f32 %v4083, %v4391
    %v4442 = vsel %vm302, %v4434, 0
    %v4445 = vsel %vm302, %v4437, 0
    %4447 = vmatpush.msra.mxu0 0.0
    %4448 = vmatpush.msra.mxu0 0.0
    %4449 = vmatpush.msra.mxu0 0.0
    %4450 = vmatpush.msra.mxu0 0.0
    %4451 = vmatpush.msra.mxu0 0.0
    %4452 = vmatpush.msra.mxu0 0.0
    %4453 = vmatpush.msra.mxu0 0.0
    %4454 = vmatpush.msra.mxu0 0.0
    %4455 = vmatpush.msra.mxu0 0.0
    %4456 = vmatpush.msra.mxu0 0.0
    %4457 = vmatpush.msra.mxu0 0.0
    %4458 = vmatpush.msra.mxu0 0.0
    %4459 = vmatpush.msra.mxu0 0.0
    %4460 = vmatpush.msra.mxu0 0.0
    %4461 = vmatpush.msra.mxu0 %v4083
    %4462 = vmatpush.msra.mxu0 %v4082
    %4463 = vmatmul.f32.gmra.mxu0 %v4442
    %v4464 = vpop.f32.mrf.mxu0
    %v4465 = vadd.f32 1e-06, %v4464
    %4466 = vmatmul.f32.gmra.mxu0 %v4445
    %v4467 = vpop.f32.mrf.mxu0
    %v4468 = vadd.f32 1e-06, %v4467
    %4469 = vdwg.mxu0
    %v4470 = vrcp.pop %v4465
    %v4471 = vmul.f32 %v4465, %v4470
    %v4472 = vsub.f32 1.0, %v4471
    %v4473 = vmul.f32 %v4470, %v4472
    %v4474 = vadd.f32 %v4470, %v4473
    %vm4475 = vweird.f32 %v4465
    %vm4476 = vweird.f32 %v4470
    %vm4477 = vmor %vm4475, %vm4476
    %v4478 = vsel %vm4477, %v4470, %v4474
    %v4479 = vand.u32 2147483647, %v4465
    %vm4480 = vcmp.eq.f32.partialorder %v4479, 8.507059e+37
    %v4481 = vand.u32 %v4465, 2147483648
    %v4482 = vor.u32 1.1754944e-38, %v4481
    %v4483 = vsel %vm4480, %v4482, %v4478
    %v4484 = vmul.f32 %v4439, %v4483
    %v4485 = vrcp.pop %v4468
    %v4486 = vmul.f32 %v4468, %v4485
    %v4487 = vsub.f32 1.0, %v4486
    %v4488 = vmul.f32 %v4485, %v4487
    %v4489 = vadd.f32 %v4485, %v4488
    %vm4490 = vweird.f32 %v4468
    %vm4491 = vweird.f32 %v4485
    %vm4492 = vmor %vm4490, %vm4491
    %v4493 = vsel %vm4492, %v4485, %v4489
    %v4494 = vand.u32 2147483647, %v4468
    %vm4495 = vcmp.eq.f32.partialorder %v4494, 8.507059e+37
    %v4496 = vand.u32 %v4468, 2147483648
    %v4497 = vor.u32 1.1754944e-38, %v4496
    %v4498 = vsel %vm4495, %v4497, %v4493
    %v4499 = vmul.f32 %v4440, %v4498
    %v4501 = vsel %vm213, %v4484, 0
    %v4504 = vsel %vm213, %v4499, 0
    %4506 = vmatpush.msra.mxu0 0.0
    %4507 = vmatpush.msra.mxu0 0.0
    %4508 = vmatpush.msra.mxu0 0.0
    %4509 = vmatpush.msra.mxu0 0.0
    %4510 = vmatpush.msra.mxu0 0.0
    %4511 = vmatpush.msra.mxu0 0.0
    %4512 = vmatpush.msra.mxu0 0.0
    %4513 = vmatpush.msra.mxu0 0.0
    %4514 = vmatpush.msra.mxu0 %v1612
    %4515 = vmatpush.msra.mxu0 %v1608
    %4516 = vmatpush.msra.mxu0 %v1604
    %4517 = vmatpush.msra.mxu0 %v1600
    %4518 = vmatpush.msra.mxu0 %v1596
    %4519 = vmatpush.msra.mxu0 %v1592
    %4520 = vmatpush.msra.mxu0 %v1588
    %4521 = vmatpush.msra.mxu0 %v1584
    %4522 = vmatmul.f32.gmra.mxu0 %v4501
    %v4523 = vpop.f32.mrf.mxu0
    %v4524 = vadd.f32 0.0, %v4523
    %4525 = vmatmul.f32.gmra.mxu0 %v4504
    %v4526 = vpop.f32.mrf.mxu0
    %v4527 = vadd.f32 0.0, %v4526
    %4528 = vdwg.mxu0
    %4529 = vmatpush.msra.mxu0 0.0
    %4530 = vmatpush.msra.mxu0 0.0
    %4531 = vmatpush.msra.mxu0 0.0
    %4532 = vmatpush.msra.mxu0 0.0
    %4533 = vmatpush.msra.mxu0 0.0
    %4534 = vmatpush.msra.mxu0 0.0
    %4535 = vmatpush.msra.mxu0 0.0
    %4536 = vmatpush.msra.mxu0 0.0
    %4537 = vmatpush.msra.mxu0 %v1613
    %4538 = vmatpush.msra.mxu0 %v1609
    %4539 = vmatpush.msra.mxu0 %v1605
    %4540 = vmatpush.msra.mxu0 %v1601
    %4541 = vmatpush.msra.mxu0 %v1597
    %4542 = vmatpush.msra.mxu0 %v1593
    %4543 = vmatpush.msra.mxu0 %v1589
    %4544 = vmatpush.msra.mxu0 %v1585
    %4545 = vmatmul.f32.gmra.mxu0 %v4501
    %v4546 = vpop.f32.mrf.mxu0
    %v4547 = vadd.f32 0.0, %v4546
    %4548 = vmatmul.f32.gmra.mxu0 %v4504
    %v4549 = vpop.f32.mrf.mxu0
    %v4550 = vadd.f32 0.0, %v4549
    %4551 = vdwg.mxu0
    %4552 = vmatpush.xpose.msra.mxu0 0.0
    %4553 = vmatpush.xpose.msra.mxu0 0.0
    %4554 = vmatpush.xpose.msra.mxu0 0.0
    %4555 = vmatpush.xpose.msra.mxu0 0.0
    %4556 = vmatpush.xpose.msra.mxu0 0.0
    %4557 = vmatpush.xpose.msra.mxu0 0.0
    %4558 = vmatpush.xpose.msra.mxu0 0.0
    %4559 = vmatpush.xpose.msra.mxu0 0.0
    %4560 = vmatpush.xpose.msra.mxu0 0.0
    %4561 = vmatpush.xpose.msra.mxu0 0.0
    %4562 = vmatpush.xpose.msra.mxu0 0.0
    %4563 = vmatpush.xpose.msra.mxu0 0.0
    %4564 = vmatpush.xpose.msra.mxu0 0.0
    %4565 = vmatpush.xpose.msra.mxu0 0.0
    %4566 = vmatpush.xpose.msra.mxu0 %v4504
    %4567 = vmatpush.xpose.msra.mxu0 %v4501
    %4568 = vmatmul.f32.gmra.mxu0 %v4501
    %v4569 = vpop.f32.mrf.mxu0
    %v4570 = vadd.f32 0.0, %v4569
    %4571 = vmatmul.f32.gmra.mxu0 %v4504
    %v4572 = vpop.f32.mrf.mxu0
    %v4573 = vadd.f32 0.0, %v4572
    %4574 = vdwg.mxu0
    %v4575 = vmul.f32 %v4301, %v4524
    %v4576 = vmul.f32 %v4316, %v4547
    %v4577 = vmul.f32 %v4331, %v4527
    %v4578 = vmul.f32 %v4346, %v4550
    %v4580 = vsel %vm302, %v4570, 0
    %v4583 = vsel %vm302, %v4573, 0
    %4585 = vmatpush.msra.mxu0 0.0
    %4586 = vmatpush.msra.mxu0 0.0
    %4587 = vmatpush.msra.mxu0 0.0
    %4588 = vmatpush.msra.mxu0 0.0
    %4589 = vmatpush.msra.mxu0 0.0
    %4590 = vmatpush.msra.mxu0 0.0
    %4591 = vmatpush.msra.mxu0 0.0
    %4592 = vmatpush.msra.mxu0 0.0
    %4593 = vmatpush.msra.mxu0 0.0
    %4594 = vmatpush.msra.mxu0 0.0
    %4595 = vmatpush.msra.mxu0 0.0
    %4596 = vmatpush.msra.mxu0 0.0
    %4597 = vmatpush.msra.mxu0 0.0
    %4598 = vmatpush.msra.mxu0 0.0
    %4599 = vmatpush.msra.mxu0 %v4331
    %4600 = vmatpush.msra.mxu0 %v4301
    %4601 = vmatmul.f32.gmra.mxu0 %v4580
    %v4602 = vpop.f32.mrf.mxu0
    %v4603 = vadd.f32 1e-06, %v4602
    %4604 = vmatmul.f32.gmra.mxu0 %v4583
    %v4605 = vpop.f32.mrf.mxu0
    %v4606 = vadd.f32 1e-06, %v4605
    %4607 = vdwg.mxu0
    %4608 = vmatpush.msra.mxu0 0.0
    %4609 = vmatpush.msra.mxu0 0.0
    %4610 = vmatpush.msra.mxu0 0.0
    %4611 = vmatpush.msra.mxu0 0.0
    %4612 = vmatpush.msra.mxu0 0.0
    %4613 = vmatpush.msra.mxu0 0.0
    %4614 = vmatpush.msra.mxu0 0.0
    %4615 = vmatpush.msra.mxu0 0.0
    %4616 = vmatpush.msra.mxu0 0.0
    %4617 = vmatpush.msra.mxu0 0.0
    %4618 = vmatpush.msra.mxu0 0.0
    %4619 = vmatpush.msra.mxu0 0.0
    %4620 = vmatpush.msra.mxu0 0.0
    %4621 = vmatpush.msra.mxu0 0.0
    %4622 = vmatpush.msra.mxu0 %v4346
    %4623 = vmatpush.msra.mxu0 %v4316
    %4624 = vmatmul.f32.gmra.mxu0 %v4580
    %v4625 = vpop.f32.mrf.mxu0
    %v4626 = vadd.f32 1e-06, %v4625
    %4627 = vmatmul.f32.gmra.mxu0 %v4583
    %v4628 = vpop.f32.mrf.mxu0
    %v4629 = vadd.f32 1e-06, %v4628
    %4630 = vdwg.mxu0
    %v4631 = vrcp.pop %v4603
    %v4632 = vmul.f32 %v4603, %v4631
    %v4633 = vsub.f32 1.0, %v4632
    %v4634 = vmul.f32 %v4631, %v4633
    %v4635 = vadd.f32 %v4631, %v4634
    %vm4636 = vweird.f32 %v4603
    %vm4637 = vweird.f32 %v4631
    %vm4638 = vmor %vm4636, %vm4637
    %v4639 = vsel %vm4638, %v4631, %v4635
    %v4640 = vand.u32 2147483647, %v4603
    %vm4641 = vcmp.eq.f32.partialorder %v4640, 8.507059e+37
    %v4642 = vand.u32 %v4603, 2147483648
    %v4643 = vor.u32 1.1754944e-38, %v4642
    %v4644 = vsel %vm4641, %v4643, %v4639
    %v4645 = vmul.f32 %v4575, %v4644
    %v4646 = vrcp.pop %v4626
    %v4647 = vmul.f32 %v4626, %v4646
    %v4648 = vsub.f32 1.0, %v4647
    %v4649 = vmul.f32 %v4646, %v4648
    %v4650 = vadd.f32 %v4646, %v4649
    %vm4651 = vweird.f32 %v4626
    %vm4652 = vweird.f32 %v4646
    %vm4653 = vmor %vm4651, %vm4652
    %v4654 = vsel %vm4653, %v4646, %v4650
    %v4655 = vand.u32 2147483647, %v4626
    %vm4656 = vcmp.eq.f32.partialorder %v4655, 8.507059e+37
    %v4657 = vand.u32 %v4626, 2147483648
    %v4658 = vor.u32 1.1754944e-38, %v4657
    %v4659 = vsel %vm4656, %v4658, %v4654
    %v4660 = vmul.f32 %v4576, %v4659
    %v4661 = vrcp.pop %v4606
    %v4662 = vmul.f32 %v4606, %v4661
    %v4663 = vsub.f32 1.0, %v4662
    %v4664 = vmul.f32 %v4661, %v4663
    %v4665 = vadd.f32 %v4661, %v4664
    %vm4666 = vweird.f32 %v4606
    %vm4667 = vweird.f32 %v4661
    %vm4668 = vmor %vm4666, %vm4667
    %v4669 = vsel %vm4668, %v4661, %v4665
    %v4670 = vand.u32 2147483647, %v4606
    %vm4671 = vcmp.eq.f32.partialorder %v4670, 8.507059e+37
    %v4672 = vand.u32 %v4606, 2147483648
    %v4673 = vor.u32 1.1754944e-38, %v4672
    %v4674 = vsel %vm4671, %v4673, %v4669
    %v4675 = vmul.f32 %v4577, %v4674
    %v4676 = vrcp.pop %v4629
    %v4677 = vmul.f32 %v4629, %v4676
    %v4678 = vsub.f32 1.0, %v4677
    %v4679 = vmul.f32 %v4676, %v4678
    %v4680 = vadd.f32 %v4676, %v4679
    %vm4681 = vweird.f32 %v4629
    %vm4682 = vweird.f32 %v4676
    %vm4683 = vmor %vm4681, %vm4682
    %v4684 = vsel %vm4683, %v4676, %v4680
    %v4685 = vand.u32 2147483647, %v4629
    %vm4686 = vcmp.eq.f32.partialorder %v4685, 8.507059e+37
    %v4687 = vand.u32 %v4629, 2147483648
    %v4688 = vor.u32 1.1754944e-38, %v4687
    %v4689 = vsel %vm4686, %v4688, %v4684
    %v4690 = vmul.f32 %v4578, %v4689
    %4691 = vmatpush.xpose.msra.mxu0 0.0
    %4692 = vmatpush.xpose.msra.mxu0 0.0
    %4693 = vmatpush.xpose.msra.mxu0 0.0
    %4694 = vmatpush.xpose.msra.mxu0 0.0
    %4695 = vmatpush.xpose.msra.mxu0 0.0
    %4696 = vmatpush.xpose.msra.mxu0 0.0
    %4697 = vmatpush.xpose.msra.mxu0 0.0
    %4698 = vmatpush.xpose.msra.mxu0 0.0
    %4699 = vmatpush.xpose.msra.mxu0 %v1612
    %4700 = vmatpush.xpose.msra.mxu0 %v1608
    %4701 = vmatpush.xpose.msra.mxu0 %v1604
    %4702 = vmatpush.xpose.msra.mxu0 %v1600
    %4703 = vmatpush.xpose.msra.mxu0 %v1596
    %4704 = vmatpush.xpose.msra.mxu0 %v1592
    %4705 = vmatpush.xpose.msra.mxu0 %v1588
    %4706 = vmatpush.xpose.msra.mxu0 %v1584
    %4707 = vmatmul.f32.gmra.mxu0 %v4645
    %v4708 = vpop.f32.mrf.mxu0
    %v4709 = vadd.f32 0.0, %v4708
    %4710 = vmatmul.f32.gmra.mxu0 %v4675
    %v4711 = vpop.f32.mrf.mxu0
    %v4712 = vadd.f32 0.0, %v4711
    %4713 = vdwg.mxu0
    %4714 = vmatpush.xpose.msra.mxu0 0.0
    %4715 = vmatpush.xpose.msra.mxu0 0.0
    %4716 = vmatpush.xpose.msra.mxu0 0.0
    %4717 = vmatpush.xpose.msra.mxu0 0.0
    %4718 = vmatpush.xpose.msra.mxu0 0.0
    %4719 = vmatpush.xpose.msra.mxu0 0.0
    %4720 = vmatpush.xpose.msra.mxu0 0.0
    %4721 = vmatpush.xpose.msra.mxu0 0.0
    %4722 = vmatpush.xpose.msra.mxu0 %v1613
    %4723 = vmatpush.xpose.msra.mxu0 %v1609
    %4724 = vmatpush.xpose.msra.mxu0 %v1605
    %4725 = vmatpush.xpose.msra.mxu0 %v1601
    %4726 = vmatpush.xpose.msra.mxu0 %v1597
    %4727 = vmatpush.xpose.msra.mxu0 %v1593
    %4728 = vmatpush.xpose.msra.mxu0 %v1589
    %4729 = vmatpush.xpose.msra.mxu0 %v1585
    %4730 = vmatmul.f32.gmra.mxu0 %v4660
    %v4731 = vpop.f32.mrf.mxu0
    %v4732 = vadd.f32 %v4709, %v4731
    %4733 = vmatmul.f32.gmra.mxu0 %v4690
    %v4734 = vpop.f32.mrf.mxu0
    %v4735 = vadd.f32 %v4712, %v4734
    %4736 = vdwg.mxu0
    %4737 = vmatpush.xpose.msra.mxu0 0.0
    %4738 = vmatpush.xpose.msra.mxu0 0.0
    %4739 = vmatpush.xpose.msra.mxu0 0.0
    %4740 = vmatpush.xpose.msra.mxu0 0.0
    %4741 = vmatpush.xpose.msra.mxu0 0.0
    %4742 = vmatpush.xpose.msra.mxu0 0.0
    %4743 = vmatpush.xpose.msra.mxu0 0.0
    %4744 = vmatpush.xpose.msra.mxu0 0.0
    %4745 = vmatpush.xpose.msra.mxu0 0.0
    %4746 = vmatpush.xpose.msra.mxu0 0.0
    %4747 = vmatpush.xpose.msra.mxu0 0.0
    %4748 = vmatpush.xpose.msra.mxu0 0.0
    %4749 = vmatpush.xpose.msra.mxu0 0.0
    %4750 = vmatpush.xpose.msra.mxu0 0.0
    %4751 = vmatpush.xpose.msra.mxu0 %v4675
    %4752 = vmatpush.xpose.msra.mxu0 %v4645
    %4753 = vmatmul.f32.gmra.mxu0 %v4645
    %v4754 = vpop.f32.mrf.mxu0
    %v4755 = vadd.f32 0.0, %v4754
    %4756 = vmatmul.f32.gmra.mxu0 %v4675
    %v4757 = vpop.f32.mrf.mxu0
    %v4758 = vadd.f32 0.0, %v4757
    %4759 = vdwg.mxu0
    %4760 = vmatpush.xpose.msra.mxu0 0.0
    %4761 = vmatpush.xpose.msra.mxu0 0.0
    %4762 = vmatpush.xpose.msra.mxu0 0.0
    %4763 = vmatpush.xpose.msra.mxu0 0.0
    %4764 = vmatpush.xpose.msra.mxu0 0.0
    %4765 = vmatpush.xpose.msra.mxu0 0.0
    %4766 = vmatpush.xpose.msra.mxu0 0.0
    %4767 = vmatpush.xpose.msra.mxu0 0.0
    %4768 = vmatpush.xpose.msra.mxu0 0.0
    %4769 = vmatpush.xpose.msra.mxu0 0.0
    %4770 = vmatpush.xpose.msra.mxu0 0.0
    %4771 = vmatpush.xpose.msra.mxu0 0.0
    %4772 = vmatpush.xpose.msra.mxu0 0.0
    %4773 = vmatpush.xpose.msra.mxu0 0.0
    %4774 = vmatpush.xpose.msra.mxu0 %v4690
    %4775 = vmatpush.xpose.msra.mxu0 %v4660
    %4776 = vmatmul.f32.gmra.mxu0 %v4660
    %v4777 = vpop.f32.mrf.mxu0
    %v4778 = vadd.f32 %v4755, %v4777
    %4779 = vmatmul.f32.gmra.mxu0 %v4690
    %v4780 = vpop.f32.mrf.mxu0
    %v4781 = vadd.f32 %v4758, %v4780
    %4782 = vdwg.mxu0
    %v4783 = vmul.f32 %v4484, %v4732
    %v4784 = vmul.f32 %v4499, %v4735
    %v4786 = vsel %vm302, %v4778, 0
    %v4789 = vsel %vm302, %v4781, 0
    %4791 = vmatpush.msra.mxu0 0.0
    %4792 = vmatpush.msra.mxu0 0.0
    %4793 = vmatpush.msra.mxu0 0.0
    %4794 = vmatpush.msra.mxu0 0.0
    %4795 = vmatpush.msra.mxu0 0.0
    %4796 = vmatpush.msra.mxu0 0.0
    %4797 = vmatpush.msra.mxu0 0.0
    %4798 = vmatpush.msra.mxu0 0.0
    %4799 = vmatpush.msra.mxu0 0.0
    %4800 = vmatpush.msra.mxu0 0.0
    %4801 = vmatpush.msra.mxu0 0.0
    %4802 = vmatpush.msra.mxu0 0.0
    %4803 = vmatpush.msra.mxu0 0.0
    %4804 = vmatpush.msra.mxu0 0.0
    %4805 = vmatpush.msra.mxu0 %v4499
    %4806 = vmatpush.msra.mxu0 %v4484
    %4807 = vmatmul.f32.gmra.mxu0 %v4786
    %v4808 = vpop.f32.mrf.mxu0
    %v4809 = vadd.f32 1e-06, %v4808
    %4810 = vmatmul.f32.gmra.mxu0 %v4789
    %v4811 = vpop.f32.mrf.mxu0
    %v4812 = vadd.f32 1e-06, %v4811
    %4813 = vdwg.mxu0
    %v4814 = vrcp.pop %v4809
    %v4815 = vmul.f32 %v4809, %v4814
    %v4816 = vsub.f32 1.0, %v4815
    %v4817 = vmul.f32 %v4814, %v4816
    %v4818 = vadd.f32 %v4814, %v4817
    %vm4819 = vweird.f32 %v4809
    %vm4820 = vweird.f32 %v4814
    %vm4821 = vmor %vm4819, %vm4820
    %v4822 = vsel %vm4821, %v4814, %v4818
    %v4823 = vand.u32 2147483647, %v4809
    %vm4824 = vcmp.eq.f32.partialorder %v4823, 8.507059e+37
    %v4825 = vand.u32 %v4809, 2147483648
    %v4826 = vor.u32 1.1754944e-38, %v4825
    %v4827 = vsel %vm4824, %v4826, %v4822
    %v4828 = vmul.f32 %v4783, %v4827
    %v4829 = vrcp.pop %v4812
    %v4830 = vmul.f32 %v4812, %v4829
    %v4831 = vsub.f32 1.0, %v4830
    %v4832 = vmul.f32 %v4829, %v4831
    %v4833 = vadd.f32 %v4829, %v4832
    %vm4834 = vweird.f32 %v4812
    %vm4835 = vweird.f32 %v4829
    %vm4836 = vmor %vm4834, %vm4835
    %v4837 = vsel %vm4836, %v4829, %v4833
    %v4838 = vand.u32 2147483647, %v4812
    %vm4839 = vcmp.eq.f32.partialorder %v4838, 8.507059e+37
    %v4840 = vand.u32 %v4812, 2147483648
    %v4841 = vor.u32 1.1754944e-38, %v4840
    %v4842 = vsel %vm4839, %v4841, %v4837
    %v4843 = vmul.f32 %v4784, %v4842
    %v4845 = vsel %vm213, %v4828, 0
    %v4848 = vsel %vm213, %v4843, 0
    %4850 = vmatpush.msra.mxu0 0.0
    %4851 = vmatpush.msra.mxu0 0.0
    %4852 = vmatpush.msra.mxu0 0.0
    %4853 = vmatpush.msra.mxu0 0.0
    %4854 = vmatpush.msra.mxu0 0.0
    %4855 = vmatpush.msra.mxu0 0.0
    %4856 = vmatpush.msra.mxu0 0.0
    %4857 = vmatpush.msra.mxu0 0.0
    %4858 = vmatpush.msra.mxu0 %v1612
    %4859 = vmatpush.msra.mxu0 %v1608
    %4860 = vmatpush.msra.mxu0 %v1604
    %4861 = vmatpush.msra.mxu0 %v1600
    %4862 = vmatpush.msra.mxu0 %v1596
    %4863 = vmatpush.msra.mxu0 %v1592
    %4864 = vmatpush.msra.mxu0 %v1588
    %4865 = vmatpush.msra.mxu0 %v1584
    %4866 = vmatmul.f32.gmra.mxu0 %v4845
    %v4867 = vpop.f32.mrf.mxu0
    %v4868 = vadd.f32 0.0, %v4867
    %4869 = vmatmul.f32.gmra.mxu0 %v4848
    %v4870 = vpop.f32.mrf.mxu0
    %v4871 = vadd.f32 0.0, %v4870
    %4872 = vdwg.mxu0
    %4873 = vmatpush.msra.mxu0 0.0
    %4874 = vmatpush.msra.mxu0 0.0
    %4875 = vmatpush.msra.mxu0 0.0
    %4876 = vmatpush.msra.mxu0 0.0
    %4877 = vmatpush.msra.mxu0 0.0
    %4878 = vmatpush.msra.mxu0 0.0
    %4879 = vmatpush.msra.mxu0 0.0
    %4880 = vmatpush.msra.mxu0 0.0
    %4881 = vmatpush.msra.mxu0 %v1613
    %4882 = vmatpush.msra.mxu0 %v1609
    %4883 = vmatpush.msra.mxu0 %v1605
    %4884 = vmatpush.msra.mxu0 %v1601
    %4885 = vmatpush.msra.mxu0 %v1597
    %4886 = vmatpush.msra.mxu0 %v1593
    %4887 = vmatpush.msra.mxu0 %v1589
    %4888 = vmatpush.msra.mxu0 %v1585
    %4889 = vmatmul.f32.gmra.mxu0 %v4845
    %v4890 = vpop.f32.mrf.mxu0
    %v4891 = vadd.f32 0.0, %v4890
    %4892 = vmatmul.f32.gmra.mxu0 %v4848
    %v4893 = vpop.f32.mrf.mxu0
    %v4894 = vadd.f32 0.0, %v4893
    %4895 = vdwg.mxu0
    %4896 = vmatpush.xpose.msra.mxu0 0.0
    %4897 = vmatpush.xpose.msra.mxu0 0.0
    %4898 = vmatpush.xpose.msra.mxu0 0.0
    %4899 = vmatpush.xpose.msra.mxu0 0.0
    %4900 = vmatpush.xpose.msra.mxu0 0.0
    %4901 = vmatpush.xpose.msra.mxu0 0.0
    %4902 = vmatpush.xpose.msra.mxu0 0.0
    %4903 = vmatpush.xpose.msra.mxu0 0.0
    %4904 = vmatpush.xpose.msra.mxu0 0.0
    %4905 = vmatpush.xpose.msra.mxu0 0.0
    %4906 = vmatpush.xpose.msra.mxu0 0.0
    %4907 = vmatpush.xpose.msra.mxu0 0.0
    %4908 = vmatpush.xpose.msra.mxu0 0.0
    %4909 = vmatpush.xpose.msra.mxu0 0.0
    %4910 = vmatpush.xpose.msra.mxu0 %v4848
    %4911 = vmatpush.xpose.msra.mxu0 %v4845
    %4912 = vmatmul.f32.gmra.mxu0 %v4845
    %v4913 = vpop.f32.mrf.mxu0
    %v4914 = vadd.f32 0.0, %v4913
    %4915 = vmatmul.f32.gmra.mxu0 %v4848
    %v4916 = vpop.f32.mrf.mxu0
    %v4917 = vadd.f32 0.0, %v4916
    %4918 = vdwg.mxu0
    %v4919 = vmul.f32 %v4645, %v4868
    %v4920 = vmul.f32 %v4660, %v4891
    %v4921 = vmul.f32 %v4675, %v4871
    %v4922 = vmul.f32 %v4690, %v4894
    %v4924 = vsel %vm302, %v4914, 0
    %v4927 = vsel %vm302, %v4917, 0
    %4929 = vmatpush.msra.mxu0 0.0
    %4930 = vmatpush.msra.mxu0 0.0
    %4931 = vmatpush.msra.mxu0 0.0
    %4932 = vmatpush.msra.mxu0 0.0
    %4933 = vmatpush.msra.mxu0 0.0
    %4934 = vmatpush.msra.mxu0 0.0
    %4935 = vmatpush.msra.mxu0 0.0
    %4936 = vmatpush.msra.mxu0 0.0
    %4937 = vmatpush.msra.mxu0 0.0
    %4938 = vmatpush.msra.mxu0 0.0
    %4939 = vmatpush.msra.mxu0 0.0
    %4940 = vmatpush.msra.mxu0 0.0
    %4941 = vmatpush.msra.mxu0 0.0
    %4942 = vmatpush.msra.mxu0 0.0
    %4943 = vmatpush.msra.mxu0 %v4675
    %4944 = vmatpush.msra.mxu0 %v4645
    %4945 = vmatmul.f32.gmra.mxu0 %v4924
    %v4946 = vpop.f32.mrf.mxu0
    %v4947 = vadd.f32 1e-06, %v4946
    %4948 = vmatmul.f32.gmra.mxu0 %v4927
    %v4949 = vpop.f32.mrf.mxu0
    %v4950 = vadd.f32 1e-06, %v4949
    %4951 = vdwg.mxu0
    %4952 = vmatpush.msra.mxu0 0.0
    %4953 = vmatpush.msra.mxu0 0.0
    %4954 = vmatpush.msra.mxu0 0.0
    %4955 = vmatpush.msra.mxu0 0.0
    %4956 = vmatpush.msra.mxu0 0.0
    %4957 = vmatpush.msra.mxu0 0.0
    %4958 = vmatpush.msra.mxu0 0.0
    %4959 = vmatpush.msra.mxu0 0.0
    %4960 = vmatpush.msra.mxu0 0.0
    %4961 = vmatpush.msra.mxu0 0.0
    %4962 = vmatpush.msra.mxu0 0.0
    %4963 = vmatpush.msra.mxu0 0.0
    %4964 = vmatpush.msra.mxu0 0.0
    %4965 = vmatpush.msra.mxu0 0.0
    %4966 = vmatpush.msra.mxu0 %v4690
    %4967 = vmatpush.msra.mxu0 %v4660
    %4968 = vmatmul.f32.gmra.mxu0 %v4924
    %v4969 = vpop.f32.mrf.mxu0
    %v4970 = vadd.f32 1e-06, %v4969
    %4971 = vmatmul.f32.gmra.mxu0 %v4927
    %v4972 = vpop.f32.mrf.mxu0
    %v4973 = vadd.f32 1e-06, %v4972
    %4974 = vdwg.mxu0
    %v4975 = vrcp.pop %v4947
    %v4976 = vmul.f32 %v4947, %v4975
    %v4977 = vsub.f32 1.0, %v4976
    %v4978 = vmul.f32 %v4975, %v4977
    %v4979 = vadd.f32 %v4975, %v4978
    %vm4980 = vweird.f32 %v4947
    %vm4981 = vweird.f32 %v4975
    %vm4982 = vmor %vm4980, %vm4981
    %v4983 = vsel %vm4982, %v4975, %v4979
    %v4984 = vand.u32 2147483647, %v4947
    %vm4985 = vcmp.eq.f32.partialorder %v4984, 8.507059e+37
    %v4986 = vand.u32 %v4947, 2147483648
    %v4987 = vor.u32 1.1754944e-38, %v4986
    %v4988 = vsel %vm4985, %v4987, %v4983
    %v4989 = vmul.f32 %v4919, %v4988
    %v4990 = vrcp.pop %v4970
    %v4991 = vmul.f32 %v4970, %v4990
    %v4992 = vsub.f32 1.0, %v4991
    %v4993 = vmul.f32 %v4990, %v4992
    %v4994 = vadd.f32 %v4990, %v4993
    %vm4995 = vweird.f32 %v4970
    %vm4996 = vweird.f32 %v4990
    %vm4997 = vmor %vm4995, %vm4996
    %v4998 = vsel %vm4997, %v4990, %v4994
    %v4999 = vand.u32 2147483647, %v4970
    %vm5000 = vcmp.eq.f32.partialorder %v4999, 8.507059e+37
    %v5001 = vand.u32 %v4970, 2147483648
    %v5002 = vor.u32 1.1754944e-38, %v5001
    %v5003 = vsel %vm5000, %v5002, %v4998
    %v5004 = vmul.f32 %v4920, %v5003
    %v5005 = vrcp.pop %v4950
    %v5006 = vmul.f32 %v4950, %v5005
    %v5007 = vsub.f32 1.0, %v5006
    %v5008 = vmul.f32 %v5005, %v5007
    %v5009 = vadd.f32 %v5005, %v5008
    %vm5010 = vweird.f32 %v4950
    %vm5011 = vweird.f32 %v5005
    %vm5012 = vmor %vm5010, %vm5011
    %v5013 = vsel %vm5012, %v5005, %v5009
    %v5014 = vand.u32 2147483647, %v4950
    %vm5015 = vcmp.eq.f32.partialorder %v5014, 8.507059e+37
    %v5016 = vand.u32 %v4950, 2147483648
    %v5017 = vor.u32 1.1754944e-38, %v5016
    %v5018 = vsel %vm5015, %v5017, %v5013
    %v5019 = vmul.f32 %v4921, %v5018
    %v5020 = vrcp.pop %v4973
    %v5021 = vmul.f32 %v4973, %v5020
    %v5022 = vsub.f32 1.0, %v5021
    %v5023 = vmul.f32 %v5020, %v5022
    %v5024 = vadd.f32 %v5020, %v5023
    %vm5025 = vweird.f32 %v4973
    %vm5026 = vweird.f32 %v5020
    %vm5027 = vmor %vm5025, %vm5026
    %v5028 = vsel %vm5027, %v5020, %v5024
    %v5029 = vand.u32 2147483647, %v4973
    %vm5030 = vcmp.eq.f32.partialorder %v5029, 8.507059e+37
    %v5031 = vand.u32 %v4973, 2147483648
    %v5032 = vor.u32 1.1754944e-38, %v5031
    %v5033 = vsel %vm5030, %v5032, %v5028
    %v5034 = vmul.f32 %v4922, %v5033
    %5035 = vmatpush.xpose.msra.mxu0 0.0
    %5036 = vmatpush.xpose.msra.mxu0 0.0
    %5037 = vmatpush.xpose.msra.mxu0 0.0
    %5038 = vmatpush.xpose.msra.mxu0 0.0
    %5039 = vmatpush.xpose.msra.mxu0 0.0
    %5040 = vmatpush.xpose.msra.mxu0 0.0
    %5041 = vmatpush.xpose.msra.mxu0 0.0
    %5042 = vmatpush.xpose.msra.mxu0 0.0
    %5043 = vmatpush.xpose.msra.mxu0 %v1612
    %5044 = vmatpush.xpose.msra.mxu0 %v1608
    %5045 = vmatpush.xpose.msra.mxu0 %v1604
    %5046 = vmatpush.xpose.msra.mxu0 %v1600
    %5047 = vmatpush.xpose.msra.mxu0 %v1596
    %5048 = vmatpush.xpose.msra.mxu0 %v1592
    %5049 = vmatpush.xpose.msra.mxu0 %v1588
    %5050 = vmatpush.xpose.msra.mxu0 %v1584
    %5051 = vmatmul.f32.gmra.mxu0 %v4989
    %v5052 = vpop.f32.mrf.mxu0
    %v5053 = vadd.f32 0.0, %v5052
    %5054 = vmatmul.f32.gmra.mxu0 %v5019
    %v5055 = vpop.f32.mrf.mxu0
    %v5056 = vadd.f32 0.0, %v5055
    %5057 = vdwg.mxu0
    %5058 = vmatpush.xpose.msra.mxu0 0.0
    %5059 = vmatpush.xpose.msra.mxu0 0.0
    %5060 = vmatpush.xpose.msra.mxu0 0.0
    %5061 = vmatpush.xpose.msra.mxu0 0.0
    %5062 = vmatpush.xpose.msra.mxu0 0.0
    %5063 = vmatpush.xpose.msra.mxu0 0.0
    %5064 = vmatpush.xpose.msra.mxu0 0.0
    %5065 = vmatpush.xpose.msra.mxu0 0.0
    %5066 = vmatpush.xpose.msra.mxu0 %v1613
    %5067 = vmatpush.xpose.msra.mxu0 %v1609
    %5068 = vmatpush.xpose.msra.mxu0 %v1605
    %5069 = vmatpush.xpose.msra.mxu0 %v1601
    %5070 = vmatpush.xpose.msra.mxu0 %v1597
    %5071 = vmatpush.xpose.msra.mxu0 %v1593
    %5072 = vmatpush.xpose.msra.mxu0 %v1589
    %5073 = vmatpush.xpose.msra.mxu0 %v1585
    %5074 = vmatmul.f32.gmra.mxu0 %v5004
    %v5075 = vpop.f32.mrf.mxu0
    %v5076 = vadd.f32 %v5053, %v5075
    %5077 = vmatmul.f32.gmra.mxu0 %v5034
    %v5078 = vpop.f32.mrf.mxu0
    %v5079 = vadd.f32 %v5056, %v5078
    %5080 = vdwg.mxu0
    %5081 = vmatpush.xpose.msra.mxu0 0.0
    %5082 = vmatpush.xpose.msra.mxu0 0.0
    %5083 = vmatpush.xpose.msra.mxu0 0.0
    %5084 = vmatpush.xpose.msra.mxu0 0.0
    %5085 = vmatpush.xpose.msra.mxu0 0.0
    %5086 = vmatpush.xpose.msra.mxu0 0.0
    %5087 = vmatpush.xpose.msra.mxu0 0.0
    %5088 = vmatpush.xpose.msra.mxu0 0.0
    %5089 = vmatpush.xpose.msra.mxu0 0.0
    %5090 = vmatpush.xpose.msra.mxu0 0.0
    %5091 = vmatpush.xpose.msra.mxu0 0.0
    %5092 = vmatpush.xpose.msra.mxu0 0.0
    %5093 = vmatpush.xpose.msra.mxu0 0.0
    %5094 = vmatpush.xpose.msra.mxu0 0.0
    %5095 = vmatpush.xpose.msra.mxu0 %v5019
    %5096 = vmatpush.xpose.msra.mxu0 %v4989
    %5097 = vmatmul.f32.gmra.mxu0 %v4989
    %v5098 = vpop.f32.mrf.mxu0
    %v5099 = vadd.f32 0.0, %v5098
    %5100 = vmatmul.f32.gmra.mxu0 %v5019
    %v5101 = vpop.f32.mrf.mxu0
    %v5102 = vadd.f32 0.0, %v5101
    %5103 = vdwg.mxu0
    %5104 = vmatpush.xpose.msra.mxu0 0.0
    %5105 = vmatpush.xpose.msra.mxu0 0.0
    %5106 = vmatpush.xpose.msra.mxu0 0.0
    %5107 = vmatpush.xpose.msra.mxu0 0.0
    %5108 = vmatpush.xpose.msra.mxu0 0.0
    %5109 = vmatpush.xpose.msra.mxu0 0.0
    %5110 = vmatpush.xpose.msra.mxu0 0.0
    %5111 = vmatpush.xpose.msra.mxu0 0.0
    %5112 = vmatpush.xpose.msra.mxu0 0.0
    %5113 = vmatpush.xpose.msra.mxu0 0.0
    %5114 = vmatpush.xpose.msra.mxu0 0.0
    %5115 = vmatpush.xpose.msra.mxu0 0.0
    %5116 = vmatpush.xpose.msra.mxu0 0.0
    %5117 = vmatpush.xpose.msra.mxu0 0.0
    %5118 = vmatpush.xpose.msra.mxu0 %v5034
    %5119 = vmatpush.xpose.msra.mxu0 %v5004
    %5120 = vmatmul.f32.gmra.mxu0 %v5004
    %v5121 = vpop.f32.mrf.mxu0
    %v5122 = vadd.f32 %v5099, %v5121
    %5123 = vmatmul.f32.gmra.mxu0 %v5034
    %v5124 = vpop.f32.mrf.mxu0
    %v5125 = vadd.f32 %v5102, %v5124
    %5126 = vdwg.mxu0
    %v5127 = vmul.f32 %v4828, %v5076
    %v5128 = vmul.f32 %v4843, %v5079
    %v5130 = vsel %vm302, %v5122, 0
    %v5133 = vsel %vm302, %v5125, 0
    %5135 = vmatpush.msra.mxu0 0.0
    %5136 = vmatpush.msra.mxu0 0.0
    %5137 = vmatpush.msra.mxu0 0.0
    %5138 = vmatpush.msra.mxu0 0.0
    %5139 = vmatpush.msra.mxu0 0.0
    %5140 = vmatpush.msra.mxu0 0.0
    %5141 = vmatpush.msra.mxu0 0.0
    %5142 = vmatpush.msra.mxu0 0.0
    %5143 = vmatpush.msra.mxu0 0.0
    %5144 = vmatpush.msra.mxu0 0.0
    %5145 = vmatpush.msra.mxu0 0.0
    %5146 = vmatpush.msra.mxu0 0.0
    %5147 = vmatpush.msra.mxu0 0.0
    %5148 = vmatpush.msra.mxu0 0.0
    %5149 = vmatpush.msra.mxu0 %v4843
    %5150 = vmatpush.msra.mxu0 %v4828
    %5151 = vmatmul.f32.gmra.mxu0 %v5130
    %v5152 = vpop.f32.mrf.mxu0
    %v5153 = vadd.f32 1e-06, %v5152
    %5154 = vmatmul.f32.gmra.mxu0 %v5133
    %v5155 = vpop.f32.mrf.mxu0
    %v5156 = vadd.f32 1e-06, %v5155
    %5157 = vdwg.mxu0
    %v5158 = vrcp.pop %v5153
    %v5159 = vmul.f32 %v5153, %v5158
    %v5160 = vsub.f32 1.0, %v5159
    %v5161 = vmul.f32 %v5158, %v5160
    %v5162 = vadd.f32 %v5158, %v5161
    %vm5163 = vweird.f32 %v5153
    %vm5164 = vweird.f32 %v5158
    %vm5165 = vmor %vm5163, %vm5164
    %v5166 = vsel %vm5165, %v5158, %v5162
    %v5167 = vand.u32 2147483647, %v5153
    %vm5168 = vcmp.eq.f32.partialorder %v5167, 8.507059e+37
    %v5169 = vand.u32 %v5153, 2147483648
    %v5170 = vor.u32 1.1754944e-38, %v5169
    %v5171 = vsel %vm5168, %v5170, %v5166
    %v5172 = vmul.f32 %v5127, %v5171
    %v5173 = vrcp.pop %v5156
    %v5174 = vmul.f32 %v5156, %v5173
    %v5175 = vsub.f32 1.0, %v5174
    %v5176 = vmul.f32 %v5173, %v5175
    %v5177 = vadd.f32 %v5173, %v5176
    %vm5178 = vweird.f32 %v5156
    %vm5179 = vweird.f32 %v5173
    %vm5180 = vmor %vm5178, %vm5179
    %v5181 = vsel %vm5180, %v5173, %v5177
    %v5182 = vand.u32 2147483647, %v5156
    %vm5183 = vcmp.eq.f32.partialorder %v5182, 8.507059e+37
    %v5184 = vand.u32 %v5156, 2147483648
    %v5185 = vor.u32 1.1754944e-38, %v5184
    %v5186 = vsel %vm5183, %v5185, %v5181
    %v5187 = vmul.f32 %v5128, %v5186
    %v5189 = vsel %vm213, %v5172, 0
    %v5192 = vsel %vm213, %v5187, 0
    %5194 = vmatpush.msra.mxu0 0.0
    %5195 = vmatpush.msra.mxu0 0.0
    %5196 = vmatpush.msra.mxu0 0.0
    %5197 = vmatpush.msra.mxu0 0.0
    %5198 = vmatpush.msra.mxu0 0.0
    %5199 = vmatpush.msra.mxu0 0.0
    %5200 = vmatpush.msra.mxu0 0.0
    %5201 = vmatpush.msra.mxu0 0.0
    %5202 = vmatpush.msra.mxu0 %v1612
    %5203 = vmatpush.msra.mxu0 %v1608
    %5204 = vmatpush.msra.mxu0 %v1604
    %5205 = vmatpush.msra.mxu0 %v1600
    %5206 = vmatpush.msra.mxu0 %v1596
    %5207 = vmatpush.msra.mxu0 %v1592
    %5208 = vmatpush.msra.mxu0 %v1588
    %5209 = vmatpush.msra.mxu0 %v1584
    %5210 = vmatmul.f32.gmra.mxu0 %v5189
    %v5211 = vpop.f32.mrf.mxu0
    %v5212 = vadd.f32 0.0, %v5211
    %5213 = vmatmul.f32.gmra.mxu0 %v5192
    %v5214 = vpop.f32.mrf.mxu0
    %v5215 = vadd.f32 0.0, %v5214
    %5216 = vdwg.mxu0
    %5217 = vmatpush.msra.mxu0 0.0
    %5218 = vmatpush.msra.mxu0 0.0
    %5219 = vmatpush.msra.mxu0 0.0
    %5220 = vmatpush.msra.mxu0 0.0
    %5221 = vmatpush.msra.mxu0 0.0
    %5222 = vmatpush.msra.mxu0 0.0
    %5223 = vmatpush.msra.mxu0 0.0
    %5224 = vmatpush.msra.mxu0 0.0
    %5225 = vmatpush.msra.mxu0 %v1613
    %5226 = vmatpush.msra.mxu0 %v1609
    %5227 = vmatpush.msra.mxu0 %v1605
    %5228 = vmatpush.msra.mxu0 %v1601
    %5229 = vmatpush.msra.mxu0 %v1597
    %5230 = vmatpush.msra.mxu0 %v1593
    %5231 = vmatpush.msra.mxu0 %v1589
    %5232 = vmatpush.msra.mxu0 %v1585
    %5233 = vmatmul.f32.gmra.mxu0 %v5189
    %v5234 = vpop.f32.mrf.mxu0
    %v5235 = vadd.f32 0.0, %v5234
    %5236 = vmatmul.f32.gmra.mxu0 %v5192
    %v5237 = vpop.f32.mrf.mxu0
    %v5238 = vadd.f32 0.0, %v5237
    %5239 = vdwg.mxu0
    %5240 = vmatpush.xpose.msra.mxu0 0.0
    %5241 = vmatpush.xpose.msra.mxu0 0.0
    %5242 = vmatpush.xpose.msra.mxu0 0.0
    %5243 = vmatpush.xpose.msra.mxu0 0.0
    %5244 = vmatpush.xpose.msra.mxu0 0.0
    %5245 = vmatpush.xpose.msra.mxu0 0.0
    %5246 = vmatpush.xpose.msra.mxu0 0.0
    %5247 = vmatpush.xpose.msra.mxu0 0.0
    %5248 = vmatpush.xpose.msra.mxu0 0.0
    %5249 = vmatpush.xpose.msra.mxu0 0.0
    %5250 = vmatpush.xpose.msra.mxu0 0.0
    %5251 = vmatpush.xpose.msra.mxu0 0.0
    %5252 = vmatpush.xpose.msra.mxu0 0.0
    %5253 = vmatpush.xpose.msra.mxu0 0.0
    %5254 = vmatpush.xpose.msra.mxu0 %v5192
    %5255 = vmatpush.xpose.msra.mxu0 %v5189
    %5256 = vmatmul.f32.gmra.mxu0 %v5189
    %v5257 = vpop.f32.mrf.mxu0
    %v5258 = vadd.f32 0.0, %v5257
    %5259 = vmatmul.f32.gmra.mxu0 %v5192
    %v5260 = vpop.f32.mrf.mxu0
    %v5261 = vadd.f32 0.0, %v5260
    %5262 = vdwg.mxu0
    %v5263 = vmul.f32 %v4989, %v5212
    %v5264 = vmul.f32 %v5004, %v5235
    %v5265 = vmul.f32 %v5019, %v5215
    %v5266 = vmul.f32 %v5034, %v5238
    %v5268 = vsel %vm302, %v5258, 0
    %v5271 = vsel %vm302, %v5261, 0
    %5273 = vmatpush.msra.mxu0 0.0
    %5274 = vmatpush.msra.mxu0 0.0
    %5275 = vmatpush.msra.mxu0 0.0
    %5276 = vmatpush.msra.mxu0 0.0
    %5277 = vmatpush.msra.mxu0 0.0
    %5278 = vmatpush.msra.mxu0 0.0
    %5279 = vmatpush.msra.mxu0 0.0
    %5280 = vmatpush.msra.mxu0 0.0
    %5281 = vmatpush.msra.mxu0 0.0
    %5282 = vmatpush.msra.mxu0 0.0
    %5283 = vmatpush.msra.mxu0 0.0
    %5284 = vmatpush.msra.mxu0 0.0
    %5285 = vmatpush.msra.mxu0 0.0
    %5286 = vmatpush.msra.mxu0 0.0
    %5287 = vmatpush.msra.mxu0 %v5019
    %5288 = vmatpush.msra.mxu0 %v4989
    %5289 = vmatmul.f32.gmra.mxu0 %v5268
    %v5290 = vpop.f32.mrf.mxu0
    %v5291 = vadd.f32 1e-06, %v5290
    %5292 = vmatmul.f32.gmra.mxu0 %v5271
    %v5293 = vpop.f32.mrf.mxu0
    %v5294 = vadd.f32 1e-06, %v5293
    %5295 = vdwg.mxu0
    %5296 = vmatpush.msra.mxu0 0.0
    %5297 = vmatpush.msra.mxu0 0.0
    %5298 = vmatpush.msra.mxu0 0.0
    %5299 = vmatpush.msra.mxu0 0.0
    %5300 = vmatpush.msra.mxu0 0.0
    %5301 = vmatpush.msra.mxu0 0.0
    %5302 = vmatpush.msra.mxu0 0.0
    %5303 = vmatpush.msra.mxu0 0.0
    %5304 = vmatpush.msra.mxu0 0.0
    %5305 = vmatpush.msra.mxu0 0.0
    %5306 = vmatpush.msra.mxu0 0.0
    %5307 = vmatpush.msra.mxu0 0.0
    %5308 = vmatpush.msra.mxu0 0.0
    %5309 = vmatpush.msra.mxu0 0.0
    %5310 = vmatpush.msra.mxu0 %v5034
    %5311 = vmatpush.msra.mxu0 %v5004
    %5312 = vmatmul.f32.gmra.mxu0 %v5268
    %v5313 = vpop.f32.mrf.mxu0
    %v5314 = vadd.f32 1e-06, %v5313
    %5315 = vmatmul.f32.gmra.mxu0 %v5271
    %v5316 = vpop.f32.mrf.mxu0
    %v5317 = vadd.f32 1e-06, %v5316
    %5318 = vdwg.mxu0
    %v5319 = vrcp.pop %v5291
    %v5320 = vmul.f32 %v5291, %v5319
    %v5321 = vsub.f32 1.0, %v5320
    %v5322 = vmul.f32 %v5319, %v5321
    %v5323 = vadd.f32 %v5319, %v5322
    %vm5324 = vweird.f32 %v5291
    %vm5325 = vweird.f32 %v5319
    %vm5326 = vmor %vm5324, %vm5325
    %v5327 = vsel %vm5326, %v5319, %v5323
    %v5328 = vand.u32 2147483647, %v5291
    %vm5329 = vcmp.eq.f32.partialorder %v5328, 8.507059e+37
    %v5330 = vand.u32 %v5291, 2147483648
    %v5331 = vor.u32 1.1754944e-38, %v5330
    %v5332 = vsel %vm5329, %v5331, %v5327
    %v5333 = vmul.f32 %v5263, %v5332
    %v5334 = vrcp.pop %v5314
    %v5335 = vmul.f32 %v5314, %v5334
    %v5336 = vsub.f32 1.0, %v5335
    %v5337 = vmul.f32 %v5334, %v5336
    %v5338 = vadd.f32 %v5334, %v5337
    %vm5339 = vweird.f32 %v5314
    %vm5340 = vweird.f32 %v5334
    %vm5341 = vmor %vm5339, %vm5340
    %v5342 = vsel %vm5341, %v5334, %v5338
    %v5343 = vand.u32 2147483647, %v5314
    %vm5344 = vcmp.eq.f32.partialorder %v5343, 8.507059e+37
    %v5345 = vand.u32 %v5314, 2147483648
    %v5346 = vor.u32 1.1754944e-38, %v5345
    %v5347 = vsel %vm5344, %v5346, %v5342
    %v5348 = vmul.f32 %v5264, %v5347
    %v5349 = vrcp.pop %v5294
    %v5350 = vmul.f32 %v5294, %v5349
    %v5351 = vsub.f32 1.0, %v5350
    %v5352 = vmul.f32 %v5349, %v5351
    %v5353 = vadd.f32 %v5349, %v5352
    %vm5354 = vweird.f32 %v5294
    %vm5355 = vweird.f32 %v5349
    %vm5356 = vmor %vm5354, %vm5355
    %v5357 = vsel %vm5356, %v5349, %v5353
    %v5358 = vand.u32 2147483647, %v5294
    %vm5359 = vcmp.eq.f32.partialorder %v5358, 8.507059e+37
    %v5360 = vand.u32 %v5294, 2147483648
    %v5361 = vor.u32 1.1754944e-38, %v5360
    %v5362 = vsel %vm5359, %v5361, %v5357
    %v5363 = vmul.f32 %v5265, %v5362
    %v5364 = vrcp.pop %v5317
    %v5365 = vmul.f32 %v5317, %v5364
    %v5366 = vsub.f32 1.0, %v5365
    %v5367 = vmul.f32 %v5364, %v5366
    %v5368 = vadd.f32 %v5364, %v5367
    %vm5369 = vweird.f32 %v5317
    %vm5370 = vweird.f32 %v5364
    %vm5371 = vmor %vm5369, %vm5370
    %v5372 = vsel %vm5371, %v5364, %v5368
    %v5373 = vand.u32 2147483647, %v5317
    %vm5374 = vcmp.eq.f32.partialorder %v5373, 8.507059e+37
    %v5375 = vand.u32 %v5317, 2147483648
    %v5376 = vor.u32 1.1754944e-38, %v5375
    %v5377 = vsel %vm5374, %v5376, %v5372
    %v5378 = vmul.f32 %v5266, %v5377
    %5379 = vmatpush.xpose.msra.mxu0 0.0
    %5380 = vmatpush.xpose.msra.mxu0 0.0
    %5381 = vmatpush.xpose.msra.mxu0 0.0
    %5382 = vmatpush.xpose.msra.mxu0 0.0
    %5383 = vmatpush.xpose.msra.mxu0 0.0
    %5384 = vmatpush.xpose.msra.mxu0 0.0
    %5385 = vmatpush.xpose.msra.mxu0 0.0
    %5386 = vmatpush.xpose.msra.mxu0 0.0
    %5387 = vmatpush.xpose.msra.mxu0 %v1612
    %5388 = vmatpush.xpose.msra.mxu0 %v1608
    %5389 = vmatpush.xpose.msra.mxu0 %v1604
    %5390 = vmatpush.xpose.msra.mxu0 %v1600
    %5391 = vmatpush.xpose.msra.mxu0 %v1596
    %5392 = vmatpush.xpose.msra.mxu0 %v1592
    %5393 = vmatpush.xpose.msra.mxu0 %v1588
    %5394 = vmatpush.xpose.msra.mxu0 %v1584
    %5395 = vmatmul.f32.gmra.mxu0 %v5333
    %v5396 = vpop.f32.mrf.mxu0
    %v5397 = vadd.f32 0.0, %v5396
    %5398 = vmatmul.f32.gmra.mxu0 %v5363
    %v5399 = vpop.f32.mrf.mxu0
    %v5400 = vadd.f32 0.0, %v5399
    %5401 = vdwg.mxu0
    %5402 = vmatpush.xpose.msra.mxu0 0.0
    %5403 = vmatpush.xpose.msra.mxu0 0.0
    %5404 = vmatpush.xpose.msra.mxu0 0.0
    %5405 = vmatpush.xpose.msra.mxu0 0.0
    %5406 = vmatpush.xpose.msra.mxu0 0.0
    %5407 = vmatpush.xpose.msra.mxu0 0.0
    %5408 = vmatpush.xpose.msra.mxu0 0.0
    %5409 = vmatpush.xpose.msra.mxu0 0.0
    %5410 = vmatpush.xpose.msra.mxu0 %v1613
    %5411 = vmatpush.xpose.msra.mxu0 %v1609
    %5412 = vmatpush.xpose.msra.mxu0 %v1605
    %5413 = vmatpush.xpose.msra.mxu0 %v1601
    %5414 = vmatpush.xpose.msra.mxu0 %v1597
    %5415 = vmatpush.xpose.msra.mxu0 %v1593
    %5416 = vmatpush.xpose.msra.mxu0 %v1589
    %5417 = vmatpush.xpose.msra.mxu0 %v1585
    %5418 = vmatmul.f32.gmra.mxu0 %v5348
    %v5419 = vpop.f32.mrf.mxu0
    %v5420 = vadd.f32 %v5397, %v5419
    %5421 = vmatmul.f32.gmra.mxu0 %v5378
    %v5422 = vpop.f32.mrf.mxu0
    %v5423 = vadd.f32 %v5400, %v5422
    %5424 = vdwg.mxu0
    %5425 = vmatpush.xpose.msra.mxu0 0.0
    %5426 = vmatpush.xpose.msra.mxu0 0.0
    %5427 = vmatpush.xpose.msra.mxu0 0.0
    %5428 = vmatpush.xpose.msra.mxu0 0.0
    %5429 = vmatpush.xpose.msra.mxu0 0.0
    %5430 = vmatpush.xpose.msra.mxu0 0.0
    %5431 = vmatpush.xpose.msra.mxu0 0.0
    %5432 = vmatpush.xpose.msra.mxu0 0.0
    %5433 = vmatpush.xpose.msra.mxu0 0.0
    %5434 = vmatpush.xpose.msra.mxu0 0.0
    %5435 = vmatpush.xpose.msra.mxu0 0.0
    %5436 = vmatpush.xpose.msra.mxu0 0.0
    %5437 = vmatpush.xpose.msra.mxu0 0.0
    %5438 = vmatpush.xpose.msra.mxu0 0.0
    %5439 = vmatpush.xpose.msra.mxu0 %v5363
    %5440 = vmatpush.xpose.msra.mxu0 %v5333
    %5441 = vmatmul.f32.gmra.mxu0 %v5333
    %v5442 = vpop.f32.mrf.mxu0
    %v5443 = vadd.f32 0.0, %v5442
    %5444 = vmatmul.f32.gmra.mxu0 %v5363
    %v5445 = vpop.f32.mrf.mxu0
    %v5446 = vadd.f32 0.0, %v5445
    %5447 = vdwg.mxu0
    %5448 = vmatpush.xpose.msra.mxu0 0.0
    %5449 = vmatpush.xpose.msra.mxu0 0.0
    %5450 = vmatpush.xpose.msra.mxu0 0.0
    %5451 = vmatpush.xpose.msra.mxu0 0.0
    %5452 = vmatpush.xpose.msra.mxu0 0.0
    %5453 = vmatpush.xpose.msra.mxu0 0.0
    %5454 = vmatpush.xpose.msra.mxu0 0.0
    %5455 = vmatpush.xpose.msra.mxu0 0.0
    %5456 = vmatpush.xpose.msra.mxu0 0.0
    %5457 = vmatpush.xpose.msra.mxu0 0.0
    %5458 = vmatpush.xpose.msra.mxu0 0.0
    %5459 = vmatpush.xpose.msra.mxu0 0.0
    %5460 = vmatpush.xpose.msra.mxu0 0.0
    %5461 = vmatpush.xpose.msra.mxu0 0.0
    %5462 = vmatpush.xpose.msra.mxu0 %v5378
    %5463 = vmatpush.xpose.msra.mxu0 %v5348
    %5464 = vmatmul.f32.gmra.mxu0 %v5348
    %v5465 = vpop.f32.mrf.mxu0
    %v5466 = vadd.f32 %v5443, %v5465
    %5467 = vmatmul.f32.gmra.mxu0 %v5378
    %v5468 = vpop.f32.mrf.mxu0
    %v5469 = vadd.f32 %v5446, %v5468
    %5470 = vdwg.mxu0
    %v5471 = vmul.f32 %v5172, %v5420
    %v5472 = vmul.f32 %v5187, %v5423
    %v5474 = vsel %vm302, %v5466, 0
    %v5477 = vsel %vm302, %v5469, 0
    %5479 = vmatpush.msra.mxu0 0.0
    %5480 = vmatpush.msra.mxu0 0.0
    %5481 = vmatpush.msra.mxu0 0.0
    %5482 = vmatpush.msra.mxu0 0.0
    %5483 = vmatpush.msra.mxu0 0.0
    %5484 = vmatpush.msra.mxu0 0.0
    %5485 = vmatpush.msra.mxu0 0.0
    %5486 = vmatpush.msra.mxu0 0.0
    %5487 = vmatpush.msra.mxu0 0.0
    %5488 = vmatpush.msra.mxu0 0.0
    %5489 = vmatpush.msra.mxu0 0.0
    %5490 = vmatpush.msra.mxu0 0.0
    %5491 = vmatpush.msra.mxu0 0.0
    %5492 = vmatpush.msra.mxu0 0.0
    %5493 = vmatpush.msra.mxu0 %v5187
    %5494 = vmatpush.msra.mxu0 %v5172
    %5495 = vmatmul.f32.gmra.mxu0 %v5474
    %v5496 = vpop.f32.mrf.mxu0
    %v5497 = vadd.f32 1e-06, %v5496
    %5498 = vmatmul.f32.gmra.mxu0 %v5477
    %v5499 = vpop.f32.mrf.mxu0
    %v5500 = vadd.f32 1e-06, %v5499
    %5501 = vdwg.mxu0
    %v5502 = vrcp.pop %v5497
    %v5503 = vmul.f32 %v5497, %v5502
    %v5504 = vsub.f32 1.0, %v5503
    %v5505 = vmul.f32 %v5502, %v5504
    %v5506 = vadd.f32 %v5502, %v5505
    %vm5507 = vweird.f32 %v5497
    %vm5508 = vweird.f32 %v5502
    %vm5509 = vmor %vm5507, %vm5508
    %v5510 = vsel %vm5509, %v5502, %v5506
    %v5511 = vand.u32 2147483647, %v5497
    %vm5512 = vcmp.eq.f32.partialorder %v5511, 8.507059e+37
    %v5513 = vand.u32 %v5497, 2147483648
    %v5514 = vor.u32 1.1754944e-38, %v5513
    %v5515 = vsel %vm5512, %v5514, %v5510
    %v5516 = vmul.f32 %v5471, %v5515
    %v5517 = vrcp.pop %v5500
    %v5518 = vmul.f32 %v5500, %v5517
    %v5519 = vsub.f32 1.0, %v5518
    %v5520 = vmul.f32 %v5517, %v5519
    %v5521 = vadd.f32 %v5517, %v5520
    %vm5522 = vweird.f32 %v5500
    %vm5523 = vweird.f32 %v5517
    %vm5524 = vmor %vm5522, %vm5523
    %v5525 = vsel %vm5524, %v5517, %v5521
    %v5526 = vand.u32 2147483647, %v5500
    %vm5527 = vcmp.eq.f32.partialorder %v5526, 8.507059e+37
    %v5528 = vand.u32 %v5500, 2147483648
    %v5529 = vor.u32 1.1754944e-38, %v5528
    %v5530 = vsel %vm5527, %v5529, %v5525
    %v5531 = vmul.f32 %v5472, %v5530
    %v5533 = vsel %vm213, %v5516, 0
    %v5536 = vsel %vm213, %v5531, 0
    %5538 = vmatpush.msra.mxu0 0.0
    %5539 = vmatpush.msra.mxu0 0.0
    %5540 = vmatpush.msra.mxu0 0.0
    %5541 = vmatpush.msra.mxu0 0.0
    %5542 = vmatpush.msra.mxu0 0.0
    %5543 = vmatpush.msra.mxu0 0.0
    %5544 = vmatpush.msra.mxu0 0.0
    %5545 = vmatpush.msra.mxu0 0.0
    %5546 = vmatpush.msra.mxu0 %v1612
    %5547 = vmatpush.msra.mxu0 %v1608
    %5548 = vmatpush.msra.mxu0 %v1604
    %5549 = vmatpush.msra.mxu0 %v1600
    %5550 = vmatpush.msra.mxu0 %v1596
    %5551 = vmatpush.msra.mxu0 %v1592
    %5552 = vmatpush.msra.mxu0 %v1588
    %5553 = vmatpush.msra.mxu0 %v1584
    %5554 = vmatmul.f32.gmra.mxu0 %v5533
    %v5555 = vpop.f32.mrf.mxu0
    %v5556 = vadd.f32 0.0, %v5555
    %5557 = vmatmul.f32.gmra.mxu0 %v5536
    %v5558 = vpop.f32.mrf.mxu0
    %v5559 = vadd.f32 0.0, %v5558
    %5560 = vdwg.mxu0
    %5561 = vmatpush.msra.mxu0 0.0
    %5562 = vmatpush.msra.mxu0 0.0
    %5563 = vmatpush.msra.mxu0 0.0
    %5564 = vmatpush.msra.mxu0 0.0
    %5565 = vmatpush.msra.mxu0 0.0
    %5566 = vmatpush.msra.mxu0 0.0
    %5567 = vmatpush.msra.mxu0 0.0
    %5568 = vmatpush.msra.mxu0 0.0
    %5569 = vmatpush.msra.mxu0 %v1613
    %5570 = vmatpush.msra.mxu0 %v1609
    %5571 = vmatpush.msra.mxu0 %v1605
    %5572 = vmatpush.msra.mxu0 %v1601
    %5573 = vmatpush.msra.mxu0 %v1597
    %5574 = vmatpush.msra.mxu0 %v1593
    %5575 = vmatpush.msra.mxu0 %v1589
    %5576 = vmatpush.msra.mxu0 %v1585
    %5577 = vmatmul.f32.gmra.mxu0 %v5533
    %v5578 = vpop.f32.mrf.mxu0
    %v5579 = vadd.f32 0.0, %v5578
    %5580 = vmatmul.f32.gmra.mxu0 %v5536
    %v5581 = vpop.f32.mrf.mxu0
    %v5582 = vadd.f32 0.0, %v5581
    %5583 = vdwg.mxu0
    %5584 = vmatpush.xpose.msra.mxu0 0.0
    %5585 = vmatpush.xpose.msra.mxu0 0.0
    %5586 = vmatpush.xpose.msra.mxu0 0.0
    %5587 = vmatpush.xpose.msra.mxu0 0.0
    %5588 = vmatpush.xpose.msra.mxu0 0.0
    %5589 = vmatpush.xpose.msra.mxu0 0.0
    %5590 = vmatpush.xpose.msra.mxu0 0.0
    %5591 = vmatpush.xpose.msra.mxu0 0.0
    %5592 = vmatpush.xpose.msra.mxu0 0.0
    %5593 = vmatpush.xpose.msra.mxu0 0.0
    %5594 = vmatpush.xpose.msra.mxu0 0.0
    %5595 = vmatpush.xpose.msra.mxu0 0.0
    %5596 = vmatpush.xpose.msra.mxu0 0.0
    %5597 = vmatpush.xpose.msra.mxu0 0.0
    %5598 = vmatpush.xpose.msra.mxu0 %v5536
    %5599 = vmatpush.xpose.msra.mxu0 %v5533
    %5600 = vmatmul.f32.gmra.mxu0 %v5533
    %v5601 = vpop.f32.mrf.mxu0
    %v5602 = vadd.f32 0.0, %v5601
    %5603 = vmatmul.f32.gmra.mxu0 %v5536
    %v5604 = vpop.f32.mrf.mxu0
    %v5605 = vadd.f32 0.0, %v5604
    %5606 = vdwg.mxu0
    %v5607 = vmul.f32 %v5333, %v5556
    %v5608 = vmul.f32 %v5348, %v5579
    %v5609 = vmul.f32 %v5363, %v5559
    %v5610 = vmul.f32 %v5378, %v5582
    %v5612 = vsel %vm302, %v5602, 0
    %v5615 = vsel %vm302, %v5605, 0
    %5617 = vmatpush.msra.mxu0 0.0
    %5618 = vmatpush.msra.mxu0 0.0
    %5619 = vmatpush.msra.mxu0 0.0
    %5620 = vmatpush.msra.mxu0 0.0
    %5621 = vmatpush.msra.mxu0 0.0
    %5622 = vmatpush.msra.mxu0 0.0
    %5623 = vmatpush.msra.mxu0 0.0
    %5624 = vmatpush.msra.mxu0 0.0
    %5625 = vmatpush.msra.mxu0 0.0
    %5626 = vmatpush.msra.mxu0 0.0
    %5627 = vmatpush.msra.mxu0 0.0
    %5628 = vmatpush.msra.mxu0 0.0
    %5629 = vmatpush.msra.mxu0 0.0
    %5630 = vmatpush.msra.mxu0 0.0
    %5631 = vmatpush.msra.mxu0 %v5363
    %5632 = vmatpush.msra.mxu0 %v5333
    %5633 = vmatmul.f32.gmra.mxu0 %v5612
    %v5634 = vpop.f32.mrf.mxu0
    %v5635 = vadd.f32 1e-06, %v5634
    %5636 = vmatmul.f32.gmra.mxu0 %v5615
    %v5637 = vpop.f32.mrf.mxu0
    %v5638 = vadd.f32 1e-06, %v5637
    %5639 = vdwg.mxu0
    %5640 = vmatpush.msra.mxu0 0.0
    %5641 = vmatpush.msra.mxu0 0.0
    %5642 = vmatpush.msra.mxu0 0.0
    %5643 = vmatpush.msra.mxu0 0.0
    %5644 = vmatpush.msra.mxu0 0.0
    %5645 = vmatpush.msra.mxu0 0.0
    %5646 = vmatpush.msra.mxu0 0.0
    %5647 = vmatpush.msra.mxu0 0.0
    %5648 = vmatpush.msra.mxu0 0.0
    %5649 = vmatpush.msra.mxu0 0.0
    %5650 = vmatpush.msra.mxu0 0.0
    %5651 = vmatpush.msra.mxu0 0.0
    %5652 = vmatpush.msra.mxu0 0.0
    %5653 = vmatpush.msra.mxu0 0.0
    %5654 = vmatpush.msra.mxu0 %v5378
    %5655 = vmatpush.msra.mxu0 %v5348
    %5656 = vmatmul.f32.gmra.mxu0 %v5612
    %v5657 = vpop.f32.mrf.mxu0
    %v5658 = vadd.f32 1e-06, %v5657
    %5659 = vmatmul.f32.gmra.mxu0 %v5615
    %v5660 = vpop.f32.mrf.mxu0
    %v5661 = vadd.f32 1e-06, %v5660
    %5662 = vdwg.mxu0
    %v5663 = vrcp.pop %v5635
    %v5664 = vmul.f32 %v5635, %v5663
    %v5665 = vsub.f32 1.0, %v5664
    %v5666 = vmul.f32 %v5663, %v5665
    %v5667 = vadd.f32 %v5663, %v5666
    %vm5668 = vweird.f32 %v5635
    %vm5669 = vweird.f32 %v5663
    %vm5670 = vmor %vm5668, %vm5669
    %v5671 = vsel %vm5670, %v5663, %v5667
    %v5672 = vand.u32 2147483647, %v5635
    %vm5673 = vcmp.eq.f32.partialorder %v5672, 8.507059e+37
    %v5674 = vand.u32 %v5635, 2147483648
    %v5675 = vor.u32 1.1754944e-38, %v5674
    %v5676 = vsel %vm5673, %v5675, %v5671
    %v5677 = vmul.f32 %v5607, %v5676
    %v5678 = vrcp.pop %v5658
    %v5679 = vmul.f32 %v5658, %v5678
    %v5680 = vsub.f32 1.0, %v5679
    %v5681 = vmul.f32 %v5678, %v5680
    %v5682 = vadd.f32 %v5678, %v5681
    %vm5683 = vweird.f32 %v5658
    %vm5684 = vweird.f32 %v5678
    %vm5685 = vmor %vm5683, %vm5684
    %v5686 = vsel %vm5685, %v5678, %v5682
    %v5687 = vand.u32 2147483647, %v5658
    %vm5688 = vcmp.eq.f32.partialorder %v5687, 8.507059e+37
    %v5689 = vand.u32 %v5658, 2147483648
    %v5690 = vor.u32 1.1754944e-38, %v5689
    %v5691 = vsel %vm5688, %v5690, %v5686
    %v5692 = vmul.f32 %v5608, %v5691
    %v5693 = vrcp.pop %v5638
    %v5694 = vmul.f32 %v5638, %v5693
    %v5695 = vsub.f32 1.0, %v5694
    %v5696 = vmul.f32 %v5693, %v5695
    %v5697 = vadd.f32 %v5693, %v5696
    %vm5698 = vweird.f32 %v5638
    %vm5699 = vweird.f32 %v5693
    %vm5700 = vmor %vm5698, %vm5699
    %v5701 = vsel %vm5700, %v5693, %v5697
    %v5702 = vand.u32 2147483647, %v5638
    %vm5703 = vcmp.eq.f32.partialorder %v5702, 8.507059e+37
    %v5704 = vand.u32 %v5638, 2147483648
    %v5705 = vor.u32 1.1754944e-38, %v5704
    %v5706 = vsel %vm5703, %v5705, %v5701
    %v5707 = vmul.f32 %v5609, %v5706
    %v5708 = vrcp.pop %v5661
    %v5709 = vmul.f32 %v5661, %v5708
    %v5710 = vsub.f32 1.0, %v5709
    %v5711 = vmul.f32 %v5708, %v5710
    %v5712 = vadd.f32 %v5708, %v5711
    %vm5713 = vweird.f32 %v5661
    %vm5714 = vweird.f32 %v5708
    %vm5715 = vmor %vm5713, %vm5714
    %v5716 = vsel %vm5715, %v5708, %v5712
    %v5717 = vand.u32 2147483647, %v5661
    %vm5718 = vcmp.eq.f32.partialorder %v5717, 8.507059e+37
    %v5719 = vand.u32 %v5661, 2147483648
    %v5720 = vor.u32 1.1754944e-38, %v5719
    %v5721 = vsel %vm5718, %v5720, %v5716
    %v5722 = vmul.f32 %v5610, %v5721
    %5723 = vmatpush.xpose.msra.mxu0 0.0
    %5724 = vmatpush.xpose.msra.mxu0 0.0
    %5725 = vmatpush.xpose.msra.mxu0 0.0
    %5726 = vmatpush.xpose.msra.mxu0 0.0
    %5727 = vmatpush.xpose.msra.mxu0 0.0
    %5728 = vmatpush.xpose.msra.mxu0 0.0
    %5729 = vmatpush.xpose.msra.mxu0 0.0
    %5730 = vmatpush.xpose.msra.mxu0 0.0
    %5731 = vmatpush.xpose.msra.mxu0 %v1612
    %5732 = vmatpush.xpose.msra.mxu0 %v1608
    %5733 = vmatpush.xpose.msra.mxu0 %v1604
    %5734 = vmatpush.xpose.msra.mxu0 %v1600
    %5735 = vmatpush.xpose.msra.mxu0 %v1596
    %5736 = vmatpush.xpose.msra.mxu0 %v1592
    %5737 = vmatpush.xpose.msra.mxu0 %v1588
    %5738 = vmatpush.xpose.msra.mxu0 %v1584
    %5739 = vmatmul.f32.gmra.mxu0 %v5677
    %v5740 = vpop.f32.mrf.mxu0
    %v5741 = vadd.f32 0.0, %v5740
    %5742 = vmatmul.f32.gmra.mxu0 %v5707
    %v5743 = vpop.f32.mrf.mxu0
    %v5744 = vadd.f32 0.0, %v5743
    %5745 = vdwg.mxu0
    %5746 = vmatpush.xpose.msra.mxu0 0.0
    %5747 = vmatpush.xpose.msra.mxu0 0.0
    %5748 = vmatpush.xpose.msra.mxu0 0.0
    %5749 = vmatpush.xpose.msra.mxu0 0.0
    %5750 = vmatpush.xpose.msra.mxu0 0.0
    %5751 = vmatpush.xpose.msra.mxu0 0.0
    %5752 = vmatpush.xpose.msra.mxu0 0.0
    %5753 = vmatpush.xpose.msra.mxu0 0.0
    %5754 = vmatpush.xpose.msra.mxu0 %v1613
    %5755 = vmatpush.xpose.msra.mxu0 %v1609
    %5756 = vmatpush.xpose.msra.mxu0 %v1605
    %5757 = vmatpush.xpose.msra.mxu0 %v1601
    %5758 = vmatpush.xpose.msra.mxu0 %v1597
    %5759 = vmatpush.xpose.msra.mxu0 %v1593
    %5760 = vmatpush.xpose.msra.mxu0 %v1589
    %5761 = vmatpush.xpose.msra.mxu0 %v1585
    %5762 = vmatmul.f32.gmra.mxu0 %v5692
    %v5763 = vpop.f32.mrf.mxu0
    %v5764 = vadd.f32 %v5741, %v5763
    %5765 = vmatmul.f32.gmra.mxu0 %v5722
    %v5766 = vpop.f32.mrf.mxu0
    %v5767 = vadd.f32 %v5744, %v5766
    %5768 = vdwg.mxu0
    %5769 = vmatpush.xpose.msra.mxu0 0.0
    %5770 = vmatpush.xpose.msra.mxu0 0.0
    %5771 = vmatpush.xpose.msra.mxu0 0.0
    %5772 = vmatpush.xpose.msra.mxu0 0.0
    %5773 = vmatpush.xpose.msra.mxu0 0.0
    %5774 = vmatpush.xpose.msra.mxu0 0.0
    %5775 = vmatpush.xpose.msra.mxu0 0.0
    %5776 = vmatpush.xpose.msra.mxu0 0.0
    %5777 = vmatpush.xpose.msra.mxu0 0.0
    %5778 = vmatpush.xpose.msra.mxu0 0.0
    %5779 = vmatpush.xpose.msra.mxu0 0.0
    %5780 = vmatpush.xpose.msra.mxu0 0.0
    %5781 = vmatpush.xpose.msra.mxu0 0.0
    %5782 = vmatpush.xpose.msra.mxu0 0.0
    %5783 = vmatpush.xpose.msra.mxu0 %v5707
    %5784 = vmatpush.xpose.msra.mxu0 %v5677
    %5785 = vmatmul.f32.gmra.mxu0 %v5677
    %v5786 = vpop.f32.mrf.mxu0
    %v5787 = vadd.f32 0.0, %v5786
    %5788 = vmatmul.f32.gmra.mxu0 %v5707
    %v5789 = vpop.f32.mrf.mxu0
    %v5790 = vadd.f32 0.0, %v5789
    %5791 = vdwg.mxu0
    %5792 = vmatpush.xpose.msra.mxu0 0.0
    %5793 = vmatpush.xpose.msra.mxu0 0.0
    %5794 = vmatpush.xpose.msra.mxu0 0.0
    %5795 = vmatpush.xpose.msra.mxu0 0.0
    %5796 = vmatpush.xpose.msra.mxu0 0.0
    %5797 = vmatpush.xpose.msra.mxu0 0.0
    %5798 = vmatpush.xpose.msra.mxu0 0.0
    %5799 = vmatpush.xpose.msra.mxu0 0.0
    %5800 = vmatpush.xpose.msra.mxu0 0.0
    %5801 = vmatpush.xpose.msra.mxu0 0.0
    %5802 = vmatpush.xpose.msra.mxu0 0.0
    %5803 = vmatpush.xpose.msra.mxu0 0.0
    %5804 = vmatpush.xpose.msra.mxu0 0.0
    %5805 = vmatpush.xpose.msra.mxu0 0.0
    %5806 = vmatpush.xpose.msra.mxu0 %v5722
    %5807 = vmatpush.xpose.msra.mxu0 %v5692
    %5808 = vmatmul.f32.gmra.mxu0 %v5692
    %v5809 = vpop.f32.mrf.mxu0
    %v5810 = vadd.f32 %v5787, %v5809
    %5811 = vmatmul.f32.gmra.mxu0 %v5722
    %v5812 = vpop.f32.mrf.mxu0
    %v5813 = vadd.f32 %v5790, %v5812
    %5814 = vdwg.mxu0
    %v5815 = vmul.f32 %v5516, %v5764
    %v5816 = vmul.f32 %v5531, %v5767
    %v5818 = vsel %vm302, %v5810, 0
    %v5821 = vsel %vm302, %v5813, 0
    %5823 = vmatpush.msra.mxu0 0.0
    %5824 = vmatpush.msra.mxu0 0.0
    %5825 = vmatpush.msra.mxu0 0.0
    %5826 = vmatpush.msra.mxu0 0.0
    %5827 = vmatpush.msra.mxu0 0.0
    %5828 = vmatpush.msra.mxu0 0.0
    %5829 = vmatpush.msra.mxu0 0.0
    %5830 = vmatpush.msra.mxu0 0.0
    %5831 = vmatpush.msra.mxu0 0.0
    %5832 = vmatpush.msra.mxu0 0.0
    %5833 = vmatpush.msra.mxu0 0.0
    %5834 = vmatpush.msra.mxu0 0.0
    %5835 = vmatpush.msra.mxu0 0.0
    %5836 = vmatpush.msra.mxu0 0.0
    %5837 = vmatpush.msra.mxu0 %v5531
    %5838 = vmatpush.msra.mxu0 %v5516
    %5839 = vmatmul.f32.gmra.mxu0 %v5818
    %v5840 = vpop.f32.mrf.mxu0
    %v5841 = vadd.f32 1e-06, %v5840
    %5842 = vmatmul.f32.gmra.mxu0 %v5821
    %v5843 = vpop.f32.mrf.mxu0
    %v5844 = vadd.f32 1e-06, %v5843
    %5845 = vdwg.mxu0
    %v5846 = vrcp.pop %v5841
    %v5847 = vmul.f32 %v5841, %v5846
    %v5848 = vsub.f32 1.0, %v5847
    %v5849 = vmul.f32 %v5846, %v5848
    %v5850 = vadd.f32 %v5846, %v5849
    %vm5851 = vweird.f32 %v5841
    %vm5852 = vweird.f32 %v5846
    %vm5853 = vmor %vm5851, %vm5852
    %v5854 = vsel %vm5853, %v5846, %v5850
    %v5855 = vand.u32 2147483647, %v5841
    %vm5856 = vcmp.eq.f32.partialorder %v5855, 8.507059e+37
    %v5857 = vand.u32 %v5841, 2147483648
    %v5858 = vor.u32 1.1754944e-38, %v5857
    %v5859 = vsel %vm5856, %v5858, %v5854
    %v5860 = vmul.f32 %v5815, %v5859
    %v5861 = vrcp.pop %v5844
    %v5862 = vmul.f32 %v5844, %v5861
    %v5863 = vsub.f32 1.0, %v5862
    %v5864 = vmul.f32 %v5861, %v5863
    %v5865 = vadd.f32 %v5861, %v5864
    %vm5866 = vweird.f32 %v5844
    %vm5867 = vweird.f32 %v5861
    %vm5868 = vmor %vm5866, %vm5867
    %v5869 = vsel %vm5868, %v5861, %v5865
    %v5870 = vand.u32 2147483647, %v5844
    %vm5871 = vcmp.eq.f32.partialorder %v5870, 8.507059e+37
    %v5872 = vand.u32 %v5844, 2147483648
    %v5873 = vor.u32 1.1754944e-38, %v5872
    %v5874 = vsel %vm5871, %v5873, %v5869
    %v5875 = vmul.f32 %v5816, %v5874
    %v5877 = vsel %vm213, %v5860, 0
    %v5880 = vsel %vm213, %v5875, 0
    %5882 = vmatpush.msra.mxu0 0.0
    %5883 = vmatpush.msra.mxu0 0.0
    %5884 = vmatpush.msra.mxu0 0.0
    %5885 = vmatpush.msra.mxu0 0.0
    %5886 = vmatpush.msra.mxu0 0.0
    %5887 = vmatpush.msra.mxu0 0.0
    %5888 = vmatpush.msra.mxu0 0.0
    %5889 = vmatpush.msra.mxu0 0.0
    %5890 = vmatpush.msra.mxu0 %v1612
    %5891 = vmatpush.msra.mxu0 %v1608
    %5892 = vmatpush.msra.mxu0 %v1604
    %5893 = vmatpush.msra.mxu0 %v1600
    %5894 = vmatpush.msra.mxu0 %v1596
    %5895 = vmatpush.msra.mxu0 %v1592
    %5896 = vmatpush.msra.mxu0 %v1588
    %5897 = vmatpush.msra.mxu0 %v1584
    %5898 = vmatmul.f32.gmra.mxu0 %v5877
    %v5899 = vpop.f32.mrf.mxu0
    %v5900 = vadd.f32 0.0, %v5899
    %5901 = vmatmul.f32.gmra.mxu0 %v5880
    %v5902 = vpop.f32.mrf.mxu0
    %v5903 = vadd.f32 0.0, %v5902
    %5904 = vdwg.mxu0
    %5905 = vmatpush.msra.mxu0 0.0
    %5906 = vmatpush.msra.mxu0 0.0
    %5907 = vmatpush.msra.mxu0 0.0
    %5908 = vmatpush.msra.mxu0 0.0
    %5909 = vmatpush.msra.mxu0 0.0
    %5910 = vmatpush.msra.mxu0 0.0
    %5911 = vmatpush.msra.mxu0 0.0
    %5912 = vmatpush.msra.mxu0 0.0
    %5913 = vmatpush.msra.mxu0 %v1613
    %5914 = vmatpush.msra.mxu0 %v1609
    %5915 = vmatpush.msra.mxu0 %v1605
    %5916 = vmatpush.msra.mxu0 %v1601
    %5917 = vmatpush.msra.mxu0 %v1597
    %5918 = vmatpush.msra.mxu0 %v1593
    %5919 = vmatpush.msra.mxu0 %v1589
    %5920 = vmatpush.msra.mxu0 %v1585
    %5921 = vmatmul.f32.gmra.mxu0 %v5877
    %v5922 = vpop.f32.mrf.mxu0
    %v5923 = vadd.f32 0.0, %v5922
    %5924 = vmatmul.f32.gmra.mxu0 %v5880
    %v5925 = vpop.f32.mrf.mxu0
    %v5926 = vadd.f32 0.0, %v5925
    %5927 = vdwg.mxu0
    %5928 = vmatpush.xpose.msra.mxu0 0.0
    %5929 = vmatpush.xpose.msra.mxu0 0.0
    %5930 = vmatpush.xpose.msra.mxu0 0.0
    %5931 = vmatpush.xpose.msra.mxu0 0.0
    %5932 = vmatpush.xpose.msra.mxu0 0.0
    %5933 = vmatpush.xpose.msra.mxu0 0.0
    %5934 = vmatpush.xpose.msra.mxu0 0.0
    %5935 = vmatpush.xpose.msra.mxu0 0.0
    %5936 = vmatpush.xpose.msra.mxu0 0.0
    %5937 = vmatpush.xpose.msra.mxu0 0.0
    %5938 = vmatpush.xpose.msra.mxu0 0.0
    %5939 = vmatpush.xpose.msra.mxu0 0.0
    %5940 = vmatpush.xpose.msra.mxu0 0.0
    %5941 = vmatpush.xpose.msra.mxu0 0.0
    %5942 = vmatpush.xpose.msra.mxu0 %v5880
    %5943 = vmatpush.xpose.msra.mxu0 %v5877
    %5944 = vmatmul.f32.gmra.mxu0 %v5877
    %v5945 = vpop.f32.mrf.mxu0
    %v5946 = vadd.f32 0.0, %v5945
    %5947 = vmatmul.f32.gmra.mxu0 %v5880
    %v5948 = vpop.f32.mrf.mxu0
    %v5949 = vadd.f32 0.0, %v5948
    %5950 = vdwg.mxu0
    %v5951 = vmul.f32 %v5677, %v5900
    %v5952 = vmul.f32 %v5692, %v5923
    %v5953 = vmul.f32 %v5707, %v5903
    %v5954 = vmul.f32 %v5722, %v5926
    %v5956 = vsel %vm302, %v5946, 0
    %v5959 = vsel %vm302, %v5949, 0
    %5961 = vmatpush.msra.mxu0 0.0
    %5962 = vmatpush.msra.mxu0 0.0
    %5963 = vmatpush.msra.mxu0 0.0
    %5964 = vmatpush.msra.mxu0 0.0
    %5965 = vmatpush.msra.mxu0 0.0
    %5966 = vmatpush.msra.mxu0 0.0
    %5967 = vmatpush.msra.mxu0 0.0
    %5968 = vmatpush.msra.mxu0 0.0
    %5969 = vmatpush.msra.mxu0 0.0
    %5970 = vmatpush.msra.mxu0 0.0
    %5971 = vmatpush.msra.mxu0 0.0
    %5972 = vmatpush.msra.mxu0 0.0
    %5973 = vmatpush.msra.mxu0 0.0
    %5974 = vmatpush.msra.mxu0 0.0
    %5975 = vmatpush.msra.mxu0 %v5707
    %5976 = vmatpush.msra.mxu0 %v5677
    %5977 = vmatmul.f32.gmra.mxu0 %v5956
    %v5978 = vpop.f32.mrf.mxu0
    %v5979 = vadd.f32 1e-06, %v5978
    %5980 = vmatmul.f32.gmra.mxu0 %v5959
    %v5981 = vpop.f32.mrf.mxu0
    %v5982 = vadd.f32 1e-06, %v5981
    %5983 = vdwg.mxu0
    %5984 = vmatpush.msra.mxu0 0.0
    %5985 = vmatpush.msra.mxu0 0.0
    %5986 = vmatpush.msra.mxu0 0.0
    %5987 = vmatpush.msra.mxu0 0.0
    %5988 = vmatpush.msra.mxu0 0.0
    %5989 = vmatpush.msra.mxu0 0.0
    %5990 = vmatpush.msra.mxu0 0.0
    %5991 = vmatpush.msra.mxu0 0.0
    %5992 = vmatpush.msra.mxu0 0.0
    %5993 = vmatpush.msra.mxu0 0.0
    %5994 = vmatpush.msra.mxu0 0.0
    %5995 = vmatpush.msra.mxu0 0.0
    %5996 = vmatpush.msra.mxu0 0.0
    %5997 = vmatpush.msra.mxu0 0.0
    %5998 = vmatpush.msra.mxu0 %v5722
    %5999 = vmatpush.msra.mxu0 %v5692
    %6000 = vmatmul.f32.gmra.mxu0 %v5956
    %v6001 = vpop.f32.mrf.mxu0
    %v6002 = vadd.f32 1e-06, %v6001
    %6003 = vmatmul.f32.gmra.mxu0 %v5959
    %v6004 = vpop.f32.mrf.mxu0
    %v6005 = vadd.f32 1e-06, %v6004
    %6006 = vdwg.mxu0
    %v6007 = vrcp.pop %v5979
    %v6008 = vmul.f32 %v5979, %v6007
    %v6009 = vsub.f32 1.0, %v6008
    %v6010 = vmul.f32 %v6007, %v6009
    %v6011 = vadd.f32 %v6007, %v6010
    %vm6012 = vweird.f32 %v5979
    %vm6013 = vweird.f32 %v6007
    %vm6014 = vmor %vm6012, %vm6013
    %v6015 = vsel %vm6014, %v6007, %v6011
    %v6016 = vand.u32 2147483647, %v5979
    %vm6017 = vcmp.eq.f32.partialorder %v6016, 8.507059e+37
    %v6018 = vand.u32 %v5979, 2147483648
    %v6019 = vor.u32 1.1754944e-38, %v6018
    %v6020 = vsel %vm6017, %v6019, %v6015
    %v6021 = vmul.f32 %v5951, %v6020
    %v6022 = vrcp.pop %v6002
    %v6023 = vmul.f32 %v6002, %v6022
    %v6024 = vsub.f32 1.0, %v6023
    %v6025 = vmul.f32 %v6022, %v6024
    %v6026 = vadd.f32 %v6022, %v6025
    %vm6027 = vweird.f32 %v6002
    %vm6028 = vweird.f32 %v6022
    %vm6029 = vmor %vm6027, %vm6028
    %v6030 = vsel %vm6029, %v6022, %v6026
    %v6031 = vand.u32 2147483647, %v6002
    %vm6032 = vcmp.eq.f32.partialorder %v6031, 8.507059e+37
    %v6033 = vand.u32 %v6002, 2147483648
    %v6034 = vor.u32 1.1754944e-38, %v6033
    %v6035 = vsel %vm6032, %v6034, %v6030
    %v6036 = vmul.f32 %v5952, %v6035
    %v6037 = vrcp.pop %v5982
    %v6038 = vmul.f32 %v5982, %v6037
    %v6039 = vsub.f32 1.0, %v6038
    %v6040 = vmul.f32 %v6037, %v6039
    %v6041 = vadd.f32 %v6037, %v6040
    %vm6042 = vweird.f32 %v5982
    %vm6043 = vweird.f32 %v6037
    %vm6044 = vmor %vm6042, %vm6043
    %v6045 = vsel %vm6044, %v6037, %v6041
    %v6046 = vand.u32 2147483647, %v5982
    %vm6047 = vcmp.eq.f32.partialorder %v6046, 8.507059e+37
    %v6048 = vand.u32 %v5982, 2147483648
    %v6049 = vor.u32 1.1754944e-38, %v6048
    %v6050 = vsel %vm6047, %v6049, %v6045
    %v6051 = vmul.f32 %v5953, %v6050
    %v6052 = vrcp.pop %v6005
    %v6053 = vmul.f32 %v6005, %v6052
    %v6054 = vsub.f32 1.0, %v6053
    %v6055 = vmul.f32 %v6052, %v6054
    %v6056 = vadd.f32 %v6052, %v6055
    %vm6057 = vweird.f32 %v6005
    %vm6058 = vweird.f32 %v6052
    %vm6059 = vmor %vm6057, %vm6058
    %v6060 = vsel %vm6059, %v6052, %v6056
    %v6061 = vand.u32 2147483647, %v6005
    %vm6062 = vcmp.eq.f32.partialorder %v6061, 8.507059e+37
    %v6063 = vand.u32 %v6005, 2147483648
    %v6064 = vor.u32 1.1754944e-38, %v6063
    %v6065 = vsel %vm6062, %v6064, %v6060
    %v6066 = vmul.f32 %v5954, %v6065
    %6067 = vmatpush.xpose.msra.mxu0 0.0
    %6068 = vmatpush.xpose.msra.mxu0 0.0
    %6069 = vmatpush.xpose.msra.mxu0 0.0
    %6070 = vmatpush.xpose.msra.mxu0 0.0
    %6071 = vmatpush.xpose.msra.mxu0 0.0
    %6072 = vmatpush.xpose.msra.mxu0 0.0
    %6073 = vmatpush.xpose.msra.mxu0 0.0
    %6074 = vmatpush.xpose.msra.mxu0 0.0
    %6075 = vmatpush.xpose.msra.mxu0 %v1612
    %6076 = vmatpush.xpose.msra.mxu0 %v1608
    %6077 = vmatpush.xpose.msra.mxu0 %v1604
    %6078 = vmatpush.xpose.msra.mxu0 %v1600
    %6079 = vmatpush.xpose.msra.mxu0 %v1596
    %6080 = vmatpush.xpose.msra.mxu0 %v1592
    %6081 = vmatpush.xpose.msra.mxu0 %v1588
    %6082 = vmatpush.xpose.msra.mxu0 %v1584
    %6083 = vmatmul.f32.gmra.mxu0 %v6021
    %v6084 = vpop.f32.mrf.mxu0
    %v6085 = vadd.f32 0.0, %v6084
    %6086 = vmatmul.f32.gmra.mxu0 %v6051
    %v6087 = vpop.f32.mrf.mxu0
    %v6088 = vadd.f32 0.0, %v6087
    %6089 = vdwg.mxu0
    %6090 = vmatpush.xpose.msra.mxu0 0.0
    %6091 = vmatpush.xpose.msra.mxu0 0.0
    %6092 = vmatpush.xpose.msra.mxu0 0.0
    %6093 = vmatpush.xpose.msra.mxu0 0.0
    %6094 = vmatpush.xpose.msra.mxu0 0.0
    %6095 = vmatpush.xpose.msra.mxu0 0.0
    %6096 = vmatpush.xpose.msra.mxu0 0.0
    %6097 = vmatpush.xpose.msra.mxu0 0.0
    %6098 = vmatpush.xpose.msra.mxu0 %v1613
    %6099 = vmatpush.xpose.msra.mxu0 %v1609
    %6100 = vmatpush.xpose.msra.mxu0 %v1605
    %6101 = vmatpush.xpose.msra.mxu0 %v1601
    %6102 = vmatpush.xpose.msra.mxu0 %v1597
    %6103 = vmatpush.xpose.msra.mxu0 %v1593
    %6104 = vmatpush.xpose.msra.mxu0 %v1589
    %6105 = vmatpush.xpose.msra.mxu0 %v1585
    %6106 = vmatmul.f32.gmra.mxu0 %v6036
    %v6107 = vpop.f32.mrf.mxu0
    %v6108 = vadd.f32 %v6085, %v6107
    %6109 = vmatmul.f32.gmra.mxu0 %v6066
    %v6110 = vpop.f32.mrf.mxu0
    %v6111 = vadd.f32 %v6088, %v6110
    %6112 = vdwg.mxu0
    %6113 = vmatpush.xpose.msra.mxu0 0.0
    %6114 = vmatpush.xpose.msra.mxu0 0.0
    %6115 = vmatpush.xpose.msra.mxu0 0.0
    %6116 = vmatpush.xpose.msra.mxu0 0.0
    %6117 = vmatpush.xpose.msra.mxu0 0.0
    %6118 = vmatpush.xpose.msra.mxu0 0.0
    %6119 = vmatpush.xpose.msra.mxu0 0.0
    %6120 = vmatpush.xpose.msra.mxu0 0.0
    %6121 = vmatpush.xpose.msra.mxu0 0.0
    %6122 = vmatpush.xpose.msra.mxu0 0.0
    %6123 = vmatpush.xpose.msra.mxu0 0.0
    %6124 = vmatpush.xpose.msra.mxu0 0.0
    %6125 = vmatpush.xpose.msra.mxu0 0.0
    %6126 = vmatpush.xpose.msra.mxu0 0.0
    %6127 = vmatpush.xpose.msra.mxu0 %v6051
    %6128 = vmatpush.xpose.msra.mxu0 %v6021
    %6129 = vmatmul.f32.gmra.mxu0 %v6021
    %v6130 = vpop.f32.mrf.mxu0
    %v6131 = vadd.f32 0.0, %v6130
    %6132 = vmatmul.f32.gmra.mxu0 %v6051
    %v6133 = vpop.f32.mrf.mxu0
    %v6134 = vadd.f32 0.0, %v6133
    %6135 = vdwg.mxu0
    %6136 = vmatpush.xpose.msra.mxu0 0.0
    %6137 = vmatpush.xpose.msra.mxu0 0.0
    %6138 = vmatpush.xpose.msra.mxu0 0.0
    %6139 = vmatpush.xpose.msra.mxu0 0.0
    %6140 = vmatpush.xpose.msra.mxu0 0.0
    %6141 = vmatpush.xpose.msra.mxu0 0.0
    %6142 = vmatpush.xpose.msra.mxu0 0.0
    %6143 = vmatpush.xpose.msra.mxu0 0.0
    %6144 = vmatpush.xpose.msra.mxu0 0.0
    %6145 = vmatpush.xpose.msra.mxu0 0.0
    %6146 = vmatpush.xpose.msra.mxu0 0.0
    %6147 = vmatpush.xpose.msra.mxu0 0.0
    %6148 = vmatpush.xpose.msra.mxu0 0.0
    %6149 = vmatpush.xpose.msra.mxu0 0.0
    %6150 = vmatpush.xpose.msra.mxu0 %v6066
    %6151 = vmatpush.xpose.msra.mxu0 %v6036
    %6152 = vmatmul.f32.gmra.mxu0 %v6036
    %v6153 = vpop.f32.mrf.mxu0
    %v6154 = vadd.f32 %v6131, %v6153
    %6155 = vmatmul.f32.gmra.mxu0 %v6066
    %v6156 = vpop.f32.mrf.mxu0
    %v6157 = vadd.f32 %v6134, %v6156
    %6158 = vdwg.mxu0
    %v6159 = vmul.f32 %v5860, %v6108
    %v6160 = vmul.f32 %v5875, %v6111
    %v6162 = vsel %vm302, %v6154, 0
    %v6165 = vsel %vm302, %v6157, 0
    %6167 = vmatpush.msra.mxu0 0.0
    %6168 = vmatpush.msra.mxu0 0.0
    %6169 = vmatpush.msra.mxu0 0.0
    %6170 = vmatpush.msra.mxu0 0.0
    %6171 = vmatpush.msra.mxu0 0.0
    %6172 = vmatpush.msra.mxu0 0.0
    %6173 = vmatpush.msra.mxu0 0.0
    %6174 = vmatpush.msra.mxu0 0.0
    %6175 = vmatpush.msra.mxu0 0.0
    %6176 = vmatpush.msra.mxu0 0.0
    %6177 = vmatpush.msra.mxu0 0.0
    %6178 = vmatpush.msra.mxu0 0.0
    %6179 = vmatpush.msra.mxu0 0.0
    %6180 = vmatpush.msra.mxu0 0.0
    %6181 = vmatpush.msra.mxu0 %v5875
    %6182 = vmatpush.msra.mxu0 %v5860
    %6183 = vmatmul.f32.gmra.mxu0 %v6162
    %v6184 = vpop.f32.mrf.mxu0
    %v6185 = vadd.f32 1e-06, %v6184
    %6186 = vmatmul.f32.gmra.mxu0 %v6165
    %v6187 = vpop.f32.mrf.mxu0
    %v6188 = vadd.f32 1e-06, %v6187
    %6189 = vdwg.mxu0
    %v6190 = vrcp.pop %v6185
    %v6191 = vmul.f32 %v6185, %v6190
    %v6192 = vsub.f32 1.0, %v6191
    %v6193 = vmul.f32 %v6190, %v6192
    %v6194 = vadd.f32 %v6190, %v6193
    %vm6195 = vweird.f32 %v6185
    %vm6196 = vweird.f32 %v6190
    %vm6197 = vmor %vm6195, %vm6196
    %v6198 = vsel %vm6197, %v6190, %v6194
    %v6199 = vand.u32 2147483647, %v6185
    %vm6200 = vcmp.eq.f32.partialorder %v6199, 8.507059e+37
    %v6201 = vand.u32 %v6185, 2147483648
    %v6202 = vor.u32 1.1754944e-38, %v6201
    %v6203 = vsel %vm6200, %v6202, %v6198
    %v6204 = vmul.f32 %v6159, %v6203
    %v6205 = vrcp.pop %v6188
    %v6206 = vmul.f32 %v6188, %v6205
    %v6207 = vsub.f32 1.0, %v6206
    %v6208 = vmul.f32 %v6205, %v6207
    %v6209 = vadd.f32 %v6205, %v6208
    %vm6210 = vweird.f32 %v6188
    %vm6211 = vweird.f32 %v6205
    %vm6212 = vmor %vm6210, %vm6211
    %v6213 = vsel %vm6212, %v6205, %v6209
    %v6214 = vand.u32 2147483647, %v6188
    %vm6215 = vcmp.eq.f32.partialorder %v6214, 8.507059e+37
    %v6216 = vand.u32 %v6188, 2147483648
    %v6217 = vor.u32 1.1754944e-38, %v6216
    %v6218 = vsel %vm6215, %v6217, %v6213
    %v6219 = vmul.f32 %v6160, %v6218
    %v6221 = vsel %vm213, %v6204, 0
    %v6224 = vsel %vm213, %v6219, 0
    %6226 = vmatpush.msra.mxu0 0.0
    %6227 = vmatpush.msra.mxu0 0.0
    %6228 = vmatpush.msra.mxu0 0.0
    %6229 = vmatpush.msra.mxu0 0.0
    %6230 = vmatpush.msra.mxu0 0.0
    %6231 = vmatpush.msra.mxu0 0.0
    %6232 = vmatpush.msra.mxu0 0.0
    %6233 = vmatpush.msra.mxu0 0.0
    %6234 = vmatpush.msra.mxu0 %v1612
    %6235 = vmatpush.msra.mxu0 %v1608
    %6236 = vmatpush.msra.mxu0 %v1604
    %6237 = vmatpush.msra.mxu0 %v1600
    %6238 = vmatpush.msra.mxu0 %v1596
    %6239 = vmatpush.msra.mxu0 %v1592
    %6240 = vmatpush.msra.mxu0 %v1588
    %6241 = vmatpush.msra.mxu0 %v1584
    %6242 = vmatmul.f32.gmra.mxu0 %v6221
    %v6243 = vpop.f32.mrf.mxu0
    %v6244 = vadd.f32 0.0, %v6243
    %6245 = vmatmul.f32.gmra.mxu0 %v6224
    %v6246 = vpop.f32.mrf.mxu0
    %v6247 = vadd.f32 0.0, %v6246
    %6248 = vdwg.mxu0
    %6249 = vmatpush.msra.mxu0 0.0
    %6250 = vmatpush.msra.mxu0 0.0
    %6251 = vmatpush.msra.mxu0 0.0
    %6252 = vmatpush.msra.mxu0 0.0
    %6253 = vmatpush.msra.mxu0 0.0
    %6254 = vmatpush.msra.mxu0 0.0
    %6255 = vmatpush.msra.mxu0 0.0
    %6256 = vmatpush.msra.mxu0 0.0
    %6257 = vmatpush.msra.mxu0 %v1613
    %6258 = vmatpush.msra.mxu0 %v1609
    %6259 = vmatpush.msra.mxu0 %v1605
    %6260 = vmatpush.msra.mxu0 %v1601
    %6261 = vmatpush.msra.mxu0 %v1597
    %6262 = vmatpush.msra.mxu0 %v1593
    %6263 = vmatpush.msra.mxu0 %v1589
    %6264 = vmatpush.msra.mxu0 %v1585
    %6265 = vmatmul.f32.gmra.mxu0 %v6221
    %v6266 = vpop.f32.mrf.mxu0
    %v6267 = vadd.f32 0.0, %v6266
    %6268 = vmatmul.f32.gmra.mxu0 %v6224
    %v6269 = vpop.f32.mrf.mxu0
    %v6270 = vadd.f32 0.0, %v6269
    %6271 = vdwg.mxu0
    %6272 = vmatpush.xpose.msra.mxu0 0.0
    %6273 = vmatpush.xpose.msra.mxu0 0.0
    %6274 = vmatpush.xpose.msra.mxu0 0.0
    %6275 = vmatpush.xpose.msra.mxu0 0.0
    %6276 = vmatpush.xpose.msra.mxu0 0.0
    %6277 = vmatpush.xpose.msra.mxu0 0.0
    %6278 = vmatpush.xpose.msra.mxu0 0.0
    %6279 = vmatpush.xpose.msra.mxu0 0.0
    %6280 = vmatpush.xpose.msra.mxu0 0.0
    %6281 = vmatpush.xpose.msra.mxu0 0.0
    %6282 = vmatpush.xpose.msra.mxu0 0.0
    %6283 = vmatpush.xpose.msra.mxu0 0.0
    %6284 = vmatpush.xpose.msra.mxu0 0.0
    %6285 = vmatpush.xpose.msra.mxu0 0.0
    %6286 = vmatpush.xpose.msra.mxu0 %v6224
    %6287 = vmatpush.xpose.msra.mxu0 %v6221
    %6288 = vmatmul.f32.gmra.mxu0 %v6221
    %v6289 = vpop.f32.mrf.mxu0
    %v6290 = vadd.f32 0.0, %v6289
    %6291 = vmatmul.f32.gmra.mxu0 %v6224
    %v6292 = vpop.f32.mrf.mxu0
    %v6293 = vadd.f32 0.0, %v6292
    %6294 = vdwg.mxu0
    %v6295 = vmul.f32 %v6021, %v6244
    %v6296 = vmul.f32 %v6036, %v6267
    %v6297 = vmul.f32 %v6051, %v6247
    %v6298 = vmul.f32 %v6066, %v6270
    %v6300 = vsel %vm302, %v6290, 0
    %v6303 = vsel %vm302, %v6293, 0
    %6305 = vmatpush.msra.mxu0 0.0
    %6306 = vmatpush.msra.mxu0 0.0
    %6307 = vmatpush.msra.mxu0 0.0
    %6308 = vmatpush.msra.mxu0 0.0
    %6309 = vmatpush.msra.mxu0 0.0
    %6310 = vmatpush.msra.mxu0 0.0
    %6311 = vmatpush.msra.mxu0 0.0
    %6312 = vmatpush.msra.mxu0 0.0
    %6313 = vmatpush.msra.mxu0 0.0
    %6314 = vmatpush.msra.mxu0 0.0
    %6315 = vmatpush.msra.mxu0 0.0
    %6316 = vmatpush.msra.mxu0 0.0
    %6317 = vmatpush.msra.mxu0 0.0
    %6318 = vmatpush.msra.mxu0 0.0
    %6319 = vmatpush.msra.mxu0 %v6051
    %6320 = vmatpush.msra.mxu0 %v6021
    %6321 = vmatmul.f32.gmra.mxu0 %v6300
    %v6322 = vpop.f32.mrf.mxu0
    %v6323 = vadd.f32 1e-06, %v6322
    %6324 = vmatmul.f32.gmra.mxu0 %v6303
    %v6325 = vpop.f32.mrf.mxu0
    %v6326 = vadd.f32 1e-06, %v6325
    %6327 = vdwg.mxu0
    %6328 = vmatpush.msra.mxu0 0.0
    %6329 = vmatpush.msra.mxu0 0.0
    %6330 = vmatpush.msra.mxu0 0.0
    %6331 = vmatpush.msra.mxu0 0.0
    %6332 = vmatpush.msra.mxu0 0.0
    %6333 = vmatpush.msra.mxu0 0.0
    %6334 = vmatpush.msra.mxu0 0.0
    %6335 = vmatpush.msra.mxu0 0.0
    %6336 = vmatpush.msra.mxu0 0.0
    %6337 = vmatpush.msra.mxu0 0.0
    %6338 = vmatpush.msra.mxu0 0.0
    %6339 = vmatpush.msra.mxu0 0.0
    %6340 = vmatpush.msra.mxu0 0.0
    %6341 = vmatpush.msra.mxu0 0.0
    %6342 = vmatpush.msra.mxu0 %v6066
    %6343 = vmatpush.msra.mxu0 %v6036
    %6344 = vmatmul.f32.gmra.mxu0 %v6300
    %v6345 = vpop.f32.mrf.mxu0
    %v6346 = vadd.f32 1e-06, %v6345
    %6347 = vmatmul.f32.gmra.mxu0 %v6303
    %v6348 = vpop.f32.mrf.mxu0
    %v6349 = vadd.f32 1e-06, %v6348
    %6350 = vdwg.mxu0
    %v6351 = vrcp.pop %v6323
    %v6352 = vmul.f32 %v6323, %v6351
    %v6353 = vsub.f32 1.0, %v6352
    %v6354 = vmul.f32 %v6351, %v6353
    %v6355 = vadd.f32 %v6351, %v6354
    %vm6356 = vweird.f32 %v6323
    %vm6357 = vweird.f32 %v6351
    %vm6358 = vmor %vm6356, %vm6357
    %v6359 = vsel %vm6358, %v6351, %v6355
    %v6360 = vand.u32 2147483647, %v6323
    %vm6361 = vcmp.eq.f32.partialorder %v6360, 8.507059e+37
    %v6362 = vand.u32 %v6323, 2147483648
    %v6363 = vor.u32 1.1754944e-38, %v6362
    %v6364 = vsel %vm6361, %v6363, %v6359
    %v6365 = vmul.f32 %v6295, %v6364
    %v6366 = vrcp.pop %v6346
    %v6367 = vmul.f32 %v6346, %v6366
    %v6368 = vsub.f32 1.0, %v6367
    %v6369 = vmul.f32 %v6366, %v6368
    %v6370 = vadd.f32 %v6366, %v6369
    %vm6371 = vweird.f32 %v6346
    %vm6372 = vweird.f32 %v6366
    %vm6373 = vmor %vm6371, %vm6372
    %v6374 = vsel %vm6373, %v6366, %v6370
    %v6375 = vand.u32 2147483647, %v6346
    %vm6376 = vcmp.eq.f32.partialorder %v6375, 8.507059e+37
    %v6377 = vand.u32 %v6346, 2147483648
    %v6378 = vor.u32 1.1754944e-38, %v6377
    %v6379 = vsel %vm6376, %v6378, %v6374
    %v6380 = vmul.f32 %v6296, %v6379
    %v6381 = vrcp.pop %v6326
    %v6382 = vmul.f32 %v6326, %v6381
    %v6383 = vsub.f32 1.0, %v6382
    %v6384 = vmul.f32 %v6381, %v6383
    %v6385 = vadd.f32 %v6381, %v6384
    %vm6386 = vweird.f32 %v6326
    %vm6387 = vweird.f32 %v6381
    %vm6388 = vmor %vm6386, %vm6387
    %v6389 = vsel %vm6388, %v6381, %v6385
    %v6390 = vand.u32 2147483647, %v6326
    %vm6391 = vcmp.eq.f32.partialorder %v6390, 8.507059e+37
    %v6392 = vand.u32 %v6326, 2147483648
    %v6393 = vor.u32 1.1754944e-38, %v6392
    %v6394 = vsel %vm6391, %v6393, %v6389
    %v6395 = vmul.f32 %v6297, %v6394
    %v6396 = vrcp.pop %v6349
    %v6397 = vmul.f32 %v6349, %v6396
    %v6398 = vsub.f32 1.0, %v6397
    %v6399 = vmul.f32 %v6396, %v6398
    %v6400 = vadd.f32 %v6396, %v6399
    %vm6401 = vweird.f32 %v6349
    %vm6402 = vweird.f32 %v6396
    %vm6403 = vmor %vm6401, %vm6402
    %v6404 = vsel %vm6403, %v6396, %v6400
    %v6405 = vand.u32 2147483647, %v6349
    %vm6406 = vcmp.eq.f32.partialorder %v6405, 8.507059e+37
    %v6407 = vand.u32 %v6349, 2147483648
    %v6408 = vor.u32 1.1754944e-38, %v6407
    %v6409 = vsel %vm6406, %v6408, %v6404
    %v6410 = vmul.f32 %v6298, %v6409
    %6411 = vxpose.xlu0.b32.start [1/16] %v6204, 128
    %6412 = vxpose.xlu0.b32.cont [2/16] %v6219, 128
    %6413 = vxpose.xlu0.b32.cont [3/16] 0.0, 128
    %6414 = vxpose.xlu0.b32.cont [4/16] 0.0, 128
    %6415 = vxpose.xlu0.b32.cont [5/16] 0.0, 128
    %6416 = vxpose.xlu0.b32.cont [6/16] 0.0, 128
    %6417 = vxpose.xlu0.b32.cont [7/16] 0.0, 128
    %6418 = vxpose.xlu0.b32.cont [8/16] 0.0, 128
    %6419 = vxpose.xlu0.b32.cont [9/16] 0.0, 128
    %6420 = vxpose.xlu0.b32.cont [10/16] 0.0, 128
    %6421 = vxpose.xlu0.b32.cont [11/16] 0.0, 128
    %6422 = vxpose.xlu0.b32.cont [12/16] 0.0, 128
    %6423 = vxpose.xlu0.b32.cont [13/16] 0.0, 128
    %6424 = vxpose.xlu0.b32.cont [14/16] 0.0, 128
    %6425 = vxpose.xlu0.b32.cont [15/16] 0.0, 128
    %6426 = vxpose.xlu0.b32.end [16/16] 0.0, 128
    %v6427 = vpop.trf.xlu0
    %v6428 = vpop.trf.xlu0
    %v6429 = vpop.trf.xlu0
    %v6430 = vpop.trf.xlu0
    %v6431 = vpop.trf.xlu0
    %v6432 = vpop.trf.xlu0
    %v6433 = vpop.trf.xlu0
    %v6434 = vpop.trf.xlu0
    %v6435 = vpop.trf.xlu0
    %v6436 = vpop.trf.xlu0
    %v6437 = vpop.trf.xlu0
    %v6438 = vpop.trf.xlu0
    %v6439 = vpop.trf.xlu0
    %v6440 = vpop.trf.xlu0
    %v6441 = vpop.trf.xlu0
    %v6442 = vpop.trf.xlu0
    %v6444 = vsel %vm302, %v6427, 0
    %v6447 = vsel %vm302, %v6428, 0
    %v6450 = vsel %vm302, %v6429, 0
    %v6453 = vsel %vm302, %v6430, 0
    %v6456 = vsel %vm302, %v6431, 0
    %v6459 = vsel %vm302, %v6432, 0
    %v6462 = vsel %vm302, %v6433, 0
    %v6465 = vsel %vm302, %v6434, 0
    %6467 = vmatpush.msra.mxu0 0.0
    %6468 = vmatpush.msra.mxu0 0.0
    %6469 = vmatpush.msra.mxu0 0.0
    %6470 = vmatpush.msra.mxu0 0.0
    %6471 = vmatpush.msra.mxu0 0.0
    %6472 = vmatpush.msra.mxu0 0.0
    %6473 = vmatpush.msra.mxu0 0.0
    %6474 = vmatpush.msra.mxu0 0.0
    %6475 = vmatpush.msra.mxu0 0.0
    %6476 = vmatpush.msra.mxu0 0.0
    %6477 = vmatpush.msra.mxu0 0.0
    %6478 = vmatpush.msra.mxu0 0.0
    %6479 = vmatpush.msra.mxu0 0.0
    %6480 = vmatpush.msra.mxu0 0.0
    %6481 = vmatpush.msra.mxu0 %v6395
    %6482 = vmatpush.msra.mxu0 %v6365
    %6483 = vmatmul.f32.gmra.mxu0 %v6444
    %v6484 = vpop.f32.mrf.mxu0
    %v6485 = vadd.f32 0.0, %v6484
    %6486 = vmatmul.f32.gmra.mxu0 %v6447
    %v6487 = vpop.f32.mrf.mxu0
    %v6488 = vadd.f32 0.0, %v6487
    %6489 = vmatmul.f32.gmra.mxu0 %v6450
    %v6490 = vpop.f32.mrf.mxu0
    %v6491 = vadd.f32 0.0, %v6490
    %6492 = vmatmul.f32.gmra.mxu0 %v6453
    %v6493 = vpop.f32.mrf.mxu0
    %v6494 = vadd.f32 0.0, %v6493
    %6495 = vmatmul.f32.gmra.mxu0 %v6456
    %v6496 = vpop.f32.mrf.mxu0
    %v6497 = vadd.f32 0.0, %v6496
    %6498 = vmatmul.f32.gmra.mxu0 %v6459
    %v6499 = vpop.f32.mrf.mxu0
    %v6500 = vadd.f32 0.0, %v6499
    %6501 = vmatmul.f32.gmra.mxu0 %v6462
    %v6502 = vpop.f32.mrf.mxu0
    %v6503 = vadd.f32 0.0, %v6502
    %6504 = vmatmul.f32.gmra.mxu0 %v6465
    %v6505 = vpop.f32.mrf.mxu0
    %v6506 = vadd.f32 0.0, %v6505
    %6507 = vdwg.mxu0
    %6508 = vmatpush.msra.mxu0 0.0
    %6509 = vmatpush.msra.mxu0 0.0
    %6510 = vmatpush.msra.mxu0 0.0
    %6511 = vmatpush.msra.mxu0 0.0
    %6512 = vmatpush.msra.mxu0 0.0
    %6513 = vmatpush.msra.mxu0 0.0
    %6514 = vmatpush.msra.mxu0 0.0
    %6515 = vmatpush.msra.mxu0 0.0
    %6516 = vmatpush.msra.mxu0 0.0
    %6517 = vmatpush.msra.mxu0 0.0
    %6518 = vmatpush.msra.mxu0 0.0
    %6519 = vmatpush.msra.mxu0 0.0
    %6520 = vmatpush.msra.mxu0 0.0
    %6521 = vmatpush.msra.mxu0 0.0
    %6522 = vmatpush.msra.mxu0 %v6410
    %6523 = vmatpush.msra.mxu0 %v6380
    %6524 = vmatmul.f32.gmra.mxu0 %v6444
    %v6525 = vpop.f32.mrf.mxu0
    %v6526 = vadd.f32 0.0, %v6525
    %6527 = vmatmul.f32.gmra.mxu0 %v6447
    %v6528 = vpop.f32.mrf.mxu0
    %v6529 = vadd.f32 0.0, %v6528
    %6530 = vmatmul.f32.gmra.mxu0 %v6450
    %v6531 = vpop.f32.mrf.mxu0
    %v6532 = vadd.f32 0.0, %v6531
    %6533 = vmatmul.f32.gmra.mxu0 %v6453
    %v6534 = vpop.f32.mrf.mxu0
    %v6535 = vadd.f32 0.0, %v6534
    %6536 = vmatmul.f32.gmra.mxu0 %v6456
    %v6537 = vpop.f32.mrf.mxu0
    %v6538 = vadd.f32 0.0, %v6537
    %6539 = vmatmul.f32.gmra.mxu0 %v6459
    %v6540 = vpop.f32.mrf.mxu0
    %v6541 = vadd.f32 0.0, %v6540
    %6542 = vmatmul.f32.gmra.mxu0 %v6462
    %v6543 = vpop.f32.mrf.mxu0
    %v6544 = vadd.f32 0.0, %v6543
    %6545 = vmatmul.f32.gmra.mxu0 %v6465
    %v6546 = vpop.f32.mrf.mxu0
    %v6547 = vadd.f32 0.0, %v6546
    %6548 = vdwg.mxu0
    %v6549 = vpack.c.bf16 %v4020, %v4017
    %v6550 = vpack.c.bf16 %v4061, %v4058
    %v6551 = vpack.c.bf16 %v6488, %v6485
    %v6552 = vpack.c.bf16 %v6529, %v6526
    %v6553 = vpack.c.bf16 %v4026, %v4023
    %v6554 = vpack.c.bf16 %v4067, %v4064
    %v6555 = vpack.c.bf16 %v6494, %v6491
    %v6556 = vpack.c.bf16 %v6535, %v6532
    %v6557 = vpack.c.bf16 %v4032, %v4029
    %v6558 = vpack.c.bf16 %v4073, %v4070
    %v6559 = vpack.c.bf16 %v6500, %v6497
    %v6560 = vpack.c.bf16 %v6541, %v6538
    %v6561 = vpack.c.bf16 %v4038, %v4035
    %v6562 = vpack.c.bf16 %v4079, %v4076
    %v6563 = vpack.c.bf16 %v6506, %v6503
    %v6564 = vpack.c.bf16 %v6547, %v6544
    %6565 = vset.pattern.permute.xlu0 4
    %6566 = vperm.xlu0 %6565, %v100
    %v6567 = vpop.permute.xlu0 %6566
    %6569 = vset.pattern.permute.xlu0 4
    %6570 = vperm.xlu0 %6569, %v101
    %v6571 = vpop.permute.xlu0 %6570
    %6573 = vset.pattern.permute.xlu0 4
    %6574 = vperm.xlu0 %6573, %v102
    %v6575 = vpop.permute.xlu0 %6574
    %6577 = vset.pattern.permute.xlu0 4
    %6578 = vperm.xlu0 %6577, %v103
    %v6579 = vpop.permute.xlu0 %6578
    %6581 = vset.pattern.permute.xlu0 4
    %6582 = vperm.xlu0 %6581, %v104
    %v6583 = vpop.permute.xlu0 %6582
    %6585 = vset.pattern.permute.xlu0 4
    %6586 = vperm.xlu0 %6585, %v105
    %v6587 = vpop.permute.xlu0 %6586
    %6589 = vset.pattern.permute.xlu0 4
    %6590 = vperm.xlu0 %6589, %v106
    %v6591 = vpop.permute.xlu0 %6590
    %6593 = vset.pattern.permute.xlu0 4
    %6594 = vperm.xlu0 %6593, %v107
    %v6595 = vpop.permute.xlu0 %6594
    %v6605 = vunpack.c.l.b16 %v134
    %v6606 = vunpack.c.l.b16 %v135
    %v6607 = vunpack.c.l.b16 %v136
    %v6608 = vunpack.c.l.b16 %v137
    %v6609 = vunpack.c.l.b16 %v138
    %v6610 = vunpack.c.l.b16 %v139
    %v6611 = vunpack.c.l.b16 %v140
    %v6612 = vunpack.c.l.b16 %v141
    %v6613 = vpack.c.b16 %v6606, %v6605
    %v6614 = vpack.c.b16 %v6608, %v6607
    %v6615 = vpack.c.b16 %v6610, %v6609
    %v6616 = vpack.c.b16 %v6612, %v6611
    %v6618 = vsel %vm213, %v6613, 0
    %v6621 = vsel %vm213, %v6614, 0
    %v6624 = vsel %vm213, %v6615, 0
    %v6627 = vsel %vm213, %v6616, 0
    %6629 = vmatpush.bf16.msra.mxu0 0
    %6630 = vmatpush.bf16.msra.mxu0 0
    %6631 = vmatpush.bf16.msra.mxu0 0
    %6632 = vmatpush.bf16.msra.mxu0 0
    %6633 = vmatpush.bf16.msra.mxu0 %v6561
    %6634 = vmatpush.bf16.msra.mxu0 %v6557
    %6635 = vmatpush.bf16.msra.mxu0 %v6553
    %6636 = vmatpush.bf16.msra.mxu0 %v6549
    %6637 = vmatmul.bf16.gmra.mxu0 %v6618
    %v6638 = vpop.f32.mrf.mxu0
    %v6639 = vadd.f32 %v6567, %v6638
    %v6640 = vpop.f32.mrf.mxu0
    %v6641 = vadd.f32 %v6571, %v6640
    %6642 = vmatmul.bf16.gmra.mxu0 %v6621
    %v6643 = vpop.f32.mrf.mxu0
    %v6644 = vadd.f32 %v6575, %v6643
    %v6645 = vpop.f32.mrf.mxu0
    %v6646 = vadd.f32 %v6579, %v6645
    %6647 = vmatmul.bf16.gmra.mxu0 %v6624
    %v6648 = vpop.f32.mrf.mxu0
    %v6649 = vadd.f32 %v6583, %v6648
    %v6650 = vpop.f32.mrf.mxu0
    %v6651 = vadd.f32 %v6587, %v6650
    %6652 = vmatmul.bf16.gmra.mxu0 %v6627
    %v6653 = vpop.f32.mrf.mxu0
    %v6654 = vadd.f32 %v6591, %v6653
    %v6655 = vpop.f32.mrf.mxu0
    %v6656 = vadd.f32 %v6595, %v6655
    %6657 = vdwg.mxu0
    %6658 = vmatpush.bf16.msra.mxu0 0
    %6659 = vmatpush.bf16.msra.mxu0 0
    %6660 = vmatpush.bf16.msra.mxu0 0
    %6661 = vmatpush.bf16.msra.mxu0 0
    %6662 = vmatpush.bf16.msra.mxu0 %v6562
    %6663 = vmatpush.bf16.msra.mxu0 %v6558
    %6664 = vmatpush.bf16.msra.mxu0 %v6554
    %6665 = vmatpush.bf16.msra.mxu0 %v6550
    %6666 = vmatmul.bf16.gmra.mxu0 %v6618
    %v6667 = vpop.f32.mrf.mxu0
    %v6668 = vadd.f32 %v6567, %v6667
    %v6669 = vpop.f32.mrf.mxu0
    %v6670 = vadd.f32 %v6571, %v6669
    %6671 = vmatmul.bf16.gmra.mxu0 %v6621
    %v6672 = vpop.f32.mrf.mxu0
    %v6673 = vadd.f32 %v6575, %v6672
    %v6674 = vpop.f32.mrf.mxu0
    %v6675 = vadd.f32 %v6579, %v6674
    %6676 = vmatmul.bf16.gmra.mxu0 %v6624
    %v6677 = vpop.f32.mrf.mxu0
    %v6678 = vadd.f32 %v6583, %v6677
    %v6679 = vpop.f32.mrf.mxu0
    %v6680 = vadd.f32 %v6587, %v6679
    %6681 = vmatmul.bf16.gmra.mxu0 %v6627
    %v6682 = vpop.f32.mrf.mxu0
    %v6683 = vadd.f32 %v6591, %v6682
    %v6684 = vpop.f32.mrf.mxu0
    %v6685 = vadd.f32 %v6595, %v6684
    %6686 = vdwg.mxu0
    %6687 = vmatpush.bf16.msra.mxu0 0
    %6688 = vmatpush.bf16.msra.mxu0 0
    %6689 = vmatpush.bf16.msra.mxu0 0
    %6690 = vmatpush.bf16.msra.mxu0 0
    %6691 = vmatpush.bf16.msra.mxu0 %v6563
    %6692 = vmatpush.bf16.msra.mxu0 %v6559
    %6693 = vmatpush.bf16.msra.mxu0 %v6555
    %6694 = vmatpush.bf16.msra.mxu0 %v6551
    %6695 = vmatmul.bf16.gmra.mxu0 %v6618
    %v6696 = vpop.f32.mrf.mxu0
    %v6697 = vadd.f32 %v6567, %v6696
    %v6698 = vpop.f32.mrf.mxu0
    %v6699 = vadd.f32 %v6571, %v6698
    %6700 = vmatmul.bf16.gmra.mxu0 %v6621
    %v6701 = vpop.f32.mrf.mxu0
    %v6702 = vadd.f32 %v6575, %v6701
    %v6703 = vpop.f32.mrf.mxu0
    %v6704 = vadd.f32 %v6579, %v6703
    %6705 = vmatmul.bf16.gmra.mxu0 %v6624
    %v6706 = vpop.f32.mrf.mxu0
    %v6707 = vadd.f32 %v6583, %v6706
    %v6708 = vpop.f32.mrf.mxu0
    %v6709 = vadd.f32 %v6587, %v6708
    %6710 = vmatmul.bf16.gmra.mxu0 %v6627
    %v6711 = vpop.f32.mrf.mxu0
    %v6712 = vadd.f32 %v6591, %v6711
    %v6713 = vpop.f32.mrf.mxu0
    %v6714 = vadd.f32 %v6595, %v6713
    %6715 = vdwg.mxu0
    %6716 = vmatpush.bf16.msra.mxu0 0
    %6717 = vmatpush.bf16.msra.mxu0 0
    %6718 = vmatpush.bf16.msra.mxu0 0
    %6719 = vmatpush.bf16.msra.mxu0 0
    %6720 = vmatpush.bf16.msra.mxu0 %v6564
    %6721 = vmatpush.bf16.msra.mxu0 %v6560
    %6722 = vmatpush.bf16.msra.mxu0 %v6556
    %6723 = vmatpush.bf16.msra.mxu0 %v6552
    %6724 = vmatmul.bf16.gmra.mxu0 %v6618
    %v6725 = vpop.f32.mrf.mxu0
    %v6726 = vadd.f32 %v6567, %v6725
    %v6727 = vpop.f32.mrf.mxu0
    %v6728 = vadd.f32 %v6571, %v6727
    %6729 = vmatmul.bf16.gmra.mxu0 %v6621
    %v6730 = vpop.f32.mrf.mxu0
    %v6731 = vadd.f32 %v6575, %v6730
    %v6732 = vpop.f32.mrf.mxu0
    %v6733 = vadd.f32 %v6579, %v6732
    %6734 = vmatmul.bf16.gmra.mxu0 %v6624
    %v6735 = vpop.f32.mrf.mxu0
    %v6736 = vadd.f32 %v6583, %v6735
    %v6737 = vpop.f32.mrf.mxu0
    %v6738 = vadd.f32 %v6587, %v6737
    %6739 = vmatmul.bf16.gmra.mxu0 %v6627
    %v6740 = vpop.f32.mrf.mxu0
    %v6741 = vadd.f32 %v6591, %v6740
    %v6742 = vpop.f32.mrf.mxu0
    %v6743 = vadd.f32 %v6595, %v6742
    %6744 = vdwg.mxu0
    %v6745 = vadd.f32 %v6639, %v6668
    %6746 = vadd.xlane.f32.xlu0 %v6745
    %v6747 = vpop.xlane.xlu0 %6746
    %v6748 = vadd.f32 %v6641, %v6670
    %6749 = vadd.xlane.f32.xlu0 %v6748
    %v6750 = vpop.xlane.xlu0 %6749
    %v6751 = vadd.f32 %v6644, %v6673
    %6752 = vadd.xlane.f32.xlu0 %v6751
    %v6753 = vpop.xlane.xlu0 %6752
    %v6754 = vadd.f32 %v6646, %v6675
    %6755 = vadd.xlane.f32.xlu0 %v6754
    %v6756 = vpop.xlane.xlu0 %6755
    %v6757 = vadd.f32 %v6649, %v6678
    %6758 = vadd.xlane.f32.xlu0 %v6757
    %v6759 = vpop.xlane.xlu0 %6758
    %v6760 = vadd.f32 %v6651, %v6680
    %6761 = vadd.xlane.f32.xlu0 %v6760
    %v6762 = vpop.xlane.xlu0 %6761
    %v6763 = vadd.f32 %v6654, %v6683
    %6764 = vadd.xlane.f32.xlu0 %v6763
    %v6765 = vpop.xlane.xlu0 %6764
    %v6766 = vadd.f32 %v6656, %v6685
    %6767 = vadd.xlane.f32.xlu0 %v6766
    %v6768 = vpop.xlane.xlu0 %6767
    %v6769 = vmul.f32 %v6639, %v6639
    %v6770 = vmul.f32 %v6668, %v6668
    %v6771 = vmul.f32 %v6641, %v6641
    %v6772 = vmul.f32 %v6670, %v6670
    %v6773 = vmul.f32 %v6644, %v6644
    %v6774 = vmul.f32 %v6673, %v6673
    %v6775 = vmul.f32 %v6646, %v6646
    %v6776 = vmul.f32 %v6675, %v6675
    %v6777 = vmul.f32 %v6649, %v6649
    %v6778 = vmul.f32 %v6678, %v6678
    %v6779 = vmul.f32 %v6651, %v6651
    %v6780 = vmul.f32 %v6680, %v6680
    %v6781 = vmul.f32 %v6654, %v6654
    %v6782 = vmul.f32 %v6683, %v6683
    %v6783 = vmul.f32 %v6656, %v6656
    %v6784 = vmul.f32 %v6685, %v6685
    %v6785 = vadd.f32 %v6769, %v6770
    %6786 = vadd.xlane.f32.xlu0 %v6785
    %v6787 = vpop.xlane.xlu0 %6786
    %v6788 = vadd.f32 %v6771, %v6772
    %6789 = vadd.xlane.f32.xlu0 %v6788
    %v6790 = vpop.xlane.xlu0 %6789
    %v6791 = vadd.f32 %v6773, %v6774
    %6792 = vadd.xlane.f32.xlu0 %v6791
    %v6793 = vpop.xlane.xlu0 %6792
    %v6794 = vadd.f32 %v6775, %v6776
    %6795 = vadd.xlane.f32.xlu0 %v6794
    %v6796 = vpop.xlane.xlu0 %6795
    %v6797 = vadd.f32 %v6777, %v6778
    %6798 = vadd.xlane.f32.xlu0 %v6797
    %v6799 = vpop.xlane.xlu0 %6798
    %v6800 = vadd.f32 %v6779, %v6780
    %6801 = vadd.xlane.f32.xlu0 %v6800
    %v6802 = vpop.xlane.xlu0 %6801
    %v6803 = vadd.f32 %v6781, %v6782
    %6804 = vadd.xlane.f32.xlu0 %v6803
    %v6805 = vpop.xlane.xlu0 %6804
    %v6806 = vadd.f32 %v6783, %v6784
    %6807 = vadd.xlane.f32.xlu0 %v6806
    %v6808 = vpop.xlane.xlu0 %6807
    %v6809 = vadd.f32 %v6697, %v6726
    %6810 = vadd.xlane.f32.xlu0 %v6809
    %v6811 = vpop.xlane.xlu0 %6810
    %v6812 = vadd.f32 %v6699, %v6728
    %6813 = vadd.xlane.f32.xlu0 %v6812
    %v6814 = vpop.xlane.xlu0 %6813
    %v6815 = vadd.f32 %v6702, %v6731
    %6816 = vadd.xlane.f32.xlu0 %v6815
    %v6817 = vpop.xlane.xlu0 %6816
    %v6818 = vadd.f32 %v6704, %v6733
    %6819 = vadd.xlane.f32.xlu0 %v6818
    %v6820 = vpop.xlane.xlu0 %6819
    %v6821 = vadd.f32 %v6707, %v6736
    %6822 = vadd.xlane.f32.xlu0 %v6821
    %v6823 = vpop.xlane.xlu0 %6822
    %v6824 = vadd.f32 %v6709, %v6738
    %6825 = vadd.xlane.f32.xlu0 %v6824
    %v6826 = vpop.xlane.xlu0 %6825
    %v6827 = vadd.f32 %v6712, %v6741
    %6828 = vadd.xlane.f32.xlu0 %v6827
    %v6829 = vpop.xlane.xlu0 %6828
    %v6830 = vadd.f32 %v6714, %v6743
    %6831 = vadd.xlane.f32.xlu0 %v6830
    %v6832 = vpop.xlane.xlu0 %6831
    %v6833 = vmul.f32 %v6697, %v6697
    %v6834 = vmul.f32 %v6726, %v6726
    %v6835 = vmul.f32 %v6699, %v6699
    %v6836 = vmul.f32 %v6728, %v6728
    %v6837 = vmul.f32 %v6702, %v6702
    %v6838 = vmul.f32 %v6731, %v6731
    %v6839 = vmul.f32 %v6704, %v6704
    %v6840 = vmul.f32 %v6733, %v6733
    %v6841 = vmul.f32 %v6707, %v6707
    %v6842 = vmul.f32 %v6736, %v6736
    %v6843 = vmul.f32 %v6709, %v6709
    %v6844 = vmul.f32 %v6738, %v6738
    %v6845 = vmul.f32 %v6712, %v6712
    %v6846 = vmul.f32 %v6741, %v6741
    %v6847 = vmul.f32 %v6714, %v6714
    %v6848 = vmul.f32 %v6743, %v6743
    %v6849 = vadd.f32 %v6833, %v6834
    %6850 = vadd.xlane.f32.xlu0 %v6849
    %v6851 = vpop.xlane.xlu0 %6850
    %v6852 = vadd.f32 %v6835, %v6836
    %6853 = vadd.xlane.f32.xlu0 %v6852
    %v6854 = vpop.xlane.xlu0 %6853
    %v6855 = vadd.f32 %v6837, %v6838
    %6856 = vadd.xlane.f32.xlu0 %v6855
    %v6857 = vpop.xlane.xlu0 %6856
    %v6858 = vadd.f32 %v6839, %v6840
    %6859 = vadd.xlane.f32.xlu0 %v6858
    %v6860 = vpop.xlane.xlu0 %6859
    %v6861 = vadd.f32 %v6841, %v6842
    %6862 = vadd.xlane.f32.xlu0 %v6861
    %v6863 = vpop.xlane.xlu0 %6862
    %v6864 = vadd.f32 %v6843, %v6844
    %6865 = vadd.xlane.f32.xlu0 %v6864
    %v6866 = vpop.xlane.xlu0 %6865
    %v6867 = vadd.f32 %v6845, %v6846
    %6868 = vadd.xlane.f32.xlu0 %v6867
    %v6869 = vpop.xlane.xlu0 %6868
    %v6870 = vadd.f32 %v6847, %v6848
    %6871 = vadd.xlane.f32.xlu0 %v6870
    %v6872 = vpop.xlane.xlu0 %6871
    %v6873 = vsel %vm782, %v6747, %v6787
    %v6874 = vsel %vm782, %v6750, %v6790
    %v6875 = vsel %vm782, %v6753, %v6793
    %v6876 = vsel %vm782, %v6756, %v6796
    %v6877 = vsel %vm782, %v6759, %v6799
    %v6878 = vsel %vm782, %v6762, %v6802
    %v6879 = vsel %vm782, %v6765, %v6805
    %v6880 = vsel %vm782, %v6768, %v6808
    %v6881 = vsel %vm791, %v6873, %v6811
    %v6882 = vsel %vm791, %v6874, %v6814
    %v6883 = vsel %vm791, %v6875, %v6817
    %v6884 = vsel %vm791, %v6876, %v6820
    %v6885 = vsel %vm791, %v6877, %v6823
    %v6886 = vsel %vm791, %v6878, %v6826
    %v6887 = vsel %vm791, %v6879, %v6829
    %v6888 = vsel %vm791, %v6880, %v6832
    %v6889 = vsel %vm800, %v6881, %v6851
    %v6890 = vsel %vm800, %v6882, %v6854
    %v6891 = vsel %vm800, %v6883, %v6857
    %v6892 = vsel %vm800, %v6884, %v6860
    %v6893 = vsel %vm800, %v6885, %v6863
    %v6894 = vsel %vm800, %v6886, %v6866
    %v6895 = vsel %vm800, %v6887, %v6869
    %v6896 = vsel %vm800, %v6888, %v6872
    %6897 = vmatpush.msra.mxu0 0.0
    %6898 = vmatpush.msra.mxu0 0.0
    %6899 = vmatpush.msra.mxu0 0.0
    %6900 = vmatpush.msra.mxu0 0.0
    %6901 = vmatpush.msra.mxu0 0.0
    %6902 = vmatpush.msra.mxu0 0.0
    %6903 = vmatpush.msra.mxu0 0.0
    %6904 = vmatpush.msra.mxu0 0.0
    %6905 = vmatpush.msra.mxu0 %v6896
    %6906 = vmatpush.msra.mxu0 %v6895
    %6907 = vmatpush.msra.mxu0 %v6894
    %6908 = vmatpush.msra.mxu0 %v6893
    %6909 = vmatpush.msra.mxu0 %v6892
    %6910 = vmatpush.msra.mxu0 %v6891
    %6911 = vmatpush.msra.mxu0 %v6890
    %6912 = vmatpush.msra.mxu0 %v6889
    %6913 = vmatmul.f32.gmra.mxu0 %v810
    %v6914 = vpop.f32.mrf.mxu0
    %v6915 = vadd.f32 0.0, %v6914
    %6916 = vmatmul.f32.gmra.mxu0 %v813
    %v6917 = vpop.f32.mrf.mxu0
    %v6918 = vadd.f32 0.0, %v6917
    %6919 = vmatmul.f32.gmra.mxu0 %v816
    %v6920 = vpop.f32.mrf.mxu0
    %v6921 = vadd.f32 0.0, %v6920
    %6922 = vmatmul.f32.gmra.mxu0 %v819
    %v6923 = vpop.f32.mrf.mxu0
    %v6924 = vadd.f32 0.0, %v6923
    %6925 = vmatmul.f32.gmra.mxu0 %v822
    %v6926 = vpop.f32.mrf.mxu0
    %v6927 = vadd.f32 0.0, %v6926
    %6928 = vmatmul.f32.gmra.mxu0 %v825
    %v6929 = vpop.f32.mrf.mxu0
    %v6930 = vadd.f32 0.0, %v6929
    %6931 = vmatmul.f32.gmra.mxu0 %v828
    %v6932 = vpop.f32.mrf.mxu0
    %v6933 = vadd.f32 0.0, %v6932
    %6934 = vmatmul.f32.gmra.mxu0 %v831
    %v6935 = vpop.f32.mrf.mxu0
    %v6936 = vadd.f32 0.0, %v6935
    %6937 = vdwg.mxu0
    %v6938 = vmul.f32 %v6915, 0.001953125
    %v6939 = vmul.f32 %v6918, 0.001953125
    %v6940 = vmul.f32 %v6921, 0.001953125
    %v6941 = vmul.f32 %v6924, 0.001953125
    %v6942 = vmul.f32 %v6927, 0.001953125
    %v6943 = vmul.f32 %v6930, 0.001953125
    %v6944 = vmul.f32 %v6933, 0.001953125
    %v6945 = vmul.f32 %v6936, 0.001953125
    %v6946 = vmul.f32 %v6938, %v6938
    %v6947 = vmul.f32 %v6939, %v6939
    %v6948 = vmul.f32 %v6940, %v6940
    %v6949 = vmul.f32 %v6941, %v6941
    %v6950 = vmul.f32 %v6942, %v6942
    %v6951 = vmul.f32 %v6943, %v6943
    %v6952 = vmul.f32 %v6944, %v6944
    %v6953 = vmul.f32 %v6945, %v6945
    %6962 = vrot.lane.b32.xlu0 %v6946, 1
    %v6963 = vpop.permute.xlu0 %6962
    %6964 = vrot.lane.b32.xlu0 %v6947, 1
    %v6965 = vpop.permute.xlu0 %6964
    %6966 = vrot.lane.b32.xlu0 %v6948, 1
    %v6967 = vpop.permute.xlu0 %6966
    %6968 = vrot.lane.b32.xlu0 %v6949, 1
    %v6969 = vpop.permute.xlu0 %6968
    %6970 = vrot.lane.b32.xlu0 %v6950, 1
    %v6971 = vpop.permute.xlu0 %6970
    %6972 = vrot.lane.b32.xlu0 %v6951, 1
    %v6973 = vpop.permute.xlu0 %6972
    %6974 = vrot.lane.b32.xlu0 %v6952, 1
    %v6975 = vpop.permute.xlu0 %6974
    %6976 = vrot.lane.b32.xlu0 %v6953, 1
    %v6977 = vpop.permute.xlu0 %6976
    %v6986 = vsub.f32 %v6938, %v6963
    %v6987 = vsub.f32 %v6939, %v6965
    %v6988 = vsub.f32 %v6940, %v6967
    %v6989 = vsub.f32 %v6941, %v6969
    %v6990 = vsub.f32 %v6942, %v6971
    %v6991 = vsub.f32 %v6943, %v6973
    %v6992 = vsub.f32 %v6944, %v6975
    %v6993 = vsub.f32 %v6945, %v6977
    %6995 = vset.pattern.permute.xlu0 0
    %6996 = vperm.xlu0 %6995, %v6938
    %v6997 = vpop.permute.xlu0 %6996
    %7000 = vset.pattern.permute.xlu0 0
    %7001 = vperm.xlu0 %7000, %v6939
    %v7002 = vpop.permute.xlu0 %7001
    %7005 = vset.pattern.permute.xlu0 0
    %7006 = vperm.xlu0 %7005, %v6940
    %v7007 = vpop.permute.xlu0 %7006
    %7010 = vset.pattern.permute.xlu0 0
    %7011 = vperm.xlu0 %7010, %v6941
    %v7012 = vpop.permute.xlu0 %7011
    %7015 = vset.pattern.permute.xlu0 0
    %7016 = vperm.xlu0 %7015, %v6942
    %v7017 = vpop.permute.xlu0 %7016
    %7020 = vset.pattern.permute.xlu0 0
    %7021 = vperm.xlu0 %7020, %v6943
    %v7022 = vpop.permute.xlu0 %7021
    %7025 = vset.pattern.permute.xlu0 0
    %7026 = vperm.xlu0 %7025, %v6944
    %v7027 = vpop.permute.xlu0 %7026
    %7030 = vset.pattern.permute.xlu0 0
    %7031 = vperm.xlu0 %7030, %v6945
    %v7032 = vpop.permute.xlu0 %7031
    %v7034 = vsub.f32 %v6639, %v6997
    %v7035 = vsub.f32 %v6668, %v6997
    %v7036 = vsub.f32 %v6641, %v7002
    %v7037 = vsub.f32 %v6670, %v7002
    %v7038 = vsub.f32 %v6644, %v7007
    %v7039 = vsub.f32 %v6673, %v7007
    %v7040 = vsub.f32 %v6646, %v7012
    %v7041 = vsub.f32 %v6675, %v7012
    %v7042 = vsub.f32 %v6649, %v7017
    %v7043 = vsub.f32 %v6678, %v7017
    %v7044 = vsub.f32 %v6651, %v7022
    %v7045 = vsub.f32 %v6680, %v7022
    %v7046 = vsub.f32 %v6654, %v7027
    %v7047 = vsub.f32 %v6683, %v7027
    %v7048 = vsub.f32 %v6656, %v7032
    %v7049 = vsub.f32 %v6685, %v7032
    %v7050 = vadd.f32 %v6986, 1e-05
    %v7051 = vadd.f32 %v6987, 1e-05
    %v7052 = vadd.f32 %v6988, 1e-05
    %v7053 = vadd.f32 %v6989, 1e-05
    %v7054 = vadd.f32 %v6990, 1e-05
    %v7055 = vadd.f32 %v6991, 1e-05
    %v7056 = vadd.f32 %v6992, 1e-05
    %v7057 = vadd.f32 %v6993, 1e-05
    %v7058 = vrsqrt.pop %v7050
    %v7059 = vmul.f32 %v7058, %v7050
    %v7060 = vmul.f32 %v7059, %v7058
    %v7061 = vmul.f32 0.5, %v7060
    %v7062 = vsub.f32 1.5, %v7061
    %v7063 = vmul.f32 %v7058, %v7062
    %vm7064 = vweird.f32 %v7050
    %vm7065 = vweird.f32 %v7058
    %vm7066 = vmor %vm7064, %vm7065
    %v7067 = vsel %vm7066, %v7058, %v7063
    %v7068 = vrsqrt.pop %v7051
    %v7069 = vmul.f32 %v7068, %v7051
    %v7070 = vmul.f32 %v7069, %v7068
    %v7071 = vmul.f32 0.5, %v7070
    %v7072 = vsub.f32 1.5, %v7071
    %v7073 = vmul.f32 %v7068, %v7072
    %vm7074 = vweird.f32 %v7051
    %vm7075 = vweird.f32 %v7068
    %vm7076 = vmor %vm7074, %vm7075
    %v7077 = vsel %vm7076, %v7068, %v7073
    %v7078 = vrsqrt.pop %v7052
    %v7079 = vmul.f32 %v7078, %v7052
    %v7080 = vmul.f32 %v7079, %v7078
    %v7081 = vmul.f32 0.5, %v7080
    %v7082 = vsub.f32 1.5, %v7081
    %v7083 = vmul.f32 %v7078, %v7082
    %vm7084 = vweird.f32 %v7052
    %vm7085 = vweird.f32 %v7078
    %vm7086 = vmor %vm7084, %vm7085
    %v7087 = vsel %vm7086, %v7078, %v7083
    %v7088 = vrsqrt.pop %v7053
    %v7089 = vmul.f32 %v7088, %v7053
    %v7090 = vmul.f32 %v7089, %v7088
    %v7091 = vmul.f32 0.5, %v7090
    %v7092 = vsub.f32 1.5, %v7091
    %v7093 = vmul.f32 %v7088, %v7092
    %vm7094 = vweird.f32 %v7053
    %vm7095 = vweird.f32 %v7088
    %vm7096 = vmor %vm7094, %vm7095
    %v7097 = vsel %vm7096, %v7088, %v7093
    %v7098 = vrsqrt.pop %v7054
    %v7099 = vmul.f32 %v7098, %v7054
    %v7100 = vmul.f32 %v7099, %v7098
    %v7101 = vmul.f32 0.5, %v7100
    %v7102 = vsub.f32 1.5, %v7101
    %v7103 = vmul.f32 %v7098, %v7102
    %vm7104 = vweird.f32 %v7054
    %vm7105 = vweird.f32 %v7098
    %vm7106 = vmor %vm7104, %vm7105
    %v7107 = vsel %vm7106, %v7098, %v7103
    %v7108 = vrsqrt.pop %v7055
    %v7109 = vmul.f32 %v7108, %v7055
    %v7110 = vmul.f32 %v7109, %v7108
    %v7111 = vmul.f32 0.5, %v7110
    %v7112 = vsub.f32 1.5, %v7111
    %v7113 = vmul.f32 %v7108, %v7112
    %vm7114 = vweird.f32 %v7055
    %vm7115 = vweird.f32 %v7108
    %vm7116 = vmor %vm7114, %vm7115
    %v7117 = vsel %vm7116, %v7108, %v7113
    %v7118 = vrsqrt.pop %v7056
    %v7119 = vmul.f32 %v7118, %v7056
    %v7120 = vmul.f32 %v7119, %v7118
    %v7121 = vmul.f32 0.5, %v7120
    %v7122 = vsub.f32 1.5, %v7121
    %v7123 = vmul.f32 %v7118, %v7122
    %vm7124 = vweird.f32 %v7056
    %vm7125 = vweird.f32 %v7118
    %vm7126 = vmor %vm7124, %vm7125
    %v7127 = vsel %vm7126, %v7118, %v7123
    %v7128 = vrsqrt.pop %v7057
    %v7129 = vmul.f32 %v7128, %v7057
    %v7130 = vmul.f32 %v7129, %v7128
    %v7131 = vmul.f32 0.5, %v7130
    %v7132 = vsub.f32 1.5, %v7131
    %v7133 = vmul.f32 %v7128, %v7132
    %vm7134 = vweird.f32 %v7057
    %vm7135 = vweird.f32 %v7128
    %vm7136 = vmor %vm7134, %vm7135
    %v7137 = vsel %vm7136, %v7128, %v7133
    %7139 = vset.pattern.permute.xlu0 1
    %7140 = vperm.xlu0 %7139, %v7067
    %v7141 = vpop.permute.xlu0 %7140
    %7144 = vset.pattern.permute.xlu0 1
    %7145 = vperm.xlu0 %7144, %v7077
    %v7146 = vpop.permute.xlu0 %7145
    %7149 = vset.pattern.permute.xlu0 1
    %7150 = vperm.xlu0 %7149, %v7087
    %v7151 = vpop.permute.xlu0 %7150
    %7154 = vset.pattern.permute.xlu0 1
    %7155 = vperm.xlu0 %7154, %v7097
    %v7156 = vpop.permute.xlu0 %7155
    %7159 = vset.pattern.permute.xlu0 1
    %7160 = vperm.xlu0 %7159, %v7107
    %v7161 = vpop.permute.xlu0 %7160
    %7164 = vset.pattern.permute.xlu0 1
    %7165 = vperm.xlu0 %7164, %v7117
    %v7166 = vpop.permute.xlu0 %7165
    %7169 = vset.pattern.permute.xlu0 1
    %7170 = vperm.xlu0 %7169, %v7127
    %v7171 = vpop.permute.xlu0 %7170
    %7174 = vset.pattern.permute.xlu0 1
    %7175 = vperm.xlu0 %7174, %v7137
    %v7176 = vpop.permute.xlu0 %7175
    %v7178 = vmul.f32 %v7034, %v7141
    %v7179 = vmul.f32 %v7035, %v7141
    %v7180 = vmul.f32 %v7036, %v7146
    %v7181 = vmul.f32 %v7037, %v7146
    %v7182 = vmul.f32 %v7038, %v7151
    %v7183 = vmul.f32 %v7039, %v7151
    %v7184 = vmul.f32 %v7040, %v7156
    %v7185 = vmul.f32 %v7041, %v7156
    %v7186 = vmul.f32 %v7042, %v7161
    %v7187 = vmul.f32 %v7043, %v7161
    %v7188 = vmul.f32 %v7044, %v7166
    %v7189 = vmul.f32 %v7045, %v7166
    %v7190 = vmul.f32 %v7046, %v7171
    %v7191 = vmul.f32 %v7047, %v7171
    %v7192 = vmul.f32 %v7048, %v7176
    %v7193 = vmul.f32 %v7049, %v7176
    %7194 = vset.pattern.permute.xlu0 2
    %7195 = vperm.xlu0 %7194, %v6938
    %v7196 = vpop.permute.xlu0 %7195
    %7198 = vset.pattern.permute.xlu0 2
    %7199 = vperm.xlu0 %7198, %v6939
    %v7200 = vpop.permute.xlu0 %7199
    %7202 = vset.pattern.permute.xlu0 2
    %7203 = vperm.xlu0 %7202, %v6940
    %v7204 = vpop.permute.xlu0 %7203
    %7206 = vset.pattern.permute.xlu0 2
    %7207 = vperm.xlu0 %7206, %v6941
    %v7208 = vpop.permute.xlu0 %7207
    %7210 = vset.pattern.permute.xlu0 2
    %7211 = vperm.xlu0 %7210, %v6942
    %v7212 = vpop.permute.xlu0 %7211
    %7214 = vset.pattern.permute.xlu0 2
    %7215 = vperm.xlu0 %7214, %v6943
    %v7216 = vpop.permute.xlu0 %7215
    %7218 = vset.pattern.permute.xlu0 2
    %7219 = vperm.xlu0 %7218, %v6944
    %v7220 = vpop.permute.xlu0 %7219
    %7222 = vset.pattern.permute.xlu0 2
    %7223 = vperm.xlu0 %7222, %v6945
    %v7224 = vpop.permute.xlu0 %7223
    %v7226 = vsub.f32 %v6697, %v7196
    %v7227 = vsub.f32 %v6726, %v7196
    %v7228 = vsub.f32 %v6699, %v7200
    %v7229 = vsub.f32 %v6728, %v7200
    %v7230 = vsub.f32 %v6702, %v7204
    %v7231 = vsub.f32 %v6731, %v7204
    %v7232 = vsub.f32 %v6704, %v7208
    %v7233 = vsub.f32 %v6733, %v7208
    %v7234 = vsub.f32 %v6707, %v7212
    %v7235 = vsub.f32 %v6736, %v7212
    %v7236 = vsub.f32 %v6709, %v7216
    %v7237 = vsub.f32 %v6738, %v7216
    %v7238 = vsub.f32 %v6712, %v7220
    %v7239 = vsub.f32 %v6741, %v7220
    %v7240 = vsub.f32 %v6714, %v7224
    %v7241 = vsub.f32 %v6743, %v7224
    %7242 = vset.pattern.permute.xlu0 3
    %7243 = vperm.xlu0 %7242, %v7067
    %v7244 = vpop.permute.xlu0 %7243
    %7246 = vset.pattern.permute.xlu0 3
    %7247 = vperm.xlu0 %7246, %v7077
    %v7248 = vpop.permute.xlu0 %7247
    %7250 = vset.pattern.permute.xlu0 3
    %7251 = vperm.xlu0 %7250, %v7087
    %v7252 = vpop.permute.xlu0 %7251
    %7254 = vset.pattern.permute.xlu0 3
    %7255 = vperm.xlu0 %7254, %v7097
    %v7256 = vpop.permute.xlu0 %7255
    %7258 = vset.pattern.permute.xlu0 3
    %7259 = vperm.xlu0 %7258, %v7107
    %v7260 = vpop.permute.xlu0 %7259
    %7262 = vset.pattern.permute.xlu0 3
    %7263 = vperm.xlu0 %7262, %v7117
    %v7264 = vpop.permute.xlu0 %7263
    %7266 = vset.pattern.permute.xlu0 3
    %7267 = vperm.xlu0 %7266, %v7127
    %v7268 = vpop.permute.xlu0 %7267
    %7270 = vset.pattern.permute.xlu0 3
    %7271 = vperm.xlu0 %7270, %v7137
    %v7272 = vpop.permute.xlu0 %7271
    %v7274 = vmul.f32 %v7226, %v7244
    %v7275 = vmul.f32 %v7227, %v7244
    %v7276 = vmul.f32 %v7228, %v7248
    %v7277 = vmul.f32 %v7229, %v7248
    %v7278 = vmul.f32 %v7230, %v7252
    %v7279 = vmul.f32 %v7231, %v7252
    %v7280 = vmul.f32 %v7232, %v7256
    %v7281 = vmul.f32 %v7233, %v7256
    %v7282 = vmul.f32 %v7234, %v7260
    %v7283 = vmul.f32 %v7235, %v7260
    %v7284 = vmul.f32 %v7236, %v7264
    %v7285 = vmul.f32 %v7237, %v7264
    %v7286 = vmul.f32 %v7238, %v7268
    %v7287 = vmul.f32 %v7239, %v7268
    %v7288 = vmul.f32 %v7240, %v7272
    %v7289 = vmul.f32 %v7241, %v7272
    %7290 = vset.pattern.permute.xlu0 5
    %7291 = vperm.xlu0 %7290, %v100
    %v7292 = vpop.permute.xlu0 %7291
    %7294 = vset.pattern.permute.xlu0 5
    %7295 = vperm.xlu0 %7294, %v101
    %v7296 = vpop.permute.xlu0 %7295
    %7298 = vset.pattern.permute.xlu0 5
    %7299 = vperm.xlu0 %7298, %v102
    %v7300 = vpop.permute.xlu0 %7299
    %7302 = vset.pattern.permute.xlu0 5
    %7303 = vperm.xlu0 %7302, %v103
    %v7304 = vpop.permute.xlu0 %7303
    %7306 = vset.pattern.permute.xlu0 5
    %7307 = vperm.xlu0 %7306, %v104
    %v7308 = vpop.permute.xlu0 %7307
    %7310 = vset.pattern.permute.xlu0 5
    %7311 = vperm.xlu0 %7310, %v105
    %v7312 = vpop.permute.xlu0 %7311
    %7314 = vset.pattern.permute.xlu0 5
    %7315 = vperm.xlu0 %7314, %v106
    %v7316 = vpop.permute.xlu0 %7315
    %7318 = vset.pattern.permute.xlu0 5
    %7319 = vperm.xlu0 %7318, %v107
    %v7320 = vpop.permute.xlu0 %7319
    %v7322 = vmul.f32 %v7178, %v7292
    %v7323 = vmul.f32 %v7179, %v7292
    %v7324 = vmul.f32 %v7274, %v7292
    %v7325 = vmul.f32 %v7275, %v7292
    %v7326 = vmul.f32 %v7180, %v7296
    %v7327 = vmul.f32 %v7181, %v7296
    %v7328 = vmul.f32 %v7276, %v7296
    %v7329 = vmul.f32 %v7277, %v7296
    %v7330 = vmul.f32 %v7182, %v7300
    %v7331 = vmul.f32 %v7183, %v7300
    %v7332 = vmul.f32 %v7278, %v7300
    %v7333 = vmul.f32 %v7279, %v7300
    %v7334 = vmul.f32 %v7184, %v7304
    %v7335 = vmul.f32 %v7185, %v7304
    %v7336 = vmul.f32 %v7280, %v7304
    %v7337 = vmul.f32 %v7281, %v7304
    %v7338 = vmul.f32 %v7186, %v7308
    %v7339 = vmul.f32 %v7187, %v7308
    %v7340 = vmul.f32 %v7282, %v7308
    %v7341 = vmul.f32 %v7283, %v7308
    %v7342 = vmul.f32 %v7188, %v7312
    %v7343 = vmul.f32 %v7189, %v7312
    %v7344 = vmul.f32 %v7284, %v7312
    %v7345 = vmul.f32 %v7285, %v7312
    %v7346 = vmul.f32 %v7190, %v7316
    %v7347 = vmul.f32 %v7191, %v7316
    %v7348 = vmul.f32 %v7286, %v7316
    %v7349 = vmul.f32 %v7287, %v7316
    %v7350 = vmul.f32 %v7192, %v7320
    %v7351 = vmul.f32 %v7193, %v7320
    %v7352 = vmul.f32 %v7288, %v7320
    %v7353 = vmul.f32 %v7289, %v7320
    %7354 = vset.pattern.permute.xlu0 6
    %7355 = vperm.xlu0 %7354, %v100
    %v7356 = vpop.permute.xlu0 %7355
    %7358 = vset.pattern.permute.xlu0 6
    %7359 = vperm.xlu0 %7358, %v101
    %v7360 = vpop.permute.xlu0 %7359
    %7362 = vset.pattern.permute.xlu0 6
    %7363 = vperm.xlu0 %7362, %v102
    %v7364 = vpop.permute.xlu0 %7363
    %7366 = vset.pattern.permute.xlu0 6
    %7367 = vperm.xlu0 %7366, %v103
    %v7368 = vpop.permute.xlu0 %7367
    %7370 = vset.pattern.permute.xlu0 6
    %7371 = vperm.xlu0 %7370, %v104
    %v7372 = vpop.permute.xlu0 %7371
    %7374 = vset.pattern.permute.xlu0 6
    %7375 = vperm.xlu0 %7374, %v105
    %v7376 = vpop.permute.xlu0 %7375
    %7378 = vset.pattern.permute.xlu0 6
    %7379 = vperm.xlu0 %7378, %v106
    %v7380 = vpop.permute.xlu0 %7379
    %7382 = vset.pattern.permute.xlu0 6
    %7383 = vperm.xlu0 %7382, %v107
    %v7384 = vpop.permute.xlu0 %7383
    %v7386 = vadd.f32 %v7322, %v7356
    %v7387 = vadd.f32 %v7323, %v7356
    %v7388 = vadd.f32 %v7324, %v7356
    %v7389 = vadd.f32 %v7325, %v7356
    %v7390 = vadd.f32 %v7326, %v7360
    %v7391 = vadd.f32 %v7327, %v7360
    %v7392 = vadd.f32 %v7328, %v7360
    %v7393 = vadd.f32 %v7329, %v7360
    %v7394 = vadd.f32 %v7330, %v7364
    %v7395 = vadd.f32 %v7331, %v7364
    %v7396 = vadd.f32 %v7332, %v7364
    %v7397 = vadd.f32 %v7333, %v7364
    %v7398 = vadd.f32 %v7334, %v7368
    %v7399 = vadd.f32 %v7335, %v7368
    %v7400 = vadd.f32 %v7336, %v7368
    %v7401 = vadd.f32 %v7337, %v7368
    %v7402 = vadd.f32 %v7338, %v7372
    %v7403 = vadd.f32 %v7339, %v7372
    %v7404 = vadd.f32 %v7340, %v7372
    %v7405 = vadd.f32 %v7341, %v7372
    %v7406 = vadd.f32 %v7342, %v7376
    %v7407 = vadd.f32 %v7343, %v7376
    %v7408 = vadd.f32 %v7344, %v7376
    %v7409 = vadd.f32 %v7345, %v7376
    %v7410 = vadd.f32 %v7346, %v7380
    %v7411 = vadd.f32 %v7347, %v7380
    %v7412 = vadd.f32 %v7348, %v7380
    %v7413 = vadd.f32 %v7349, %v7380
    %v7414 = vadd.f32 %v7350, %v7384
    %v7415 = vadd.f32 %v7351, %v7384
    %v7416 = vadd.f32 %v7352, %v7384
    %v7417 = vadd.f32 %v7353, %v7384
    %v7418 = vadd.f32 %v1354, %v7386
    %v7419 = vadd.f32 %v1355, %v7387
    %v7420 = vadd.f32 %v1356, %v7388
    %v7421 = vadd.f32 %v1357, %v7389
    %v7422 = vadd.f32 %v1358, %v7390
    %v7423 = vadd.f32 %v1359, %v7391
    %v7424 = vadd.f32 %v1360, %v7392
    %v7425 = vadd.f32 %v1361, %v7393
    %v7426 = vadd.f32 %v1362, %v7394
    %v7427 = vadd.f32 %v1363, %v7395
    %v7428 = vadd.f32 %v1364, %v7396
    %v7429 = vadd.f32 %v1365, %v7397
    %v7430 = vadd.f32 %v1366, %v7398
    %v7431 = vadd.f32 %v1367, %v7399
    %v7432 = vadd.f32 %v1368, %v7400
    %v7433 = vadd.f32 %v1369, %v7401
    %v7434 = vadd.f32 %v1370, %v7402
    %v7435 = vadd.f32 %v1371, %v7403
    %v7436 = vadd.f32 %v1372, %v7404
    %v7437 = vadd.f32 %v1373, %v7405
    %v7438 = vadd.f32 %v1374, %v7406
    %v7439 = vadd.f32 %v1375, %v7407
    %v7440 = vadd.f32 %v1376, %v7408
    %v7441 = vadd.f32 %v1377, %v7409
    %v7442 = vadd.f32 %v1378, %v7410
    %v7443 = vadd.f32 %v1379, %v7411
    %v7444 = vadd.f32 %v1380, %v7412
    %v7445 = vadd.f32 %v1381, %v7413
    %v7446 = vadd.f32 %v1382, %v7414
    %v7447 = vadd.f32 %v1383, %v7415
    %v7448 = vadd.f32 %v1384, %v7416
    %v7449 = vadd.f32 %v1385, %v7417
    %v7450 = vmax.f32 %v7418, 0.0
    %v7451 = vmax.f32 %v7419, 0.0
    %v7452 = vmax.f32 %v7420, 0.0
    %v7453 = vmax.f32 %v7421, 0.0
    %v7454 = vmax.f32 %v7422, 0.0
    %v7455 = vmax.f32 %v7423, 0.0
    %v7456 = vmax.f32 %v7424, 0.0
    %v7457 = vmax.f32 %v7425, 0.0
    %v7458 = vmax.f32 %v7426, 0.0
    %v7459 = vmax.f32 %v7427, 0.0
    %v7460 = vmax.f32 %v7428, 0.0
    %v7461 = vmax.f32 %v7429, 0.0
    %v7462 = vmax.f32 %v7430, 0.0
    %v7463 = vmax.f32 %v7431, 0.0
    %v7464 = vmax.f32 %v7432, 0.0
    %v7465 = vmax.f32 %v7433, 0.0
    %v7466 = vmax.f32 %v7434, 0.0
    %v7467 = vmax.f32 %v7435, 0.0
    %v7468 = vmax.f32 %v7436, 0.0
    %v7469 = vmax.f32 %v7437, 0.0
    %v7470 = vmax.f32 %v7438, 0.0
    %v7471 = vmax.f32 %v7439, 0.0
    %v7472 = vmax.f32 %v7440, 0.0
    %v7473 = vmax.f32 %v7441, 0.0
    %v7474 = vmax.f32 %v7442, 0.0
    %v7475 = vmax.f32 %v7443, 0.0
    %v7476 = vmax.f32 %v7444, 0.0
    %v7477 = vmax.f32 %v7445, 0.0
    %v7478 = vmax.f32 %v7446, 0.0
    %v7479 = vmax.f32 %v7447, 0.0
    %v7480 = vmax.f32 %v7448, 0.0
    %v7481 = vmax.f32 %v7449, 0.0
    %v7482 = vpack.c.bf16 %v7454, %v7450
    %v7483 = vpack.c.bf16 %v7455, %v7451
    %v7484 = vpack.c.bf16 %v7456, %v7452
    %v7485 = vpack.c.bf16 %v7457, %v7453
    %v7486 = vpack.c.bf16 %v7462, %v7458
    %v7487 = vpack.c.bf16 %v7463, %v7459
    %v7488 = vpack.c.bf16 %v7464, %v7460
    %v7489 = vpack.c.bf16 %v7465, %v7461
    %v7490 = vpack.c.bf16 %v7470, %v7466
    %v7491 = vpack.c.bf16 %v7471, %v7467
    %v7492 = vpack.c.bf16 %v7472, %v7468
    %v7493 = vpack.c.bf16 %v7473, %v7469
    %v7494 = vpack.c.bf16 %v7478, %v7474
    %v7495 = vpack.c.bf16 %v7479, %v7475
    %v7496 = vpack.c.bf16 %v7480, %v7476
    %v7497 = vpack.c.bf16 %v7481, %v7477
    %7498 = vset.pattern.permute.xlu0 7
    %7499 = vperm.xlu0 %7498, %v100
    %v7500 = vpop.permute.xlu0 %7499
    %7502 = vset.pattern.permute.xlu0 7
    %7503 = vperm.xlu0 %7502, %v101
    %v7504 = vpop.permute.xlu0 %7503
    %7506 = vset.pattern.permute.xlu0 7
    %7507 = vperm.xlu0 %7506, %v102
    %v7508 = vpop.permute.xlu0 %7507
    %7510 = vset.pattern.permute.xlu0 7
    %7511 = vperm.xlu0 %7510, %v103
    %v7512 = vpop.permute.xlu0 %7511
    %7514 = vset.pattern.permute.xlu0 7
    %7515 = vperm.xlu0 %7514, %v104
    %v7516 = vpop.permute.xlu0 %7515
    %7518 = vset.pattern.permute.xlu0 7
    %7519 = vperm.xlu0 %7518, %v105
    %v7520 = vpop.permute.xlu0 %7519
    %7522 = vset.pattern.permute.xlu0 7
    %7523 = vperm.xlu0 %7522, %v106
    %v7524 = vpop.permute.xlu0 %7523
    %7526 = vset.pattern.permute.xlu0 7
    %7527 = vperm.xlu0 %7526, %v107
    %v7528 = vpop.permute.xlu0 %7527
    %v7538 = vunpack.c.l.b16 %v143
    %v7539 = vunpack.c.l.b16 %v144
    %v7540 = vunpack.c.l.b16 %v145
    %v7541 = vunpack.c.l.b16 %v146
    %v7542 = vunpack.c.l.b16 %v147
    %v7543 = vunpack.c.l.b16 %v148
    %v7544 = vunpack.c.l.b16 %v149
    %v7545 = vunpack.c.l.b16 %v150
    %v7546 = vpack.c.b16 %v7539, %v7538
    %v7547 = vpack.c.b16 %v7541, %v7540
    %v7548 = vpack.c.b16 %v7543, %v7542
    %v7549 = vpack.c.b16 %v7545, %v7544
    %v7551 = vsel %vm213, %v7546, 0
    %v7554 = vsel %vm213, %v7547, 0
    %v7557 = vsel %vm213, %v7548, 0
    %v7560 = vsel %vm213, %v7549, 0
    %7562 = vmatpush.bf16.msra.mxu0 0
    %7563 = vmatpush.bf16.msra.mxu0 0
    %7564 = vmatpush.bf16.msra.mxu0 0
    %7565 = vmatpush.bf16.msra.mxu0 0
    %7566 = vmatpush.bf16.msra.mxu0 %v7494
    %7567 = vmatpush.bf16.msra.mxu0 %v7490
    %7568 = vmatpush.bf16.msra.mxu0 %v7486
    %7569 = vmatpush.bf16.msra.mxu0 %v7482
    %7570 = vmatmul.bf16.gmra.mxu0 %v7551
    %v7571 = vpop.f32.mrf.mxu0
    %v7572 = vadd.f32 %v7500, %v7571
    %v7573 = vpop.f32.mrf.mxu0
    %v7574 = vadd.f32 %v7504, %v7573
    %7575 = vmatmul.bf16.gmra.mxu0 %v7554
    %v7576 = vpop.f32.mrf.mxu0
    %v7577 = vadd.f32 %v7508, %v7576
    %v7578 = vpop.f32.mrf.mxu0
    %v7579 = vadd.f32 %v7512, %v7578
    %7580 = vmatmul.bf16.gmra.mxu0 %v7557
    %v7581 = vpop.f32.mrf.mxu0
    %v7582 = vadd.f32 %v7516, %v7581
    %v7583 = vpop.f32.mrf.mxu0
    %v7584 = vadd.f32 %v7520, %v7583
    %7585 = vmatmul.bf16.gmra.mxu0 %v7560
    %v7586 = vpop.f32.mrf.mxu0
    %v7587 = vadd.f32 %v7524, %v7586
    %v7588 = vpop.f32.mrf.mxu0
    %v7589 = vadd.f32 %v7528, %v7588
    %7590 = vdwg.mxu0
    %7591 = vmatpush.bf16.msra.mxu0 0
    %7592 = vmatpush.bf16.msra.mxu0 0
    %7593 = vmatpush.bf16.msra.mxu0 0
    %7594 = vmatpush.bf16.msra.mxu0 0
    %7595 = vmatpush.bf16.msra.mxu0 %v7495
    %7596 = vmatpush.bf16.msra.mxu0 %v7491
    %7597 = vmatpush.bf16.msra.mxu0 %v7487
    %7598 = vmatpush.bf16.msra.mxu0 %v7483
    %7599 = vmatmul.bf16.gmra.mxu0 %v7551
    %v7600 = vpop.f32.mrf.mxu0
    %v7601 = vadd.f32 %v7500, %v7600
    %v7602 = vpop.f32.mrf.mxu0
    %v7603 = vadd.f32 %v7504, %v7602
    %7604 = vmatmul.bf16.gmra.mxu0 %v7554
    %v7605 = vpop.f32.mrf.mxu0
    %v7606 = vadd.f32 %v7508, %v7605
    %v7607 = vpop.f32.mrf.mxu0
    %v7608 = vadd.f32 %v7512, %v7607
    %7609 = vmatmul.bf16.gmra.mxu0 %v7557
    %v7610 = vpop.f32.mrf.mxu0
    %v7611 = vadd.f32 %v7516, %v7610
    %v7612 = vpop.f32.mrf.mxu0
    %v7613 = vadd.f32 %v7520, %v7612
    %7614 = vmatmul.bf16.gmra.mxu0 %v7560
    %v7615 = vpop.f32.mrf.mxu0
    %v7616 = vadd.f32 %v7524, %v7615
    %v7617 = vpop.f32.mrf.mxu0
    %v7618 = vadd.f32 %v7528, %v7617
    %7619 = vdwg.mxu0
    %7620 = vmatpush.bf16.msra.mxu0 0
    %7621 = vmatpush.bf16.msra.mxu0 0
    %7622 = vmatpush.bf16.msra.mxu0 0
    %7623 = vmatpush.bf16.msra.mxu0 0
    %7624 = vmatpush.bf16.msra.mxu0 %v7496
    %7625 = vmatpush.bf16.msra.mxu0 %v7492
    %7626 = vmatpush.bf16.msra.mxu0 %v7488
    %7627 = vmatpush.bf16.msra.mxu0 %v7484
    %7628 = vmatmul.bf16.gmra.mxu0 %v7551
    %v7629 = vpop.f32.mrf.mxu0
    %v7630 = vadd.f32 %v7500, %v7629
    %v7631 = vpop.f32.mrf.mxu0
    %v7632 = vadd.f32 %v7504, %v7631
    %7633 = vmatmul.bf16.gmra.mxu0 %v7554
    %v7634 = vpop.f32.mrf.mxu0
    %v7635 = vadd.f32 %v7508, %v7634
    %v7636 = vpop.f32.mrf.mxu0
    %v7637 = vadd.f32 %v7512, %v7636
    %7638 = vmatmul.bf16.gmra.mxu0 %v7557
    %v7639 = vpop.f32.mrf.mxu0
    %v7640 = vadd.f32 %v7516, %v7639
    %v7641 = vpop.f32.mrf.mxu0
    %v7642 = vadd.f32 %v7520, %v7641
    %7643 = vmatmul.bf16.gmra.mxu0 %v7560
    %v7644 = vpop.f32.mrf.mxu0
    %v7645 = vadd.f32 %v7524, %v7644
    %v7646 = vpop.f32.mrf.mxu0
    %v7647 = vadd.f32 %v7528, %v7646
    %7648 = vdwg.mxu0
    %7649 = vmatpush.bf16.msra.mxu0 0
    %7650 = vmatpush.bf16.msra.mxu0 0
    %7651 = vmatpush.bf16.msra.mxu0 0
    %7652 = vmatpush.bf16.msra.mxu0 0
    %7653 = vmatpush.bf16.msra.mxu0 %v7497
    %7654 = vmatpush.bf16.msra.mxu0 %v7493
    %7655 = vmatpush.bf16.msra.mxu0 %v7489
    %7656 = vmatpush.bf16.msra.mxu0 %v7485
    %7657 = vmatmul.bf16.gmra.mxu0 %v7551
    %v7658 = vpop.f32.mrf.mxu0
    %v7659 = vadd.f32 %v7500, %v7658
    %v7660 = vpop.f32.mrf.mxu0
    %v7661 = vadd.f32 %v7504, %v7660
    %7662 = vmatmul.bf16.gmra.mxu0 %v7554
    %v7663 = vpop.f32.mrf.mxu0
    %v7664 = vadd.f32 %v7508, %v7663
    %v7665 = vpop.f32.mrf.mxu0
    %v7666 = vadd.f32 %v7512, %v7665
    %7667 = vmatmul.bf16.gmra.mxu0 %v7557
    %v7668 = vpop.f32.mrf.mxu0
    %v7669 = vadd.f32 %v7516, %v7668
    %v7670 = vpop.f32.mrf.mxu0
    %v7671 = vadd.f32 %v7520, %v7670
    %7672 = vmatmul.bf16.gmra.mxu0 %v7560
    %v7673 = vpop.f32.mrf.mxu0
    %v7674 = vadd.f32 %v7524, %v7673
    %v7675 = vpop.f32.mrf.mxu0
    %v7676 = vadd.f32 %v7528, %v7675
    %7677 = vdwg.mxu0
    %v7678 = vadd.f32 %v7572, %v7601
    %7679 = vadd.xlane.f32.xlu0 %v7678
    %v7680 = vpop.xlane.xlu0 %7679
    %v7681 = vadd.f32 %v7574, %v7603
    %7682 = vadd.xlane.f32.xlu0 %v7681
    %v7683 = vpop.xlane.xlu0 %7682
    %v7684 = vadd.f32 %v7577, %v7606
    %7685 = vadd.xlane.f32.xlu0 %v7684
    %v7686 = vpop.xlane.xlu0 %7685
    %v7687 = vadd.f32 %v7579, %v7608
    %7688 = vadd.xlane.f32.xlu0 %v7687
    %v7689 = vpop.xlane.xlu0 %7688
    %v7690 = vadd.f32 %v7582, %v7611
    %7691 = vadd.xlane.f32.xlu0 %v7690
    %v7692 = vpop.xlane.xlu0 %7691
    %v7693 = vadd.f32 %v7584, %v7613
    %7694 = vadd.xlane.f32.xlu0 %v7693
    %v7695 = vpop.xlane.xlu0 %7694
    %v7696 = vadd.f32 %v7587, %v7616
    %7697 = vadd.xlane.f32.xlu0 %v7696
    %v7698 = vpop.xlane.xlu0 %7697
    %v7699 = vadd.f32 %v7589, %v7618
    %7700 = vadd.xlane.f32.xlu0 %v7699
    %v7701 = vpop.xlane.xlu0 %7700
    %v7702 = vmul.f32 %v7572, %v7572
    %v7703 = vmul.f32 %v7601, %v7601
    %v7704 = vmul.f32 %v7574, %v7574
    %v7705 = vmul.f32 %v7603, %v7603
    %v7706 = vmul.f32 %v7577, %v7577
    %v7707 = vmul.f32 %v7606, %v7606
    %v7708 = vmul.f32 %v7579, %v7579
    %v7709 = vmul.f32 %v7608, %v7608
    %v7710 = vmul.f32 %v7582, %v7582
    %v7711 = vmul.f32 %v7611, %v7611
    %v7712 = vmul.f32 %v7584, %v7584
    %v7713 = vmul.f32 %v7613, %v7613
    %v7714 = vmul.f32 %v7587, %v7587
    %v7715 = vmul.f32 %v7616, %v7616
    %v7716 = vmul.f32 %v7589, %v7589
    %v7717 = vmul.f32 %v7618, %v7618
    %v7718 = vadd.f32 %v7702, %v7703
    %7719 = vadd.xlane.f32.xlu0 %v7718
    %v7720 = vpop.xlane.xlu0 %7719
    %v7721 = vadd.f32 %v7704, %v7705
    %7722 = vadd.xlane.f32.xlu0 %v7721
    %v7723 = vpop.xlane.xlu0 %7722
    %v7724 = vadd.f32 %v7706, %v7707
    %7725 = vadd.xlane.f32.xlu0 %v7724
    %v7726 = vpop.xlane.xlu0 %7725
    %v7727 = vadd.f32 %v7708, %v7709
    %7728 = vadd.xlane.f32.xlu0 %v7727
    %v7729 = vpop.xlane.xlu0 %7728
    %v7730 = vadd.f32 %v7710, %v7711
    %7731 = vadd.xlane.f32.xlu0 %v7730
    %v7732 = vpop.xlane.xlu0 %7731
    %v7733 = vadd.f32 %v7712, %v7713
    %7734 = vadd.xlane.f32.xlu0 %v7733
    %v7735 = vpop.xlane.xlu0 %7734
    %v7736 = vadd.f32 %v7714, %v7715
    %7737 = vadd.xlane.f32.xlu0 %v7736
    %v7738 = vpop.xlane.xlu0 %7737
    %v7739 = vadd.f32 %v7716, %v7717
    %7740 = vadd.xlane.f32.xlu0 %v7739
    %v7741 = vpop.xlane.xlu0 %7740
    %v7742 = vadd.f32 %v7630, %v7659
    %7743 = vadd.xlane.f32.xlu0 %v7742
    %v7744 = vpop.xlane.xlu0 %7743
    %v7745 = vadd.f32 %v7632, %v7661
    %7746 = vadd.xlane.f32.xlu0 %v7745
    %v7747 = vpop.xlane.xlu0 %7746
    %v7748 = vadd.f32 %v7635, %v7664
    %7749 = vadd.xlane.f32.xlu0 %v7748
    %v7750 = vpop.xlane.xlu0 %7749
    %v7751 = vadd.f32 %v7637, %v7666
    %7752 = vadd.xlane.f32.xlu0 %v7751
    %v7753 = vpop.xlane.xlu0 %7752
    %v7754 = vadd.f32 %v7640, %v7669
    %7755 = vadd.xlane.f32.xlu0 %v7754
    %v7756 = vpop.xlane.xlu0 %7755
    %v7757 = vadd.f32 %v7642, %v7671
    %7758 = vadd.xlane.f32.xlu0 %v7757
    %v7759 = vpop.xlane.xlu0 %7758
    %v7760 = vadd.f32 %v7645, %v7674
    %7761 = vadd.xlane.f32.xlu0 %v7760
    %v7762 = vpop.xlane.xlu0 %7761
    %v7763 = vadd.f32 %v7647, %v7676
    %7764 = vadd.xlane.f32.xlu0 %v7763
    %v7765 = vpop.xlane.xlu0 %7764
    %v7766 = vmul.f32 %v7630, %v7630
    %v7767 = vmul.f32 %v7659, %v7659
    %v7768 = vmul.f32 %v7632, %v7632
    %v7769 = vmul.f32 %v7661, %v7661
    %v7770 = vmul.f32 %v7635, %v7635
    %v7771 = vmul.f32 %v7664, %v7664
    %v7772 = vmul.f32 %v7637, %v7637
    %v7773 = vmul.f32 %v7666, %v7666
    %v7774 = vmul.f32 %v7640, %v7640
    %v7775 = vmul.f32 %v7669, %v7669
    %v7776 = vmul.f32 %v7642, %v7642
    %v7777 = vmul.f32 %v7671, %v7671
    %v7778 = vmul.f32 %v7645, %v7645
    %v7779 = vmul.f32 %v7674, %v7674
    %v7780 = vmul.f32 %v7647, %v7647
    %v7781 = vmul.f32 %v7676, %v7676
    %v7782 = vadd.f32 %v7766, %v7767
    %7783 = vadd.xlane.f32.xlu0 %v7782
    %v7784 = vpop.xlane.xlu0 %7783
    %v7785 = vadd.f32 %v7768, %v7769
    %7786 = vadd.xlane.f32.xlu0 %v7785
    %v7787 = vpop.xlane.xlu0 %7786
    %v7788 = vadd.f32 %v7770, %v7771
    %7789 = vadd.xlane.f32.xlu0 %v7788
    %v7790 = vpop.xlane.xlu0 %7789
    %v7791 = vadd.f32 %v7772, %v7773
    %7792 = vadd.xlane.f32.xlu0 %v7791
    %v7793 = vpop.xlane.xlu0 %7792
    %v7794 = vadd.f32 %v7774, %v7775
    %7795 = vadd.xlane.f32.xlu0 %v7794
    %v7796 = vpop.xlane.xlu0 %7795
    %v7797 = vadd.f32 %v7776, %v7777
    %7798 = vadd.xlane.f32.xlu0 %v7797
    %v7799 = vpop.xlane.xlu0 %7798
    %v7800 = vadd.f32 %v7778, %v7779
    %7801 = vadd.xlane.f32.xlu0 %v7800
    %v7802 = vpop.xlane.xlu0 %7801
    %v7803 = vadd.f32 %v7780, %v7781
    %7804 = vadd.xlane.f32.xlu0 %v7803
    %v7805 = vpop.xlane.xlu0 %7804
    %v7806 = vsel %vm782, %v7680, %v7720
    %v7807 = vsel %vm782, %v7683, %v7723
    %v7808 = vsel %vm782, %v7686, %v7726
    %v7809 = vsel %vm782, %v7689, %v7729
    %v7810 = vsel %vm782, %v7692, %v7732
    %v7811 = vsel %vm782, %v7695, %v7735
    %v7812 = vsel %vm782, %v7698, %v7738
    %v7813 = vsel %vm782, %v7701, %v7741
    %v7814 = vsel %vm791, %v7806, %v7744
    %v7815 = vsel %vm791, %v7807, %v7747
    %v7816 = vsel %vm791, %v7808, %v7750
    %v7817 = vsel %vm791, %v7809, %v7753
    %v7818 = vsel %vm791, %v7810, %v7756
    %v7819 = vsel %vm791, %v7811, %v7759
    %v7820 = vsel %vm791, %v7812, %v7762
    %v7821 = vsel %vm791, %v7813, %v7765
    %v7822 = vsel %vm800, %v7814, %v7784
    %v7823 = vsel %vm800, %v7815, %v7787
    %v7824 = vsel %vm800, %v7816, %v7790
    %v7825 = vsel %vm800, %v7817, %v7793
    %v7826 = vsel %vm800, %v7818, %v7796
    %v7827 = vsel %vm800, %v7819, %v7799
    %v7828 = vsel %vm800, %v7820, %v7802
    %v7829 = vsel %vm800, %v7821, %v7805
    %7830 = vmatpush.msra.mxu0 0.0
    %7831 = vmatpush.msra.mxu0 0.0
    %7832 = vmatpush.msra.mxu0 0.0
    %7833 = vmatpush.msra.mxu0 0.0
    %7834 = vmatpush.msra.mxu0 0.0
    %7835 = vmatpush.msra.mxu0 0.0
    %7836 = vmatpush.msra.mxu0 0.0
    %7837 = vmatpush.msra.mxu0 0.0
    %7838 = vmatpush.msra.mxu0 %v7829
    %7839 = vmatpush.msra.mxu0 %v7828
    %7840 = vmatpush.msra.mxu0 %v7827
    %7841 = vmatpush.msra.mxu0 %v7826
    %7842 = vmatpush.msra.mxu0 %v7825
    %7843 = vmatpush.msra.mxu0 %v7824
    %7844 = vmatpush.msra.mxu0 %v7823
    %7845 = vmatpush.msra.mxu0 %v7822
    %7846 = vmatmul.f32.gmra.mxu0 %v810
    %v7847 = vpop.f32.mrf.mxu0
    %v7848 = vadd.f32 0.0, %v7847
    %7849 = vmatmul.f32.gmra.mxu0 %v813
    %v7850 = vpop.f32.mrf.mxu0
    %v7851 = vadd.f32 0.0, %v7850
    %7852 = vmatmul.f32.gmra.mxu0 %v816
    %v7853 = vpop.f32.mrf.mxu0
    %v7854 = vadd.f32 0.0, %v7853
    %7855 = vmatmul.f32.gmra.mxu0 %v819
    %v7856 = vpop.f32.mrf.mxu0
    %v7857 = vadd.f32 0.0, %v7856
    %7858 = vmatmul.f32.gmra.mxu0 %v822
    %v7859 = vpop.f32.mrf.mxu0
    %v7860 = vadd.f32 0.0, %v7859
    %7861 = vmatmul.f32.gmra.mxu0 %v825
    %v7862 = vpop.f32.mrf.mxu0
    %v7863 = vadd.f32 0.0, %v7862
    %7864 = vmatmul.f32.gmra.mxu0 %v828
    %v7865 = vpop.f32.mrf.mxu0
    %v7866 = vadd.f32 0.0, %v7865
    %7867 = vmatmul.f32.gmra.mxu0 %v831
    %v7868 = vpop.f32.mrf.mxu0
    %v7869 = vadd.f32 0.0, %v7868
    %7870 = vdwg.mxu0
    %v7871 = vmul.f32 %v7848, 0.001953125
    %v7872 = vmul.f32 %v7851, 0.001953125
    %v7873 = vmul.f32 %v7854, 0.001953125
    %v7874 = vmul.f32 %v7857, 0.001953125
    %v7875 = vmul.f32 %v7860, 0.001953125
    %v7876 = vmul.f32 %v7863, 0.001953125
    %v7877 = vmul.f32 %v7866, 0.001953125
    %v7878 = vmul.f32 %v7869, 0.001953125
    %v7879 = vmul.f32 %v7871, %v7871
    %v7880 = vmul.f32 %v7872, %v7872
    %v7881 = vmul.f32 %v7873, %v7873
    %v7882 = vmul.f32 %v7874, %v7874
    %v7883 = vmul.f32 %v7875, %v7875
    %v7884 = vmul.f32 %v7876, %v7876
    %v7885 = vmul.f32 %v7877, %v7877
    %v7886 = vmul.f32 %v7878, %v7878
    %7895 = vrot.lane.b32.xlu0 %v7879, 1
    %v7896 = vpop.permute.xlu0 %7895
    %7897 = vrot.lane.b32.xlu0 %v7880, 1
    %v7898 = vpop.permute.xlu0 %7897
    %7899 = vrot.lane.b32.xlu0 %v7881, 1
    %v7900 = vpop.permute.xlu0 %7899
    %7901 = vrot.lane.b32.xlu0 %v7882, 1
    %v7902 = vpop.permute.xlu0 %7901
    %7903 = vrot.lane.b32.xlu0 %v7883, 1
    %v7904 = vpop.permute.xlu0 %7903
    %7905 = vrot.lane.b32.xlu0 %v7884, 1
    %v7906 = vpop.permute.xlu0 %7905
    %7907 = vrot.lane.b32.xlu0 %v7885, 1
    %v7908 = vpop.permute.xlu0 %7907
    %7909 = vrot.lane.b32.xlu0 %v7886, 1
    %v7910 = vpop.permute.xlu0 %7909
    %v7919 = vsub.f32 %v7871, %v7896
    %v7920 = vsub.f32 %v7872, %v7898
    %v7921 = vsub.f32 %v7873, %v7900
    %v7922 = vsub.f32 %v7874, %v7902
    %v7923 = vsub.f32 %v7875, %v7904
    %v7924 = vsub.f32 %v7876, %v7906
    %v7925 = vsub.f32 %v7877, %v7908
    %v7926 = vsub.f32 %v7878, %v7910
    %7928 = vset.pattern.permute.xlu0 0
    %7929 = vperm.xlu0 %7928, %v7871
    %v7930 = vpop.permute.xlu0 %7929
    %7933 = vset.pattern.permute.xlu0 0
    %7934 = vperm.xlu0 %7933, %v7872
    %v7935 = vpop.permute.xlu0 %7934
    %7938 = vset.pattern.permute.xlu0 0
    %7939 = vperm.xlu0 %7938, %v7873
    %v7940 = vpop.permute.xlu0 %7939
    %7943 = vset.pattern.permute.xlu0 0
    %7944 = vperm.xlu0 %7943, %v7874
    %v7945 = vpop.permute.xlu0 %7944
    %7948 = vset.pattern.permute.xlu0 0
    %7949 = vperm.xlu0 %7948, %v7875
    %v7950 = vpop.permute.xlu0 %7949
    %7953 = vset.pattern.permute.xlu0 0
    %7954 = vperm.xlu0 %7953, %v7876
    %v7955 = vpop.permute.xlu0 %7954
    %7958 = vset.pattern.permute.xlu0 0
    %7959 = vperm.xlu0 %7958, %v7877
    %v7960 = vpop.permute.xlu0 %7959
    %7963 = vset.pattern.permute.xlu0 0
    %7964 = vperm.xlu0 %7963, %v7878
    %v7965 = vpop.permute.xlu0 %7964
    %v7967 = vsub.f32 %v7572, %v7930
    %v7968 = vsub.f32 %v7601, %v7930
    %v7969 = vsub.f32 %v7574, %v7935
    %v7970 = vsub.f32 %v7603, %v7935
    %v7971 = vsub.f32 %v7577, %v7940
    %v7972 = vsub.f32 %v7606, %v7940
    %v7973 = vsub.f32 %v7579, %v7945
    %v7974 = vsub.f32 %v7608, %v7945
    %v7975 = vsub.f32 %v7582, %v7950
    %v7976 = vsub.f32 %v7611, %v7950
    %v7977 = vsub.f32 %v7584, %v7955
    %v7978 = vsub.f32 %v7613, %v7955
    %v7979 = vsub.f32 %v7587, %v7960
    %v7980 = vsub.f32 %v7616, %v7960
    %v7981 = vsub.f32 %v7589, %v7965
    %v7982 = vsub.f32 %v7618, %v7965
    %v7983 = vadd.f32 %v7919, 1e-05
    %v7984 = vadd.f32 %v7920, 1e-05
    %v7985 = vadd.f32 %v7921, 1e-05
    %v7986 = vadd.f32 %v7922, 1e-05
    %v7987 = vadd.f32 %v7923, 1e-05
    %v7988 = vadd.f32 %v7924, 1e-05
    %v7989 = vadd.f32 %v7925, 1e-05
    %v7990 = vadd.f32 %v7926, 1e-05
    %v7991 = vrsqrt.pop %v7983
    %v7992 = vmul.f32 %v7991, %v7983
    %v7993 = vmul.f32 %v7992, %v7991
    %v7994 = vmul.f32 0.5, %v7993
    %v7995 = vsub.f32 1.5, %v7994
    %v7996 = vmul.f32 %v7991, %v7995
    %vm7997 = vweird.f32 %v7983
    %vm7998 = vweird.f32 %v7991
    %vm7999 = vmor %vm7997, %vm7998
    %v8000 = vsel %vm7999, %v7991, %v7996
    %v8001 = vrsqrt.pop %v7984
    %v8002 = vmul.f32 %v8001, %v7984
    %v8003 = vmul.f32 %v8002, %v8001
    %v8004 = vmul.f32 0.5, %v8003
    %v8005 = vsub.f32 1.5, %v8004
    %v8006 = vmul.f32 %v8001, %v8005
    %vm8007 = vweird.f32 %v7984
    %vm8008 = vweird.f32 %v8001
    %vm8009 = vmor %vm8007, %vm8008
    %v8010 = vsel %vm8009, %v8001, %v8006
    %v8011 = vrsqrt.pop %v7985
    %v8012 = vmul.f32 %v8011, %v7985
    %v8013 = vmul.f32 %v8012, %v8011
    %v8014 = vmul.f32 0.5, %v8013
    %v8015 = vsub.f32 1.5, %v8014
    %v8016 = vmul.f32 %v8011, %v8015
    %vm8017 = vweird.f32 %v7985
    %vm8018 = vweird.f32 %v8011
    %vm8019 = vmor %vm8017, %vm8018
    %v8020 = vsel %vm8019, %v8011, %v8016
    %v8021 = vrsqrt.pop %v7986
    %v8022 = vmul.f32 %v8021, %v7986
    %v8023 = vmul.f32 %v8022, %v8021
    %v8024 = vmul.f32 0.5, %v8023
    %v8025 = vsub.f32 1.5, %v8024
    %v8026 = vmul.f32 %v8021, %v8025
    %vm8027 = vweird.f32 %v7986
    %vm8028 = vweird.f32 %v8021
    %vm8029 = vmor %vm8027, %vm8028
    %v8030 = vsel %vm8029, %v8021, %v8026
    %v8031 = vrsqrt.pop %v7987
    %v8032 = vmul.f32 %v8031, %v7987
    %v8033 = vmul.f32 %v8032, %v8031
    %v8034 = vmul.f32 0.5, %v8033
    %v8035 = vsub.f32 1.5, %v8034
    %v8036 = vmul.f32 %v8031, %v8035
    %vm8037 = vweird.f32 %v7987
    %vm8038 = vweird.f32 %v8031
    %vm8039 = vmor %vm8037, %vm8038
    %v8040 = vsel %vm8039, %v8031, %v8036
    %v8041 = vrsqrt.pop %v7988
    %v8042 = vmul.f32 %v8041, %v7988
    %v8043 = vmul.f32 %v8042, %v8041
    %v8044 = vmul.f32 0.5, %v8043
    %v8045 = vsub.f32 1.5, %v8044
    %v8046 = vmul.f32 %v8041, %v8045
    %vm8047 = vweird.f32 %v7988
    %vm8048 = vweird.f32 %v8041
    %vm8049 = vmor %vm8047, %vm8048
    %v8050 = vsel %vm8049, %v8041, %v8046
    %v8051 = vrsqrt.pop %v7989
    %v8052 = vmul.f32 %v8051, %v7989
    %v8053 = vmul.f32 %v8052, %v8051
    %v8054 = vmul.f32 0.5, %v8053
    %v8055 = vsub.f32 1.5, %v8054
    %v8056 = vmul.f32 %v8051, %v8055
    %vm8057 = vweird.f32 %v7989
    %vm8058 = vweird.f32 %v8051
    %vm8059 = vmor %vm8057, %vm8058
    %v8060 = vsel %vm8059, %v8051, %v8056
    %v8061 = vrsqrt.pop %v7990
    %v8062 = vmul.f32 %v8061, %v7990
    %v8063 = vmul.f32 %v8062, %v8061
    %v8064 = vmul.f32 0.5, %v8063
    %v8065 = vsub.f32 1.5, %v8064
    %v8066 = vmul.f32 %v8061, %v8065
    %vm8067 = vweird.f32 %v7990
    %vm8068 = vweird.f32 %v8061
    %vm8069 = vmor %vm8067, %vm8068
    %v8070 = vsel %vm8069, %v8061, %v8066
    %8072 = vset.pattern.permute.xlu0 1
    %8073 = vperm.xlu0 %8072, %v8000
    %v8074 = vpop.permute.xlu0 %8073
    %8077 = vset.pattern.permute.xlu0 1
    %8078 = vperm.xlu0 %8077, %v8010
    %v8079 = vpop.permute.xlu0 %8078
    %8082 = vset.pattern.permute.xlu0 1
    %8083 = vperm.xlu0 %8082, %v8020
    %v8084 = vpop.permute.xlu0 %8083
    %8087 = vset.pattern.permute.xlu0 1
    %8088 = vperm.xlu0 %8087, %v8030
    %v8089 = vpop.permute.xlu0 %8088
    %8092 = vset.pattern.permute.xlu0 1
    %8093 = vperm.xlu0 %8092, %v8040
    %v8094 = vpop.permute.xlu0 %8093
    %8097 = vset.pattern.permute.xlu0 1
    %8098 = vperm.xlu0 %8097, %v8050
    %v8099 = vpop.permute.xlu0 %8098
    %8102 = vset.pattern.permute.xlu0 1
    %8103 = vperm.xlu0 %8102, %v8060
    %v8104 = vpop.permute.xlu0 %8103
    %8107 = vset.pattern.permute.xlu0 1
    %8108 = vperm.xlu0 %8107, %v8070
    %v8109 = vpop.permute.xlu0 %8108
    %v8111 = vmul.f32 %v7967, %v8074
    %v8112 = vmul.f32 %v7968, %v8074
    %v8113 = vmul.f32 %v7969, %v8079
    %v8114 = vmul.f32 %v7970, %v8079
    %v8115 = vmul.f32 %v7971, %v8084
    %v8116 = vmul.f32 %v7972, %v8084
    %v8117 = vmul.f32 %v7973, %v8089
    %v8118 = vmul.f32 %v7974, %v8089
    %v8119 = vmul.f32 %v7975, %v8094
    %v8120 = vmul.f32 %v7976, %v8094
    %v8121 = vmul.f32 %v7977, %v8099
    %v8122 = vmul.f32 %v7978, %v8099
    %v8123 = vmul.f32 %v7979, %v8104
    %v8124 = vmul.f32 %v7980, %v8104
    %v8125 = vmul.f32 %v7981, %v8109
    %v8126 = vmul.f32 %v7982, %v8109
    %8127 = vset.pattern.permute.xlu0 2
    %8128 = vperm.xlu0 %8127, %v7871
    %v8129 = vpop.permute.xlu0 %8128
    %8131 = vset.pattern.permute.xlu0 2
    %8132 = vperm.xlu0 %8131, %v7872
    %v8133 = vpop.permute.xlu0 %8132
    %8135 = vset.pattern.permute.xlu0 2
    %8136 = vperm.xlu0 %8135, %v7873
    %v8137 = vpop.permute.xlu0 %8136
    %8139 = vset.pattern.permute.xlu0 2
    %8140 = vperm.xlu0 %8139, %v7874
    %v8141 = vpop.permute.xlu0 %8140
    %8143 = vset.pattern.permute.xlu0 2
    %8144 = vperm.xlu0 %8143, %v7875
    %v8145 = vpop.permute.xlu0 %8144
    %8147 = vset.pattern.permute.xlu0 2
    %8148 = vperm.xlu0 %8147, %v7876
    %v8149 = vpop.permute.xlu0 %8148
    %8151 = vset.pattern.permute.xlu0 2
    %8152 = vperm.xlu0 %8151, %v7877
    %v8153 = vpop.permute.xlu0 %8152
    %8155 = vset.pattern.permute.xlu0 2
    %8156 = vperm.xlu0 %8155, %v7878
    %v8157 = vpop.permute.xlu0 %8156
    %v8159 = vsub.f32 %v7630, %v8129
    %v8160 = vsub.f32 %v7659, %v8129
    %v8161 = vsub.f32 %v7632, %v8133
    %v8162 = vsub.f32 %v7661, %v8133
    %v8163 = vsub.f32 %v7635, %v8137
    %v8164 = vsub.f32 %v7664, %v8137
    %v8165 = vsub.f32 %v7637, %v8141
    %v8166 = vsub.f32 %v7666, %v8141
    %v8167 = vsub.f32 %v7640, %v8145
    %v8168 = vsub.f32 %v7669, %v8145
    %v8169 = vsub.f32 %v7642, %v8149
    %v8170 = vsub.f32 %v7671, %v8149
    %v8171 = vsub.f32 %v7645, %v8153
    %v8172 = vsub.f32 %v7674, %v8153
    %v8173 = vsub.f32 %v7647, %v8157
    %v8174 = vsub.f32 %v7676, %v8157
    %8175 = vset.pattern.permute.xlu0 3
    %8176 = vperm.xlu0 %8175, %v8000
    %v8177 = vpop.permute.xlu0 %8176
    %8179 = vset.pattern.permute.xlu0 3
    %8180 = vperm.xlu0 %8179, %v8010
    %v8181 = vpop.permute.xlu0 %8180
    %8183 = vset.pattern.permute.xlu0 3
    %8184 = vperm.xlu0 %8183, %v8020
    %v8185 = vpop.permute.xlu0 %8184
    %8187 = vset.pattern.permute.xlu0 3
    %8188 = vperm.xlu0 %8187, %v8030
    %v8189 = vpop.permute.xlu0 %8188
    %8191 = vset.pattern.permute.xlu0 3
    %8192 = vperm.xlu0 %8191, %v8040
    %v8193 = vpop.permute.xlu0 %8192
    %8195 = vset.pattern.permute.xlu0 3
    %8196 = vperm.xlu0 %8195, %v8050
    %v8197 = vpop.permute.xlu0 %8196
    %8199 = vset.pattern.permute.xlu0 3
    %8200 = vperm.xlu0 %8199, %v8060
    %v8201 = vpop.permute.xlu0 %8200
    %8203 = vset.pattern.permute.xlu0 3
    %8204 = vperm.xlu0 %8203, %v8070
    %v8205 = vpop.permute.xlu0 %8204
    %v8207 = vmul.f32 %v8159, %v8177
    %v8208 = vmul.f32 %v8160, %v8177
    %v8209 = vmul.f32 %v8161, %v8181
    %v8210 = vmul.f32 %v8162, %v8181
    %v8211 = vmul.f32 %v8163, %v8185
    %v8212 = vmul.f32 %v8164, %v8185
    %v8213 = vmul.f32 %v8165, %v8189
    %v8214 = vmul.f32 %v8166, %v8189
    %v8215 = vmul.f32 %v8167, %v8193
    %v8216 = vmul.f32 %v8168, %v8193
    %v8217 = vmul.f32 %v8169, %v8197
    %v8218 = vmul.f32 %v8170, %v8197
    %v8219 = vmul.f32 %v8171, %v8201
    %v8220 = vmul.f32 %v8172, %v8201
    %v8221 = vmul.f32 %v8173, %v8205
    %v8222 = vmul.f32 %v8174, %v8205
    %8223 = vset.pattern.permute.xlu0 8
    %8224 = vperm.xlu0 %8223, %v100
    %v8225 = vpop.permute.xlu0 %8224
    %8227 = vset.pattern.permute.xlu0 8
    %8228 = vperm.xlu0 %8227, %v101
    %v8229 = vpop.permute.xlu0 %8228
    %8231 = vset.pattern.permute.xlu0 8
    %8232 = vperm.xlu0 %8231, %v102
    %v8233 = vpop.permute.xlu0 %8232
    %8235 = vset.pattern.permute.xlu0 8
    %8236 = vperm.xlu0 %8235, %v103
    %v8237 = vpop.permute.xlu0 %8236
    %8239 = vset.pattern.permute.xlu0 8
    %8240 = vperm.xlu0 %8239, %v104
    %v8241 = vpop.permute.xlu0 %8240
    %8243 = vset.pattern.permute.xlu0 8
    %8244 = vperm.xlu0 %8243, %v105
    %v8245 = vpop.permute.xlu0 %8244
    %8247 = vset.pattern.permute.xlu0 8
    %8248 = vperm.xlu0 %8247, %v106
    %v8249 = vpop.permute.xlu0 %8248
    %8251 = vset.pattern.permute.xlu0 8
    %8252 = vperm.xlu0 %8251, %v107
    %v8253 = vpop.permute.xlu0 %8252
    %v8255 = vmul.f32 %v8111, %v8225
    %v8256 = vmul.f32 %v8112, %v8225
    %v8257 = vmul.f32 %v8207, %v8225
    %v8258 = vmul.f32 %v8208, %v8225
    %v8259 = vmul.f32 %v8113, %v8229
    %v8260 = vmul.f32 %v8114, %v8229
    %v8261 = vmul.f32 %v8209, %v8229
    %v8262 = vmul.f32 %v8210, %v8229
    %v8263 = vmul.f32 %v8115, %v8233
    %v8264 = vmul.f32 %v8116, %v8233
    %v8265 = vmul.f32 %v8211, %v8233
    %v8266 = vmul.f32 %v8212, %v8233
    %v8267 = vmul.f32 %v8117, %v8237
    %v8268 = vmul.f32 %v8118, %v8237
    %v8269 = vmul.f32 %v8213, %v8237
    %v8270 = vmul.f32 %v8214, %v8237
    %v8271 = vmul.f32 %v8119, %v8241
    %v8272 = vmul.f32 %v8120, %v8241
    %v8273 = vmul.f32 %v8215, %v8241
    %v8274 = vmul.f32 %v8216, %v8241
    %v8275 = vmul.f32 %v8121, %v8245
    %v8276 = vmul.f32 %v8122, %v8245
    %v8277 = vmul.f32 %v8217, %v8245
    %v8278 = vmul.f32 %v8218, %v8245
    %v8279 = vmul.f32 %v8123, %v8249
    %v8280 = vmul.f32 %v8124, %v8249
    %v8281 = vmul.f32 %v8219, %v8249
    %v8282 = vmul.f32 %v8220, %v8249
    %v8283 = vmul.f32 %v8125, %v8253
    %v8284 = vmul.f32 %v8126, %v8253
    %v8285 = vmul.f32 %v8221, %v8253
    %v8286 = vmul.f32 %v8222, %v8253
    %8287 = vset.pattern.permute.xlu0 9
    %8288 = vperm.xlu0 %8287, %v100
    %v8289 = vpop.permute.xlu0 %8288
    %8291 = vset.pattern.permute.xlu0 9
    %8292 = vperm.xlu0 %8291, %v101
    %v8293 = vpop.permute.xlu0 %8292
    %8295 = vset.pattern.permute.xlu0 9
    %8296 = vperm.xlu0 %8295, %v102
    %v8297 = vpop.permute.xlu0 %8296
    %8299 = vset.pattern.permute.xlu0 9
    %8300 = vperm.xlu0 %8299, %v103
    %v8301 = vpop.permute.xlu0 %8300
    %8303 = vset.pattern.permute.xlu0 9
    %8304 = vperm.xlu0 %8303, %v104
    %v8305 = vpop.permute.xlu0 %8304
    %8307 = vset.pattern.permute.xlu0 9
    %8308 = vperm.xlu0 %8307, %v105
    %v8309 = vpop.permute.xlu0 %8308
    %8311 = vset.pattern.permute.xlu0 9
    %8312 = vperm.xlu0 %8311, %v106
    %v8313 = vpop.permute.xlu0 %8312
    %8315 = vset.pattern.permute.xlu0 9
    %8316 = vperm.xlu0 %8315, %v107
    %v8317 = vpop.permute.xlu0 %8316
    %v8319 = vadd.f32 %v8255, %v8289
    %v8320 = vadd.f32 %v8256, %v8289
    %v8321 = vadd.f32 %v8257, %v8289
    %v8322 = vadd.f32 %v8258, %v8289
    %v8323 = vadd.f32 %v8259, %v8293
    %v8324 = vadd.f32 %v8260, %v8293
    %v8325 = vadd.f32 %v8261, %v8293
    %v8326 = vadd.f32 %v8262, %v8293
    %v8327 = vadd.f32 %v8263, %v8297
    %v8328 = vadd.f32 %v8264, %v8297
    %v8329 = vadd.f32 %v8265, %v8297
    %v8330 = vadd.f32 %v8266, %v8297
    %v8331 = vadd.f32 %v8267, %v8301
    %v8332 = vadd.f32 %v8268, %v8301
    %v8333 = vadd.f32 %v8269, %v8301
    %v8334 = vadd.f32 %v8270, %v8301
    %v8335 = vadd.f32 %v8271, %v8305
    %v8336 = vadd.f32 %v8272, %v8305
    %v8337 = vadd.f32 %v8273, %v8305
    %v8338 = vadd.f32 %v8274, %v8305
    %v8339 = vadd.f32 %v8275, %v8309
    %v8340 = vadd.f32 %v8276, %v8309
    %v8341 = vadd.f32 %v8277, %v8309
    %v8342 = vadd.f32 %v8278, %v8309
    %v8343 = vadd.f32 %v8279, %v8313
    %v8344 = vadd.f32 %v8280, %v8313
    %v8345 = vadd.f32 %v8281, %v8313
    %v8346 = vadd.f32 %v8282, %v8313
    %v8347 = vadd.f32 %v8283, %v8317
    %v8348 = vadd.f32 %v8284, %v8317
    %v8349 = vadd.f32 %v8285, %v8317
    %v8350 = vadd.f32 %v8286, %v8317
    %v8351 = vmax.f32 %v8319, 0.0
    %v8352 = vmax.f32 %v8320, 0.0
    %v8353 = vmax.f32 %v8321, 0.0
    %v8354 = vmax.f32 %v8322, 0.0
    %v8355 = vmax.f32 %v8323, 0.0
    %v8356 = vmax.f32 %v8324, 0.0
    %v8357 = vmax.f32 %v8325, 0.0
    %v8358 = vmax.f32 %v8326, 0.0
    %v8359 = vmax.f32 %v8327, 0.0
    %v8360 = vmax.f32 %v8328, 0.0
    %v8361 = vmax.f32 %v8329, 0.0
    %v8362 = vmax.f32 %v8330, 0.0
    %v8363 = vmax.f32 %v8331, 0.0
    %v8364 = vmax.f32 %v8332, 0.0
    %v8365 = vmax.f32 %v8333, 0.0
    %v8366 = vmax.f32 %v8334, 0.0
    %v8367 = vmax.f32 %v8335, 0.0
    %v8368 = vmax.f32 %v8336, 0.0
    %v8369 = vmax.f32 %v8337, 0.0
    %v8370 = vmax.f32 %v8338, 0.0
    %v8371 = vmax.f32 %v8339, 0.0
    %v8372 = vmax.f32 %v8340, 0.0
    %v8373 = vmax.f32 %v8341, 0.0
    %v8374 = vmax.f32 %v8342, 0.0
    %v8375 = vmax.f32 %v8343, 0.0
    %v8376 = vmax.f32 %v8344, 0.0
    %v8377 = vmax.f32 %v8345, 0.0
    %v8378 = vmax.f32 %v8346, 0.0
    %v8379 = vmax.f32 %v8347, 0.0
    %v8380 = vmax.f32 %v8348, 0.0
    %v8381 = vmax.f32 %v8349, 0.0
    %v8382 = vmax.f32 %v8350, 0.0
    %v8383 = vld [vmem:[%s7] sm:$0x3]
    %v8384 = vpack.c.bf16 %v8383, %v8383
    %v8385 = vpack.c.bf16 %v8355, %v8351
    %v8386 = vpack.c.bf16 %v8356, %v8352
    %v8387 = vpack.c.bf16 %v8357, %v8353
    %v8388 = vpack.c.bf16 %v8358, %v8354
    %v8389 = vpack.c.bf16 %v8363, %v8359
    %v8390 = vpack.c.bf16 %v8364, %v8360
    %v8391 = vpack.c.bf16 %v8365, %v8361
    %v8392 = vpack.c.bf16 %v8366, %v8362
    %v8393 = vpack.c.bf16 %v8371, %v8367
    %v8394 = vpack.c.bf16 %v8372, %v8368
    %v8395 = vpack.c.bf16 %v8373, %v8369
    %v8396 = vpack.c.bf16 %v8374, %v8370
    %v8397 = vpack.c.bf16 %v8379, %v8375
    %v8398 = vpack.c.bf16 %v8380, %v8376
    %v8399 = vpack.c.bf16 %v8381, %v8377
    %v8400 = vpack.c.bf16 %v8382, %v8378
    %8402 = vset.pattern.permute.xlu0 64
    %8403 = vperm.xlu0 %8402, %v8383
    %v8404 = vpop.permute.xlu0 %8403
    %v8407 = vsel %vm213, %v8384, 0
    %8409 = vmatpush.bf16.msra.mxu0 0
    %8410 = vmatpush.bf16.msra.mxu0 0
    %8411 = vmatpush.bf16.msra.mxu0 0
    %8412 = vmatpush.bf16.msra.mxu0 0
    %8413 = vmatpush.bf16.msra.mxu0 %v8397
    %8414 = vmatpush.bf16.msra.mxu0 %v8393
    %8415 = vmatpush.bf16.msra.mxu0 %v8389
    %8416 = vmatpush.bf16.msra.mxu0 %v8385
    %8417 = vmatmul.bf16.gmra.mxu0 %v8407
    %v8418 = vpop.f32.mrf.mxu0
    %v8419 = vadd.f32 %v8404, %v8418
    %v8420 = vpop.f32.mrf.mxu0
    %8421 = vdwg.mxu0
    %8422 = vmatpush.bf16.msra.mxu0 0
    %8423 = vmatpush.bf16.msra.mxu0 0
    %8424 = vmatpush.bf16.msra.mxu0 0
    %8425 = vmatpush.bf16.msra.mxu0 0
    %8426 = vmatpush.bf16.msra.mxu0 %v8398
    %8427 = vmatpush.bf16.msra.mxu0 %v8394
    %8428 = vmatpush.bf16.msra.mxu0 %v8390
    %8429 = vmatpush.bf16.msra.mxu0 %v8386
    %8430 = vmatmul.bf16.gmra.mxu0 %v8407
    %v8431 = vpop.f32.mrf.mxu0
    %v8432 = vadd.f32 %v8404, %v8431
    %v8433 = vpop.f32.mrf.mxu0
    %8434 = vdwg.mxu0
    %8435 = vmatpush.bf16.msra.mxu0 0
    %8436 = vmatpush.bf16.msra.mxu0 0
    %8437 = vmatpush.bf16.msra.mxu0 0
    %8438 = vmatpush.bf16.msra.mxu0 0
    %8439 = vmatpush.bf16.msra.mxu0 %v8399
    %8440 = vmatpush.bf16.msra.mxu0 %v8395
    %8441 = vmatpush.bf16.msra.mxu0 %v8391
    %8442 = vmatpush.bf16.msra.mxu0 %v8387
    %8443 = vmatmul.bf16.gmra.mxu0 %v8407
    %v8444 = vpop.f32.mrf.mxu0
    %v8445 = vadd.f32 %v8404, %v8444
    %v8446 = vpop.f32.mrf.mxu0
    %8447 = vdwg.mxu0
    %8448 = vmatpush.bf16.msra.mxu0 0
    %8449 = vmatpush.bf16.msra.mxu0 0
    %8450 = vmatpush.bf16.msra.mxu0 0
    %8451 = vmatpush.bf16.msra.mxu0 0
    %8452 = vmatpush.bf16.msra.mxu0 %v8400
    %8453 = vmatpush.bf16.msra.mxu0 %v8396
    %8454 = vmatpush.bf16.msra.mxu0 %v8392
    %8455 = vmatpush.bf16.msra.mxu0 %v8388
    %8456 = vmatmul.bf16.gmra.mxu0 %v8407
    %v8457 = vpop.f32.mrf.mxu0
    %v8458 = vadd.f32 %v8404, %v8457
    %v8459 = vpop.f32.mrf.mxu0
    %8460 = vdwg.mxu0
    %v8463 = vrot.slane %v8432, 6
    %vm8464 = vcmask 1041408
    %v8465 = vsel %vm8464, %v8419, %v8463
    %8467 = vst [vmem:[#allocation10] sm:$0xf] %v8465
    %v8470 = vrot.slane %v8458, 6
    %v8471 = vsel %vm8464, %v8445, %v8470
    %s8473 = scalar_lea.vmem [#allocation10], 4
    %8474 = vst [vmem:[%s8473] sm:$0xf] %v8471
    // Predicated region
    $region58: #{tpu_custom_call.1} parent=1 // pred_check
      _
    $region59: #{tpu_custom_call.1} parent=1 // pred_check_branch
      %8476 = sbr.rel (0) target = $region61
    $region60: #{tpu_custom_call.1} parent=1 // pred_region
      %8478 = vsyncadd [#allocation4], 0
      %s8479 = sshll.u32 [#allocation10], 4
      %s8480 = int_to_ptr.vmem [resolvable:$true] %s8479
      %s8481 = sshll.u32 %s10, 4
      %s8482 = int_to_ptr.hbm [resolvable:$true] %s8481
      %8487 = dma.vmem_to_hbm [thread:$0]  %s8480, 128, %s8482, [#allocation4], 64, 64, 4
    $region61: #{tpu_custom_call.1} parent=1 // pred_fallthru
      _
    // Predicated region
    $region62: #{tpu_custom_call.1} parent=1 // pred_check
      _
    $region63: #{tpu_custom_call.1} parent=1 // pred_check_branch
      %8489 = sbr.rel (0) target = $region65
    $region64: #{tpu_custom_call.1} parent=1 // pred_region
      %8491 = dma.done [#allocation4], 128
    $region65: #{tpu_custom_call.1} parent=1 // pred_fallthru
      _
    %8492 = vsyncpa [#allocation3], 1
    %8493 = vsyncpa [#allocation6], 1
    %8494 = vsyncpa [#allocation9], 1
    %8495 = vsyncpa [#allocation4], 1

</llo_original>
